<compile_context>
chip_gen: v6e
topology: v6e:2x2x1
jax: 0.10.0
libtpu: 0.0.40
codegen_flags: <defaults>
</compile_context>

<pallas_src>
import jax
import jax.numpy as jnp
from jax import lax
from jax.experimental import pallas as pl
from jax.experimental.pallas import tpu as pltpu

BN_EPS = 1e-5
_INV_SQRT2 = 0.7071067811865476
_INV_1414 = 1.0 / 1.414
_HIGHEST = jax.lax.Precision.HIGHEST


# ------------------------------ GELU helpers ---------------------------------

def _erf_approx(x):
    # Abramowitz & Stegun 7.1.26 rational approximation, |err| <= 1.5e-7.
    a1, a2, a3, a4, a5 = (0.254829592, -0.284496736, 1.421413741,
                          -1.453152027, 1.061405429)
    p = 0.3275911
    sgn = jnp.where(x < 0.0, -1.0, 1.0)
    ax = jnp.abs(x)
    t = 1.0 / (1.0 + p * ax)
    poly = ((((a5 * t + a4) * t + a3) * t + a2) * t + a1) * t
    return sgn * (1.0 - poly * jnp.exp(-ax * ax))


def _gelu_kernel(x):
    # PyTorch nn.GELU() default = exact erf-based GELU.
    return 0.5 * x * (1.0 + _erf_approx(x * _INV_SQRT2))


def _gelu_ref(x):
    return 0.5 * x * (1.0 + lax.erf(x * _INV_SQRT2))


# ------------------------------ fused kernel ---------------------------------

def _make_fused_kernel(n, h, w, c):
    """Build the fused UNetUp kernel for static geometry.

    n: batch; (h, w): input spatial dims (pre-upsample); c: out_channels.
    Slab layouts:
      input  x_slab : (n*h,       w*cin)
      padded act    : (n*(2h+2), (2w+2)*c)  [interior col-blocks first, 2 pad blocks last]
      activations   : (n*2h,      2w*c)     (lane-dense)
    """
    h2, w2 = 2 * h, 2 * w
    hp = h2 + 2                 # padded rows per image
    w2c = w2 * c                # interior slab row width (lane-dense)
    inv_count = 1.0 / float(n * h2 * w2)

    def kernel(x_ref, wa_ref, ctb_ref, wd_ref, cb_ref, gm_ref, bt_ref,
               tmat_ref, tmat_t_ref, o_ref, act_ref, acc_ref, res_ref):
        # ---- zero the padded activation slab (pad rows / pad col-blocks stay 0) ----
        act_ref[...] = jnp.zeros_like(act_ref)

        # ---- stage 0: ConvTranspose2d(k=2, s=2), 2x2 scatter fused in-kernel ----
        x = x_ref[...]
        ctb = ctb_ref[...]
        for a in range(2):                                    # output-row parity
            y_a = jnp.dot(x, wa_ref[a], preferred_element_type=jnp.float32) + ctb
            for ni in range(n):
                for i in range(h):
                    src = ni * h + i
                    dst = ni * hp + 1 + 2 * i + a             # static row index
                    act_ref[dst:dst + 1, 0:w2c] = y_a[src:src + 1, :]

        # residual input of ResidualConvBlock(is_res=True) = ConvT output
        for ni in range(n):
            res_ref[ni * h2:(ni + 1) * h2, :] = \
                act_ref[ni * hp + 1:ni * hp + 1 + h2, 0:w2c]

        tmat = tmat_ref[...]        # (c, w2*c)   per-channel -> lane-dense broadcast
        tmat_t = tmat_t_ref[...]    # (w2*c, c)   lane-dense -> per-channel reduce

        # ---- stages 1..4: Conv3x3(pad=1) + BatchNorm(batch stats) + GELU ----
        for s in range(4):
            for ni in range(n):
                base = ni * hp
                acc_n = (
                    jnp.dot(act_ref[base + 0:base + 0 + h2, :], wd_ref[3 * s + 0],
                            preferred_element_type=jnp.float32)
                    + jnp.dot(act_ref[base + 1:base + 1 + h2, :], wd_ref[3 * s + 1],
                              preferred_element_type=jnp.float32)
                    + jnp.dot(act_ref[base + 2:base + 2 + h2, :], wd_ref[3 * s + 2],
                              preferred_element_type=jnp.float32))
                acc_ref[ni * h2:(ni + 1) * h2, :] = acc_n
            acc = acc_ref[...] + cb_ref[s]                    # + conv bias

            # one-pass BatchNorm2d batch statistics (per channel over N,H,W)
            rsum = jnp.sum(acc, axis=0, keepdims=True)        # (1, w2*c)
            rssq = jnp.sum(acc * acc, axis=0, keepdims=True)  # (1, w2*c)
            sum_c = jnp.dot(rsum, tmat_t, preferred_element_type=jnp.float32)
            ssq_c = jnp.dot(rssq, tmat_t, preferred_element_type=jnp.float32)
            mu_c = sum_c * inv_count
            var_c = ssq_c * inv_count - mu_c * mu_c           # biased variance
            istd_c = lax.rsqrt(var_c + BN_EPS)
            mu_row = jnp.dot(mu_c, tmat, preferred_element_type=jnp.float32)
            istd_row = jnp.dot(istd_c, tmat, preferred_element_type=jnp.float32)

            y = gm_ref[s] * (acc - mu_row) * istd_row + bt_ref[s]
            y = _gelu_kernel(y)

            if s == 1:   # end of ResidualConvBlock(is_res=True): (y + x) / 1.414
                y = (y + res_ref[...]) * _INV_1414

            if s == 3:
                o_ref[...] = y.astype(o_ref.dtype)
            else:        # write back into the padded slab for the next stage
                for ni in range(n):
                    act_ref[ni * hp + 1:ni * hp + 1 + h2, 0:w2c] = \
                        y[ni * h2:(ni + 1) * h2, :]

    return kernel


# ------------------------------ JAX wrapper -----------------------------------

def _vmem_spec():
    return pl.BlockSpec(memory_space=pltpu.MemorySpace.VMEM)


def unet_up_forward(params, x, x_skip):
    """UNetUp forward. x, x_skip: NCHW (PyTorch convention). Returns NCHW."""
    xcat = jnp.concatenate([x, x_skip], axis=1)               # torch.cat(dim=1)
    n, cin, h, w = xcat.shape
    ctw, ctb = params["ct_w"], params["ct_b"]                 # (cin, c, 2, 2), (c,)
    c = ctw.shape[1]
    h2, w2 = 2 * h, 2 * w
    hp = h2 + 2
    w2c = w2 * c
    wpc = (w2 + 2) * c
    f32 = jnp.float32

    # -------- one-time layout / weight preparation (tiny, plain XLA) --------
    # input slab: (n*h, w*cin), column = j*cin + ch
    x_slab = jnp.transpose(xcat, (0, 2, 3, 1)).reshape(n * h, w * cin).astype(f32)

    # ConvTranspose2d as banded matmuls, one per output-row parity a:
    #   wa[a, j*cin + ch, j2*c + f] = ctw[ch, f, a, b]  with j2 = 2*j + b
    jj = jnp.arange(w)[:, None, None]
    bb = jnp.arange(2)[None, :, None]
    j2 = jnp.arange(w2)[None, None, :]
    dsel = (j2 == 2 * jj + bb).astype(f32)                    # (w, 2, w2)
    wa = jnp.einsum("jbz,cfab->ajczf", dsel, ctw.astype(f32),
                    precision=_HIGHEST).reshape(2, w * cin, w2c)
    ctb_row = jnp.tile(ctb.astype(f32), w2).reshape(1, w2c)

    # Conv3x3 as banded matmuls, one per kernel row dy:
    #   wd[dy, p*c + ch, xo*c + f] = wt[f, ch, dy, p - xo]  (0 <= p-xo <= 2)
    # Column blocks of the padded slab are permuted so the W2 interior blocks come
    # first (lane-aligned interior loads/stores) and the 2 pad blocks come last.
    pp = jnp.arange(w2 + 2)[:, None, None]
    xo = jnp.arange(w2)[None, :, None]
    dx = jnp.arange(3)[None, None, :]
    esel = (pp == xo + dx).astype(f32)                        # (w2+2, w2, 3)
    perm = jnp.concatenate([jnp.arange(1, w2 + 1), jnp.array([0, w2 + 1])])

    def banded_conv_weight(wt):                               # wt: (c, c, 3, 3)
        wd = jnp.einsum("pxd,fcyd->ypcxf", esel, wt.astype(f32),
                        precision=_HIGHEST)                   # (3, w2+2, c, w2, c)
        wd = wd[:, perm]                                      # pad blocks last
        return wd.reshape(3, wpc, w2c)

    stages = (params["r1c1"], params["r1c2"], params["r2c1"], params["r2c2"])
    wd_all = jnp.stack([banded_conv_weight(st[0]) for st in stages])
    wd_all = wd_all.reshape(4 * 3, wpc, w2c)                  # flat index 3*s + dy
    cb_rows = jnp.stack([jnp.tile(st[1].astype(f32), w2) for st in stages]).reshape(4, 1, w2c)
    gm_rows = jnp.stack([jnp.tile(st[2].astype(f32), w2) for st in stages]).reshape(4, 1, w2c)
    bt_rows = jnp.stack([jnp.tile(st[3].astype(f32), w2) for st in stages]).reshape(4, 1, w2c)

    # per-channel <-> lane-dense tiling matrices (used on the MXU for BN stats)
    tmat = jnp.tile(jnp.eye(c, dtype=f32), (1, w2))           # (c, w2*c)
    tmat_t = tmat.T                                           # (w2*c, c)

    kernel = _make_fused_kernel(n, h, w, c)
    out_slab = pl.pallas_call(
        kernel,
        out_shape=jax.ShapeDtypeStruct((n * h2, w2c), f32),
        in_specs=[_vmem_spec()] * 9,
        out_specs=_vmem_spec(),
        scratch_shapes=[
            pltpu.VMEM((n * hp, wpc), f32),    # padded activation slab
            pltpu.VMEM((n * h2, w2c), f32),    # conv accumulator
            pltpu.VMEM((n * h2, w2c), f32),    # residual (ConvT output)
        ],
    )(x_slab, wa, ctb_row, wd_all, cb_rows, gm_rows, bt_rows, tmat, tmat_t)

    out = out_slab.reshape(n, h2, w2, c)
    return jnp.transpose(out, (0, 3, 1, 2))                   # NHWC -> NCHW


# --------------------------- pure-JAX reference -------------------------------

def _ref_convt(x, w, b):
    y = jnp.einsum("nhwc,cfab->nhawbf", x, w, precision=_HIGHEST)
    n, h, _, wdim, _, cout = y.shape
    return y.reshape(n, 2 * h, 2 * wdim, cout) + b


def _ref_conv_bn_gelu(x, w, b, gamma, beta, residual=None):
    w_hwio = jnp.transpose(w, (2, 3, 1, 0))
    y = lax.conv_general_dilated(x, w_hwio, (1, 1), "SAME",
                                 dimension_numbers=("NHWC", "HWIO", "NHWC"),
                                 precision=_HIGHEST)
    y = y + b
    mu = jnp.mean(y, axis=(0, 1, 2), keepdims=True)
    var = jnp.mean((y - mu) ** 2, axis=(0, 1, 2), keepdims=True)
    y = gamma * (y - mu) / jnp.sqrt(var + BN_EPS) + beta
    y = _gelu_ref(y)
    if residual is not None:
        y = (y + residual) / 1.414
    return y


def unet_up_reference(params, x, x_skip):
    h = jnp.concatenate([x, x_skip], axis=1)
    h = jnp.transpose(h, (0, 2, 3, 1))
    h = _ref_convt(h, params["ct_w"], params["ct_b"])
    res_in = h
    h1 = _ref_conv_bn_gelu(h, *params["r1c1"])
    h2 = _ref_conv_bn_gelu(h1, *params["r1c2"], residual=res_in)
    h3 = _ref_conv_bn_gelu(h2, *params["r2c1"])
    h4 = _ref_conv_bn_gelu(h3, *params["r2c2"])
    return jnp.transpose(h4, (0, 3, 1, 2))


# ----------------------------------- main --------------------------------------

if __name__ == "__main__":
    key = jax.random.PRNGKey(0)
    keys = jax.random.split(key, 20)

    in_channels, out_channels = 8, 8        # UNetUp(8, 8); x & x_skip carry 4 channels each
    N, H, W = 2, 8, 8                       # output spatial is 2H x 2W = 16 x 16

    def conv_block_params(k0, k1, k2, k3, cin, cout):
        return (0.2 * jax.random.normal(k0, (cout, cin, 3, 3), jnp.float32),   # conv weight
                0.1 * jax.random.normal(k1, (cout,), jnp.float32),             # conv bias
                1.0 + 0.1 * jax.random.normal(k2, (cout,), jnp.float32),       # BN gamma
                0.1 * jax.random.normal(k3, (cout,), jnp.float32))             # BN beta

    params = {
        "ct_w": 0.2 * jax.random.normal(keys[0], (in_channels, out_channels, 2, 2), jnp.float32),
        "ct_b": 0.1 * jax.random.normal(keys[1], (out_channels,), jnp.float32),
        "r1c1": conv_block_params(keys[2], keys[3], keys[4], keys[5], out_channels, out_channels),
        "r1c2": conv_block_params(keys[6], keys[7], keys[8], keys[9], out_channels, out_channels),
        "r2c1": conv_block_params(keys[10], keys[11], keys[12], keys[13], out_channels, out_channels),
        "r2c2": conv_block_params(keys[14], keys[15], keys[16], keys[17], out_channels, out_channels),
    }

    x = jax.random.normal(keys[18], (N, in_channels // 2, H, W), jnp.float32)
    x_skip = jax.random.normal(keys[19], (N, in_channels // 2, H, W), jnp.float32)

    out = jax.jit(unet_up_forward)(params, x, x_skip)
    out = jax.block_until_ready(out)

    ref = unet_up_reference(params, x, x_skip)
    assert out.shape == (N, out_channels, 2 * H, 2 * W), out.shape
    assert jnp.allclose(out, ref, rtol=5e-4, atol=5e-4), float(jnp.max(jnp.abs(out - ref)))

    print("KERNEL_OK")
</pallas_src>

<mosaic_0001>
module attributes {stable_mosaic.version = 11 : i64} {
  func.func @kernel(%arg0: memref<16x64xf32, #tpu.memory_space<vmem>>, %arg1: memref<2x64x128xf32, #tpu.memory_space<vmem>>, %arg2: memref<1x128xf32, #tpu.memory_space<vmem>>, %arg3: memref<12x144x128xf32, #tpu.memory_space<vmem>>, %arg4: memref<4x1x128xf32, #tpu.memory_space<vmem>>, %arg5: memref<4x1x128xf32, #tpu.memory_space<vmem>>, %arg6: memref<4x1x128xf32, #tpu.memory_space<vmem>>, %arg7: memref<8x128xf32, #tpu.memory_space<vmem>>, %arg8: memref<128x8xf32, #tpu.memory_space<vmem>>, %arg9: memref<32x128xf32, #tpu.memory_space<vmem>>, %arg10: memref<36x144xf32, #tpu.memory_space<vmem>>, %arg11: memref<32x128xf32, #tpu.memory_space<vmem>>, %arg12: memref<32x128xf32, #tpu.memory_space<vmem>>) attributes {dimension_semantics = [], scalar_prefetch = 0 : i64, scratch_operands = 3 : i64, tpu.core_type = #tpu.core_type<tc>} {
    %cst = arith.constant 0.000000e+00 : f32
    %0 = vector.broadcast %cst : f32 to vector<36x144xf32>
    %c0 = arith.constant 0 : index
    %c0_0 = arith.constant 0 : index
    %1 = vector.load %arg10[%c0, %c0_0] : memref<36x144xf32, #tpu.memory_space<vmem>>, vector<36x144xf32>
    tpu.vector_store %arg10[%c0, %c0_0], %0 {strides = array<i32>} : memref<36x144xf32, #tpu.memory_space<vmem>>, vector<36x144xf32>,
    %c0_1 = arith.constant 0 : index
    %c0_2 = arith.constant 0 : index
    %2 = vector.load %arg0[%c0_1, %c0_2] : memref<16x64xf32, #tpu.memory_space<vmem>>, vector<16x64xf32>
    %c0_3 = arith.constant 0 : index
    %c0_4 = arith.constant 0 : index
    %3 = vector.load %arg2[%c0_3, %c0_4] : memref<1x128xf32, #tpu.memory_space<vmem>>, vector<1x128xf32>
    %c0_5 = arith.constant 0 : index
    %c0_6 = arith.constant 0 : index
    %c0_7 = arith.constant 0 : index
    %4 = vector.load %arg1[%c0_5, %c0_6, %c0_7] : memref<2x64x128xf32, #tpu.memory_space<vmem>>, vector<1x64x128xf32>
    %5 = vector.shape_cast %4 : vector<1x64x128xf32> to vector<64x128xf32>
    %cst_8 = arith.constant dense<0.000000e+00> : vector<16x128xf32>
    %6 = tpu.matmul %2, %5, %cst_8 {dimension_numbers = #tpu.dot_dimension_numbers<[1], [0], [0], [1], [0, 0, 1, 1], [], []>} : vector<16x64xf32>, vector<64x128xf32>, vector<16x128xf32> -> vector<16x128xf32>
    %7 = vector.broadcast %3 : vector<1x128xf32> to vector<16x128xf32>
    %8 = arith.addf %6, %7 : vector<16x128xf32>
    %9 = vector.extract_strided_slice %8 {offsets = [0, 0], sizes = [1, 128], strides = [1, 1]} : vector<16x128xf32> to vector<1x128xf32>
    %c1 = arith.constant 1 : index
    %c0_9 = arith.constant 0 : index
    %10 = vector.load %arg10[%c1, %c0_9] : memref<36x144xf32, #tpu.memory_space<vmem>>, vector<1x128xf32>
    tpu.vector_store %arg10[%c1, %c0_9], %9 {strides = array<i32>} : memref<36x144xf32, #tpu.memory_space<vmem>>, vector<1x128xf32>,
    %11 = vector.extract_strided_slice %8 {offsets = [1, 0], sizes = [1, 128], strides = [1, 1]} : vector<16x128xf32> to vector<1x128xf32>
    %c3 = arith.constant 3 : index
    %c0_10 = arith.constant 0 : index
    %12 = vector.load %arg10[%c3, %c0_10] : memref<36x144xf32, #tpu.memory_space<vmem>>, vector<1x128xf32>
    tpu.vector_store %arg10[%c3, %c0_10], %11 {strides = array<i32>} : memref<36x144xf32, #tpu.memory_space<vmem>>, vector<1x128xf32>,
    %13 = vector.extract_strided_slice %8 {offsets = [2, 0], sizes = [1, 128], strides = [1, 1]} : vector<16x128xf32> to vector<1x128xf32>
    %c5 = arith.constant 5 : index
    %c0_11 = arith.constant 0 : index
    %14 = vector.load %arg10[%c5, %c0_11] : memref<36x144xf32, #tpu.memory_space<vmem>>, vector<1x128xf32>
    tpu.vector_store %arg10[%c5, %c0_11], %13 {strides = array<i32>} : memref<36x144xf32, #tpu.memory_space<vmem>>, vector<1x128xf32>,
    %15 = vector.extract_strided_slice %8 {offsets = [3, 0], sizes = [1, 128], strides = [1, 1]} : vector<16x128xf32> to vector<1x128xf32>
    %c7 = arith.constant 7 : index
    %c0_12 = arith.constant 0 : index
    %16 = vector.load %arg10[%c7, %c0_12] : memref<36x144xf32, #tpu.memory_space<vmem>>, vector<1x128xf32>
    tpu.vector_store %arg10[%c7, %c0_12], %15 {strides = array<i32>} : memref<36x144xf32, #tpu.memory_space<vmem>>, vector<1x128xf32>,
    %17 = vector.extract_strided_slice %8 {offsets = [4, 0], sizes = [1, 128], strides = [1, 1]} : vector<16x128xf32> to vector<1x128xf32>
    %c9 = arith.constant 9 : index
    %c0_13 = arith.constant 0 : index
    %18 = vector.load %arg10[%c9, %c0_13] : memref<36x144xf32, #tpu.memory_space<vmem>>, vector<1x128xf32>
    tpu.vector_store %arg10[%c9, %c0_13], %17 {strides = array<i32>} : memref<36x144xf32, #tpu.memory_space<vmem>>, vector<1x128xf32>,
    %19 = vector.extract_strided_slice %8 {offsets = [5, 0], sizes = [1, 128], strides = [1, 1]} : vector<16x128xf32> to vector<1x128xf32>
    %c11 = arith.constant 11 : index
    %c0_14 = arith.constant 0 : index
    %20 = vector.load %arg10[%c11, %c0_14] : memref<36x144xf32, #tpu.memory_space<vmem>>, vector<1x128xf32>
    tpu.vector_store %arg10[%c11, %c0_14], %19 {strides = array<i32>} : memref<36x144xf32, #tpu.memory_space<vmem>>, vector<1x128xf32>,
    %21 = vector.extract_strided_slice %8 {offsets = [6, 0], sizes = [1, 128], strides = [1, 1]} : vector<16x128xf32> to vector<1x128xf32>
    %c13 = arith.constant 13 : index
    %c0_15 = arith.constant 0 : index
    %22 = vector.load %arg10[%c13, %c0_15] : memref<36x144xf32, #tpu.memory_space<vmem>>, vector<1x128xf32>
    tpu.vector_store %arg10[%c13, %c0_15], %21 {strides = array<i32>} : memref<36x144xf32, #tpu.memory_space<vmem>>, vector<1x128xf32>,
    %23 = vector.extract_strided_slice %8 {offsets = [7, 0], sizes = [1, 128], strides = [1, 1]} : vector<16x128xf32> to vector<1x128xf32>
    %c15 = arith.constant 15 : index
    %c0_16 = arith.constant 0 : index
    %24 = vector.load %arg10[%c15, %c0_16] : memref<36x144xf32, #tpu.memory_space<vmem>>, vector<1x128xf32>
    tpu.vector_store %arg10[%c15, %c0_16], %23 {strides = array<i32>} : memref<36x144xf32, #tpu.memory_space<vmem>>, vector<1x128xf32>,
    %25 = vector.extract_strided_slice %8 {offsets = [8, 0], sizes = [1, 128], strides = [1, 1]} : vector<16x128xf32> to vector<1x128xf32>
    %c19 = arith.constant 19 : index
    %c0_17 = arith.constant 0 : index
    %26 = vector.load %arg10[%c19, %c0_17] : memref<36x144xf32, #tpu.memory_space<vmem>>, vector<1x128xf32>
    tpu.vector_store %arg10[%c19, %c0_17], %25 {strides = array<i32>} : memref<36x144xf32, #tpu.memory_space<vmem>>, vector<1x128xf32>,
    %27 = vector.extract_strided_slice %8 {offsets = [9, 0], sizes = [1, 128], strides = [1, 1]} : vector<16x128xf32> to vector<1x128xf32>
    %c21 = arith.constant 21 : index
    %c0_18 = arith.constant 0 : index
    %28 = vector.load %arg10[%c21, %c0_18] : memref<36x144xf32, #tpu.memory_space<vmem>>, vector<1x128xf32>
    tpu.vector_store %arg10[%c21, %c0_18], %27 {strides = array<i32>} : memref<36x144xf32, #tpu.memory_space<vmem>>, vector<1x128xf32>,
    %29 = vector.extract_strided_slice %8 {offsets = [10, 0], sizes = [1, 128], strides = [1, 1]} : vector<16x128xf32> to vector<1x128xf32>
    %c23 = arith.constant 23 : index
    %c0_19 = arith.constant 0 : index
    %30 = vector.load %arg10[%c23, %c0_19] : memref<36x144xf32, #tpu.memory_space<vmem>>, vector<1x128xf32>
    tpu.vector_store %arg10[%c23, %c0_19], %29 {strides = array<i32>} : memref<36x144xf32, #tpu.memory_space<vmem>>, vector<1x128xf32>,
    %31 = vector.extract_strided_slice %8 {offsets = [11, 0], sizes = [1, 128], strides = [1, 1]} : vector<16x128xf32> to vector<1x128xf32>
    %c25 = arith.constant 25 : index
    %c0_20 = arith.constant 0 : index
    %32 = vector.load %arg10[%c25, %c0_20] : memref<36x144xf32, #tpu.memory_space<vmem>>, vector<1x128xf32>
    tpu.vector_store %arg10[%c25, %c0_20], %31 {strides = array<i32>} : memref<36x144xf32, #tpu.memory_space<vmem>>, vector<1x128xf32>,
    %33 = vector.extract_strided_slice %8 {offsets = [12, 0], sizes = [1, 128], strides = [1, 1]} : vector<16x128xf32> to vector<1x128xf32>
    %c27 = arith.constant 27 : index
    %c0_21 = arith.constant 0 : index
    %34 = vector.load %arg10[%c27, %c0_21] : memref<36x144xf32, #tpu.memory_space<vmem>>, vector<1x128xf32>
    tpu.vector_store %arg10[%c27, %c0_21], %33 {strides = array<i32>} : memref<36x144xf32, #tpu.memory_space<vmem>>, vector<1x128xf32>,
    %35 = vector.extract_strided_slice %8 {offsets = [13, 0], sizes = [1, 128], strides = [1, 1]} : vector<16x128xf32> to vector<1x128xf32>
    %c29 = arith.constant 29 : index
    %c0_22 = arith.constant 0 : index
    %36 = vector.load %arg10[%c29, %c0_22] : memref<36x144xf32, #tpu.memory_space<vmem>>, vector<1x128xf32>
    tpu.vector_store %arg10[%c29, %c0_22], %35 {strides = array<i32>} : memref<36x144xf32, #tpu.memory_space<vmem>>, vector<1x128xf32>,
    %37 = vector.extract_strided_slice %8 {offsets = [14, 0], sizes = [1, 128], strides = [1, 1]} : vector<16x128xf32> to vector<1x128xf32>
    %c31 = arith.constant 31 : index
    %c0_23 = arith.constant 0 : index
    %38 = vector.load %arg10[%c31, %c0_23] : memref<36x144xf32, #tpu.memory_space<vmem>>, vector<1x128xf32>
    tpu.vector_store %arg10[%c31, %c0_23], %37 {strides = array<i32>} : memref<36x144xf32, #tpu.memory_space<vmem>>, vector<1x128xf32>,
    %39 = vector.extract_strided_slice %8 {offsets = [15, 0], sizes = [1, 128], strides = [1, 1]} : vector<16x128xf32> to vector<1x128xf32>
    %c33 = arith.constant 33 : index
    %c0_24 = arith.constant 0 : index
    %40 = vector.load %arg10[%c33, %c0_24] : memref<36x144xf32, #tpu.memory_space<vmem>>, vector<1x128xf32>
    tpu.vector_store %arg10[%c33, %c0_24], %39 {strides = array<i32>} : memref<36x144xf32, #tpu.memory_space<vmem>>, vector<1x128xf32>,
    %c1_25 = arith.constant 1 : index
    %c0_26 = arith.constant 0 : index
    %c0_27 = arith.constant 0 : index
    %41 = vector.load %arg1[%c1_25, %c0_26, %c0_27] : memref<2x64x128xf32, #tpu.memory_space<vmem>>, vector<1x64x128xf32>
    %42 = vector.shape_cast %41 : vector<1x64x128xf32> to vector<64x128xf32>
    %cst_28 = arith.constant dense<0.000000e+00> : vector<16x128xf32>
    %43 = tpu.matmul %2, %42, %cst_28 {dimension_numbers = #tpu.dot_dimension_numbers<[1], [0], [0], [1], [0, 0, 1, 1], [], []>} : vector<16x64xf32>, vector<64x128xf32>, vector<16x128xf32> -> vector<16x128xf32>
    %44 = vector.broadcast %3 : vector<1x128xf32> to vector<16x128xf32>
    %45 = arith.addf %43, %44 : vector<16x128xf32>
    %46 = vector.extract_strided_slice %45 {offsets = [0, 0], sizes = [1, 128], strides = [1, 1]} : vector<16x128xf32> to vector<1x128xf32>
    %c2 = arith.constant 2 : index
    %c0_29 = arith.constant 0 : index
    %47 = vector.load %arg10[%c2, %c0_29] : memref<36x144xf32, #tpu.memory_space<vmem>>, vector<1x128xf32>
    tpu.vector_store %arg10[%c2, %c0_29], %46 {strides = array<i32>} : memref<36x144xf32, #tpu.memory_space<vmem>>, vector<1x128xf32>,
    %48 = vector.extract_strided_slice %45 {offsets = [1, 0], sizes = [1, 128], strides = [1, 1]} : vector<16x128xf32> to vector<1x128xf32>
    %c4 = arith.constant 4 : index
    %c0_30 = arith.constant 0 : index
    %49 = vector.load %arg10[%c4, %c0_30] : memref<36x144xf32, #tpu.memory_space<vmem>>, vector<1x128xf32>
    tpu.vector_store %arg10[%c4, %c0_30], %48 {strides = array<i32>} : memref<36x144xf32, #tpu.memory_space<vmem>>, vector<1x128xf32>,
    %50 = vector.extract_strided_slice %45 {offsets = [2, 0], sizes = [1, 128], strides = [1, 1]} : vector<16x128xf32> to vector<1x128xf32>
    %c6 = arith.constant 6 : index
    %c0_31 = arith.constant 0 : index
    %51 = vector.load %arg10[%c6, %c0_31] : memref<36x144xf32, #tpu.memory_space<vmem>>, vector<1x128xf32>
    tpu.vector_store %arg10[%c6, %c0_31], %50 {strides = array<i32>} : memref<36x144xf32, #tpu.memory_space<vmem>>, vector<1x128xf32>,
    %52 = vector.extract_strided_slice %45 {offsets = [3, 0], sizes = [1, 128], strides = [1, 1]} : vector<16x128xf32> to vector<1x128xf32>
    %c8 = arith.constant 8 : index
    %c0_32 = arith.constant 0 : index
    %53 = vector.load %arg10[%c8, %c0_32] : memref<36x144xf32, #tpu.memory_space<vmem>>, vector<1x128xf32>
    tpu.vector_store %arg10[%c8, %c0_32], %52 {strides = array<i32>} : memref<36x144xf32, #tpu.memory_space<vmem>>, vector<1x128xf32>,
    %54 = vector.extract_strided_slice %45 {offsets = [4, 0], sizes = [1, 128], strides = [1, 1]} : vector<16x128xf32> to vector<1x128xf32>
    %c10 = arith.constant 10 : index
    %c0_33 = arith.constant 0 : index
    %55 = vector.load %arg10[%c10, %c0_33] : memref<36x144xf32, #tpu.memory_space<vmem>>, vector<1x128xf32>
    tpu.vector_store %arg10[%c10, %c0_33], %54 {strides = array<i32>} : memref<36x144xf32, #tpu.memory_space<vmem>>, vector<1x128xf32>,
    %56 = vector.extract_strided_slice %45 {offsets = [5, 0], sizes = [1, 128], strides = [1, 1]} : vector<16x128xf32> to vector<1x128xf32>
    %c12 = arith.constant 12 : index
    %c0_34 = arith.constant 0 : index
    %57 = vector.load %arg10[%c12, %c0_34] : memref<36x144xf32, #tpu.memory_space<vmem>>, vector<1x128xf32>
    tpu.vector_store %arg10[%c12, %c0_34], %56 {strides = array<i32>} : memref<36x144xf32, #tpu.memory_space<vmem>>, vector<1x128xf32>,
    %58 = vector.extract_strided_slice %45 {offsets = [6, 0], sizes = [1, 128], strides = [1, 1]} : vector<16x128xf32> to vector<1x128xf32>
    %c14 = arith.constant 14 : index
    %c0_35 = arith.constant 0 : index
    %59 = vector.load %arg10[%c14, %c0_35] : memref<36x144xf32, #tpu.memory_space<vmem>>, vector<1x128xf32>
    tpu.vector_store %arg10[%c14, %c0_35], %58 {strides = array<i32>} : memref<36x144xf32, #tpu.memory_space<vmem>>, vector<1x128xf32>,
    %60 = vector.extract_strided_slice %45 {offsets = [7, 0], sizes = [1, 128], strides = [1, 1]} : vector<16x128xf32> to vector<1x128xf32>
    %c16 = arith.constant 16 : index
    %c0_36 = arith.constant 0 : index
    %61 = vector.load %arg10[%c16, %c0_36] : memref<36x144xf32, #tpu.memory_space<vmem>>, vector<1x128xf32>
    tpu.vector_store %arg10[%c16, %c0_36], %60 {strides = array<i32>} : memref<36x144xf32, #tpu.memory_space<vmem>>, vector<1x128xf32>,
    %62 = vector.extract_strided_slice %45 {offsets = [8, 0], sizes = [1, 128], strides = [1, 1]} : vector<16x128xf32> to vector<1x128xf32>
    %c20 = arith.constant 20 : index
    %c0_37 = arith.constant 0 : index
    %63 = vector.load %arg10[%c20, %c0_37] : memref<36x144xf32, #tpu.memory_space<vmem>>, vector<1x128xf32>
    tpu.vector_store %arg10[%c20, %c0_37], %62 {strides = array<i32>} : memref<36x144xf32, #tpu.memory_space<vmem>>, vector<1x128xf32>,
    %64 = vector.extract_strided_slice %45 {offsets = [9, 0], sizes = [1, 128], strides = [1, 1]} : vector<16x128xf32> to vector<1x128xf32>
    %c22 = arith.constant 22 : index
    %c0_38 = arith.constant 0 : index
    %65 = vector.load %arg10[%c22, %c0_38] : memref<36x144xf32, #tpu.memory_space<vmem>>, vector<1x128xf32>
    tpu.vector_store %arg10[%c22, %c0_38], %64 {strides = array<i32>} : memref<36x144xf32, #tpu.memory_space<vmem>>, vector<1x128xf32>,
    %66 = vector.extract_strided_slice %45 {offsets = [10, 0], sizes = [1, 128], strides = [1, 1]} : vector<16x128xf32> to vector<1x128xf32>
    %c24 = arith.constant 24 : index
    %c0_39 = arith.constant 0 : index
    %67 = vector.load %arg10[%c24, %c0_39] : memref<36x144xf32, #tpu.memory_space<vmem>>, vector<1x128xf32>
    tpu.vector_store %arg10[%c24, %c0_39], %66 {strides = array<i32>} : memref<36x144xf32, #tpu.memory_space<vmem>>, vector<1x128xf32>,
    %68 = vector.extract_strided_slice %45 {offsets = [11, 0], sizes = [1, 128], strides = [1, 1]} : vector<16x128xf32> to vector<1x128xf32>
    %c26 = arith.constant 26 : index
    %c0_40 = arith.constant 0 : index
    %69 = vector.load %arg10[%c26, %c0_40] : memref<36x144xf32, #tpu.memory_space<vmem>>, vector<1x128xf32>
    tpu.vector_store %arg10[%c26, %c0_40], %68 {strides = array<i32>} : memref<36x144xf32, #tpu.memory_space<vmem>>, vector<1x128xf32>,
    %70 = vector.extract_strided_slice %45 {offsets = [12, 0], sizes = [1, 128], strides = [1, 1]} : vector<16x128xf32> to vector<1x128xf32>
    %c28 = arith.constant 28 : index
    %c0_41 = arith.constant 0 : index
    %71 = vector.load %arg10[%c28, %c0_41] : memref<36x144xf32, #tpu.memory_space<vmem>>, vector<1x128xf32>
    tpu.vector_store %arg10[%c28, %c0_41], %70 {strides = array<i32>} : memref<36x144xf32, #tpu.memory_space<vmem>>, vector<1x128xf32>,
    %72 = vector.extract_strided_slice %45 {offsets = [13, 0], sizes = [1, 128], strides = [1, 1]} : vector<16x128xf32> to vector<1x128xf32>
    %c30 = arith.constant 30 : index
    %c0_42 = arith.constant 0 : index
    %73 = vector.load %arg10[%c30, %c0_42] : memref<36x144xf32, #tpu.memory_space<vmem>>, vector<1x128xf32>
    tpu.vector_store %arg10[%c30, %c0_42], %72 {strides = array<i32>} : memref<36x144xf32, #tpu.memory_space<vmem>>, vector<1x128xf32>,
    %74 = vector.extract_strided_slice %45 {offsets = [14, 0], sizes = [1, 128], strides = [1, 1]} : vector<16x128xf32> to vector<1x128xf32>
    %c32 = arith.constant 32 : index
    %c0_43 = arith.constant 0 : index
    %75 = vector.load %arg10[%c32, %c0_43] : memref<36x144xf32, #tpu.memory_space<vmem>>, vector<1x128xf32>
    tpu.vector_store %arg10[%c32, %c0_43], %74 {strides = array<i32>} : memref<36x144xf32, #tpu.memory_space<vmem>>, vector<1x128xf32>,
    %76 = vector.extract_strided_slice %45 {offsets = [15, 0], sizes = [1, 128], strides = [1, 1]} : vector<16x128xf32> to vector<1x128xf32>
    %c34 = arith.constant 34 : index
    %c0_44 = arith.constant 0 : index
    %77 = vector.load %arg10[%c34, %c0_44] : memref<36x144xf32, #tpu.memory_space<vmem>>, vector<1x128xf32>
    tpu.vector_store %arg10[%c34, %c0_44], %76 {strides = array<i32>} : memref<36x144xf32, #tpu.memory_space<vmem>>, vector<1x128xf32>,
    %c1_45 = arith.constant 1 : index
    %c0_46 = arith.constant 0 : index
    %78 = vector.load %arg10[%c1_45, %c0_46] : memref<36x144xf32, #tpu.memory_space<vmem>>, vector<16x128xf32>
    %c0_47 = arith.constant 0 : index
    %c0_48 = arith.constant 0 : index
    %79 = vector.load %arg12[%c0_47, %c0_48] : memref<32x128xf32, #tpu.memory_space<vmem>>, vector<16x128xf32>
    tpu.vector_store %arg12[%c0_47, %c0_48], %78 {strides = array<i32>} : memref<32x128xf32, #tpu.memory_space<vmem>>, vector<16x128xf32>,
    %c19_49 = arith.constant 19 : index
    %c0_50 = arith.constant 0 : index
    %80 = vector.load %arg10[%c19_49, %c0_50] : memref<36x144xf32, #tpu.memory_space<vmem>>, vector<16x128xf32>
    %c16_51 = arith.constant 16 : index
    %c0_52 = arith.constant 0 : index
    %81 = vector.load %arg12[%c16_51, %c0_52] : memref<32x128xf32, #tpu.memory_space<vmem>>, vector<16x128xf32>
    tpu.vector_store %arg12[%c16_51, %c0_52], %80 {strides = array<i32>} : memref<32x128xf32, #tpu.memory_space<vmem>>, vector<16x128xf32>,
    %c0_53 = arith.constant 0 : index
    %c0_54 = arith.constant 0 : index
    %82 = vector.load %arg7[%c0_53, %c0_54] : memref<8x128xf32, #tpu.memory_space<vmem>>, vector<8x128xf32>
    %c0_55 = arith.constant 0 : index
    %c0_56 = arith.constant 0 : index
    %83 = vector.load %arg8[%c0_55, %c0_56] : memref<128x8xf32, #tpu.memory_space<vmem>>, vector<128x8xf32>
    %c0_57 = arith.constant 0 : index
    %c0_58 = arith.constant 0 : index
    %84 = vector.load %arg10[%c0_57, %c0_58] : memref<36x144xf32, #tpu.memory_space<vmem>>, vector<16x144xf32>
    %c0_59 = arith.constant 0 : index
    %c0_60 = arith.constant 0 : index
    %c0_61 = arith.constant 0 : index
    %85 = vector.load %arg3[%c0_59, %c0_60, %c0_61] : memref<12x144x128xf32, #tpu.memory_space<vmem>>, vector<1x144x128xf32>
    %86 = vector.shape_cast %85 : vector<1x144x128xf32> to vector<144x128xf32>
    %cst_62 = arith.constant dense<0.000000e+00> : vector<16x128xf32>
    %87 = tpu.matmul %84, %86, %cst_62 {dimension_numbers = #tpu.dot_dimension_numbers<[1], [0], [0], [1], [0, 0, 1, 1], [], []>} : vector<16x144xf32>, vector<144x128xf32>, vector<16x128xf32> -> vector<16x128xf32>
    %c1_63 = arith.constant 1 : index
    %c0_64 = arith.constant 0 : index
    %88 = vector.load %arg10[%c1_63, %c0_64] : memref<36x144xf32, #tpu.memory_space<vmem>>, vector<16x144xf32>
    %c1_65 = arith.constant 1 : index
    %c0_66 = arith.constant 0 : index
    %c0_67 = arith.constant 0 : index
    %89 = vector.load %arg3[%c1_65, %c0_66, %c0_67] : memref<12x144x128xf32, #tpu.memory_space<vmem>>, vector<1x144x128xf32>
    %90 = vector.shape_cast %89 : vector<1x144x128xf32> to vector<144x128xf32>
    %cst_68 = arith.constant dense<0.000000e+00> : vector<16x128xf32>
    %91 = tpu.matmul %88, %90, %cst_68 {dimension_numbers = #tpu.dot_dimension_numbers<[1], [0], [0], [1], [0, 0, 1, 1], [], []>} : vector<16x144xf32>, vector<144x128xf32>, vector<16x128xf32> -> vector<16x128xf32>
    %92 = arith.addf %87, %91 : vector<16x128xf32>
    %c2_69 = arith.constant 2 : index
    %c0_70 = arith.constant 0 : index
    %93 = vector.load %arg10[%c2_69, %c0_70] : memref<36x144xf32, #tpu.memory_space<vmem>>, vector<16x144xf32>
    %c2_71 = arith.constant 2 : index
    %c0_72 = arith.constant 0 : index
    %c0_73 = arith.constant 0 : index
    %94 = vector.load %arg3[%c2_71, %c0_72, %c0_73] : memref<12x144x128xf32, #tpu.memory_space<vmem>>, vector<1x144x128xf32>
    %95 = vector.shape_cast %94 : vector<1x144x128xf32> to vector<144x128xf32>
    %cst_74 = arith.constant dense<0.000000e+00> : vector<16x128xf32>
    %96 = tpu.matmul %93, %95, %cst_74 {dimension_numbers = #tpu.dot_dimension_numbers<[1], [0], [0], [1], [0, 0, 1, 1], [], []>} : vector<16x144xf32>, vector<144x128xf32>, vector<16x128xf32> -> vector<16x128xf32>
    %97 = arith.addf %92, %96 : vector<16x128xf32>
    %c0_75 = arith.constant 0 : index
    %c0_76 = arith.constant 0 : index
    %98 = vector.load %arg11[%c0_75, %c0_76] : memref<32x128xf32, #tpu.memory_space<vmem>>, vector<16x128xf32>
    tpu.vector_store %arg11[%c0_75, %c0_76], %97 {strides = array<i32>} : memref<32x128xf32, #tpu.memory_space<vmem>>, vector<16x128xf32>,
    %c18 = arith.constant 18 : index
    %c0_77 = arith.constant 0 : index
    %99 = vector.load %arg10[%c18, %c0_77] : memref<36x144xf32, #tpu.memory_space<vmem>>, vector<16x144xf32>
    %c0_78 = arith.constant 0 : index
    %c0_79 = arith.constant 0 : index
    %c0_80 = arith.constant 0 : index
    %100 = vector.load %arg3[%c0_78, %c0_79, %c0_80] : memref<12x144x128xf32, #tpu.memory_space<vmem>>, vector<1x144x128xf32>
    %101 = vector.shape_cast %100 : vector<1x144x128xf32> to vector<144x128xf32>
    %cst_81 = arith.constant dense<0.000000e+00> : vector<16x128xf32>
    %102 = tpu.matmul %99, %101, %cst_81 {dimension_numbers = #tpu.dot_dimension_numbers<[1], [0], [0], [1], [0, 0, 1, 1], [], []>} : vector<16x144xf32>, vector<144x128xf32>, vector<16x128xf32> -> vector<16x128xf32>
    %c19_82 = arith.constant 19 : index
    %c0_83 = arith.constant 0 : index
    %103 = vector.load %arg10[%c19_82, %c0_83] : memref<36x144xf32, #tpu.memory_space<vmem>>, vector<16x144xf32>
    %c1_84 = arith.constant 1 : index
    %c0_85 = arith.constant 0 : index
    %c0_86 = arith.constant 0 : index
    %104 = vector.load %arg3[%c1_84, %c0_85, %c0_86] : memref<12x144x128xf32, #tpu.memory_space<vmem>>, vector<1x144x128xf32>
    %105 = vector.shape_cast %104 : vector<1x144x128xf32> to vector<144x128xf32>
    %cst_87 = arith.constant dense<0.000000e+00> : vector<16x128xf32>
    %106 = tpu.matmul %103, %105, %cst_87 {dimension_numbers = #tpu.dot_dimension_numbers<[1], [0], [0], [1], [0, 0, 1, 1], [], []>} : vector<16x144xf32>, vector<144x128xf32>, vector<16x128xf32> -> vector<16x128xf32>
    %107 = arith.addf %102, %106 : vector<16x128xf32>
    %c20_88 = arith.constant 20 : index
    %c0_89 = arith.constant 0 : index
    %108 = vector.load %arg10[%c20_88, %c0_89] : memref<36x144xf32, #tpu.memory_space<vmem>>, vector<16x144xf32>
    %c2_90 = arith.constant 2 : index
    %c0_91 = arith.constant 0 : index
    %c0_92 = arith.constant 0 : index
    %109 = vector.load %arg3[%c2_90, %c0_91, %c0_92] : memref<12x144x128xf32, #tpu.memory_space<vmem>>, vector<1x144x128xf32>
    %110 = vector.shape_cast %109 : vector<1x144x128xf32> to vector<144x128xf32>
    %cst_93 = arith.constant dense<0.000000e+00> : vector<16x128xf32>
    %111 = tpu.matmul %108, %110, %cst_93 {dimension_numbers = #tpu.dot_dimension_numbers<[1], [0], [0], [1], [0, 0, 1, 1], [], []>} : vector<16x144xf32>, vector<144x128xf32>, vector<16x128xf32> -> vector<16x128xf32>
    %112 = arith.addf %107, %111 : vector<16x128xf32>
    %c16_94 = arith.constant 16 : index
    %c0_95 = arith.constant 0 : index
    %113 = vector.load %arg11[%c16_94, %c0_95] : memref<32x128xf32, #tpu.memory_space<vmem>>, vector<16x128xf32>
    tpu.vector_store %arg11[%c16_94, %c0_95], %112 {strides = array<i32>} : memref<32x128xf32, #tpu.memory_space<vmem>>, vector<16x128xf32>,
    %c0_96 = arith.constant 0 : index
    %c0_97 = arith.constant 0 : index
    %114 = vector.load %arg11[%c0_96, %c0_97] : memref<32x128xf32, #tpu.memory_space<vmem>>, vector<32x128xf32>
    %c0_98 = arith.constant 0 : index
    %c0_99 = arith.constant 0 : index
    %c0_100 = arith.constant 0 : index
    %115 = vector.load %arg4[%c0_98, %c0_99, %c0_100] : memref<4x1x128xf32, #tpu.memory_space<vmem>>, vector<1x1x128xf32>
    %116 = vector.shape_cast %115 : vector<1x1x128xf32> to vector<1x128xf32>
    %117 = vector.broadcast %116 : vector<1x128xf32> to vector<32x128xf32>
    %118 = arith.addf %114, %117 : vector<32x128xf32>
    %cst_101 = arith.constant dense<0.000000e+00> : vector<128xf32>
    %119 = vector.multi_reduction <add>, %118, %cst_101 [0] : vector<32x128xf32> to vector<128xf32>
    %120 = vector.shape_cast %119 : vector<128xf32> to vector<1x128xf32>
    %121 = arith.mulf %118, %118 : vector<32x128xf32>
    %cst_102 = arith.constant dense<0.000000e+00> : vector<128xf32>
    %122 = vector.multi_reduction <add>, %121, %cst_102 [0] : vector<32x128xf32> to vector<128xf32>
    %123 = vector.shape_cast %122 : vector<128xf32> to vector<1x128xf32>
    %cst_103 = arith.constant dense<0.000000e+00> : vector<1x8xf32>
    %124 = tpu.matmul %120, %83, %cst_103 {dimension_numbers = #tpu.dot_dimension_numbers<[1], [0], [0], [1], [0, 0, 1, 1], [], []>} : vector<1x128xf32>, vector<128x8xf32>, vector<1x8xf32> -> vector<1x8xf32>
    %cst_104 = arith.constant dense<0.000000e+00> : vector<1x8xf32>
    %125 = tpu.matmul %123, %83, %cst_104 {dimension_numbers = #tpu.dot_dimension_numbers<[1], [0], [0], [1], [0, 0, 1, 1], [], []>} : vector<1x128xf32>, vector<128x8xf32>, vector<1x8xf32> -> vector<1x8xf32>
    %cst_105 = arith.constant 0.001953125 : f32
    %126 = vector.broadcast %cst_105 : f32 to vector<1x8xf32>
    %127 = arith.mulf %124, %126 : vector<1x8xf32>
    %cst_106 = arith.constant 0.001953125 : f32
    %128 = vector.broadcast %cst_106 : f32 to vector<1x8xf32>
    %129 = arith.mulf %125, %128 : vector<1x8xf32>
    %130 = arith.mulf %127, %127 : vector<1x8xf32>
    %131 = arith.subf %129, %130 : vector<1x8xf32>
    %cst_107 = arith.constant 9.99999974E-6 : f32
    %132 = vector.broadcast %cst_107 : f32 to vector<1x8xf32>
    %133 = arith.addf %131, %132 : vector<1x8xf32>
    %134 = math.rsqrt %133 : vector<1x8xf32>
    %cst_108 = arith.constant dense<0.000000e+00> : vector<1x128xf32>
    %135 = tpu.matmul %127, %82, %cst_108 {dimension_numbers = #tpu.dot_dimension_numbers<[1], [0], [0], [1], [0, 0, 1, 1], [], []>} : vector<1x8xf32>, vector<8x128xf32>, vector<1x128xf32> -> vector<1x128xf32>
    %cst_109 = arith.constant dense<0.000000e+00> : vector<1x128xf32>
    %136 = tpu.matmul %134, %82, %cst_109 {dimension_numbers = #tpu.dot_dimension_numbers<[1], [0], [0], [1], [0, 0, 1, 1], [], []>} : vector<1x8xf32>, vector<8x128xf32>, vector<1x128xf32> -> vector<1x128xf32>
    %c0_110 = arith.constant 0 : index
    %c0_111 = arith.constant 0 : index
    %c0_112 = arith.constant 0 : index
    %137 = vector.load %arg5[%c0_110, %c0_111, %c0_112] : memref<4x1x128xf32, #tpu.memory_space<vmem>>, vector<1x1x128xf32>
    %138 = vector.shape_cast %137 : vector<1x1x128xf32> to vector<1x128xf32>
    %139 = vector.broadcast %135 : vector<1x128xf32> to vector<32x128xf32>
    %140 = arith.subf %118, %139 : vector<32x128xf32>
    %141 = vector.broadcast %138 : vector<1x128xf32> to vector<32x128xf32>
    %142 = arith.mulf %141, %140 : vector<32x128xf32>
    %143 = vector.broadcast %136 : vector<1x128xf32> to vector<32x128xf32>
    %144 = arith.mulf %142, %143 : vector<32x128xf32>
    %c0_113 = arith.constant 0 : index
    %c0_114 = arith.constant 0 : index
    %c0_115 = arith.constant 0 : index
    %145 = vector.load %arg6[%c0_113, %c0_114, %c0_115] : memref<4x1x128xf32, #tpu.memory_space<vmem>>, vector<1x1x128xf32>
    %146 = vector.shape_cast %145 : vector<1x1x128xf32> to vector<1x128xf32>
    %147 = vector.broadcast %146 : vector<1x128xf32> to vector<32x128xf32>
    %148 = arith.addf %144, %147 : vector<32x128xf32>
    %cst_116 = arith.constant 5.000000e-01 : f32
    %149 = vector.broadcast %cst_116 : f32 to vector<32x128xf32>
    %150 = arith.mulf %149, %148 : vector<32x128xf32>
    %cst_117 = arith.constant 0.707106769 : f32
    %151 = vector.broadcast %cst_117 : f32 to vector<32x128xf32>
    %152 = arith.mulf %148, %151 : vector<32x128xf32>
    %cst_118 = arith.constant 0.000000e+00 : f32
    %153 = vector.broadcast %cst_118 : f32 to vector<32x128xf32>
    %154 = arith.cmpf olt, %152, %153 : vector<32x128xf32>
    %cst_119 = arith.constant -1.000000e+00 : f32
    %cst_120 = arith.constant 1.000000e+00 : f32
    %155 = vector.broadcast %cst_119 : f32 to vector<32x128xf32>
    %156 = vector.broadcast %cst_120 : f32 to vector<32x128xf32>
    %157 = arith.select %154, %155, %156 : vector<32x128xi1>, vector<32x128xf32>
    %158 = math.absf %152 : vector<32x128xf32>
    %cst_121 = arith.constant 0.327591091 : f32
    %159 = vector.broadcast %cst_121 : f32 to vector<32x128xf32>
    %160 = arith.mulf %159, %158 : vector<32x128xf32>
    %cst_122 = arith.constant 1.000000e+00 : f32
    %161 = vector.broadcast %cst_122 : f32 to vector<32x128xf32>
    %162 = arith.addf %161, %160 : vector<32x128xf32>
    %cst_123 = arith.constant 1.000000e+00 : f32
    %163 = vector.broadcast %cst_123 : f32 to vector<32x128xf32>
    %164 = arith.divf %163, %162 : vector<32x128xf32>
    %cst_124 = arith.constant 1.06140542 : f32
    %165 = vector.broadcast %cst_124 : f32 to vector<32x128xf32>
    %166 = arith.mulf %165, %164 : vector<32x128xf32>
    %cst_125 = arith.constant -1.45315206 : f32
    %167 = vector.broadcast %cst_125 : f32 to vector<32x128xf32>
    %168 = arith.addf %166, %167 : vector<32x128xf32>
    %169 = arith.mulf %168, %164 : vector<32x128xf32>
    %cst_126 = arith.constant 1.42141378 : f32
    %170 = vector.broadcast %cst_126 : f32 to vector<32x128xf32>
    %171 = arith.addf %169, %170 : vector<32x128xf32>
    %172 = arith.mulf %171, %164 : vector<32x128xf32>
    %cst_127 = arith.constant -0.284496725 : f32
    %173 = vector.broadcast %cst_127 : f32 to vector<32x128xf32>
    %174 = arith.addf %172, %173 : vector<32x128xf32>
    %175 = arith.mulf %174, %164 : vector<32x128xf32>
    %cst_128 = arith.constant 0.254829586 : f32
    %176 = vector.broadcast %cst_128 : f32 to vector<32x128xf32>
    %177 = arith.addf %175, %176 : vector<32x128xf32>
    %178 = arith.mulf %177, %164 : vector<32x128xf32>
    %cst_129 = arith.constant 0.000000e+00 : f32
    %179 = vector.broadcast %cst_129 : f32 to vector<32x128xf32>
    %180 = arith.subf %179, %158 : vector<32x128xf32>
    %181 = arith.mulf %180, %158 : vector<32x128xf32>
    %182 = math.exp %181 : vector<32x128xf32>
    %183 = arith.mulf %178, %182 : vector<32x128xf32>
    %cst_130 = arith.constant 1.000000e+00 : f32
    %184 = vector.broadcast %cst_130 : f32 to vector<32x128xf32>
    %185 = arith.subf %184, %183 : vector<32x128xf32>
    %186 = arith.mulf %157, %185 : vector<32x128xf32>
    %cst_131 = arith.constant 1.000000e+00 : f32
    %187 = vector.broadcast %cst_131 : f32 to vector<32x128xf32>
    %188 = arith.addf %187, %186 : vector<32x128xf32>
    %189 = arith.mulf %150, %188 : vector<32x128xf32>
    %190 = vector.extract_strided_slice %189 {offsets = [0, 0], sizes = [16, 128], strides = [1, 1]} : vector<32x128xf32> to vector<16x128xf32>
    %c1_132 = arith.constant 1 : index
    %c0_133 = arith.constant 0 : index
    %191 = vector.load %arg10[%c1_132, %c0_133] : memref<36x144xf32, #tpu.memory_space<vmem>>, vector<16x128xf32>
    tpu.vector_store %arg10[%c1_132, %c0_133], %190 {strides = array<i32>} : memref<36x144xf32, #tpu.memory_space<vmem>>, vector<16x128xf32>,
    %192 = vector.extract_strided_slice %189 {offsets = [16, 0], sizes = [16, 128], strides = [1, 1]} : vector<32x128xf32> to vector<16x128xf32>
    %c19_134 = arith.constant 19 : index
    %c0_135 = arith.constant 0 : index
    %193 = vector.load %arg10[%c19_134, %c0_135] : memref<36x144xf32, #tpu.memory_space<vmem>>, vector<16x128xf32>
    tpu.vector_store %arg10[%c19_134, %c0_135], %192 {strides = array<i32>} : memref<36x144xf32, #tpu.memory_space<vmem>>, vector<16x128xf32>,
    %c0_136 = arith.constant 0 : index
    %c0_137 = arith.constant 0 : index
    %194 = vector.load %arg10[%c0_136, %c0_137] : memref<36x144xf32, #tpu.memory_space<vmem>>, vector<16x144xf32>
    %c3_138 = arith.constant 3 : index
    %c0_139 = arith.constant 0 : index
    %c0_140 = arith.constant 0 : index
    %195 = vector.load %arg3[%c3_138, %c0_139, %c0_140] : memref<12x144x128xf32, #tpu.memory_space<vmem>>, vector<1x144x128xf32>
    %196 = vector.shape_cast %195 : vector<1x144x128xf32> to vector<144x128xf32>
    %cst_141 = arith.constant dense<0.000000e+00> : vector<16x128xf32>
    %197 = tpu.matmul %194, %196, %cst_141 {dimension_numbers = #tpu.dot_dimension_numbers<[1], [0], [0], [1], [0, 0, 1, 1], [], []>} : vector<16x144xf32>, vector<144x128xf32>, vector<16x128xf32> -> vector<16x128xf32>
    %c1_142 = arith.constant 1 : index
    %c0_143 = arith.constant 0 : index
    %198 = vector.load %arg10[%c1_142, %c0_143] : memref<36x144xf32, #tpu.memory_space<vmem>>, vector<16x144xf32>
    %c4_144 = arith.constant 4 : index
    %c0_145 = arith.constant 0 : index
    %c0_146 = arith.constant 0 : index
    %199 = vector.load %arg3[%c4_144, %c0_145, %c0_146] : memref<12x144x128xf32, #tpu.memory_space<vmem>>, vector<1x144x128xf32>
    %200 = vector.shape_cast %199 : vector<1x144x128xf32> to vector<144x128xf32>
    %cst_147 = arith.constant dense<0.000000e+00> : vector<16x128xf32>
    %201 = tpu.matmul %198, %200, %cst_147 {dimension_numbers = #tpu.dot_dimension_numbers<[1], [0], [0], [1], [0, 0, 1, 1], [], []>} : vector<16x144xf32>, vector<144x128xf32>, vector<16x128xf32> -> vector<16x128xf32>
    %202 = arith.addf %197, %201 : vector<16x128xf32>
    %c2_148 = arith.constant 2 : index
    %c0_149 = arith.constant 0 : index
    %203 = vector.load %arg10[%c2_148, %c0_149] : memref<36x144xf32, #tpu.memory_space<vmem>>, vector<16x144xf32>
    %c5_150 = arith.constant 5 : index
    %c0_151 = arith.constant 0 : index
    %c0_152 = arith.constant 0 : index
    %204 = vector.load %arg3[%c5_150, %c0_151, %c0_152] : memref<12x144x128xf32, #tpu.memory_space<vmem>>, vector<1x144x128xf32>
    %205 = vector.shape_cast %204 : vector<1x144x128xf32> to vector<144x128xf32>
    %cst_153 = arith.constant dense<0.000000e+00> : vector<16x128xf32>
    %206 = tpu.matmul %203, %205, %cst_153 {dimension_numbers = #tpu.dot_dimension_numbers<[1], [0], [0], [1], [0, 0, 1, 1], [], []>} : vector<16x144xf32>, vector<144x128xf32>, vector<16x128xf32> -> vector<16x128xf32>
    %207 = arith.addf %202, %206 : vector<16x128xf32>
    %c0_154 = arith.constant 0 : index
    %c0_155 = arith.constant 0 : index
    %208 = vector.load %arg11[%c0_154, %c0_155] : memref<32x128xf32, #tpu.memory_space<vmem>>, vector<16x128xf32>
    tpu.vector_store %arg11[%c0_154, %c0_155], %207 {strides = array<i32>} : memref<32x128xf32, #tpu.memory_space<vmem>>, vector<16x128xf32>,
    %c18_156 = arith.constant 18 : index
    %c0_157 = arith.constant 0 : index
    %209 = vector.load %arg10[%c18_156, %c0_157] : memref<36x144xf32, #tpu.memory_space<vmem>>, vector<16x144xf32>
    %c3_158 = arith.constant 3 : index
    %c0_159 = arith.constant 0 : index
    %c0_160 = arith.constant 0 : index
    %210 = vector.load %arg3[%c3_158, %c0_159, %c0_160] : memref<12x144x128xf32, #tpu.memory_space<vmem>>, vector<1x144x128xf32>
    %211 = vector.shape_cast %210 : vector<1x144x128xf32> to vector<144x128xf32>
    %cst_161 = arith.constant dense<0.000000e+00> : vector<16x128xf32>
    %212 = tpu.matmul %209, %211, %cst_161 {dimension_numbers = #tpu.dot_dimension_numbers<[1], [0], [0], [1], [0, 0, 1, 1], [], []>} : vector<16x144xf32>, vector<144x128xf32>, vector<16x128xf32> -> vector<16x128xf32>
    %c19_162 = arith.constant 19 : index
    %c0_163 = arith.constant 0 : index
    %213 = vector.load %arg10[%c19_162, %c0_163] : memref<36x144xf32, #tpu.memory_space<vmem>>, vector<16x144xf32>
    %c4_164 = arith.constant 4 : index
    %c0_165 = arith.constant 0 : index
    %c0_166 = arith.constant 0 : index
    %214 = vector.load %arg3[%c4_164, %c0_165, %c0_166] : memref<12x144x128xf32, #tpu.memory_space<vmem>>, vector<1x144x128xf32>
    %215 = vector.shape_cast %214 : vector<1x144x128xf32> to vector<144x128xf32>
    %cst_167 = arith.constant dense<0.000000e+00> : vector<16x128xf32>
    %216 = tpu.matmul %213, %215, %cst_167 {dimension_numbers = #tpu.dot_dimension_numbers<[1], [0], [0], [1], [0, 0, 1, 1], [], []>} : vector<16x144xf32>, vector<144x128xf32>, vector<16x128xf32> -> vector<16x128xf32>
    %217 = arith.addf %212, %216 : vector<16x128xf32>
    %c20_168 = arith.constant 20 : index
    %c0_169 = arith.constant 0 : index
    %218 = vector.load %arg10[%c20_168, %c0_169] : memref<36x144xf32, #tpu.memory_space<vmem>>, vector<16x144xf32>
    %c5_170 = arith.constant 5 : index
    %c0_171 = arith.constant 0 : index
    %c0_172 = arith.constant 0 : index
    %219 = vector.load %arg3[%c5_170, %c0_171, %c0_172] : memref<12x144x128xf32, #tpu.memory_space<vmem>>, vector<1x144x128xf32>
    %220 = vector.shape_cast %219 : vector<1x144x128xf32> to vector<144x128xf32>
    %cst_173 = arith.constant dense<0.000000e+00> : vector<16x128xf32>
    %221 = tpu.matmul %218, %220, %cst_173 {dimension_numbers = #tpu.dot_dimension_numbers<[1], [0], [0], [1], [0, 0, 1, 1], [], []>} : vector<16x144xf32>, vector<144x128xf32>, vector<16x128xf32> -> vector<16x128xf32>
    %222 = arith.addf %217, %221 : vector<16x128xf32>
    %c16_174 = arith.constant 16 : index
    %c0_175 = arith.constant 0 : index
    %223 = vector.load %arg11[%c16_174, %c0_175] : memref<32x128xf32, #tpu.memory_space<vmem>>, vector<16x128xf32>
    tpu.vector_store %arg11[%c16_174, %c0_175], %222 {strides = array<i32>} : memref<32x128xf32, #tpu.memory_space<vmem>>, vector<16x128xf32>,
    %c0_176 = arith.constant 0 : index
    %c0_177 = arith.constant 0 : index
    %224 = vector.load %arg11[%c0_176, %c0_177] : memref<32x128xf32, #tpu.memory_space<vmem>>, vector<32x128xf32>
    %c1_178 = arith.constant 1 : index
    %c0_179 = arith.constant 0 : index
    %c0_180 = arith.constant 0 : index
    %225 = vector.load %arg4[%c1_178, %c0_179, %c0_180] : memref<4x1x128xf32, #tpu.memory_space<vmem>>, vector<1x1x128xf32>
    %226 = vector.shape_cast %225 : vector<1x1x128xf32> to vector<1x128xf32>
    %227 = vector.broadcast %226 : vector<1x128xf32> to vector<32x128xf32>
    %228 = arith.addf %224, %227 : vector<32x128xf32>
    %cst_181 = arith.constant dense<0.000000e+00> : vector<128xf32>
    %229 = vector.multi_reduction <add>, %228, %cst_181 [0] : vector<32x128xf32> to vector<128xf32>
    %230 = vector.shape_cast %229 : vector<128xf32> to vector<1x128xf32>
    %231 = arith.mulf %228, %228 : vector<32x128xf32>
    %cst_182 = arith.constant dense<0.000000e+00> : vector<128xf32>
    %232 = vector.multi_reduction <add>, %231, %cst_182 [0] : vector<32x128xf32> to vector<128xf32>
    %233 = vector.shape_cast %232 : vector<128xf32> to vector<1x128xf32>
    %cst_183 = arith.constant dense<0.000000e+00> : vector<1x8xf32>
    %234 = tpu.matmul %230, %83, %cst_183 {dimension_numbers = #tpu.dot_dimension_numbers<[1], [0], [0], [1], [0, 0, 1, 1], [], []>} : vector<1x128xf32>, vector<128x8xf32>, vector<1x8xf32> -> vector<1x8xf32>
    %cst_184 = arith.constant dense<0.000000e+00> : vector<1x8xf32>
    %235 = tpu.matmul %233, %83, %cst_184 {dimension_numbers = #tpu.dot_dimension_numbers<[1], [0], [0], [1], [0, 0, 1, 1], [], []>} : vector<1x128xf32>, vector<128x8xf32>, vector<1x8xf32> -> vector<1x8xf32>
    %cst_185 = arith.constant 0.001953125 : f32
    %236 = vector.broadcast %cst_185 : f32 to vector<1x8xf32>
    %237 = arith.mulf %234, %236 : vector<1x8xf32>
    %cst_186 = arith.constant 0.001953125 : f32
    %238 = vector.broadcast %cst_186 : f32 to vector<1x8xf32>
    %239 = arith.mulf %235, %238 : vector<1x8xf32>
    %240 = arith.mulf %237, %237 : vector<1x8xf32>
    %241 = arith.subf %239, %240 : vector<1x8xf32>
    %cst_187 = arith.constant 9.99999974E-6 : f32
    %242 = vector.broadcast %cst_187 : f32 to vector<1x8xf32>
    %243 = arith.addf %241, %242 : vector<1x8xf32>
    %244 = math.rsqrt %243 : vector<1x8xf32>
    %cst_188 = arith.constant dense<0.000000e+00> : vector<1x128xf32>
    %245 = tpu.matmul %237, %82, %cst_188 {dimension_numbers = #tpu.dot_dimension_numbers<[1], [0], [0], [1], [0, 0, 1, 1], [], []>} : vector<1x8xf32>, vector<8x128xf32>, vector<1x128xf32> -> vector<1x128xf32>
    %cst_189 = arith.constant dense<0.000000e+00> : vector<1x128xf32>
    %246 = tpu.matmul %244, %82, %cst_189 {dimension_numbers = #tpu.dot_dimension_numbers<[1], [0], [0], [1], [0, 0, 1, 1], [], []>} : vector<1x8xf32>, vector<8x128xf32>, vector<1x128xf32> -> vector<1x128xf32>
    %c1_190 = arith.constant 1 : index
    %c0_191 = arith.constant 0 : index
    %c0_192 = arith.constant 0 : index
    %247 = vector.load %arg5[%c1_190, %c0_191, %c0_192] : memref<4x1x128xf32, #tpu.memory_space<vmem>>, vector<1x1x128xf32>
    %248 = vector.shape_cast %247 : vector<1x1x128xf32> to vector<1x128xf32>
    %249 = vector.broadcast %245 : vector<1x128xf32> to vector<32x128xf32>
    %250 = arith.subf %228, %249 : vector<32x128xf32>
    %251 = vector.broadcast %248 : vector<1x128xf32> to vector<32x128xf32>
    %252 = arith.mulf %251, %250 : vector<32x128xf32>
    %253 = vector.broadcast %246 : vector<1x128xf32> to vector<32x128xf32>
    %254 = arith.mulf %252, %253 : vector<32x128xf32>
    %c1_193 = arith.constant 1 : index
    %c0_194 = arith.constant 0 : index
    %c0_195 = arith.constant 0 : index
    %255 = vector.load %arg6[%c1_193, %c0_194, %c0_195] : memref<4x1x128xf32, #tpu.memory_space<vmem>>, vector<1x1x128xf32>
    %256 = vector.shape_cast %255 : vector<1x1x128xf32> to vector<1x128xf32>
    %257 = vector.broadcast %256 : vector<1x128xf32> to vector<32x128xf32>
    %258 = arith.addf %254, %257 : vector<32x128xf32>
    %cst_196 = arith.constant 5.000000e-01 : f32
    %259 = vector.broadcast %cst_196 : f32 to vector<32x128xf32>
    %260 = arith.mulf %259, %258 : vector<32x128xf32>
    %cst_197 = arith.constant 0.707106769 : f32
    %261 = vector.broadcast %cst_197 : f32 to vector<32x128xf32>
    %262 = arith.mulf %258, %261 : vector<32x128xf32>
    %cst_198 = arith.constant 0.000000e+00 : f32
    %263 = vector.broadcast %cst_198 : f32 to vector<32x128xf32>
    %264 = arith.cmpf olt, %262, %263 : vector<32x128xf32>
    %cst_199 = arith.constant -1.000000e+00 : f32
    %cst_200 = arith.constant 1.000000e+00 : f32
    %265 = vector.broadcast %cst_199 : f32 to vector<32x128xf32>
    %266 = vector.broadcast %cst_200 : f32 to vector<32x128xf32>
    %267 = arith.select %264, %265, %266 : vector<32x128xi1>, vector<32x128xf32>
    %268 = math.absf %262 : vector<32x128xf32>
    %cst_201 = arith.constant 0.327591091 : f32
    %269 = vector.broadcast %cst_201 : f32 to vector<32x128xf32>
    %270 = arith.mulf %269, %268 : vector<32x128xf32>
    %cst_202 = arith.constant 1.000000e+00 : f32
    %271 = vector.broadcast %cst_202 : f32 to vector<32x128xf32>
    %272 = arith.addf %271, %270 : vector<32x128xf32>
    %cst_203 = arith.constant 1.000000e+00 : f32
    %273 = vector.broadcast %cst_203 : f32 to vector<32x128xf32>
    %274 = arith.divf %273, %272 : vector<32x128xf32>
    %cst_204 = arith.constant 1.06140542 : f32
    %275 = vector.broadcast %cst_204 : f32 to vector<32x128xf32>
    %276 = arith.mulf %275, %274 : vector<32x128xf32>
    %cst_205 = arith.constant -1.45315206 : f32
    %277 = vector.broadcast %cst_205 : f32 to vector<32x128xf32>
    %278 = arith.addf %276, %277 : vector<32x128xf32>
    %279 = arith.mulf %278, %274 : vector<32x128xf32>
    %cst_206 = arith.constant 1.42141378 : f32
    %280 = vector.broadcast %cst_206 : f32 to vector<32x128xf32>
    %281 = arith.addf %279, %280 : vector<32x128xf32>
    %282 = arith.mulf %281, %274 : vector<32x128xf32>
    %cst_207 = arith.constant -0.284496725 : f32
    %283 = vector.broadcast %cst_207 : f32 to vector<32x128xf32>
    %284 = arith.addf %282, %283 : vector<32x128xf32>
    %285 = arith.mulf %284, %274 : vector<32x128xf32>
    %cst_208 = arith.constant 0.254829586 : f32
    %286 = vector.broadcast %cst_208 : f32 to vector<32x128xf32>
    %287 = arith.addf %285, %286 : vector<32x128xf32>
    %288 = arith.mulf %287, %274 : vector<32x128xf32>
    %cst_209 = arith.constant 0.000000e+00 : f32
    %289 = vector.broadcast %cst_209 : f32 to vector<32x128xf32>
    %290 = arith.subf %289, %268 : vector<32x128xf32>
    %291 = arith.mulf %290, %268 : vector<32x128xf32>
    %292 = math.exp %291 : vector<32x128xf32>
    %293 = arith.mulf %288, %292 : vector<32x128xf32>
    %cst_210 = arith.constant 1.000000e+00 : f32
    %294 = vector.broadcast %cst_210 : f32 to vector<32x128xf32>
    %295 = arith.subf %294, %293 : vector<32x128xf32>
    %296 = arith.mulf %267, %295 : vector<32x128xf32>
    %cst_211 = arith.constant 1.000000e+00 : f32
    %297 = vector.broadcast %cst_211 : f32 to vector<32x128xf32>
    %298 = arith.addf %297, %296 : vector<32x128xf32>
    %299 = arith.mulf %260, %298 : vector<32x128xf32>
    %c0_212 = arith.constant 0 : index
    %c0_213 = arith.constant 0 : index
    %300 = vector.load %arg12[%c0_212, %c0_213] : memref<32x128xf32, #tpu.memory_space<vmem>>, vector<32x128xf32>
    %301 = arith.addf %299, %300 : vector<32x128xf32>
    %cst_214 = arith.constant 0.70721358 : f32
    %302 = vector.broadcast %cst_214 : f32 to vector<32x128xf32>
    %303 = arith.mulf %301, %302 : vector<32x128xf32>
    %304 = vector.extract_strided_slice %303 {offsets = [0, 0], sizes = [16, 128], strides = [1, 1]} : vector<32x128xf32> to vector<16x128xf32>
    %c1_215 = arith.constant 1 : index
    %c0_216 = arith.constant 0 : index
    %305 = vector.load %arg10[%c1_215, %c0_216] : memref<36x144xf32, #tpu.memory_space<vmem>>, vector<16x128xf32>
    tpu.vector_store %arg10[%c1_215, %c0_216], %304 {strides = array<i32>} : memref<36x144xf32, #tpu.memory_space<vmem>>, vector<16x128xf32>,
    %306 = vector.extract_strided_slice %303 {offsets = [16, 0], sizes = [16, 128], strides = [1, 1]} : vector<32x128xf32> to vector<16x128xf32>
    %c19_217 = arith.constant 19 : index
    %c0_218 = arith.constant 0 : index
    %307 = vector.load %arg10[%c19_217, %c0_218] : memref<36x144xf32, #tpu.memory_space<vmem>>, vector<16x128xf32>
    tpu.vector_store %arg10[%c19_217, %c0_218], %306 {strides = array<i32>} : memref<36x144xf32, #tpu.memory_space<vmem>>, vector<16x128xf32>,
    %c0_219 = arith.constant 0 : index
    %c0_220 = arith.constant 0 : index
    %308 = vector.load %arg10[%c0_219, %c0_220] : memref<36x144xf32, #tpu.memory_space<vmem>>, vector<16x144xf32>
    %c6_221 = arith.constant 6 : index
    %c0_222 = arith.constant 0 : index
    %c0_223 = arith.constant 0 : index
    %309 = vector.load %arg3[%c6_221, %c0_222, %c0_223] : memref<12x144x128xf32, #tpu.memory_space<vmem>>, vector<1x144x128xf32>
    %310 = vector.shape_cast %309 : vector<1x144x128xf32> to vector<144x128xf32>
    %cst_224 = arith.constant dense<0.000000e+00> : vector<16x128xf32>
    %311 = tpu.matmul %308, %310, %cst_224 {dimension_numbers = #tpu.dot_dimension_numbers<[1], [0], [0], [1], [0, 0, 1, 1], [], []>} : vector<16x144xf32>, vector<144x128xf32>, vector<16x128xf32> -> vector<16x128xf32>
    %c1_225 = arith.constant 1 : index
    %c0_226 = arith.constant 0 : index
    %312 = vector.load %arg10[%c1_225, %c0_226] : memref<36x144xf32, #tpu.memory_space<vmem>>, vector<16x144xf32>
    %c7_227 = arith.constant 7 : index
    %c0_228 = arith.constant 0 : index
    %c0_229 = arith.constant 0 : index
    %313 = vector.load %arg3[%c7_227, %c0_228, %c0_229] : memref<12x144x128xf32, #tpu.memory_space<vmem>>, vector<1x144x128xf32>
    %314 = vector.shape_cast %313 : vector<1x144x128xf32> to vector<144x128xf32>
    %cst_230 = arith.constant dense<0.000000e+00> : vector<16x128xf32>
    %315 = tpu.matmul %312, %314, %cst_230 {dimension_numbers = #tpu.dot_dimension_numbers<[1], [0], [0], [1], [0, 0, 1, 1], [], []>} : vector<16x144xf32>, vector<144x128xf32>, vector<16x128xf32> -> vector<16x128xf32>
    %316 = arith.addf %311, %315 : vector<16x128xf32>
    %c2_231 = arith.constant 2 : index
    %c0_232 = arith.constant 0 : index
    %317 = vector.load %arg10[%c2_231, %c0_232] : memref<36x144xf32, #tpu.memory_space<vmem>>, vector<16x144xf32>
    %c8_233 = arith.constant 8 : index
    %c0_234 = arith.constant 0 : index
    %c0_235 = arith.constant 0 : index
    %318 = vector.load %arg3[%c8_233, %c0_234, %c0_235] : memref<12x144x128xf32, #tpu.memory_space<vmem>>, vector<1x144x128xf32>
    %319 = vector.shape_cast %318 : vector<1x144x128xf32> to vector<144x128xf32>
    %cst_236 = arith.constant dense<0.000000e+00> : vector<16x128xf32>
    %320 = tpu.matmul %317, %319, %cst_236 {dimension_numbers = #tpu.dot_dimension_numbers<[1], [0], [0], [1], [0, 0, 1, 1], [], []>} : vector<16x144xf32>, vector<144x128xf32>, vector<16x128xf32> -> vector<16x128xf32>
    %321 = arith.addf %316, %320 : vector<16x128xf32>
    %c0_237 = arith.constant 0 : index
    %c0_238 = arith.constant 0 : index
    %322 = vector.load %arg11[%c0_237, %c0_238] : memref<32x128xf32, #tpu.memory_space<vmem>>, vector<16x128xf32>
    tpu.vector_store %arg11[%c0_237, %c0_238], %321 {strides = array<i32>} : memref<32x128xf32, #tpu.memory_space<vmem>>, vector<16x128xf32>,
    %c18_239 = arith.constant 18 : index
    %c0_240 = arith.constant 0 : index
    %323 = vector.load %arg10[%c18_239, %c0_240] : memref<36x144xf32, #tpu.memory_space<vmem>>, vector<16x144xf32>
    %c6_241 = arith.constant 6 : index
    %c0_242 = arith.constant 0 : index
    %c0_243 = arith.constant 0 : index
    %324 = vector.load %arg3[%c6_241, %c0_242, %c0_243] : memref<12x144x128xf32, #tpu.memory_space<vmem>>, vector<1x144x128xf32>
    %325 = vector.shape_cast %324 : vector<1x144x128xf32> to vector<144x128xf32>
    %cst_244 = arith.constant dense<0.000000e+00> : vector<16x128xf32>
    %326 = tpu.matmul %323, %325, %cst_244 {dimension_numbers = #tpu.dot_dimension_numbers<[1], [0], [0], [1], [0, 0, 1, 1], [], []>} : vector<16x144xf32>, vector<144x128xf32>, vector<16x128xf32> -> vector<16x128xf32>
    %c19_245 = arith.constant 19 : index
    %c0_246 = arith.constant 0 : index
    %327 = vector.load %arg10[%c19_245, %c0_246] : memref<36x144xf32, #tpu.memory_space<vmem>>, vector<16x144xf32>
    %c7_247 = arith.constant 7 : index
    %c0_248 = arith.constant 0 : index
    %c0_249 = arith.constant 0 : index
    %328 = vector.load %arg3[%c7_247, %c0_248, %c0_249] : memref<12x144x128xf32, #tpu.memory_space<vmem>>, vector<1x144x128xf32>
    %329 = vector.shape_cast %328 : vector<1x144x128xf32> to vector<144x128xf32>
    %cst_250 = arith.constant dense<0.000000e+00> : vector<16x128xf32>
    %330 = tpu.matmul %327, %329, %cst_250 {dimension_numbers = #tpu.dot_dimension_numbers<[1], [0], [0], [1], [0, 0, 1, 1], [], []>} : vector<16x144xf32>, vector<144x128xf32>, vector<16x128xf32> -> vector<16x128xf32>
    %331 = arith.addf %326, %330 : vector<16x128xf32>
    %c20_251 = arith.constant 20 : index
    %c0_252 = arith.constant 0 : index
    %332 = vector.load %arg10[%c20_251, %c0_252] : memref<36x144xf32, #tpu.memory_space<vmem>>, vector<16x144xf32>
    %c8_253 = arith.constant 8 : index
    %c0_254 = arith.constant 0 : index
    %c0_255 = arith.constant 0 : index
    %333 = vector.load %arg3[%c8_253, %c0_254, %c0_255] : memref<12x144x128xf32, #tpu.memory_space<vmem>>, vector<1x144x128xf32>
    %334 = vector.shape_cast %333 : vector<1x144x128xf32> to vector<144x128xf32>
    %cst_256 = arith.constant dense<0.000000e+00> : vector<16x128xf32>
    %335 = tpu.matmul %332, %334, %cst_256 {dimension_numbers = #tpu.dot_dimension_numbers<[1], [0], [0], [1], [0, 0, 1, 1], [], []>} : vector<16x144xf32>, vector<144x128xf32>, vector<16x128xf32> -> vector<16x128xf32>
    %336 = arith.addf %331, %335 : vector<16x128xf32>
    %c16_257 = arith.constant 16 : index
    %c0_258 = arith.constant 0 : index
    %337 = vector.load %arg11[%c16_257, %c0_258] : memref<32x128xf32, #tpu.memory_space<vmem>>, vector<16x128xf32>
    tpu.vector_store %arg11[%c16_257, %c0_258], %336 {strides = array<i32>} : memref<32x128xf32, #tpu.memory_space<vmem>>, vector<16x128xf32>,
    %c0_259 = arith.constant 0 : index
    %c0_260 = arith.constant 0 : index
    %338 = vector.load %arg11[%c0_259, %c0_260] : memref<32x128xf32, #tpu.memory_space<vmem>>, vector<32x128xf32>
    %c2_261 = arith.constant 2 : index
    %c0_262 = arith.constant 0 : index
    %c0_263 = arith.constant 0 : index
    %339 = vector.load %arg4[%c2_261, %c0_262, %c0_263] : memref<4x1x128xf32, #tpu.memory_space<vmem>>, vector<1x1x128xf32>
    %340 = vector.shape_cast %339 : vector<1x1x128xf32> to vector<1x128xf32>
    %341 = vector.broadcast %340 : vector<1x128xf32> to vector<32x128xf32>
    %342 = arith.addf %338, %341 : vector<32x128xf32>
    %cst_264 = arith.constant dense<0.000000e+00> : vector<128xf32>
    %343 = vector.multi_reduction <add>, %342, %cst_264 [0] : vector<32x128xf32> to vector<128xf32>
    %344 = vector.shape_cast %343 : vector<128xf32> to vector<1x128xf32>
    %345 = arith.mulf %342, %342 : vector<32x128xf32>
    %cst_265 = arith.constant dense<0.000000e+00> : vector<128xf32>
    %346 = vector.multi_reduction <add>, %345, %cst_265 [0] : vector<32x128xf32> to vector<128xf32>
    %347 = vector.shape_cast %346 : vector<128xf32> to vector<1x128xf32>
    %cst_266 = arith.constant dense<0.000000e+00> : vector<1x8xf32>
    %348 = tpu.matmul %344, %83, %cst_266 {dimension_numbers = #tpu.dot_dimension_numbers<[1], [0], [0], [1], [0, 0, 1, 1], [], []>} : vector<1x128xf32>, vector<128x8xf32>, vector<1x8xf32> -> vector<1x8xf32>
    %cst_267 = arith.constant dense<0.000000e+00> : vector<1x8xf32>
    %349 = tpu.matmul %347, %83, %cst_267 {dimension_numbers = #tpu.dot_dimension_numbers<[1], [0], [0], [1], [0, 0, 1, 1], [], []>} : vector<1x128xf32>, vector<128x8xf32>, vector<1x8xf32> -> vector<1x8xf32>
    %cst_268 = arith.constant 0.001953125 : f32
    %350 = vector.broadcast %cst_268 : f32 to vector<1x8xf32>
    %351 = arith.mulf %348, %350 : vector<1x8xf32>
    %cst_269 = arith.constant 0.001953125 : f32
    %352 = vector.broadcast %cst_269 : f32 to vector<1x8xf32>
    %353 = arith.mulf %349, %352 : vector<1x8xf32>
    %354 = arith.mulf %351, %351 : vector<1x8xf32>
    %355 = arith.subf %353, %354 : vector<1x8xf32>
    %cst_270 = arith.constant 9.99999974E-6 : f32
    %356 = vector.broadcast %cst_270 : f32 to vector<1x8xf32>
    %357 = arith.addf %355, %356 : vector<1x8xf32>
    %358 = math.rsqrt %357 : vector<1x8xf32>
    %cst_271 = arith.constant dense<0.000000e+00> : vector<1x128xf32>
    %359 = tpu.matmul %351, %82, %cst_271 {dimension_numbers = #tpu.dot_dimension_numbers<[1], [0], [0], [1], [0, 0, 1, 1], [], []>} : vector<1x8xf32>, vector<8x128xf32>, vector<1x128xf32> -> vector<1x128xf32>
    %cst_272 = arith.constant dense<0.000000e+00> : vector<1x128xf32>
    %360 = tpu.matmul %358, %82, %cst_272 {dimension_numbers = #tpu.dot_dimension_numbers<[1], [0], [0], [1], [0, 0, 1, 1], [], []>} : vector<1x8xf32>, vector<8x128xf32>, vector<1x128xf32> -> vector<1x128xf32>
    %c2_273 = arith.constant 2 : index
    %c0_274 = arith.constant 0 : index
    %c0_275 = arith.constant 0 : index
    %361 = vector.load %arg5[%c2_273, %c0_274, %c0_275] : memref<4x1x128xf32, #tpu.memory_space<vmem>>, vector<1x1x128xf32>
    %362 = vector.shape_cast %361 : vector<1x1x128xf32> to vector<1x128xf32>
    %363 = vector.broadcast %359 : vector<1x128xf32> to vector<32x128xf32>
    %364 = arith.subf %342, %363 : vector<32x128xf32>
    %365 = vector.broadcast %362 : vector<1x128xf32> to vector<32x128xf32>
    %366 = arith.mulf %365, %364 : vector<32x128xf32>
    %367 = vector.broadcast %360 : vector<1x128xf32> to vector<32x128xf32>
    %368 = arith.mulf %366, %367 : vector<32x128xf32>
    %c2_276 = arith.constant 2 : index
    %c0_277 = arith.constant 0 : index
    %c0_278 = arith.constant 0 : index
    %369 = vector.load %arg6[%c2_276, %c0_277, %c0_278] : memref<4x1x128xf32, #tpu.memory_space<vmem>>, vector<1x1x128xf32>
    %370 = vector.shape_cast %369 : vector<1x1x128xf32> to vector<1x128xf32>
    %371 = vector.broadcast %370 : vector<1x128xf32> to vector<32x128xf32>
    %372 = arith.addf %368, %371 : vector<32x128xf32>
    %cst_279 = arith.constant 5.000000e-01 : f32
    %373 = vector.broadcast %cst_279 : f32 to vector<32x128xf32>
    %374 = arith.mulf %373, %372 : vector<32x128xf32>
    %cst_280 = arith.constant 0.707106769 : f32
    %375 = vector.broadcast %cst_280 : f32 to vector<32x128xf32>
    %376 = arith.mulf %372, %375 : vector<32x128xf32>
    %cst_281 = arith.constant 0.000000e+00 : f32
    %377 = vector.broadcast %cst_281 : f32 to vector<32x128xf32>
    %378 = arith.cmpf olt, %376, %377 : vector<32x128xf32>
    %cst_282 = arith.constant -1.000000e+00 : f32
    %cst_283 = arith.constant 1.000000e+00 : f32
    %379 = vector.broadcast %cst_282 : f32 to vector<32x128xf32>
    %380 = vector.broadcast %cst_283 : f32 to vector<32x128xf32>
    %381 = arith.select %378, %379, %380 : vector<32x128xi1>, vector<32x128xf32>
    %382 = math.absf %376 : vector<32x128xf32>
    %cst_284 = arith.constant 0.327591091 : f32
    %383 = vector.broadcast %cst_284 : f32 to vector<32x128xf32>
    %384 = arith.mulf %383, %382 : vector<32x128xf32>
    %cst_285 = arith.constant 1.000000e+00 : f32
    %385 = vector.broadcast %cst_285 : f32 to vector<32x128xf32>
    %386 = arith.addf %385, %384 : vector<32x128xf32>
    %cst_286 = arith.constant 1.000000e+00 : f32
    %387 = vector.broadcast %cst_286 : f32 to vector<32x128xf32>
    %388 = arith.divf %387, %386 : vector<32x128xf32>
    %cst_287 = arith.constant 1.06140542 : f32
    %389 = vector.broadcast %cst_287 : f32 to vector<32x128xf32>
    %390 = arith.mulf %389, %388 : vector<32x128xf32>
    %cst_288 = arith.constant -1.45315206 : f32
    %391 = vector.broadcast %cst_288 : f32 to vector<32x128xf32>
    %392 = arith.addf %390, %391 : vector<32x128xf32>
    %393 = arith.mulf %392, %388 : vector<32x128xf32>
    %cst_289 = arith.constant 1.42141378 : f32
    %394 = vector.broadcast %cst_289 : f32 to vector<32x128xf32>
    %395 = arith.addf %393, %394 : vector<32x128xf32>
    %396 = arith.mulf %395, %388 : vector<32x128xf32>
    %cst_290 = arith.constant -0.284496725 : f32
    %397 = vector.broadcast %cst_290 : f32 to vector<32x128xf32>
    %398 = arith.addf %396, %397 : vector<32x128xf32>
    %399 = arith.mulf %398, %388 : vector<32x128xf32>
    %cst_291 = arith.constant 0.254829586 : f32
    %400 = vector.broadcast %cst_291 : f32 to vector<32x128xf32>
    %401 = arith.addf %399, %400 : vector<32x128xf32>
    %402 = arith.mulf %401, %388 : vector<32x128xf32>
    %cst_292 = arith.constant 0.000000e+00 : f32
    %403 = vector.broadcast %cst_292 : f32 to vector<32x128xf32>
    %404 = arith.subf %403, %382 : vector<32x128xf32>
    %405 = arith.mulf %404, %382 : vector<32x128xf32>
    %406 = math.exp %405 : vector<32x128xf32>
    %407 = arith.mulf %402, %406 : vector<32x128xf32>
    %cst_293 = arith.constant 1.000000e+00 : f32
    %408 = vector.broadcast %cst_293 : f32 to vector<32x128xf32>
    %409 = arith.subf %408, %407 : vector<32x128xf32>
    %410 = arith.mulf %381, %409 : vector<32x128xf32>
    %cst_294 = arith.constant 1.000000e+00 : f32
    %411 = vector.broadcast %cst_294 : f32 to vector<32x128xf32>
    %412 = arith.addf %411, %410 : vector<32x128xf32>
    %413 = arith.mulf %374, %412 : vector<32x128xf32>
    %414 = vector.extract_strided_slice %413 {offsets = [0, 0], sizes = [16, 128], strides = [1, 1]} : vector<32x128xf32> to vector<16x128xf32>
    %c1_295 = arith.constant 1 : index
    %c0_296 = arith.constant 0 : index
    %415 = vector.load %arg10[%c1_295, %c0_296] : memref<36x144xf32, #tpu.memory_space<vmem>>, vector<16x128xf32>
    tpu.vector_store %arg10[%c1_295, %c0_296], %414 {strides = array<i32>} : memref<36x144xf32, #tpu.memory_space<vmem>>, vector<16x128xf32>,
    %416 = vector.extract_strided_slice %413 {offsets = [16, 0], sizes = [16, 128], strides = [1, 1]} : vector<32x128xf32> to vector<16x128xf32>
    %c19_297 = arith.constant 19 : index
    %c0_298 = arith.constant 0 : index
    %417 = vector.load %arg10[%c19_297, %c0_298] : memref<36x144xf32, #tpu.memory_space<vmem>>, vector<16x128xf32>
    tpu.vector_store %arg10[%c19_297, %c0_298], %416 {strides = array<i32>} : memref<36x144xf32, #tpu.memory_space<vmem>>, vector<16x128xf32>,
    %c0_299 = arith.constant 0 : index
    %c0_300 = arith.constant 0 : index
    %418 = vector.load %arg10[%c0_299, %c0_300] : memref<36x144xf32, #tpu.memory_space<vmem>>, vector<16x144xf32>
    %c9_301 = arith.constant 9 : index
    %c0_302 = arith.constant 0 : index
    %c0_303 = arith.constant 0 : index
    %419 = vector.load %arg3[%c9_301, %c0_302, %c0_303] : memref<12x144x128xf32, #tpu.memory_space<vmem>>, vector<1x144x128xf32>
    %420 = vector.shape_cast %419 : vector<1x144x128xf32> to vector<144x128xf32>
    %cst_304 = arith.constant dense<0.000000e+00> : vector<16x128xf32>
    %421 = tpu.matmul %418, %420, %cst_304 {dimension_numbers = #tpu.dot_dimension_numbers<[1], [0], [0], [1], [0, 0, 1, 1], [], []>} : vector<16x144xf32>, vector<144x128xf32>, vector<16x128xf32> -> vector<16x128xf32>
    %c1_305 = arith.constant 1 : index
    %c0_306 = arith.constant 0 : index
    %422 = vector.load %arg10[%c1_305, %c0_306] : memref<36x144xf32, #tpu.memory_space<vmem>>, vector<16x144xf32>
    %c10_307 = arith.constant 10 : index
    %c0_308 = arith.constant 0 : index
    %c0_309 = arith.constant 0 : index
    %423 = vector.load %arg3[%c10_307, %c0_308, %c0_309] : memref<12x144x128xf32, #tpu.memory_space<vmem>>, vector<1x144x128xf32>
    %424 = vector.shape_cast %423 : vector<1x144x128xf32> to vector<144x128xf32>
    %cst_310 = arith.constant dense<0.000000e+00> : vector<16x128xf32>
    %425 = tpu.matmul %422, %424, %cst_310 {dimension_numbers = #tpu.dot_dimension_numbers<[1], [0], [0], [1], [0, 0, 1, 1], [], []>} : vector<16x144xf32>, vector<144x128xf32>, vector<16x128xf32> -> vector<16x128xf32>
    %426 = arith.addf %421, %425 : vector<16x128xf32>
    %c2_311 = arith.constant 2 : index
    %c0_312 = arith.constant 0 : index
    %427 = vector.load %arg10[%c2_311, %c0_312] : memref<36x144xf32, #tpu.memory_space<vmem>>, vector<16x144xf32>
    %c11_313 = arith.constant 11 : index
    %c0_314 = arith.constant 0 : index
    %c0_315 = arith.constant 0 : index
    %428 = vector.load %arg3[%c11_313, %c0_314, %c0_315] : memref<12x144x128xf32, #tpu.memory_space<vmem>>, vector<1x144x128xf32>
    %429 = vector.shape_cast %428 : vector<1x144x128xf32> to vector<144x128xf32>
    %cst_316 = arith.constant dense<0.000000e+00> : vector<16x128xf32>
    %430 = tpu.matmul %427, %429, %cst_316 {dimension_numbers = #tpu.dot_dimension_numbers<[1], [0], [0], [1], [0, 0, 1, 1], [], []>} : vector<16x144xf32>, vector<144x128xf32>, vector<16x128xf32> -> vector<16x128xf32>
    %431 = arith.addf %426, %430 : vector<16x128xf32>
    %c0_317 = arith.constant 0 : index
    %c0_318 = arith.constant 0 : index
    %432 = vector.load %arg11[%c0_317, %c0_318] : memref<32x128xf32, #tpu.memory_space<vmem>>, vector<16x128xf32>
    tpu.vector_store %arg11[%c0_317, %c0_318], %431 {strides = array<i32>} : memref<32x128xf32, #tpu.memory_space<vmem>>, vector<16x128xf32>,
    %c18_319 = arith.constant 18 : index
    %c0_320 = arith.constant 0 : index
    %433 = vector.load %arg10[%c18_319, %c0_320] : memref<36x144xf32, #tpu.memory_space<vmem>>, vector<16x144xf32>
    %c9_321 = arith.constant 9 : index
    %c0_322 = arith.constant 0 : index
    %c0_323 = arith.constant 0 : index
    %434 = vector.load %arg3[%c9_321, %c0_322, %c0_323] : memref<12x144x128xf32, #tpu.memory_space<vmem>>, vector<1x144x128xf32>
    %435 = vector.shape_cast %434 : vector<1x144x128xf32> to vector<144x128xf32>
    %cst_324 = arith.constant dense<0.000000e+00> : vector<16x128xf32>
    %436 = tpu.matmul %433, %435, %cst_324 {dimension_numbers = #tpu.dot_dimension_numbers<[1], [0], [0], [1], [0, 0, 1, 1], [], []>} : vector<16x144xf32>, vector<144x128xf32>, vector<16x128xf32> -> vector<16x128xf32>
    %c19_325 = arith.constant 19 : index
    %c0_326 = arith.constant 0 : index
    %437 = vector.load %arg10[%c19_325, %c0_326] : memref<36x144xf32, #tpu.memory_space<vmem>>, vector<16x144xf32>
    %c10_327 = arith.constant 10 : index
    %c0_328 = arith.constant 0 : index
    %c0_329 = arith.constant 0 : index
    %438 = vector.load %arg3[%c10_327, %c0_328, %c0_329] : memref<12x144x128xf32, #tpu.memory_space<vmem>>, vector<1x144x128xf32>
    %439 = vector.shape_cast %438 : vector<1x144x128xf32> to vector<144x128xf32>
    %cst_330 = arith.constant dense<0.000000e+00> : vector<16x128xf32>
    %440 = tpu.matmul %437, %439, %cst_330 {dimension_numbers = #tpu.dot_dimension_numbers<[1], [0], [0], [1], [0, 0, 1, 1], [], []>} : vector<16x144xf32>, vector<144x128xf32>, vector<16x128xf32> -> vector<16x128xf32>
    %441 = arith.addf %436, %440 : vector<16x128xf32>
    %c20_331 = arith.constant 20 : index
    %c0_332 = arith.constant 0 : index
    %442 = vector.load %arg10[%c20_331, %c0_332] : memref<36x144xf32, #tpu.memory_space<vmem>>, vector<16x144xf32>
    %c11_333 = arith.constant 11 : index
    %c0_334 = arith.constant 0 : index
    %c0_335 = arith.constant 0 : index
    %443 = vector.load %arg3[%c11_333, %c0_334, %c0_335] : memref<12x144x128xf32, #tpu.memory_space<vmem>>, vector<1x144x128xf32>
    %444 = vector.shape_cast %443 : vector<1x144x128xf32> to vector<144x128xf32>
    %cst_336 = arith.constant dense<0.000000e+00> : vector<16x128xf32>
    %445 = tpu.matmul %442, %444, %cst_336 {dimension_numbers = #tpu.dot_dimension_numbers<[1], [0], [0], [1], [0, 0, 1, 1], [], []>} : vector<16x144xf32>, vector<144x128xf32>, vector<16x128xf32> -> vector<16x128xf32>
    %446 = arith.addf %441, %445 : vector<16x128xf32>
    %c16_337 = arith.constant 16 : index
    %c0_338 = arith.constant 0 : index
    %447 = vector.load %arg11[%c16_337, %c0_338] : memref<32x128xf32, #tpu.memory_space<vmem>>, vector<16x128xf32>
    tpu.vector_store %arg11[%c16_337, %c0_338], %446 {strides = array<i32>} : memref<32x128xf32, #tpu.memory_space<vmem>>, vector<16x128xf32>,
    %c0_339 = arith.constant 0 : index
    %c0_340 = arith.constant 0 : index
    %448 = vector.load %arg11[%c0_339, %c0_340] : memref<32x128xf32, #tpu.memory_space<vmem>>, vector<32x128xf32>
    %c3_341 = arith.constant 3 : index
    %c0_342 = arith.constant 0 : index
    %c0_343 = arith.constant 0 : index
    %449 = vector.load %arg4[%c3_341, %c0_342, %c0_343] : memref<4x1x128xf32, #tpu.memory_space<vmem>>, vector<1x1x128xf32>
    %450 = vector.shape_cast %449 : vector<1x1x128xf32> to vector<1x128xf32>
    %451 = vector.broadcast %450 : vector<1x128xf32> to vector<32x128xf32>
    %452 = arith.addf %448, %451 : vector<32x128xf32>
    %cst_344 = arith.constant dense<0.000000e+00> : vector<128xf32>
    %453 = vector.multi_reduction <add>, %452, %cst_344 [0] : vector<32x128xf32> to vector<128xf32>
    %454 = vector.shape_cast %453 : vector<128xf32> to vector<1x128xf32>
    %455 = arith.mulf %452, %452 : vector<32x128xf32>
    %cst_345 = arith.constant dense<0.000000e+00> : vector<128xf32>
    %456 = vector.multi_reduction <add>, %455, %cst_345 [0] : vector<32x128xf32> to vector<128xf32>
    %457 = vector.shape_cast %456 : vector<128xf32> to vector<1x128xf32>
    %cst_346 = arith.constant dense<0.000000e+00> : vector<1x8xf32>
    %458 = tpu.matmul %454, %83, %cst_346 {dimension_numbers = #tpu.dot_dimension_numbers<[1], [0], [0], [1], [0, 0, 1, 1], [], []>} : vector<1x128xf32>, vector<128x8xf32>, vector<1x8xf32> -> vector<1x8xf32>
    %cst_347 = arith.constant dense<0.000000e+00> : vector<1x8xf32>
    %459 = tpu.matmul %457, %83, %cst_347 {dimension_numbers = #tpu.dot_dimension_numbers<[1], [0], [0], [1], [0, 0, 1, 1], [], []>} : vector<1x128xf32>, vector<128x8xf32>, vector<1x8xf32> -> vector<1x8xf32>
    %cst_348 = arith.constant 0.001953125 : f32
    %460 = vector.broadcast %cst_348 : f32 to vector<1x8xf32>
    %461 = arith.mulf %458, %460 : vector<1x8xf32>
    %cst_349 = arith.constant 0.001953125 : f32
    %462 = vector.broadcast %cst_349 : f32 to vector<1x8xf32>
    %463 = arith.mulf %459, %462 : vector<1x8xf32>
    %464 = arith.mulf %461, %461 : vector<1x8xf32>
    %465 = arith.subf %463, %464 : vector<1x8xf32>
    %cst_350 = arith.constant 9.99999974E-6 : f32
    %466 = vector.broadcast %cst_350 : f32 to vector<1x8xf32>
    %467 = arith.addf %465, %466 : vector<1x8xf32>
    %468 = math.rsqrt %467 : vector<1x8xf32>
    %cst_351 = arith.constant dense<0.000000e+00> : vector<1x128xf32>
    %469 = tpu.matmul %461, %82, %cst_351 {dimension_numbers = #tpu.dot_dimension_numbers<[1], [0], [0], [1], [0, 0, 1, 1], [], []>} : vector<1x8xf32>, vector<8x128xf32>, vector<1x128xf32> -> vector<1x128xf32>
    %cst_352 = arith.constant dense<0.000000e+00> : vector<1x128xf32>
    %470 = tpu.matmul %468, %82, %cst_352 {dimension_numbers = #tpu.dot_dimension_numbers<[1], [0], [0], [1], [0, 0, 1, 1], [], []>} : vector<1x8xf32>, vector<8x128xf32>, vector<1x128xf32> -> vector<1x128xf32>
    %c3_353 = arith.constant 3 : index
    %c0_354 = arith.constant 0 : index
    %c0_355 = arith.constant 0 : index
    %471 = vector.load %arg5[%c3_353, %c0_354, %c0_355] : memref<4x1x128xf32, #tpu.memory_space<vmem>>, vector<1x1x128xf32>
    %472 = vector.shape_cast %471 : vector<1x1x128xf32> to vector<1x128xf32>
    %473 = vector.broadcast %469 : vector<1x128xf32> to vector<32x128xf32>
    %474 = arith.subf %452, %473 : vector<32x128xf32>
    %475 = vector.broadcast %472 : vector<1x128xf32> to vector<32x128xf32>
    %476 = arith.mulf %475, %474 : vector<32x128xf32>
    %477 = vector.broadcast %470 : vector<1x128xf32> to vector<32x128xf32>
    %478 = arith.mulf %476, %477 : vector<32x128xf32>
    %c3_356 = arith.constant 3 : index
    %c0_357 = arith.constant 0 : index
    %c0_358 = arith.constant 0 : index
    %479 = vector.load %arg6[%c3_356, %c0_357, %c0_358] : memref<4x1x128xf32, #tpu.memory_space<vmem>>, vector<1x1x128xf32>
    %480 = vector.shape_cast %479 : vector<1x1x128xf32> to vector<1x128xf32>
    %481 = vector.broadcast %480 : vector<1x128xf32> to vector<32x128xf32>
    %482 = arith.addf %478, %481 : vector<32x128xf32>
    %cst_359 = arith.constant 5.000000e-01 : f32
    %483 = vector.broadcast %cst_359 : f32 to vector<32x128xf32>
    %484 = arith.mulf %483, %482 : vector<32x128xf32>
    %cst_360 = arith.constant 0.707106769 : f32
    %485 = vector.broadcast %cst_360 : f32 to vector<32x128xf32>
    %486 = arith.mulf %482, %485 : vector<32x128xf32>
    %cst_361 = arith.constant 0.000000e+00 : f32
    %487 = vector.broadcast %cst_361 : f32 to vector<32x128xf32>
    %488 = arith.cmpf olt, %486, %487 : vector<32x128xf32>
    %cst_362 = arith.constant -1.000000e+00 : f32
    %cst_363 = arith.constant 1.000000e+00 : f32
    %489 = vector.broadcast %cst_362 : f32 to vector<32x128xf32>
    %490 = vector.broadcast %cst_363 : f32 to vector<32x128xf32>
    %491 = arith.select %488, %489, %490 : vector<32x128xi1>, vector<32x128xf32>
    %492 = math.absf %486 : vector<32x128xf32>
    %cst_364 = arith.constant 0.327591091 : f32
    %493 = vector.broadcast %cst_364 : f32 to vector<32x128xf32>
    %494 = arith.mulf %493, %492 : vector<32x128xf32>
    %cst_365 = arith.constant 1.000000e+00 : f32
    %495 = vector.broadcast %cst_365 : f32 to vector<32x128xf32>
    %496 = arith.addf %495, %494 : vector<32x128xf32>
    %cst_366 = arith.constant 1.000000e+00 : f32
    %497 = vector.broadcast %cst_366 : f32 to vector<32x128xf32>
    %498 = arith.divf %497, %496 : vector<32x128xf32>
    %cst_367 = arith.constant 1.06140542 : f32
    %499 = vector.broadcast %cst_367 : f32 to vector<32x128xf32>
    %500 = arith.mulf %499, %498 : vector<32x128xf32>
    %cst_368 = arith.constant -1.45315206 : f32
    %501 = vector.broadcast %cst_368 : f32 to vector<32x128xf32>
    %502 = arith.addf %500, %501 : vector<32x128xf32>
    %503 = arith.mulf %502, %498 : vector<32x128xf32>
    %cst_369 = arith.constant 1.42141378 : f32
    %504 = vector.broadcast %cst_369 : f32 to vector<32x128xf32>
    %505 = arith.addf %503, %504 : vector<32x128xf32>
    %506 = arith.mulf %505, %498 : vector<32x128xf32>
    %cst_370 = arith.constant -0.284496725 : f32
    %507 = vector.broadcast %cst_370 : f32 to vector<32x128xf32>
    %508 = arith.addf %506, %507 : vector<32x128xf32>
    %509 = arith.mulf %508, %498 : vector<32x128xf32>
    %cst_371 = arith.constant 0.254829586 : f32
    %510 = vector.broadcast %cst_371 : f32 to vector<32x128xf32>
    %511 = arith.addf %509, %510 : vector<32x128xf32>
    %512 = arith.mulf %511, %498 : vector<32x128xf32>
    %cst_372 = arith.constant 0.000000e+00 : f32
    %513 = vector.broadcast %cst_372 : f32 to vector<32x128xf32>
    %514 = arith.subf %513, %492 : vector<32x128xf32>
    %515 = arith.mulf %514, %492 : vector<32x128xf32>
    %516 = math.exp %515 : vector<32x128xf32>
    %517 = arith.mulf %512, %516 : vector<32x128xf32>
    %cst_373 = arith.constant 1.000000e+00 : f32
    %518 = vector.broadcast %cst_373 : f32 to vector<32x128xf32>
    %519 = arith.subf %518, %517 : vector<32x128xf32>
    %520 = arith.mulf %491, %519 : vector<32x128xf32>
    %cst_374 = arith.constant 1.000000e+00 : f32
    %521 = vector.broadcast %cst_374 : f32 to vector<32x128xf32>
    %522 = arith.addf %521, %520 : vector<32x128xf32>
    %523 = arith.mulf %484, %522 : vector<32x128xf32>
    %c0_375 = arith.constant 0 : index
    %c0_376 = arith.constant 0 : index
    %524 = vector.load %arg9[%c0_375, %c0_376] : memref<32x128xf32, #tpu.memory_space<vmem>>, vector<32x128xf32>
    tpu.vector_store %arg9[%c0_375, %c0_376], %523 {strides = array<i32>} : memref<32x128xf32, #tpu.memory_space<vmem>>, vector<32x128xf32>,
    return
  }
}

</mosaic_0001>

<llo_original>
// kernel: tile.78
$region0: #{tile.78}
  #allocation0 [shape = 's32[1]{0}', space=sflag, size = 0x4, scoped, tag = 'scoped memory for tile.78']
  %s0 = inlined_call_operand.vmem [shape: f32[8], index: 0, kind: input, shape index: {}]
  %s1 = inlined_call_operand.vmem [shape: f32[16,8], index: 1, kind: output, shape index: {}]
  // Predicated region
  $region2: #{tile.78} parent=0 // pred_check
    _
  $region3: #{tile.78} parent=0 // pred_check_branch
    %3 = sbr.rel (0) target = $region5
  $region4: #{tile.78} parent=0 // pred_region
    _
  $region5: #{tile.78} parent=0 // pred_fallthru
    _
  %v4 = vld [vmem:[%s0] ss:$0 sm:$0xff]
  %5 = vst [vmem:[%s1] sm:$0xff] %v4
  %s6 = scalar_lea.vmem %s1, 8
  %7 = vst [vmem:[%s6] sm:$0xff] %v4

// kernel: tile.91
$region0: #{tile.91}
  %s0 = inlined_call_operand.vmem [shape: f32[16,8], index: 0, kind: input, shape index: {}]
  %s1 = inlined_call_operand.vmem [shape: f32[1,128], index: 1, kind: output, shape index: {}]
  $region1: #{tile.91} parent=0
    #allocation0 [shape = 'u8[4096]{0}', space=vmem, size = 0x1000, scoped, tag = 'scoped mem for output reshape']
    %v2 = vld [vmem:[%s0] sm:$0x1]
    %vm3 = vcmask 64512
    %4 = vst.msk [vmem:[#allocation0] sm:$0x1] %vm3, %v2
    %s5 = scalar_lea.vmem %s0, 15
    %v6 = vld [vmem:[%s5] sm:$0x1]
    %7 = vrot.lane.b32.xlu0 %v6, 120
    %v8 = vpop.permute.xlu0 %7
    %vm9 = vcmask 1048512
    %10 = vst.msk [vmem:[#allocation0] sm:$0x1] %vm9, %v8
    %s11 = scalar_lea.vmem %s0, 14
    %v12 = vld [vmem:[%s11] sm:$0x1]
    %13 = vrot.lane.b32.xlu0 %v12, 112
    %v14 = vpop.permute.xlu0 %13
    %vm15 = vcmask 982912
    %16 = vst.msk [vmem:[#allocation0] sm:$0x1] %vm15, %v14
    %s17 = scalar_lea.vmem %s0, 13
    %v18 = vld [vmem:[%s17] sm:$0x1]
    %19 = vrot.lane.b32.xlu0 %v18, 104
    %v20 = vpop.permute.xlu0 %19
    %vm21 = vcmask 917312
    %22 = vst.msk [vmem:[#allocation0] sm:$0x1] %vm21, %v20
    %s23 = scalar_lea.vmem %s0, 12
    %v24 = vld [vmem:[%s23] sm:$0x1]
    %25 = vrot.lane.b32.xlu0 %v24, 96
    %v26 = vpop.permute.xlu0 %25
    %vm27 = vcmask 851712
    %28 = vst.msk [vmem:[#allocation0] sm:$0x1] %vm27, %v26
    %s29 = scalar_lea.vmem %s0, 11
    %v30 = vld [vmem:[%s29] sm:$0x1]
    %31 = vrot.lane.b32.xlu0 %v30, 88
    %v32 = vpop.permute.xlu0 %31
    %vm33 = vcmask 786112
    %34 = vst.msk [vmem:[#allocation0] sm:$0x1] %vm33, %v32
    %s35 = scalar_lea.vmem %s0, 10
    %v36 = vld [vmem:[%s35] sm:$0x1]
    %37 = vrot.lane.b32.xlu0 %v36, 80
    %v38 = vpop.permute.xlu0 %37
    %vm39 = vcmask 720512
    %40 = vst.msk [vmem:[#allocation0] sm:$0x1] %vm39, %v38
    %s41 = scalar_lea.vmem %s0, 9
    %v42 = vld [vmem:[%s41] sm:$0x1]
    %43 = vrot.lane.b32.xlu0 %v42, 72
    %v44 = vpop.permute.xlu0 %43
    %vm45 = vcmask 654912
    %46 = vst.msk [vmem:[#allocation0] sm:$0x1] %vm45, %v44
    %s47 = scalar_lea.vmem %s0, 8
    %v48 = vld [vmem:[%s47] sm:$0x1]
    %49 = vrot.lane.b32.xlu0 %v48, 64
    %v50 = vpop.permute.xlu0 %49
    %vm51 = vcmask 589312
    %52 = vst.msk [vmem:[#allocation0] sm:$0x1] %vm51, %v50
    %s53 = scalar_lea.vmem %s0, 7
    %v54 = vld [vmem:[%s53] sm:$0x1]
    %55 = vrot.lane.b32.xlu0 %v54, 56
    %v56 = vpop.permute.xlu0 %55
    %vm57 = vcmask 523712
    %58 = vst.msk [vmem:[#allocation0] sm:$0x1] %vm57, %v56
    %s59 = scalar_lea.vmem %s0, 6
    %v60 = vld [vmem:[%s59] sm:$0x1]
    %61 = vrot.lane.b32.xlu0 %v60, 48
    %v62 = vpop.permute.xlu0 %61
    %vm63 = vcmask 458112
    %64 = vst.msk [vmem:[#allocation0] sm:$0x1] %vm63, %v62
    %s65 = scalar_lea.vmem %s0, 5
    %v66 = vld [vmem:[%s65] sm:$0x1]
    %67 = vrot.lane.b32.xlu0 %v66, 40
    %v68 = vpop.permute.xlu0 %67
    %vm69 = vcmask 392512
    %70 = vst.msk [vmem:[#allocation0] sm:$0x1] %vm69, %v68
    %s71 = scalar_lea.vmem %s0, 4
    %v72 = vld [vmem:[%s71] sm:$0x1]
    %73 = vrot.lane.b32.xlu0 %v72, 32
    %v74 = vpop.permute.xlu0 %73
    %vm75 = vcmask 326912
    %76 = vst.msk [vmem:[#allocation0] sm:$0x1] %vm75, %v74
    %s77 = scalar_lea.vmem %s0, 3
    %v78 = vld [vmem:[%s77] sm:$0x1]
    %79 = vrot.lane.b32.xlu0 %v78, 24
    %v80 = vpop.permute.xlu0 %79
    %vm81 = vcmask 261312
    %82 = vst.msk [vmem:[#allocation0] sm:$0x1] %vm81, %v80
    %s83 = scalar_lea.vmem %s0, 2
    %v84 = vld [vmem:[%s83] sm:$0x1]
    %85 = vrot.lane.b32.xlu0 %v84, 16
    %v86 = vpop.permute.xlu0 %85
    %vm87 = vcmask 195712
    %88 = vst.msk [vmem:[#allocation0] sm:$0x1] %vm87, %v86
    %s89 = scalar_lea.vmem %s0, 1
    %v90 = vld [vmem:[%s89] sm:$0x1]
    %91 = vrot.lane.b32.xlu0 %v90, 8
    %v92 = vpop.permute.xlu0 %91
    %vm93 = vcmask 130112
    %94 = vst.msk [vmem:[#allocation0] sm:$0x1] %vm93, %v92
    %s96 = sshll.u32 1, 1
    %s97 = ssub.s32 %s96, 1
    %v99 = vld [vmem:[#allocation0] sm:%s97]
    %s100 = sshll.u32 1, 1
    %s101 = ssub.s32 %s100, 1
    %102 = vst [vmem:[%s1] sm:%s101] %v99

// kernel: unet_up_forward.1
$region0: #{unet_up_forward.1}
  #allocation0 [shape = 'u32[]', space=smem, size = 0x4, offset = 0x4, fixed_abs, tag = 'smem constant byte address 0x4 - core index']
  #allocation1 [shape = 'u32[144,128]{1,0:T(1,128)}', space=vmem, size = 0x12000, scoped, tag = 'internal scratch']
  #allocation2 [shape = 'f32[36,144]{1,0:T(8,128)}', space=vmem, size = 0xa000, scoped, tag = 'scratch operand']
  #allocation3 [shape = 'f32[32,128]{1,0:T(8,128)}', space=vmem, size = 0x4000, scoped, tag = 'scratch operand']
  #allocation4 [shape = 'f32[32,128]{1,0:T(8,128)}', space=vmem, size = 0x4000, scoped, tag = 'scratch operand']
  %s0 = inlined_call_operand.vmem [shape: f32[16,64], index: 0, kind: input, shape index: {}]
  %s1 = inlined_call_operand.vmem [shape: f32[2,64,128], index: 1, kind: input, shape index: {}]
  %s2 = inlined_call_operand.vmem [shape: f32[1,128], index: 2, kind: input, shape index: {}]
  %s3 = inlined_call_operand.vmem [shape: f32[12,144,128], index: 3, kind: input, shape index: {}]
  %s4 = inlined_call_operand.vmem [shape: f32[4,1,128], index: 4, kind: input, shape index: {}]
  %s5 = inlined_call_operand.vmem [shape: f32[4,1,128], index: 5, kind: input, shape index: {}]
  %s6 = inlined_call_operand.vmem [shape: f32[4,1,128], index: 6, kind: input, shape index: {}]
  %s7 = inlined_call_operand.vmem [shape: f32[8,128], index: 7, kind: input, shape index: {}]
  %s8 = inlined_call_operand.vmem [shape: f32[128,8], index: 8, kind: input, shape index: {}]
  %s9 = inlined_call_operand.vmem [shape: f32[32,128], index: 9, kind: output, shape index: {}]
  %s10 = sld [smem:[#allocation0]]
  $region46: #{unet_up_forward.1} parent=0
    _
  %s12 = ssub.s32 1, %s10
  %s13 = scalar_select 0, %s12, %s10
  // Predicated region
  $region2: #{unet_up_forward.1} parent=0 // pred_check
    _
  $region3: #{unet_up_forward.1} parent=0 // pred_check_branch
    %15 = sbr.rel (0) target = $region5
  $region4: #{unet_up_forward.1} parent=0 // pred_region
    _
  $region5: #{unet_up_forward.1} parent=0 // pred_fallthru
    _
  // Predicated region
  $region6: #{unet_up_forward.1} parent=0 // pred_check
    _
  $region7: #{unet_up_forward.1} parent=0 // pred_check_branch
    %17 = sbr.rel (0) target = $region9
  $region8: #{unet_up_forward.1} parent=0 // pred_region
    _
  $region9: #{unet_up_forward.1} parent=0 // pred_fallthru
    _
  // Predicated region
  $region10: #{unet_up_forward.1} parent=0 // pred_check
    _
  $region11: #{unet_up_forward.1} parent=0 // pred_check_branch
    %19 = sbr.rel (0) target = $region13
  $region12: #{unet_up_forward.1} parent=0 // pred_region
    _
  $region13: #{unet_up_forward.1} parent=0 // pred_fallthru
    _
  // Predicated region
  $region14: #{unet_up_forward.1} parent=0 // pred_check
    _
  $region15: #{unet_up_forward.1} parent=0 // pred_check_branch
    %21 = sbr.rel (0) target = $region17
  $region16: #{unet_up_forward.1} parent=0 // pred_region
    _
  $region17: #{unet_up_forward.1} parent=0 // pred_fallthru
    _
  // Predicated region
  $region18: #{unet_up_forward.1} parent=0 // pred_check
    _
  $region19: #{unet_up_forward.1} parent=0 // pred_check_branch
    %23 = sbr.rel (0) target = $region21
  $region20: #{unet_up_forward.1} parent=0 // pred_region
    _
  $region21: #{unet_up_forward.1} parent=0 // pred_fallthru
    _
  // Predicated region
  $region22: #{unet_up_forward.1} parent=0 // pred_check
    _
  $region23: #{unet_up_forward.1} parent=0 // pred_check_branch
    %25 = sbr.rel (0) target = $region25
  $region24: #{unet_up_forward.1} parent=0 // pred_region
    _
  $region25: #{unet_up_forward.1} parent=0 // pred_fallthru
    _
  // Predicated region
  $region26: #{unet_up_forward.1} parent=0 // pred_check
    _
  $region27: #{unet_up_forward.1} parent=0 // pred_check_branch
    %27 = sbr.rel (0) target = $region29
  $region28: #{unet_up_forward.1} parent=0 // pred_region
    _
  $region29: #{unet_up_forward.1} parent=0 // pred_fallthru
    _
  // Predicated region
  $region30: #{unet_up_forward.1} parent=0 // pred_check
    _
  $region31: #{unet_up_forward.1} parent=0 // pred_check_branch
    %29 = sbr.rel (0) target = $region33
  $region32: #{unet_up_forward.1} parent=0 // pred_region
    _
  $region33: #{unet_up_forward.1} parent=0 // pred_fallthru
    _
  // Predicated region
  $region34: #{unet_up_forward.1} parent=0 // pred_check
    _
  $region35: #{unet_up_forward.1} parent=0 // pred_check_branch
    %31 = sbr.rel (0) target = $region37
  $region36: #{unet_up_forward.1} parent=0 // pred_region
    _
  $region37: #{unet_up_forward.1} parent=0 // pred_fallthru
    _
  %32 = vst [vmem:[#allocation2] sm:$0xff] 0.0
  %vm33 = vcmask 130048
  %34 = vst.msk [vmem:[#allocation2 + $0x8] sm:$0xff] %vm33, 0.0
  %35 = vst [vmem:[#allocation2 + $0x10] sm:$0xff] 0.0
  %36 = vst.msk [vmem:[#allocation2 + $0x18] sm:$0xff] %vm33, 0.0
  %37 = vst [vmem:[#allocation2 + $0x20] sm:$0xff] 0.0
  %38 = vst.msk [vmem:[#allocation2 + $0x28] sm:$0xff] %vm33, 0.0
  %39 = vst [vmem:[#allocation2 + $0x30] sm:$0xff] 0.0
  %40 = vst.msk [vmem:[#allocation2 + $0x38] sm:$0xff] %vm33, 0.0
  %41 = vst [vmem:[#allocation2 + $0x40] sm:$0xf] 0.0
  %vm42 = vcmask 125952
  %43 = vst.msk [vmem:[#allocation2 + $0x48] sm:$0xf] %vm42, 0.0
  %v44 = vld [vmem:[%s0] sm:$0xff]
  %v45 = vld [vmem:[%s0 + $0x8] sm:$0xff]
  %v46 = vld [vmem:[%s2] sm:$0x1]
  %v47 = vld [vmem:[%s1] sm:$0xff]
  %v48 = vld [vmem:[%s1 + $0x8] sm:$0xff]
  %v49 = vld [vmem:[%s1 + $0x10] sm:$0xff]
  %v50 = vld [vmem:[%s1 + $0x18] sm:$0xff]
  %v51 = vld [vmem:[%s1 + $0x20] sm:$0xff]
  %v52 = vld [vmem:[%s1 + $0x28] sm:$0xff]
  %v53 = vld [vmem:[%s1 + $0x30] sm:$0xff]
  %v54 = vld [vmem:[%s1 + $0x38] sm:$0xff]
  %v56 = vlaneseq
  %v57 = vshrl.u32 %v56, 7
  %v58 = vsub.s32 0, %v57
  %v59 = vrot.slane %v46, %v58
  %vm61 = vcmask 523264
  %v63 = vsel %vm61, %v44, 0
  %v66 = vsel %vm61, %v45, 0
  %68 = vmatprep.subr.mxu0 0.0
  %69 = vmatpush1.msra.mxu0 0.0
  %70 = vmatprep.subr.mxu0 0.0
  %71 = vmatpush1.msra.mxu0 0.0
  %72 = vmatprep.subr.mxu0 0.0
  %73 = vmatpush1.msra.mxu0 0.0
  %74 = vmatprep.subr.mxu0 0.0
  %75 = vmatpush1.msra.mxu0 0.0
  %76 = vmatprep.subr.mxu0 0.0
  %77 = vmatpush1.msra.mxu0 0.0
  %78 = vmatprep.subr.mxu0 0.0
  %79 = vmatpush1.msra.mxu0 0.0
  %80 = vmatprep.subr.mxu0 0.0
  %81 = vmatpush1.msra.mxu0 0.0
  %82 = vmatprep.subr.mxu0 0.0
  %83 = vmatpush1.msra.mxu0 0.0
  %84 = vmatprep.subr.mxu0 0.0
  %85 = vmatpush1.msra.mxu0 %v54
  %86 = vmatprep.subr.mxu0 0.0
  %87 = vmatpush1.msra.mxu0 %v53
  %88 = vmatprep.subr.mxu0 0.0
  %89 = vmatpush1.msra.mxu0 %v52
  %90 = vmatprep.subr.mxu0 0.0
  %91 = vmatpush1.msra.mxu0 %v51
  %92 = vmatprep.subr.mxu0 0.0
  %93 = vmatpush1.msra.mxu0 %v50
  %94 = vmatprep.subr.mxu0 0.0
  %95 = vmatpush1.msra.mxu0 %v49
  %96 = vmatprep.subr.mxu0 0.0
  %97 = vmatpush1.msra.mxu0 %v48
  %98 = vmatprep.subr.mxu0 0.0
  %99 = vmatpush1.msra.mxu0 %v47
  %100 = vmatprep.subr.mxu0 0.0
  %101 = vmatpush2.msra.mxu0 0.0
  %102 = vmatprep.subr.mxu0 0.0
  %103 = vmatpush2.msra.mxu0 0.0
  %104 = vmatprep.subr.mxu0 0.0
  %105 = vmatpush2.msra.mxu0 0.0
  %106 = vmatprep.subr.mxu0 0.0
  %107 = vmatpush2.msra.mxu0 0.0
  %108 = vmatprep.subr.mxu0 0.0
  %109 = vmatpush2.msra.mxu0 0.0
  %110 = vmatprep.subr.mxu0 0.0
  %111 = vmatpush2.msra.mxu0 0.0
  %112 = vmatprep.subr.mxu0 0.0
  %113 = vmatpush2.msra.mxu0 0.0
  %114 = vmatprep.subr.mxu0 0.0
  %115 = vmatpush2.msra.mxu0 0.0
  %116 = vmatprep.subr.mxu0 0.0
  %117 = vmatpush2.msra.mxu0 0.0
  %118 = vmatprep.subr.mxu0 0.0
  %119 = vmatpush2.msra.mxu0 0.0
  %120 = vmatprep.subr.mxu0 0.0
  %121 = vmatpush2.msra.mxu0 0.0
  %122 = vmatprep.subr.mxu0 0.0
  %123 = vmatpush2.msra.mxu0 0.0
  %124 = vmatprep.subr.mxu0 0.0
  %125 = vmatpush2.msra.mxu0 0.0
  %126 = vmatprep.subr.mxu0 0.0
  %127 = vmatpush2.msra.mxu0 0.0
  %128 = vmatprep.subr.mxu0 0.0
  %129 = vmatpush2.msra.mxu0 0.0
  %130 = vmatprep.subr.mxu0 0.0
  %131 = vmatpush2.msra.mxu0 0.0
  %132 = vmatprep.mubr.f32.mxu0 0.0
  %133 = vmatmul.mubr.f32.gmra.mxu0 %v63
  %v134 = vpop.f32.mrf.mxu0
  %v135 = vadd.f32 %v59, %v134
  %v136 = vpop.f32.mrf.mxu0
  %137 = vmatprep.mubr.f32.mxu0 0.0
  %138 = vmatmul.mubr.f32.gmra.mxu0 %v66
  %v139 = vpop.f32.mrf.mxu0
  %v140 = vadd.f32 %v59, %v139
  %v141 = vpop.f32.mrf.mxu0
  %142 = vdwg.mxu0
  %143 = vst [vmem:[#allocation2 + $0x1] sm:$0x1] %v135
  %v145 = vrot.slane %v135, 1
  %147 = vst [vmem:[#allocation2 + $0x3] sm:$0x1] %v145
  %v148 = vrot.slane %v135, 2
  %150 = vst [vmem:[#allocation2 + $0x5] sm:$0x1] %v148
  %v151 = vrot.slane %v135, 3
  %153 = vst [vmem:[#allocation2 + $0x7] sm:$0x1] %v151
  %v154 = vrot.slane %v135, 4
  %156 = vst [vmem:[#allocation2 + $0x11] sm:$0x1] %v154
  %v157 = vrot.slane %v135, 5
  %159 = vst [vmem:[#allocation2 + $0x13] sm:$0x1] %v157
  %v160 = vrot.slane %v135, 6
  %162 = vst [vmem:[#allocation2 + $0x15] sm:$0x1] %v160
  %v163 = vrot.slane %v135, 7
  %165 = vst [vmem:[#allocation2 + $0x17] sm:$0x1] %v163
  %166 = vst [vmem:[#allocation2 + $0x23] sm:$0x1] %v140
  %v168 = vrot.slane %v140, 1
  %170 = vst [vmem:[#allocation2 + $0x25] sm:$0x1] %v168
  %v171 = vrot.slane %v140, 2
  %173 = vst [vmem:[#allocation2 + $0x27] sm:$0x1] %v171
  %v174 = vrot.slane %v140, 3
  %176 = vst [vmem:[#allocation2 + $0x31] sm:$0x1] %v174
  %v177 = vrot.slane %v140, 4
  %179 = vst [vmem:[#allocation2 + $0x33] sm:$0x1] %v177
  %v180 = vrot.slane %v140, 5
  %182 = vst [vmem:[#allocation2 + $0x35] sm:$0x1] %v180
  %v183 = vrot.slane %v140, 6
  %185 = vst [vmem:[#allocation2 + $0x37] sm:$0x1] %v183
  %v186 = vrot.slane %v140, 7
  %188 = vst [vmem:[#allocation2 + $0x41] sm:$0x1] %v186
  %s189 = scalar_lea.vmem %s1, 64
  %v190 = vld [vmem:[%s189] sm:$0xff]
  %v191 = vld [vmem:[%s189 + $0x8] sm:$0xff]
  %v192 = vld [vmem:[%s189 + $0x10] sm:$0xff]
  %v193 = vld [vmem:[%s189 + $0x18] sm:$0xff]
  %v194 = vld [vmem:[%s189 + $0x20] sm:$0xff]
  %v195 = vld [vmem:[%s189 + $0x28] sm:$0xff]
  %v196 = vld [vmem:[%s189 + $0x30] sm:$0xff]
  %v197 = vld [vmem:[%s189 + $0x38] sm:$0xff]
  %198 = vmatprep.subr.mxu0 0.0
  %199 = vmatpush1.msra.mxu0 0.0
  %200 = vmatprep.subr.mxu0 0.0
  %201 = vmatpush1.msra.mxu0 0.0
  %202 = vmatprep.subr.mxu0 0.0
  %203 = vmatpush1.msra.mxu0 0.0
  %204 = vmatprep.subr.mxu0 0.0
  %205 = vmatpush1.msra.mxu0 0.0
  %206 = vmatprep.subr.mxu0 0.0
  %207 = vmatpush1.msra.mxu0 0.0
  %208 = vmatprep.subr.mxu0 0.0
  %209 = vmatpush1.msra.mxu0 0.0
  %210 = vmatprep.subr.mxu0 0.0
  %211 = vmatpush1.msra.mxu0 0.0
  %212 = vmatprep.subr.mxu0 0.0
  %213 = vmatpush1.msra.mxu0 0.0
  %214 = vmatprep.subr.mxu0 0.0
  %215 = vmatpush1.msra.mxu0 %v197
  %216 = vmatprep.subr.mxu0 0.0
  %217 = vmatpush1.msra.mxu0 %v196
  %218 = vmatprep.subr.mxu0 0.0
  %219 = vmatpush1.msra.mxu0 %v195
  %220 = vmatprep.subr.mxu0 0.0
  %221 = vmatpush1.msra.mxu0 %v194
  %222 = vmatprep.subr.mxu0 0.0
  %223 = vmatpush1.msra.mxu0 %v193
  %224 = vmatprep.subr.mxu0 0.0
  %225 = vmatpush1.msra.mxu0 %v192
  %226 = vmatprep.subr.mxu0 0.0
  %227 = vmatpush1.msra.mxu0 %v191
  %228 = vmatprep.subr.mxu0 0.0
  %229 = vmatpush1.msra.mxu0 %v190
  %230 = vmatprep.subr.mxu0 0.0
  %231 = vmatpush2.msra.mxu0 0.0
  %232 = vmatprep.subr.mxu0 0.0
  %233 = vmatpush2.msra.mxu0 0.0
  %234 = vmatprep.subr.mxu0 0.0
  %235 = vmatpush2.msra.mxu0 0.0
  %236 = vmatprep.subr.mxu0 0.0
  %237 = vmatpush2.msra.mxu0 0.0
  %238 = vmatprep.subr.mxu0 0.0
  %239 = vmatpush2.msra.mxu0 0.0
  %240 = vmatprep.subr.mxu0 0.0
  %241 = vmatpush2.msra.mxu0 0.0
  %242 = vmatprep.subr.mxu0 0.0
  %243 = vmatpush2.msra.mxu0 0.0
  %244 = vmatprep.subr.mxu0 0.0
  %245 = vmatpush2.msra.mxu0 0.0
  %246 = vmatprep.subr.mxu0 0.0
  %247 = vmatpush2.msra.mxu0 0.0
  %248 = vmatprep.subr.mxu0 0.0
  %249 = vmatpush2.msra.mxu0 0.0
  %250 = vmatprep.subr.mxu0 0.0
  %251 = vmatpush2.msra.mxu0 0.0
  %252 = vmatprep.subr.mxu0 0.0
  %253 = vmatpush2.msra.mxu0 0.0
  %254 = vmatprep.subr.mxu0 0.0
  %255 = vmatpush2.msra.mxu0 0.0
  %256 = vmatprep.subr.mxu0 0.0
  %257 = vmatpush2.msra.mxu0 0.0
  %258 = vmatprep.subr.mxu0 0.0
  %259 = vmatpush2.msra.mxu0 0.0
  %260 = vmatprep.subr.mxu0 0.0
  %261 = vmatpush2.msra.mxu0 0.0
  %262 = vmatprep.mubr.f32.mxu0 0.0
  %263 = vmatmul.mubr.f32.gmra.mxu0 %v63
  %v264 = vpop.f32.mrf.mxu0
  %v265 = vadd.f32 %v59, %v264
  %v266 = vpop.f32.mrf.mxu0
  %267 = vmatprep.mubr.f32.mxu0 0.0
  %268 = vmatmul.mubr.f32.gmra.mxu0 %v66
  %v269 = vpop.f32.mrf.mxu0
  %v270 = vadd.f32 %v59, %v269
  %v271 = vpop.f32.mrf.mxu0
  %272 = vdwg.mxu0
  %273 = vst [vmem:[#allocation2 + $0x2] sm:$0x1] %v265
  %v275 = vrot.slane %v265, 1
  %277 = vst [vmem:[#allocation2 + $0x4] sm:$0x1] %v275
  %v278 = vrot.slane %v265, 2
  %280 = vst [vmem:[#allocation2 + $0x6] sm:$0x1] %v278
  %v281 = vrot.slane %v265, 3
  %283 = vst [vmem:[#allocation2 + $0x10] sm:$0x1] %v281
  %v284 = vrot.slane %v265, 4
  %286 = vst [vmem:[#allocation2 + $0x12] sm:$0x1] %v284
  %v287 = vrot.slane %v265, 5
  %289 = vst [vmem:[#allocation2 + $0x14] sm:$0x1] %v287
  %v290 = vrot.slane %v265, 6
  %292 = vst [vmem:[#allocation2 + $0x16] sm:$0x1] %v290
  %v293 = vrot.slane %v265, 7
  %295 = vst [vmem:[#allocation2 + $0x20] sm:$0x1] %v293
  %296 = vst [vmem:[#allocation2 + $0x24] sm:$0x1] %v270
  %v298 = vrot.slane %v270, 1
  %300 = vst [vmem:[#allocation2 + $0x26] sm:$0x1] %v298
  %v301 = vrot.slane %v270, 2
  %303 = vst [vmem:[#allocation2 + $0x30] sm:$0x1] %v301
  %v304 = vrot.slane %v270, 3
  %306 = vst [vmem:[#allocation2 + $0x32] sm:$0x1] %v304
  %v307 = vrot.slane %v270, 4
  %309 = vst [vmem:[#allocation2 + $0x34] sm:$0x1] %v307
  %v310 = vrot.slane %v270, 5
  %312 = vst [vmem:[#allocation2 + $0x36] sm:$0x1] %v310
  %v313 = vrot.slane %v270, 6
  %315 = vst [vmem:[#allocation2 + $0x40] sm:$0x1] %v313
  %v316 = vrot.slane %v270, 7
  %318 = vst [vmem:[#allocation2 + $0x42] sm:$0x1] %v316
  %v319 = vld [vmem:[#allocation2] sm:$0xfe]
  %v320 = vld [vmem:[#allocation2 + $0x10] sm:$0xff]
  %v321 = vld [vmem:[#allocation2 + $0x20] sm:$0x1]
  %322 = vst [vmem:[#allocation4 - $0x1] sm:$0xfe] %v319
  %323 = vst [vmem:[#allocation4 + $0x7] sm:$0xff] %v320
  %324 = vst [vmem:[#allocation4 + $0xf] sm:$0x1] %v321
  %v325 = vld [vmem:[#allocation2 + $0x20] sm:$0xf8]
  %v326 = vld [vmem:[#allocation2 + $0x30] sm:$0xff]
  %v327 = vld [vmem:[#allocation2 + $0x40] sm:$0x7]
  %328 = vst [vmem:[#allocation4 + $0xd] sm:$0xf8] %v325
  %329 = vst [vmem:[#allocation4 + $0x15] sm:$0xff] %v326
  %330 = vst [vmem:[#allocation4 + $0x1d] sm:$0x7] %v327
  %v331 = vld [vmem:[%s7] sm:$0xff]
  %v332 = vld [vmem:[%s8] sm:$0xff]
  %v333 = vld [vmem:[%s8 + $0x8] sm:$0xff]
  %v334 = vld [vmem:[%s8 + $0x10] sm:$0xff]
  %v335 = vld [vmem:[%s8 + $0x18] sm:$0xff]
  %v336 = vld [vmem:[%s8 + $0x20] sm:$0xff]
  %v337 = vld [vmem:[%s8 + $0x28] sm:$0xff]
  %v338 = vld [vmem:[%s8 + $0x30] sm:$0xff]
  %v339 = vld [vmem:[%s8 + $0x38] sm:$0xff]
  %v340 = vld [vmem:[%s8 + $0x40] sm:$0xff]
  %v341 = vld [vmem:[%s8 + $0x48] sm:$0xff]
  %v342 = vld [vmem:[%s8 + $0x50] sm:$0xff]
  %v343 = vld [vmem:[%s8 + $0x58] sm:$0xff]
  %v344 = vld [vmem:[%s8 + $0x60] sm:$0xff]
  %v345 = vld [vmem:[%s8 + $0x68] sm:$0xff]
  %v346 = vld [vmem:[%s8 + $0x70] sm:$0xff]
  %v347 = vld [vmem:[%s8 + $0x78] sm:$0xff]
  %v348 = vld [vmem:[#allocation2] sm:$0xff]
  %v349 = vld [vmem:[#allocation2 + $0x8] sm:$0xff]
  %v350 = vld [vmem:[#allocation2 + $0x10] sm:$0xff]
  %v351 = vld [vmem:[#allocation2 + $0x18] sm:$0xff]
  %v352 = vld [vmem:[%s3] sm:$0xff]
  %v353 = vld [vmem:[%s3 + $0x8] sm:$0xff]
  %v354 = vld [vmem:[%s3 + $0x10] sm:$0xff]
  %v355 = vld [vmem:[%s3 + $0x18] sm:$0xff]
  %v356 = vld [vmem:[%s3 + $0x20] sm:$0xff]
  %v357 = vld [vmem:[%s3 + $0x28] sm:$0xff]
  %v358 = vld [vmem:[%s3 + $0x30] sm:$0xff]
  %v359 = vld [vmem:[%s3 + $0x38] sm:$0xff]
  %v360 = vld [vmem:[%s3 + $0x40] sm:$0xff]
  %v361 = vld [vmem:[%s3 + $0x48] sm:$0xff]
  %v362 = vld [vmem:[%s3 + $0x50] sm:$0xff]
  %v363 = vld [vmem:[%s3 + $0x58] sm:$0xff]
  %v364 = vld [vmem:[%s3 + $0x60] sm:$0xff]
  %v365 = vld [vmem:[%s3 + $0x68] sm:$0xff]
  %v366 = vld [vmem:[%s3 + $0x70] sm:$0xff]
  %v367 = vld [vmem:[%s3 + $0x78] sm:$0xff]
  %v368 = vld [vmem:[%s3 + $0x80] sm:$0xff]
  %v369 = vld [vmem:[%s3 + $0x88] sm:$0xff]
  %v370 = vld [vmem:[#allocation2] sm:$0xfe]
  %v371 = vld [vmem:[#allocation2 + $0x8] sm:$0xfe]
  %v372 = vld [vmem:[#allocation2 + $0x20] sm:$0x1]
  %v373 = vld [vmem:[#allocation2 + $0x28] sm:$0x1]
  %s374 = scalar_lea.vmem %s3, 144
  %v375 = vld [vmem:[%s374] sm:$0xff]
  %v376 = vld [vmem:[%s374 + $0x8] sm:$0xff]
  %v377 = vld [vmem:[%s374 + $0x10] sm:$0xff]
  %v378 = vld [vmem:[%s374 + $0x18] sm:$0xff]
  %v379 = vld [vmem:[%s374 + $0x20] sm:$0xff]
  %v380 = vld [vmem:[%s374 + $0x28] sm:$0xff]
  %v381 = vld [vmem:[%s374 + $0x30] sm:$0xff]
  %v382 = vld [vmem:[%s374 + $0x38] sm:$0xff]
  %v383 = vld [vmem:[%s374 + $0x40] sm:$0xff]
  %v384 = vld [vmem:[%s374 + $0x48] sm:$0xff]
  %v385 = vld [vmem:[%s374 + $0x50] sm:$0xff]
  %v386 = vld [vmem:[%s374 + $0x58] sm:$0xff]
  %v387 = vld [vmem:[%s374 + $0x60] sm:$0xff]
  %v388 = vld [vmem:[%s374 + $0x68] sm:$0xff]
  %v389 = vld [vmem:[%s374 + $0x70] sm:$0xff]
  %v390 = vld [vmem:[%s374 + $0x78] sm:$0xff]
  %v391 = vld [vmem:[%s374 + $0x80] sm:$0xff]
  %v392 = vld [vmem:[%s374 + $0x88] sm:$0xff]
  %vm399 = vcmask 1046528
  %v400 = vrot.slane %v370, 1
  %v401 = vrot.slane %v350, 1
  %v402 = vsel %vm399, %v400, %v401
  %v403 = vrot.slane %v371, 1
  %v404 = vrot.slane %v351, 1
  %v405 = vsel %vm399, %v403, %v404
  %v406 = vrot.slane %v372, 1
  %v407 = vsel %vm399, %v401, %v406
  %v408 = vrot.slane %v373, 1
  %v409 = vsel %vm399, %v404, %v408
  %v412 = vsel %vm33, %v405, 0
  %v414 = vsel %vm33, %v409, 0
  %416 = vmatprep.subr.mxu0 0.0
  %417 = vmatpush1.msra.mxu0 %v390
  %418 = vmatprep.subr.mxu0 0.0
  %419 = vmatpush1.msra.mxu0 %v389
  %420 = vmatprep.subr.mxu0 0.0
  %421 = vmatpush1.msra.mxu0 %v388
  %422 = vmatprep.subr.mxu0 0.0
  %423 = vmatpush1.msra.mxu0 %v387
  %424 = vmatprep.subr.mxu0 0.0
  %425 = vmatpush1.msra.mxu0 %v386
  %426 = vmatprep.subr.mxu0 0.0
  %427 = vmatpush1.msra.mxu0 %v385
  %428 = vmatprep.subr.mxu0 0.0
  %429 = vmatpush1.msra.mxu0 %v384
  %430 = vmatprep.subr.mxu0 0.0
  %431 = vmatpush1.msra.mxu0 %v383
  %432 = vmatprep.subr.mxu0 0.0
  %433 = vmatpush1.msra.mxu0 %v382
  %434 = vmatprep.subr.mxu0 0.0
  %435 = vmatpush1.msra.mxu0 %v381
  %436 = vmatprep.subr.mxu0 0.0
  %437 = vmatpush1.msra.mxu0 %v380
  %438 = vmatprep.subr.mxu0 0.0
  %439 = vmatpush1.msra.mxu0 %v379
  %440 = vmatprep.subr.mxu0 0.0
  %441 = vmatpush1.msra.mxu0 %v378
  %442 = vmatprep.subr.mxu0 0.0
  %443 = vmatpush1.msra.mxu0 %v377
  %444 = vmatprep.subr.mxu0 0.0
  %445 = vmatpush1.msra.mxu0 %v376
  %446 = vmatprep.subr.mxu0 0.0
  %447 = vmatpush1.msra.mxu0 %v375
  %448 = vmatprep.subr.mxu0 0.0
  %449 = vmatpush2.msra.mxu0 0.0
  %450 = vmatprep.subr.mxu0 0.0
  %451 = vmatpush2.msra.mxu0 0.0
  %452 = vmatprep.subr.mxu0 0.0
  %453 = vmatpush2.msra.mxu0 0.0
  %454 = vmatprep.subr.mxu0 0.0
  %455 = vmatpush2.msra.mxu0 0.0
  %456 = vmatprep.subr.mxu0 0.0
  %457 = vmatpush2.msra.mxu0 0.0
  %458 = vmatprep.subr.mxu0 0.0
  %459 = vmatpush2.msra.mxu0 0.0
  %460 = vmatprep.subr.mxu0 0.0
  %461 = vmatpush2.msra.mxu0 0.0
  %462 = vmatprep.subr.mxu0 0.0
  %463 = vmatpush2.msra.mxu0 0.0
  %464 = vmatprep.subr.mxu0 0.0
  %465 = vmatpush2.msra.mxu0 0.0
  %466 = vmatprep.subr.mxu0 0.0
  %467 = vmatpush2.msra.mxu0 0.0
  %468 = vmatprep.subr.mxu0 0.0
  %469 = vmatpush2.msra.mxu0 0.0
  %470 = vmatprep.subr.mxu0 0.0
  %471 = vmatpush2.msra.mxu0 0.0
  %472 = vmatprep.subr.mxu0 0.0
  %473 = vmatpush2.msra.mxu0 0.0
  %474 = vmatprep.subr.mxu0 0.0
  %475 = vmatpush2.msra.mxu0 0.0
  %476 = vmatprep.subr.mxu0 0.0
  %477 = vmatpush2.msra.mxu0 %v392
  %478 = vmatprep.subr.mxu0 0.0
  %479 = vmatpush2.msra.mxu0 %v391
  %480 = vmatprep.mubr.f32.mxu0 %v412
  %481 = vmatmul.mubr.f32.gmra.mxu0 %v402
  %v482 = vpop.f32.mrf.mxu0
  %v483 = vadd.f32 0.0, %v482
  %v484 = vpop.f32.mrf.mxu0
  %485 = vmatprep.mubr.f32.mxu0 %v414
  %486 = vmatmul.mubr.f32.gmra.mxu0 %v407
  %v487 = vpop.f32.mrf.mxu0
  %v488 = vadd.f32 0.0, %v487
  %v489 = vpop.f32.mrf.mxu0
  %490 = vdwg.mxu0
  %v492 = vsel %vm33, %v349, 0
  %v494 = vsel %vm33, %v351, 0
  %496 = vmatprep.subr.mxu0 0.0
  %497 = vmatpush1.msra.mxu0 %v367
  %498 = vmatprep.subr.mxu0 0.0
  %499 = vmatpush1.msra.mxu0 %v366
  %500 = vmatprep.subr.mxu0 0.0
  %501 = vmatpush1.msra.mxu0 %v365
  %502 = vmatprep.subr.mxu0 0.0
  %503 = vmatpush1.msra.mxu0 %v364
  %504 = vmatprep.subr.mxu0 0.0
  %505 = vmatpush1.msra.mxu0 %v363
  %506 = vmatprep.subr.mxu0 0.0
  %507 = vmatpush1.msra.mxu0 %v362
  %508 = vmatprep.subr.mxu0 0.0
  %509 = vmatpush1.msra.mxu0 %v361
  %510 = vmatprep.subr.mxu0 0.0
  %511 = vmatpush1.msra.mxu0 %v360
  %512 = vmatprep.subr.mxu0 0.0
  %513 = vmatpush1.msra.mxu0 %v359
  %514 = vmatprep.subr.mxu0 0.0
  %515 = vmatpush1.msra.mxu0 %v358
  %516 = vmatprep.subr.mxu0 0.0
  %517 = vmatpush1.msra.mxu0 %v357
  %518 = vmatprep.subr.mxu0 0.0
  %519 = vmatpush1.msra.mxu0 %v356
  %520 = vmatprep.subr.mxu0 0.0
  %521 = vmatpush1.msra.mxu0 %v355
  %522 = vmatprep.subr.mxu0 0.0
  %523 = vmatpush1.msra.mxu0 %v354
  %524 = vmatprep.subr.mxu0 0.0
  %525 = vmatpush1.msra.mxu0 %v353
  %526 = vmatprep.subr.mxu0 0.0
  %527 = vmatpush1.msra.mxu0 %v352
  %528 = vmatprep.subr.mxu0 0.0
  %529 = vmatpush2.msra.mxu0 0.0
  %530 = vmatprep.subr.mxu0 0.0
  %531 = vmatpush2.msra.mxu0 0.0
  %532 = vmatprep.subr.mxu0 0.0
  %533 = vmatpush2.msra.mxu0 0.0
  %534 = vmatprep.subr.mxu0 0.0
  %535 = vmatpush2.msra.mxu0 0.0
  %536 = vmatprep.subr.mxu0 0.0
  %537 = vmatpush2.msra.mxu0 0.0
  %538 = vmatprep.subr.mxu0 0.0
  %539 = vmatpush2.msra.mxu0 0.0
  %540 = vmatprep.subr.mxu0 0.0
  %541 = vmatpush2.msra.mxu0 0.0
  %542 = vmatprep.subr.mxu0 0.0
  %543 = vmatpush2.msra.mxu0 0.0
  %544 = vmatprep.subr.mxu0 0.0
  %545 = vmatpush2.msra.mxu0 0.0
  %546 = vmatprep.subr.mxu0 0.0
  %547 = vmatpush2.msra.mxu0 0.0
  %548 = vmatprep.subr.mxu0 0.0
  %549 = vmatpush2.msra.mxu0 0.0
  %550 = vmatprep.subr.mxu0 0.0
  %551 = vmatpush2.msra.mxu0 0.0
  %552 = vmatprep.subr.mxu0 0.0
  %553 = vmatpush2.msra.mxu0 0.0
  %554 = vmatprep.subr.mxu0 0.0
  %555 = vmatpush2.msra.mxu0 0.0
  %556 = vmatprep.subr.mxu0 0.0
  %557 = vmatpush2.msra.mxu0 %v369
  %558 = vmatprep.subr.mxu0 0.0
  %559 = vmatpush2.msra.mxu0 %v368
  %560 = vmatprep.mubr.f32.mxu0 %v492
  %561 = vmatmul.mubr.f32.gmra.mxu0 %v348
  %v562 = vpop.f32.mrf.mxu0
  %v563 = vadd.f32 %v483, %v562
  %v564 = vpop.f32.mrf.mxu0
  %565 = vmatprep.mubr.f32.mxu0 %v494
  %566 = vmatmul.mubr.f32.gmra.mxu0 %v350
  %v567 = vpop.f32.mrf.mxu0
  %v568 = vadd.f32 %v488, %v567
  %v569 = vpop.f32.mrf.mxu0
  %570 = vdwg.mxu0
  %v571 = vld [vmem:[#allocation2] sm:$0xfc]
  %v572 = vld [vmem:[#allocation2 + $0x8] sm:$0xfc]
  %v573 = vld [vmem:[#allocation2 + $0x20] sm:$0x3]
  %v574 = vld [vmem:[#allocation2 + $0x28] sm:$0x3]
  %s575 = scalar_lea.vmem %s3, 288
  %v576 = vld [vmem:[%s575] sm:$0xff]
  %v577 = vld [vmem:[%s575 + $0x8] sm:$0xff]
  %v578 = vld [vmem:[%s575 + $0x10] sm:$0xff]
  %v579 = vld [vmem:[%s575 + $0x18] sm:$0xff]
  %v580 = vld [vmem:[%s575 + $0x20] sm:$0xff]
  %v581 = vld [vmem:[%s575 + $0x28] sm:$0xff]
  %v582 = vld [vmem:[%s575 + $0x30] sm:$0xff]
  %v583 = vld [vmem:[%s575 + $0x38] sm:$0xff]
  %v584 = vld [vmem:[%s575 + $0x40] sm:$0xff]
  %v585 = vld [vmem:[%s575 + $0x48] sm:$0xff]
  %v586 = vld [vmem:[%s575 + $0x50] sm:$0xff]
  %v587 = vld [vmem:[%s575 + $0x58] sm:$0xff]
  %v588 = vld [vmem:[%s575 + $0x60] sm:$0xff]
  %v589 = vld [vmem:[%s575 + $0x68] sm:$0xff]
  %v590 = vld [vmem:[%s575 + $0x70] sm:$0xff]
  %v591 = vld [vmem:[%s575 + $0x78] sm:$0xff]
  %v592 = vld [vmem:[%s575 + $0x80] sm:$0xff]
  %v593 = vld [vmem:[%s575 + $0x88] sm:$0xff]
  %vm598 = vcmask 1045504
  %v599 = vrot.slane %v571, 2
  %v600 = vrot.slane %v350, 2
  %v601 = vsel %vm598, %v599, %v600
  %v602 = vrot.slane %v572, 2
  %v603 = vrot.slane %v351, 2
  %v604 = vsel %vm598, %v602, %v603
  %v605 = vrot.slane %v573, 2
  %v606 = vsel %vm598, %v600, %v605
  %v607 = vrot.slane %v574, 2
  %v608 = vsel %vm598, %v603, %v607
  %v611 = vsel %vm33, %v604, 0
  %v613 = vsel %vm33, %v608, 0
  %615 = vmatprep.subr.mxu0 0.0
  %616 = vmatpush1.msra.mxu0 %v591
  %617 = vmatprep.subr.mxu0 0.0
  %618 = vmatpush1.msra.mxu0 %v590
  %619 = vmatprep.subr.mxu0 0.0
  %620 = vmatpush1.msra.mxu0 %v589
  %621 = vmatprep.subr.mxu0 0.0
  %622 = vmatpush1.msra.mxu0 %v588
  %623 = vmatprep.subr.mxu0 0.0
  %624 = vmatpush1.msra.mxu0 %v587
  %625 = vmatprep.subr.mxu0 0.0
  %626 = vmatpush1.msra.mxu0 %v586
  %627 = vmatprep.subr.mxu0 0.0
  %628 = vmatpush1.msra.mxu0 %v585
  %629 = vmatprep.subr.mxu0 0.0
  %630 = vmatpush1.msra.mxu0 %v584
  %631 = vmatprep.subr.mxu0 0.0
  %632 = vmatpush1.msra.mxu0 %v583
  %633 = vmatprep.subr.mxu0 0.0
  %634 = vmatpush1.msra.mxu0 %v582
  %635 = vmatprep.subr.mxu0 0.0
  %636 = vmatpush1.msra.mxu0 %v581
  %637 = vmatprep.subr.mxu0 0.0
  %638 = vmatpush1.msra.mxu0 %v580
  %639 = vmatprep.subr.mxu0 0.0
  %640 = vmatpush1.msra.mxu0 %v579
  %641 = vmatprep.subr.mxu0 0.0
  %642 = vmatpush1.msra.mxu0 %v578
  %643 = vmatprep.subr.mxu0 0.0
  %644 = vmatpush1.msra.mxu0 %v577
  %645 = vmatprep.subr.mxu0 0.0
  %646 = vmatpush1.msra.mxu0 %v576
  %647 = vmatprep.subr.mxu0 0.0
  %648 = vmatpush2.msra.mxu0 0.0
  %649 = vmatprep.subr.mxu0 0.0
  %650 = vmatpush2.msra.mxu0 0.0
  %651 = vmatprep.subr.mxu0 0.0
  %652 = vmatpush2.msra.mxu0 0.0
  %653 = vmatprep.subr.mxu0 0.0
  %654 = vmatpush2.msra.mxu0 0.0
  %655 = vmatprep.subr.mxu0 0.0
  %656 = vmatpush2.msra.mxu0 0.0
  %657 = vmatprep.subr.mxu0 0.0
  %658 = vmatpush2.msra.mxu0 0.0
  %659 = vmatprep.subr.mxu0 0.0
  %660 = vmatpush2.msra.mxu0 0.0
  %661 = vmatprep.subr.mxu0 0.0
  %662 = vmatpush2.msra.mxu0 0.0
  %663 = vmatprep.subr.mxu0 0.0
  %664 = vmatpush2.msra.mxu0 0.0
  %665 = vmatprep.subr.mxu0 0.0
  %666 = vmatpush2.msra.mxu0 0.0
  %667 = vmatprep.subr.mxu0 0.0
  %668 = vmatpush2.msra.mxu0 0.0
  %669 = vmatprep.subr.mxu0 0.0
  %670 = vmatpush2.msra.mxu0 0.0
  %671 = vmatprep.subr.mxu0 0.0
  %672 = vmatpush2.msra.mxu0 0.0
  %673 = vmatprep.subr.mxu0 0.0
  %674 = vmatpush2.msra.mxu0 0.0
  %675 = vmatprep.subr.mxu0 0.0
  %676 = vmatpush2.msra.mxu0 %v593
  %677 = vmatprep.subr.mxu0 0.0
  %678 = vmatpush2.msra.mxu0 %v592
  %679 = vmatprep.mubr.f32.mxu0 %v611
  %680 = vmatmul.mubr.f32.gmra.mxu0 %v601
  %v681 = vpop.f32.mrf.mxu0
  %v682 = vadd.f32 0.0, %v681
  %v683 = vpop.f32.mrf.mxu0
  %684 = vmatprep.mubr.f32.mxu0 %v613
  %685 = vmatmul.mubr.f32.gmra.mxu0 %v606
  %v686 = vpop.f32.mrf.mxu0
  %v687 = vadd.f32 0.0, %v686
  %v688 = vpop.f32.mrf.mxu0
  %689 = vdwg.mxu0
  %v690 = vadd.f32 %v563, %v682
  %v691 = vadd.f32 %v568, %v687
  %692 = vst [vmem:[#allocation3] sm:$0xff] %v690
  %693 = vst [vmem:[#allocation3 + $0x8] sm:$0xff] %v691
  %v694 = vld [vmem:[#allocation2 + $0x20] sm:$0xfc]
  %v695 = vld [vmem:[#allocation2 + $0x28] sm:$0xfc]
  %v696 = vld [vmem:[#allocation2 + $0x30] sm:$0xff]
  %v697 = vld [vmem:[#allocation2 + $0x38] sm:$0xff]
  %v698 = vld [vmem:[#allocation2 + $0x40] sm:$0x3]
  %v699 = vld [vmem:[#allocation2 + $0x48] sm:$0x3]
  %v700 = vld [vmem:[%s3] sm:$0xff]
  %v701 = vld [vmem:[%s3 + $0x8] sm:$0xff]
  %v702 = vld [vmem:[%s3 + $0x10] sm:$0xff]
  %v703 = vld [vmem:[%s3 + $0x18] sm:$0xff]
  %v704 = vld [vmem:[%s3 + $0x20] sm:$0xff]
  %v705 = vld [vmem:[%s3 + $0x28] sm:$0xff]
  %v706 = vld [vmem:[%s3 + $0x30] sm:$0xff]
  %v707 = vld [vmem:[%s3 + $0x38] sm:$0xff]
  %v708 = vld [vmem:[%s3 + $0x40] sm:$0xff]
  %v709 = vld [vmem:[%s3 + $0x48] sm:$0xff]
  %v710 = vld [vmem:[%s3 + $0x50] sm:$0xff]
  %v711 = vld [vmem:[%s3 + $0x58] sm:$0xff]
  %v712 = vld [vmem:[%s3 + $0x60] sm:$0xff]
  %v713 = vld [vmem:[%s3 + $0x68] sm:$0xff]
  %v714 = vld [vmem:[%s3 + $0x70] sm:$0xff]
  %v715 = vld [vmem:[%s3 + $0x78] sm:$0xff]
  %v716 = vld [vmem:[%s3 + $0x80] sm:$0xff]
  %v717 = vld [vmem:[%s3 + $0x88] sm:$0xff]
  %v718 = vld [vmem:[#allocation2 + $0x20] sm:$0xf8]
  %v719 = vld [vmem:[#allocation2 + $0x28] sm:$0xf8]
  %v720 = vld [vmem:[#allocation2 + $0x40] sm:$0x7]
  %v721 = vld [vmem:[#allocation2 + $0x48] sm:$0x7]
  %v722 = vld [vmem:[%s374] sm:$0xff]
  %v723 = vld [vmem:[%s374 + $0x8] sm:$0xff]
  %v724 = vld [vmem:[%s374 + $0x10] sm:$0xff]
  %v725 = vld [vmem:[%s374 + $0x18] sm:$0xff]
  %v726 = vld [vmem:[%s374 + $0x20] sm:$0xff]
  %v727 = vld [vmem:[%s374 + $0x28] sm:$0xff]
  %v728 = vld [vmem:[%s374 + $0x30] sm:$0xff]
  %v729 = vld [vmem:[%s374 + $0x38] sm:$0xff]
  %v730 = vld [vmem:[%s374 + $0x40] sm:$0xff]
  %v731 = vld [vmem:[%s374 + $0x48] sm:$0xff]
  %v732 = vld [vmem:[%s374 + $0x50] sm:$0xff]
  %v733 = vld [vmem:[%s374 + $0x58] sm:$0xff]
  %v734 = vld [vmem:[%s374 + $0x60] sm:$0xff]
  %v735 = vld [vmem:[%s374 + $0x68] sm:$0xff]
  %v736 = vld [vmem:[%s374 + $0x70] sm:$0xff]
  %v737 = vld [vmem:[%s374 + $0x78] sm:$0xff]
  %v738 = vld [vmem:[%s374 + $0x80] sm:$0xff]
  %v739 = vld [vmem:[%s374 + $0x88] sm:$0xff]
  %vm746 = vcmask 1044480
  %v747 = vrot.slane %v718, 3
  %v748 = vrot.slane %v696, 3
  %v749 = vsel %vm746, %v747, %v748
  %v750 = vrot.slane %v719, 3
  %v751 = vrot.slane %v697, 3
  %v752 = vsel %vm746, %v750, %v751
  %v753 = vrot.slane %v720, 3
  %v754 = vsel %vm746, %v748, %v753
  %v755 = vrot.slane %v721, 3
  %v756 = vsel %vm746, %v751, %v755
  %v759 = vsel %vm33, %v752, 0
  %v761 = vsel %vm33, %v756, 0
  %763 = vmatprep.subr.mxu0 0.0
  %764 = vmatpush1.msra.mxu0 %v737
  %765 = vmatprep.subr.mxu0 0.0
  %766 = vmatpush1.msra.mxu0 %v736
  %767 = vmatprep.subr.mxu0 0.0
  %768 = vmatpush1.msra.mxu0 %v735
  %769 = vmatprep.subr.mxu0 0.0
  %770 = vmatpush1.msra.mxu0 %v734
  %771 = vmatprep.subr.mxu0 0.0
  %772 = vmatpush1.msra.mxu0 %v733
  %773 = vmatprep.subr.mxu0 0.0
  %774 = vmatpush1.msra.mxu0 %v732
  %775 = vmatprep.subr.mxu0 0.0
  %776 = vmatpush1.msra.mxu0 %v731
  %777 = vmatprep.subr.mxu0 0.0
  %778 = vmatpush1.msra.mxu0 %v730
  %779 = vmatprep.subr.mxu0 0.0
  %780 = vmatpush1.msra.mxu0 %v729
  %781 = vmatprep.subr.mxu0 0.0
  %782 = vmatpush1.msra.mxu0 %v728
  %783 = vmatprep.subr.mxu0 0.0
  %784 = vmatpush1.msra.mxu0 %v727
  %785 = vmatprep.subr.mxu0 0.0
  %786 = vmatpush1.msra.mxu0 %v726
  %787 = vmatprep.subr.mxu0 0.0
  %788 = vmatpush1.msra.mxu0 %v725
  %789 = vmatprep.subr.mxu0 0.0
  %790 = vmatpush1.msra.mxu0 %v724
  %791 = vmatprep.subr.mxu0 0.0
  %792 = vmatpush1.msra.mxu0 %v723
  %793 = vmatprep.subr.mxu0 0.0
  %794 = vmatpush1.msra.mxu0 %v722
  %795 = vmatprep.subr.mxu0 0.0
  %796 = vmatpush2.msra.mxu0 0.0
  %797 = vmatprep.subr.mxu0 0.0
  %798 = vmatpush2.msra.mxu0 0.0
  %799 = vmatprep.subr.mxu0 0.0
  %800 = vmatpush2.msra.mxu0 0.0
  %801 = vmatprep.subr.mxu0 0.0
  %802 = vmatpush2.msra.mxu0 0.0
  %803 = vmatprep.subr.mxu0 0.0
  %804 = vmatpush2.msra.mxu0 0.0
  %805 = vmatprep.subr.mxu0 0.0
  %806 = vmatpush2.msra.mxu0 0.0
  %807 = vmatprep.subr.mxu0 0.0
  %808 = vmatpush2.msra.mxu0 0.0
  %809 = vmatprep.subr.mxu0 0.0
  %810 = vmatpush2.msra.mxu0 0.0
  %811 = vmatprep.subr.mxu0 0.0
  %812 = vmatpush2.msra.mxu0 0.0
  %813 = vmatprep.subr.mxu0 0.0
  %814 = vmatpush2.msra.mxu0 0.0
  %815 = vmatprep.subr.mxu0 0.0
  %816 = vmatpush2.msra.mxu0 0.0
  %817 = vmatprep.subr.mxu0 0.0
  %818 = vmatpush2.msra.mxu0 0.0
  %819 = vmatprep.subr.mxu0 0.0
  %820 = vmatpush2.msra.mxu0 0.0
  %821 = vmatprep.subr.mxu0 0.0
  %822 = vmatpush2.msra.mxu0 0.0
  %823 = vmatprep.subr.mxu0 0.0
  %824 = vmatpush2.msra.mxu0 %v739
  %825 = vmatprep.subr.mxu0 0.0
  %826 = vmatpush2.msra.mxu0 %v738
  %827 = vmatprep.mubr.f32.mxu0 %v759
  %828 = vmatmul.mubr.f32.gmra.mxu0 %v749
  %v829 = vpop.f32.mrf.mxu0
  %v830 = vadd.f32 0.0, %v829
  %v831 = vpop.f32.mrf.mxu0
  %832 = vmatprep.mubr.f32.mxu0 %v761
  %833 = vmatmul.mubr.f32.gmra.mxu0 %v754
  %v834 = vpop.f32.mrf.mxu0
  %v835 = vadd.f32 0.0, %v834
  %v836 = vpop.f32.mrf.mxu0
  %837 = vdwg.mxu0
  %v842 = vrot.slane %v694, 2
  %v843 = vrot.slane %v696, 2
  %v844 = vsel %vm598, %v842, %v843
  %v845 = vrot.slane %v695, 2
  %v846 = vrot.slane %v697, 2
  %v847 = vsel %vm598, %v845, %v846
  %v848 = vrot.slane %v698, 2
  %v849 = vsel %vm598, %v843, %v848
  %v850 = vrot.slane %v699, 2
  %v851 = vsel %vm598, %v846, %v850
  %v854 = vsel %vm33, %v847, 0
  %v856 = vsel %vm33, %v851, 0
  %858 = vmatprep.subr.mxu0 0.0
  %859 = vmatpush1.msra.mxu0 %v715
  %860 = vmatprep.subr.mxu0 0.0
  %861 = vmatpush1.msra.mxu0 %v714
  %862 = vmatprep.subr.mxu0 0.0
  %863 = vmatpush1.msra.mxu0 %v713
  %864 = vmatprep.subr.mxu0 0.0
  %865 = vmatpush1.msra.mxu0 %v712
  %866 = vmatprep.subr.mxu0 0.0
  %867 = vmatpush1.msra.mxu0 %v711
  %868 = vmatprep.subr.mxu0 0.0
  %869 = vmatpush1.msra.mxu0 %v710
  %870 = vmatprep.subr.mxu0 0.0
  %871 = vmatpush1.msra.mxu0 %v709
  %872 = vmatprep.subr.mxu0 0.0
  %873 = vmatpush1.msra.mxu0 %v708
  %874 = vmatprep.subr.mxu0 0.0
  %875 = vmatpush1.msra.mxu0 %v707
  %876 = vmatprep.subr.mxu0 0.0
  %877 = vmatpush1.msra.mxu0 %v706
  %878 = vmatprep.subr.mxu0 0.0
  %879 = vmatpush1.msra.mxu0 %v705
  %880 = vmatprep.subr.mxu0 0.0
  %881 = vmatpush1.msra.mxu0 %v704
  %882 = vmatprep.subr.mxu0 0.0
  %883 = vmatpush1.msra.mxu0 %v703
  %884 = vmatprep.subr.mxu0 0.0
  %885 = vmatpush1.msra.mxu0 %v702
  %886 = vmatprep.subr.mxu0 0.0
  %887 = vmatpush1.msra.mxu0 %v701
  %888 = vmatprep.subr.mxu0 0.0
  %889 = vmatpush1.msra.mxu0 %v700
  %890 = vmatprep.subr.mxu0 0.0
  %891 = vmatpush2.msra.mxu0 0.0
  %892 = vmatprep.subr.mxu0 0.0
  %893 = vmatpush2.msra.mxu0 0.0
  %894 = vmatprep.subr.mxu0 0.0
  %895 = vmatpush2.msra.mxu0 0.0
  %896 = vmatprep.subr.mxu0 0.0
  %897 = vmatpush2.msra.mxu0 0.0
  %898 = vmatprep.subr.mxu0 0.0
  %899 = vmatpush2.msra.mxu0 0.0
  %900 = vmatprep.subr.mxu0 0.0
  %901 = vmatpush2.msra.mxu0 0.0
  %902 = vmatprep.subr.mxu0 0.0
  %903 = vmatpush2.msra.mxu0 0.0
  %904 = vmatprep.subr.mxu0 0.0
  %905 = vmatpush2.msra.mxu0 0.0
  %906 = vmatprep.subr.mxu0 0.0
  %907 = vmatpush2.msra.mxu0 0.0
  %908 = vmatprep.subr.mxu0 0.0
  %909 = vmatpush2.msra.mxu0 0.0
  %910 = vmatprep.subr.mxu0 0.0
  %911 = vmatpush2.msra.mxu0 0.0
  %912 = vmatprep.subr.mxu0 0.0
  %913 = vmatpush2.msra.mxu0 0.0
  %914 = vmatprep.subr.mxu0 0.0
  %915 = vmatpush2.msra.mxu0 0.0
  %916 = vmatprep.subr.mxu0 0.0
  %917 = vmatpush2.msra.mxu0 0.0
  %918 = vmatprep.subr.mxu0 0.0
  %919 = vmatpush2.msra.mxu0 %v717
  %920 = vmatprep.subr.mxu0 0.0
  %921 = vmatpush2.msra.mxu0 %v716
  %922 = vmatprep.mubr.f32.mxu0 %v854
  %923 = vmatmul.mubr.f32.gmra.mxu0 %v844
  %v924 = vpop.f32.mrf.mxu0
  %v925 = vadd.f32 %v830, %v924
  %v926 = vpop.f32.mrf.mxu0
  %927 = vmatprep.mubr.f32.mxu0 %v856
  %928 = vmatmul.mubr.f32.gmra.mxu0 %v849
  %v929 = vpop.f32.mrf.mxu0
  %v930 = vadd.f32 %v835, %v929
  %v931 = vpop.f32.mrf.mxu0
  %932 = vdwg.mxu0
  %v933 = vld [vmem:[#allocation2 + $0x20] sm:$0xf0]
  %v934 = vld [vmem:[#allocation2 + $0x28] sm:$0xf0]
  %v935 = vld [vmem:[#allocation2 + $0x40] sm:$0xf]
  %v936 = vld [vmem:[#allocation2 + $0x48] sm:$0xf]
  %v937 = vld [vmem:[%s575] sm:$0xff]
  %v938 = vld [vmem:[%s575 + $0x8] sm:$0xff]
  %v939 = vld [vmem:[%s575 + $0x10] sm:$0xff]
  %v940 = vld [vmem:[%s575 + $0x18] sm:$0xff]
  %v941 = vld [vmem:[%s575 + $0x20] sm:$0xff]
  %v942 = vld [vmem:[%s575 + $0x28] sm:$0xff]
  %v943 = vld [vmem:[%s575 + $0x30] sm:$0xff]
  %v944 = vld [vmem:[%s575 + $0x38] sm:$0xff]
  %v945 = vld [vmem:[%s575 + $0x40] sm:$0xff]
  %v946 = vld [vmem:[%s575 + $0x48] sm:$0xff]
  %v947 = vld [vmem:[%s575 + $0x50] sm:$0xff]
  %v948 = vld [vmem:[%s575 + $0x58] sm:$0xff]
  %v949 = vld [vmem:[%s575 + $0x60] sm:$0xff]
  %v950 = vld [vmem:[%s575 + $0x68] sm:$0xff]
  %v951 = vld [vmem:[%s575 + $0x70] sm:$0xff]
  %v952 = vld [vmem:[%s575 + $0x78] sm:$0xff]
  %v953 = vld [vmem:[%s575 + $0x80] sm:$0xff]
  %v954 = vld [vmem:[%s575 + $0x88] sm:$0xff]
  %vm959 = vcmask 1043456
  %v960 = vrot.slane %v933, 4
  %v961 = vrot.slane %v696, 4
  %v962 = vsel %vm959, %v960, %v961
  %v963 = vrot.slane %v934, 4
  %v964 = vrot.slane %v697, 4
  %v965 = vsel %vm959, %v963, %v964
  %v966 = vrot.slane %v935, 4
  %v967 = vsel %vm959, %v961, %v966
  %v968 = vrot.slane %v936, 4
  %v969 = vsel %vm959, %v964, %v968
  %v972 = vsel %vm33, %v965, 0
  %v974 = vsel %vm33, %v969, 0
  %976 = vmatprep.subr.mxu0 0.0
  %977 = vmatpush1.msra.mxu0 %v952
  %978 = vmatprep.subr.mxu0 0.0
  %979 = vmatpush1.msra.mxu0 %v951
  %980 = vmatprep.subr.mxu0 0.0
  %981 = vmatpush1.msra.mxu0 %v950
  %982 = vmatprep.subr.mxu0 0.0
  %983 = vmatpush1.msra.mxu0 %v949
  %984 = vmatprep.subr.mxu0 0.0
  %985 = vmatpush1.msra.mxu0 %v948
  %986 = vmatprep.subr.mxu0 0.0
  %987 = vmatpush1.msra.mxu0 %v947
  %988 = vmatprep.subr.mxu0 0.0
  %989 = vmatpush1.msra.mxu0 %v946
  %990 = vmatprep.subr.mxu0 0.0
  %991 = vmatpush1.msra.mxu0 %v945
  %992 = vmatprep.subr.mxu0 0.0
  %993 = vmatpush1.msra.mxu0 %v944
  %994 = vmatprep.subr.mxu0 0.0
  %995 = vmatpush1.msra.mxu0 %v943
  %996 = vmatprep.subr.mxu0 0.0
  %997 = vmatpush1.msra.mxu0 %v942
  %998 = vmatprep.subr.mxu0 0.0
  %999 = vmatpush1.msra.mxu0 %v941
  %1000 = vmatprep.subr.mxu0 0.0
  %1001 = vmatpush1.msra.mxu0 %v940
  %1002 = vmatprep.subr.mxu0 0.0
  %1003 = vmatpush1.msra.mxu0 %v939
  %1004 = vmatprep.subr.mxu0 0.0
  %1005 = vmatpush1.msra.mxu0 %v938
  %1006 = vmatprep.subr.mxu0 0.0
  %1007 = vmatpush1.msra.mxu0 %v937
  %1008 = vmatprep.subr.mxu0 0.0
  %1009 = vmatpush2.msra.mxu0 0.0
  %1010 = vmatprep.subr.mxu0 0.0
  %1011 = vmatpush2.msra.mxu0 0.0
  %1012 = vmatprep.subr.mxu0 0.0
  %1013 = vmatpush2.msra.mxu0 0.0
  %1014 = vmatprep.subr.mxu0 0.0
  %1015 = vmatpush2.msra.mxu0 0.0
  %1016 = vmatprep.subr.mxu0 0.0
  %1017 = vmatpush2.msra.mxu0 0.0
  %1018 = vmatprep.subr.mxu0 0.0
  %1019 = vmatpush2.msra.mxu0 0.0
  %1020 = vmatprep.subr.mxu0 0.0
  %1021 = vmatpush2.msra.mxu0 0.0
  %1022 = vmatprep.subr.mxu0 0.0
  %1023 = vmatpush2.msra.mxu0 0.0
  %1024 = vmatprep.subr.mxu0 0.0
  %1025 = vmatpush2.msra.mxu0 0.0
  %1026 = vmatprep.subr.mxu0 0.0
  %1027 = vmatpush2.msra.mxu0 0.0
  %1028 = vmatprep.subr.mxu0 0.0
  %1029 = vmatpush2.msra.mxu0 0.0
  %1030 = vmatprep.subr.mxu0 0.0
  %1031 = vmatpush2.msra.mxu0 0.0
  %1032 = vmatprep.subr.mxu0 0.0
  %1033 = vmatpush2.msra.mxu0 0.0
  %1034 = vmatprep.subr.mxu0 0.0
  %1035 = vmatpush2.msra.mxu0 0.0
  %1036 = vmatprep.subr.mxu0 0.0
  %1037 = vmatpush2.msra.mxu0 %v954
  %1038 = vmatprep.subr.mxu0 0.0
  %1039 = vmatpush2.msra.mxu0 %v953
  %1040 = vmatprep.mubr.f32.mxu0 %v972
  %1041 = vmatmul.mubr.f32.gmra.mxu0 %v962
  %v1042 = vpop.f32.mrf.mxu0
  %v1043 = vadd.f32 0.0, %v1042
  %v1044 = vpop.f32.mrf.mxu0
  %1045 = vmatprep.mubr.f32.mxu0 %v974
  %1046 = vmatmul.mubr.f32.gmra.mxu0 %v967
  %v1047 = vpop.f32.mrf.mxu0
  %v1048 = vadd.f32 0.0, %v1047
  %v1049 = vpop.f32.mrf.mxu0
  %1050 = vdwg.mxu0
  %v1051 = vadd.f32 %v925, %v1043
  %v1052 = vadd.f32 %v930, %v1048
  %1053 = vst [vmem:[#allocation3 + $0x10] sm:$0xff] %v1051
  %1054 = vst [vmem:[#allocation3 + $0x18] sm:$0xff] %v1052
  %v1055 = vld [vmem:[#allocation3] sm:$0xff]
  %v1056 = vld [vmem:[#allocation3 + $0x8] sm:$0xff]
  %v1057 = vld [vmem:[#allocation3 + $0x10] sm:$0xff]
  %v1058 = vld [vmem:[#allocation3 + $0x18] sm:$0xff]
  %v1059 = vld [vmem:[%s4] sm:$0x1]
  %v1061 = vlaneseq
  %v1062 = vshrl.u32 %v1061, 7
  %v1063 = vsub.s32 0, %v1062
  %v1064 = vrot.slane %v1059, %v1063
  %v1066 = vadd.f32 %v1055, %v1064
  %v1067 = vadd.f32 %v1056, %v1064
  %v1068 = vadd.f32 %v1057, %v1064
  %v1069 = vadd.f32 %v1058, %v1064
  %v1070 = vadd.f32 %v1066, %v1067
  %v1071 = vadd.f32 %v1070, %v1068
  %v1072 = vadd.f32 %v1071, %v1069
  %v1073 = vrot.slane %v1072, 4
  %v1074 = vadd.f32 %v1072, %v1073
  %v1075 = vrot.slane %v1074, 2
  %v1076 = vadd.f32 %v1074, %v1075
  %v1077 = vrot.slane %v1076, 1
  %v1078 = vadd.f32 %v1076, %v1077
  %v1079 = vmul.f32 %v1066, %v1066
  %v1080 = vmul.f32 %v1067, %v1067
  %v1081 = vmul.f32 %v1068, %v1068
  %v1082 = vmul.f32 %v1069, %v1069
  %v1083 = vadd.f32 %v1079, %v1080
  %v1084 = vadd.f32 %v1083, %v1081
  %v1085 = vadd.f32 %v1084, %v1082
  %v1086 = vrot.slane %v1085, 4
  %v1087 = vadd.f32 %v1085, %v1086
  %v1088 = vrot.slane %v1087, 2
  %v1089 = vadd.f32 %v1087, %v1088
  %v1090 = vrot.slane %v1089, 1
  %v1091 = vadd.f32 %v1089, %v1090
  %1092 = vmatprep.subr.mxu0 0.0
  %1093 = vmatpush1.msra.mxu0 %v347
  %1094 = vmatprep.subr.mxu0 0.0
  %1095 = vmatpush1.msra.mxu0 %v346
  %1096 = vmatprep.subr.mxu0 0.0
  %1097 = vmatpush1.msra.mxu0 %v345
  %1098 = vmatprep.subr.mxu0 0.0
  %1099 = vmatpush1.msra.mxu0 %v344
  %1100 = vmatprep.subr.mxu0 0.0
  %1101 = vmatpush1.msra.mxu0 %v343
  %1102 = vmatprep.subr.mxu0 0.0
  %1103 = vmatpush1.msra.mxu0 %v342
  %1104 = vmatprep.subr.mxu0 0.0
  %1105 = vmatpush1.msra.mxu0 %v341
  %1106 = vmatprep.subr.mxu0 0.0
  %1107 = vmatpush1.msra.mxu0 %v340
  %1108 = vmatprep.subr.mxu0 0.0
  %1109 = vmatpush1.msra.mxu0 %v339
  %1110 = vmatprep.subr.mxu0 0.0
  %1111 = vmatpush1.msra.mxu0 %v338
  %1112 = vmatprep.subr.mxu0 0.0
  %1113 = vmatpush1.msra.mxu0 %v337
  %1114 = vmatprep.subr.mxu0 0.0
  %1115 = vmatpush1.msra.mxu0 %v336
  %1116 = vmatprep.subr.mxu0 0.0
  %1117 = vmatpush1.msra.mxu0 %v335
  %1118 = vmatprep.subr.mxu0 0.0
  %1119 = vmatpush1.msra.mxu0 %v334
  %1120 = vmatprep.subr.mxu0 0.0
  %1121 = vmatpush1.msra.mxu0 %v333
  %1122 = vmatprep.subr.mxu0 0.0
  %1123 = vmatpush1.msra.mxu0 %v332
  %1124 = vmatprep.subr.mxu0 0.0
  %1125 = vmatpush2.msra.mxu0 0.0
  %1126 = vmatprep.subr.mxu0 0.0
  %1127 = vmatpush2.msra.mxu0 0.0
  %1128 = vmatprep.subr.mxu0 0.0
  %1129 = vmatpush2.msra.mxu0 0.0
  %1130 = vmatprep.subr.mxu0 0.0
  %1131 = vmatpush2.msra.mxu0 0.0
  %1132 = vmatprep.subr.mxu0 0.0
  %1133 = vmatpush2.msra.mxu0 0.0
  %1134 = vmatprep.subr.mxu0 0.0
  %1135 = vmatpush2.msra.mxu0 0.0
  %1136 = vmatprep.subr.mxu0 0.0
  %1137 = vmatpush2.msra.mxu0 0.0
  %1138 = vmatprep.subr.mxu0 0.0
  %1139 = vmatpush2.msra.mxu0 0.0
  %1140 = vmatprep.subr.mxu0 0.0
  %1141 = vmatpush2.msra.mxu0 0.0
  %1142 = vmatprep.subr.mxu0 0.0
  %1143 = vmatpush2.msra.mxu0 0.0
  %1144 = vmatprep.subr.mxu0 0.0
  %1145 = vmatpush2.msra.mxu0 0.0
  %1146 = vmatprep.subr.mxu0 0.0
  %1147 = vmatpush2.msra.mxu0 0.0
  %1148 = vmatprep.subr.mxu0 0.0
  %1149 = vmatpush2.msra.mxu0 0.0
  %1150 = vmatprep.subr.mxu0 0.0
  %1151 = vmatpush2.msra.mxu0 0.0
  %1152 = vmatprep.subr.mxu0 0.0
  %1153 = vmatpush2.msra.mxu0 0.0
  %1154 = vmatprep.subr.mxu0 0.0
  %1155 = vmatpush2.msra.mxu0 0.0
  %1156 = vmatprep.mubr.f32.mxu0 0.0
  %1157 = vmatmul.mubr.f32.gmra.mxu0 %v1078
  %v1158 = vpop.f32.mrf.mxu0
  %v1159 = vadd.f32 0.0, %v1158
  %v1160 = vpop.f32.mrf.mxu0
  %1161 = vdwg.mxu0
  %1162 = vmatprep.subr.mxu0 0.0
  %1163 = vmatpush1.msra.mxu0 %v347
  %1164 = vmatprep.subr.mxu0 0.0
  %1165 = vmatpush1.msra.mxu0 %v346
  %1166 = vmatprep.subr.mxu0 0.0
  %1167 = vmatpush1.msra.mxu0 %v345
  %1168 = vmatprep.subr.mxu0 0.0
  %1169 = vmatpush1.msra.mxu0 %v344
  %1170 = vmatprep.subr.mxu0 0.0
  %1171 = vmatpush1.msra.mxu0 %v343
  %1172 = vmatprep.subr.mxu0 0.0
  %1173 = vmatpush1.msra.mxu0 %v342
  %1174 = vmatprep.subr.mxu0 0.0
  %1175 = vmatpush1.msra.mxu0 %v341
  %1176 = vmatprep.subr.mxu0 0.0
  %1177 = vmatpush1.msra.mxu0 %v340
  %1178 = vmatprep.subr.mxu0 0.0
  %1179 = vmatpush1.msra.mxu0 %v339
  %1180 = vmatprep.subr.mxu0 0.0
  %1181 = vmatpush1.msra.mxu0 %v338
  %1182 = vmatprep.subr.mxu0 0.0
  %1183 = vmatpush1.msra.mxu0 %v337
  %1184 = vmatprep.subr.mxu0 0.0
  %1185 = vmatpush1.msra.mxu0 %v336
  %1186 = vmatprep.subr.mxu0 0.0
  %1187 = vmatpush1.msra.mxu0 %v335
  %1188 = vmatprep.subr.mxu0 0.0
  %1189 = vmatpush1.msra.mxu0 %v334
  %1190 = vmatprep.subr.mxu0 0.0
  %1191 = vmatpush1.msra.mxu0 %v333
  %1192 = vmatprep.subr.mxu0 0.0
  %1193 = vmatpush1.msra.mxu0 %v332
  %1194 = vmatprep.subr.mxu0 0.0
  %1195 = vmatpush2.msra.mxu0 0.0
  %1196 = vmatprep.subr.mxu0 0.0
  %1197 = vmatpush2.msra.mxu0 0.0
  %1198 = vmatprep.subr.mxu0 0.0
  %1199 = vmatpush2.msra.mxu0 0.0
  %1200 = vmatprep.subr.mxu0 0.0
  %1201 = vmatpush2.msra.mxu0 0.0
  %1202 = vmatprep.subr.mxu0 0.0
  %1203 = vmatpush2.msra.mxu0 0.0
  %1204 = vmatprep.subr.mxu0 0.0
  %1205 = vmatpush2.msra.mxu0 0.0
  %1206 = vmatprep.subr.mxu0 0.0
  %1207 = vmatpush2.msra.mxu0 0.0
  %1208 = vmatprep.subr.mxu0 0.0
  %1209 = vmatpush2.msra.mxu0 0.0
  %1210 = vmatprep.subr.mxu0 0.0
  %1211 = vmatpush2.msra.mxu0 0.0
  %1212 = vmatprep.subr.mxu0 0.0
  %1213 = vmatpush2.msra.mxu0 0.0
  %1214 = vmatprep.subr.mxu0 0.0
  %1215 = vmatpush2.msra.mxu0 0.0
  %1216 = vmatprep.subr.mxu0 0.0
  %1217 = vmatpush2.msra.mxu0 0.0
  %1218 = vmatprep.subr.mxu0 0.0
  %1219 = vmatpush2.msra.mxu0 0.0
  %1220 = vmatprep.subr.mxu0 0.0
  %1221 = vmatpush2.msra.mxu0 0.0
  %1222 = vmatprep.subr.mxu0 0.0
  %1223 = vmatpush2.msra.mxu0 0.0
  %1224 = vmatprep.subr.mxu0 0.0
  %1225 = vmatpush2.msra.mxu0 0.0
  %1226 = vmatprep.mubr.f32.mxu0 0.0
  %1227 = vmatmul.mubr.f32.gmra.mxu0 %v1091
  %v1228 = vpop.f32.mrf.mxu0
  %v1229 = vadd.f32 0.0, %v1228
  %v1230 = vpop.f32.mrf.mxu0
  %1231 = vdwg.mxu0
  %v1232 = vmul.f32 %v1159, 0.001953125
  %v1233 = vmul.f32 %v1229, 0.001953125
  %v1234 = vmul.f32 %v1232, %v1232
  %v1235 = vsub.f32 %v1233, %v1234
  %v1236 = vadd.f32 %v1235, 1e-05
  %v1237 = vrsqrt.pop %v1236
  %vm1238 = vcmask 64512
  %v1240 = vsel %vm1238, %v1232, 0
  %1242 = vmatprep.subr.mxu0 0.0
  %1243 = vmatpush1.msra.mxu0 0.0
  %1244 = vmatprep.subr.mxu0 0.0
  %1245 = vmatpush1.msra.mxu0 0.0
  %1246 = vmatprep.subr.mxu0 0.0
  %1247 = vmatpush1.msra.mxu0 0.0
  %1248 = vmatprep.subr.mxu0 0.0
  %1249 = vmatpush1.msra.mxu0 0.0
  %1250 = vmatprep.subr.mxu0 0.0
  %1251 = vmatpush1.msra.mxu0 0.0
  %1252 = vmatprep.subr.mxu0 0.0
  %1253 = vmatpush1.msra.mxu0 0.0
  %1254 = vmatprep.subr.mxu0 0.0
  %1255 = vmatpush1.msra.mxu0 0.0
  %1256 = vmatprep.subr.mxu0 0.0
  %1257 = vmatpush1.msra.mxu0 0.0
  %1258 = vmatprep.subr.mxu0 0.0
  %1259 = vmatpush1.msra.mxu0 0.0
  %1260 = vmatprep.subr.mxu0 0.0
  %1261 = vmatpush1.msra.mxu0 0.0
  %1262 = vmatprep.subr.mxu0 0.0
  %1263 = vmatpush1.msra.mxu0 0.0
  %1264 = vmatprep.subr.mxu0 0.0
  %1265 = vmatpush1.msra.mxu0 0.0
  %1266 = vmatprep.subr.mxu0 0.0
  %1267 = vmatpush1.msra.mxu0 0.0
  %1268 = vmatprep.subr.mxu0 0.0
  %1269 = vmatpush1.msra.mxu0 0.0
  %1270 = vmatprep.subr.mxu0 0.0
  %1271 = vmatpush1.msra.mxu0 0.0
  %1272 = vmatprep.subr.mxu0 0.0
  %1273 = vmatpush1.msra.mxu0 %v331
  %1274 = vmatprep.subr.mxu0 0.0
  %1275 = vmatpush2.msra.mxu0 0.0
  %1276 = vmatprep.subr.mxu0 0.0
  %1277 = vmatpush2.msra.mxu0 0.0
  %1278 = vmatprep.subr.mxu0 0.0
  %1279 = vmatpush2.msra.mxu0 0.0
  %1280 = vmatprep.subr.mxu0 0.0
  %1281 = vmatpush2.msra.mxu0 0.0
  %1282 = vmatprep.subr.mxu0 0.0
  %1283 = vmatpush2.msra.mxu0 0.0
  %1284 = vmatprep.subr.mxu0 0.0
  %1285 = vmatpush2.msra.mxu0 0.0
  %1286 = vmatprep.subr.mxu0 0.0
  %1287 = vmatpush2.msra.mxu0 0.0
  %1288 = vmatprep.subr.mxu0 0.0
  %1289 = vmatpush2.msra.mxu0 0.0
  %1290 = vmatprep.subr.mxu0 0.0
  %1291 = vmatpush2.msra.mxu0 0.0
  %1292 = vmatprep.subr.mxu0 0.0
  %1293 = vmatpush2.msra.mxu0 0.0
  %1294 = vmatprep.subr.mxu0 0.0
  %1295 = vmatpush2.msra.mxu0 0.0
  %1296 = vmatprep.subr.mxu0 0.0
  %1297 = vmatpush2.msra.mxu0 0.0
  %1298 = vmatprep.subr.mxu0 0.0
  %1299 = vmatpush2.msra.mxu0 0.0
  %1300 = vmatprep.subr.mxu0 0.0
  %1301 = vmatpush2.msra.mxu0 0.0
  %1302 = vmatprep.subr.mxu0 0.0
  %1303 = vmatpush2.msra.mxu0 0.0
  %1304 = vmatprep.subr.mxu0 0.0
  %1305 = vmatpush2.msra.mxu0 0.0
  %1306 = vmatprep.mubr.f32.mxu0 0.0
  %1307 = vmatmul.mubr.f32.gmra.mxu0 %v1240
  %v1308 = vpop.f32.mrf.mxu0
  %v1309 = vadd.f32 0.0, %v1308
  %v1310 = vpop.f32.mrf.mxu0
  %1311 = vdwg.mxu0
  %v1313 = vsel %vm1238, %v1237, 0
  %1315 = vmatprep.subr.mxu0 0.0
  %1316 = vmatpush1.msra.mxu0 0.0
  %1317 = vmatprep.subr.mxu0 0.0
  %1318 = vmatpush1.msra.mxu0 0.0
  %1319 = vmatprep.subr.mxu0 0.0
  %1320 = vmatpush1.msra.mxu0 0.0
  %1321 = vmatprep.subr.mxu0 0.0
  %1322 = vmatpush1.msra.mxu0 0.0
  %1323 = vmatprep.subr.mxu0 0.0
  %1324 = vmatpush1.msra.mxu0 0.0
  %1325 = vmatprep.subr.mxu0 0.0
  %1326 = vmatpush1.msra.mxu0 0.0
  %1327 = vmatprep.subr.mxu0 0.0
  %1328 = vmatpush1.msra.mxu0 0.0
  %1329 = vmatprep.subr.mxu0 0.0
  %1330 = vmatpush1.msra.mxu0 0.0
  %1331 = vmatprep.subr.mxu0 0.0
  %1332 = vmatpush1.msra.mxu0 0.0
  %1333 = vmatprep.subr.mxu0 0.0
  %1334 = vmatpush1.msra.mxu0 0.0
  %1335 = vmatprep.subr.mxu0 0.0
  %1336 = vmatpush1.msra.mxu0 0.0
  %1337 = vmatprep.subr.mxu0 0.0
  %1338 = vmatpush1.msra.mxu0 0.0
  %1339 = vmatprep.subr.mxu0 0.0
  %1340 = vmatpush1.msra.mxu0 0.0
  %1341 = vmatprep.subr.mxu0 0.0
  %1342 = vmatpush1.msra.mxu0 0.0
  %1343 = vmatprep.subr.mxu0 0.0
  %1344 = vmatpush1.msra.mxu0 0.0
  %1345 = vmatprep.subr.mxu0 0.0
  %1346 = vmatpush1.msra.mxu0 %v331
  %1347 = vmatprep.subr.mxu0 0.0
  %1348 = vmatpush2.msra.mxu0 0.0
  %1349 = vmatprep.subr.mxu0 0.0
  %1350 = vmatpush2.msra.mxu0 0.0
  %1351 = vmatprep.subr.mxu0 0.0
  %1352 = vmatpush2.msra.mxu0 0.0
  %1353 = vmatprep.subr.mxu0 0.0
  %1354 = vmatpush2.msra.mxu0 0.0
  %1355 = vmatprep.subr.mxu0 0.0
  %1356 = vmatpush2.msra.mxu0 0.0
  %1357 = vmatprep.subr.mxu0 0.0
  %1358 = vmatpush2.msra.mxu0 0.0
  %1359 = vmatprep.subr.mxu0 0.0
  %1360 = vmatpush2.msra.mxu0 0.0
  %1361 = vmatprep.subr.mxu0 0.0
  %1362 = vmatpush2.msra.mxu0 0.0
  %1363 = vmatprep.subr.mxu0 0.0
  %1364 = vmatpush2.msra.mxu0 0.0
  %1365 = vmatprep.subr.mxu0 0.0
  %1366 = vmatpush2.msra.mxu0 0.0
  %1367 = vmatprep.subr.mxu0 0.0
  %1368 = vmatpush2.msra.mxu0 0.0
  %1369 = vmatprep.subr.mxu0 0.0
  %1370 = vmatpush2.msra.mxu0 0.0
  %1371 = vmatprep.subr.mxu0 0.0
  %1372 = vmatpush2.msra.mxu0 0.0
  %1373 = vmatprep.subr.mxu0 0.0
  %1374 = vmatpush2.msra.mxu0 0.0
  %1375 = vmatprep.subr.mxu0 0.0
  %1376 = vmatpush2.msra.mxu0 0.0
  %1377 = vmatprep.subr.mxu0 0.0
  %1378 = vmatpush2.msra.mxu0 0.0
  %1379 = vmatprep.mubr.f32.mxu0 0.0
  %1380 = vmatmul.mubr.f32.gmra.mxu0 %v1313
  %v1381 = vpop.f32.mrf.mxu0
  %v1382 = vadd.f32 0.0, %v1381
  %v1383 = vpop.f32.mrf.mxu0
  %1384 = vdwg.mxu0
  %v1385 = vld [vmem:[%s5] sm:$0x1]
  %v1386 = vlaneseq
  %v1387 = vshrl.u32 %v1386, 7
  %v1388 = vsub.s32 0, %v1387
  %v1389 = vrot.slane %v1309, %v1388
  %v1390 = vsub.f32 %v1066, %v1389
  %v1391 = vsub.f32 %v1067, %v1389
  %v1392 = vsub.f32 %v1068, %v1389
  %v1393 = vsub.f32 %v1069, %v1389
  %v1395 = vlaneseq
  %v1396 = vshrl.u32 %v1395, 7
  %v1397 = vsub.s32 0, %v1396
  %v1398 = vrot.slane %v1385, %v1397
  %v1400 = vmul.f32 %v1398, %v1390
  %v1401 = vmul.f32 %v1398, %v1391
  %v1402 = vmul.f32 %v1398, %v1392
  %v1403 = vmul.f32 %v1398, %v1393
  %v1404 = vlaneseq
  %v1405 = vshrl.u32 %v1404, 7
  %v1406 = vsub.s32 0, %v1405
  %v1407 = vrot.slane %v1382, %v1406
  %v1408 = vmul.f32 %v1400, %v1407
  %v1409 = vmul.f32 %v1401, %v1407
  %v1410 = vmul.f32 %v1402, %v1407
  %v1411 = vmul.f32 %v1403, %v1407
  %v1412 = vld [vmem:[%s6] sm:$0x1]
  %v1414 = vlaneseq
  %v1415 = vshrl.u32 %v1414, 7
  %v1416 = vsub.s32 0, %v1415
  %v1417 = vrot.slane %v1412, %v1416
  %v1419 = vadd.f32 %v1408, %v1417
  %v1420 = vadd.f32 %v1409, %v1417
  %v1421 = vadd.f32 %v1410, %v1417
  %v1422 = vadd.f32 %v1411, %v1417
  %v1423 = vmul.f32 %v1419, 0.5
  %v1424 = vmul.f32 %v1420, 0.5
  %v1425 = vmul.f32 %v1421, 0.5
  %v1426 = vmul.f32 %v1422, 0.5
  %v1427 = vmul.f32 %v1419, 0.70710677
  %v1428 = vmul.f32 %v1420, 0.70710677
  %v1429 = vmul.f32 %v1421, 0.70710677
  %v1430 = vmul.f32 %v1422, 0.70710677
  %vm1431 = vcmp.lt.f32.partialorder %v1427, 0.0
  %vm1432 = vcmp.lt.f32.partialorder %v1428, 0.0
  %vm1433 = vcmp.lt.f32.partialorder %v1429, 0.0
  %vm1434 = vcmp.lt.f32.partialorder %v1430, 0.0
  %v1435 = vsel %vm1431, -1.0, 1.0
  %v1436 = vsel %vm1432, -1.0, 1.0
  %v1437 = vsel %vm1433, -1.0, 1.0
  %v1438 = vsel %vm1434, -1.0, 1.0
  %v1439 = vand.u32 2147483647, %v1427
  %v1440 = vand.u32 2147483647, %v1428
  %v1441 = vand.u32 2147483647, %v1429
  %v1442 = vand.u32 2147483647, %v1430
  %v1443 = vmul.f32 %v1439, 0.3275911
  %v1444 = vmul.f32 %v1440, 0.3275911
  %v1445 = vmul.f32 %v1441, 0.3275911
  %v1446 = vmul.f32 %v1442, 0.3275911
  %v1447 = vadd.f32 %v1443, 1.0
  %v1448 = vadd.f32 %v1444, 1.0
  %v1449 = vadd.f32 %v1445, 1.0
  %v1450 = vadd.f32 %v1446, 1.0
  %v1451 = vrcp.pop %v1447
  %v1452 = vmul.f32 1.0, %v1451
  %v1453 = vrcp.pop %v1448
  %v1454 = vmul.f32 1.0, %v1453
  %v1455 = vrcp.pop %v1449
  %v1456 = vmul.f32 1.0, %v1455
  %v1457 = vrcp.pop %v1450
  %v1458 = vmul.f32 1.0, %v1457
  %v1459 = vmul.f32 %v1452, 1.0614054
  %v1460 = vmul.f32 %v1454, 1.0614054
  %v1461 = vmul.f32 %v1456, 1.0614054
  %v1462 = vmul.f32 %v1458, 1.0614054
  %v1463 = vadd.f32 %v1459, -1.4531521
  %v1464 = vadd.f32 %v1460, -1.4531521
  %v1465 = vadd.f32 %v1461, -1.4531521
  %v1466 = vadd.f32 %v1462, -1.4531521
  %v1467 = vmul.f32 %v1463, %v1452
  %v1468 = vmul.f32 %v1464, %v1454
  %v1469 = vmul.f32 %v1465, %v1456
  %v1470 = vmul.f32 %v1466, %v1458
  %v1471 = vadd.f32 %v1467, 1.4214138
  %v1472 = vadd.f32 %v1468, 1.4214138
  %v1473 = vadd.f32 %v1469, 1.4214138
  %v1474 = vadd.f32 %v1470, 1.4214138
  %v1475 = vmul.f32 %v1471, %v1452
  %v1476 = vmul.f32 %v1472, %v1454
  %v1477 = vmul.f32 %v1473, %v1456
  %v1478 = vmul.f32 %v1474, %v1458
  %v1479 = vadd.f32 %v1475, -0.28449672
  %v1480 = vadd.f32 %v1476, -0.28449672
  %v1481 = vadd.f32 %v1477, -0.28449672
  %v1482 = vadd.f32 %v1478, -0.28449672
  %v1483 = vmul.f32 %v1479, %v1452
  %v1484 = vmul.f32 %v1480, %v1454
  %v1485 = vmul.f32 %v1481, %v1456
  %v1486 = vmul.f32 %v1482, %v1458
  %v1487 = vadd.f32 %v1483, 0.2548296
  %v1488 = vadd.f32 %v1484, 0.2548296
  %v1489 = vadd.f32 %v1485, 0.2548296
  %v1490 = vadd.f32 %v1486, 0.2548296
  %v1491 = vmul.f32 %v1487, %v1452
  %v1492 = vmul.f32 %v1488, %v1454
  %v1493 = vmul.f32 %v1489, %v1456
  %v1494 = vmul.f32 %v1490, %v1458
  %v1495 = vsub.f32 0.0, %v1439
  %v1496 = vsub.f32 0.0, %v1440
  %v1497 = vsub.f32 0.0, %v1441
  %v1498 = vsub.f32 0.0, %v1442
  %v1499 = vmul.f32 %v1495, %v1439
  %v1500 = vmul.f32 %v1496, %v1440
  %v1501 = vmul.f32 %v1497, %v1441
  %v1502 = vmul.f32 %v1498, %v1442
  %v1503 = vmul.f32 %v1499, 1.442695
  %v1504 = vpow.pop %v1503
  %v1505 = vmul.f32 %v1500, 1.442695
  %v1506 = vpow.pop %v1505
  %v1507 = vmul.f32 %v1501, 1.442695
  %v1508 = vpow.pop %v1507
  %v1509 = vmul.f32 %v1502, 1.442695
  %v1510 = vpow.pop %v1509
  %v1511 = vmul.f32 %v1491, %v1504
  %v1512 = vmul.f32 %v1492, %v1506
  %v1513 = vmul.f32 %v1493, %v1508
  %v1514 = vmul.f32 %v1494, %v1510
  %v1515 = vsub.f32 1.0, %v1511
  %v1516 = vsub.f32 1.0, %v1512
  %v1517 = vsub.f32 1.0, %v1513
  %v1518 = vsub.f32 1.0, %v1514
  %v1519 = vmul.f32 %v1435, %v1515
  %v1520 = vmul.f32 %v1436, %v1516
  %v1521 = vmul.f32 %v1437, %v1517
  %v1522 = vmul.f32 %v1438, %v1518
  %v1523 = vadd.f32 %v1519, 1.0
  %v1524 = vadd.f32 %v1520, 1.0
  %v1525 = vadd.f32 %v1521, 1.0
  %v1526 = vadd.f32 %v1522, 1.0
  %v1527 = vmul.f32 %v1423, %v1523
  %v1528 = vmul.f32 %v1424, %v1524
  %v1529 = vmul.f32 %v1425, %v1525
  %v1530 = vmul.f32 %v1426, %v1526
  %vm1533 = vcmask 1040384
  %v1534 = vrot.slane %v1527, 7
  %v1535 = vrot.slane %v1528, 7
  %v1536 = vsel %vm1533, %v1534, %v1535
  %1540 = vst [vmem:[#allocation2] sm:$0xfe] %v1534
  %1541 = vst [vmem:[#allocation2 + $0x10] sm:$0xff] %v1536
  %1542 = vst [vmem:[#allocation2 + $0x20] sm:$0x1] %v1535
  %vm1545 = vcmask 1042432
  %v1546 = vrot.slane %v1529, 5
  %v1547 = vrot.slane %v1530, 5
  %v1548 = vsel %vm1545, %v1546, %v1547
  %1552 = vst [vmem:[#allocation2 + $0x20] sm:$0xf8] %v1546
  %1553 = vst [vmem:[#allocation2 + $0x30] sm:$0xff] %v1548
  %1554 = vst [vmem:[#allocation2 + $0x40] sm:$0x7] %v1547
  %v1555 = vld [vmem:[#allocation2] sm:$0xff]
  %v1556 = vld [vmem:[#allocation2 + $0x8] sm:$0xff]
  %v1557 = vld [vmem:[#allocation2 + $0x10] sm:$0xff]
  %v1558 = vld [vmem:[#allocation2 + $0x18] sm:$0xff]
  %s1559 = scalar_lea.vmem %s3, 432
  %v1560 = vld [vmem:[%s1559] sm:$0xff]
  %v1561 = vld [vmem:[%s1559 + $0x8] sm:$0xff]
  %v1562 = vld [vmem:[%s1559 + $0x10] sm:$0xff]
  %v1563 = vld [vmem:[%s1559 + $0x18] sm:$0xff]
  %v1564 = vld [vmem:[%s1559 + $0x20] sm:$0xff]
  %v1565 = vld [vmem:[%s1559 + $0x28] sm:$0xff]
  %v1566 = vld [vmem:[%s1559 + $0x30] sm:$0xff]
  %v1567 = vld [vmem:[%s1559 + $0x38] sm:$0xff]
  %v1568 = vld [vmem:[%s1559 + $0x40] sm:$0xff]
  %v1569 = vld [vmem:[%s1559 + $0x48] sm:$0xff]
  %v1570 = vld [vmem:[%s1559 + $0x50] sm:$0xff]
  %v1571 = vld [vmem:[%s1559 + $0x58] sm:$0xff]
  %v1572 = vld [vmem:[%s1559 + $0x60] sm:$0xff]
  %v1573 = vld [vmem:[%s1559 + $0x68] sm:$0xff]
  %v1574 = vld [vmem:[%s1559 + $0x70] sm:$0xff]
  %v1575 = vld [vmem:[%s1559 + $0x78] sm:$0xff]
  %v1576 = vld [vmem:[%s1559 + $0x80] sm:$0xff]
  %v1577 = vld [vmem:[%s1559 + $0x88] sm:$0xff]
  %v1578 = vld [vmem:[#allocation2] sm:$0xfe]
  %v1579 = vld [vmem:[#allocation2 + $0x8] sm:$0xfe]
  %v1580 = vld [vmem:[#allocation2 + $0x20] sm:$0x1]
  %v1581 = vld [vmem:[#allocation2 + $0x28] sm:$0x1]
  %s1582 = scalar_lea.vmem %s3, 576
  %v1583 = vld [vmem:[%s1582] sm:$0xff]
  %v1584 = vld [vmem:[%s1582 + $0x8] sm:$0xff]
  %v1585 = vld [vmem:[%s1582 + $0x10] sm:$0xff]
  %v1586 = vld [vmem:[%s1582 + $0x18] sm:$0xff]
  %v1587 = vld [vmem:[%s1582 + $0x20] sm:$0xff]
  %v1588 = vld [vmem:[%s1582 + $0x28] sm:$0xff]
  %v1589 = vld [vmem:[%s1582 + $0x30] sm:$0xff]
  %v1590 = vld [vmem:[%s1582 + $0x38] sm:$0xff]
  %v1591 = vld [vmem:[%s1582 + $0x40] sm:$0xff]
  %v1592 = vld [vmem:[%s1582 + $0x48] sm:$0xff]
  %v1593 = vld [vmem:[%s1582 + $0x50] sm:$0xff]
  %v1594 = vld [vmem:[%s1582 + $0x58] sm:$0xff]
  %v1595 = vld [vmem:[%s1582 + $0x60] sm:$0xff]
  %v1596 = vld [vmem:[%s1582 + $0x68] sm:$0xff]
  %v1597 = vld [vmem:[%s1582 + $0x70] sm:$0xff]
  %v1598 = vld [vmem:[%s1582 + $0x78] sm:$0xff]
  %v1599 = vld [vmem:[%s1582 + $0x80] sm:$0xff]
  %v1600 = vld [vmem:[%s1582 + $0x88] sm:$0xff]
  %v1607 = vrot.slane %v1578, 1
  %v1608 = vrot.slane %v1557, 1
  %v1609 = vsel %vm399, %v1607, %v1608
  %v1610 = vrot.slane %v1579, 1
  %v1611 = vrot.slane %v1558, 1
  %v1612 = vsel %vm399, %v1610, %v1611
  %v1613 = vrot.slane %v1580, 1
  %v1614 = vsel %vm399, %v1608, %v1613
  %v1615 = vrot.slane %v1581, 1
  %v1616 = vsel %vm399, %v1611, %v1615
  %v1619 = vsel %vm33, %v1612, 0
  %v1621 = vsel %vm33, %v1616, 0
  %1623 = vmatprep.subr.mxu0 0.0
  %1624 = vmatpush1.msra.mxu0 %v1598
  %1625 = vmatprep.subr.mxu0 0.0
  %1626 = vmatpush1.msra.mxu0 %v1597
  %1627 = vmatprep.subr.mxu0 0.0
  %1628 = vmatpush1.msra.mxu0 %v1596
  %1629 = vmatprep.subr.mxu0 0.0
  %1630 = vmatpush1.msra.mxu0 %v1595
  %1631 = vmatprep.subr.mxu0 0.0
  %1632 = vmatpush1.msra.mxu0 %v1594
  %1633 = vmatprep.subr.mxu0 0.0
  %1634 = vmatpush1.msra.mxu0 %v1593
  %1635 = vmatprep.subr.mxu0 0.0
  %1636 = vmatpush1.msra.mxu0 %v1592
  %1637 = vmatprep.subr.mxu0 0.0
  %1638 = vmatpush1.msra.mxu0 %v1591
  %1639 = vmatprep.subr.mxu0 0.0
  %1640 = vmatpush1.msra.mxu0 %v1590
  %1641 = vmatprep.subr.mxu0 0.0
  %1642 = vmatpush1.msra.mxu0 %v1589
  %1643 = vmatprep.subr.mxu0 0.0
  %1644 = vmatpush1.msra.mxu0 %v1588
  %1645 = vmatprep.subr.mxu0 0.0
  %1646 = vmatpush1.msra.mxu0 %v1587
  %1647 = vmatprep.subr.mxu0 0.0
  %1648 = vmatpush1.msra.mxu0 %v1586
  %1649 = vmatprep.subr.mxu0 0.0
  %1650 = vmatpush1.msra.mxu0 %v1585
  %1651 = vmatprep.subr.mxu0 0.0
  %1652 = vmatpush1.msra.mxu0 %v1584
  %1653 = vmatprep.subr.mxu0 0.0
  %1654 = vmatpush1.msra.mxu0 %v1583
  %1655 = vmatprep.subr.mxu0 0.0
  %1656 = vmatpush2.msra.mxu0 0.0
  %1657 = vmatprep.subr.mxu0 0.0
  %1658 = vmatpush2.msra.mxu0 0.0
  %1659 = vmatprep.subr.mxu0 0.0
  %1660 = vmatpush2.msra.mxu0 0.0
  %1661 = vmatprep.subr.mxu0 0.0
  %1662 = vmatpush2.msra.mxu0 0.0
  %1663 = vmatprep.subr.mxu0 0.0
  %1664 = vmatpush2.msra.mxu0 0.0
  %1665 = vmatprep.subr.mxu0 0.0
  %1666 = vmatpush2.msra.mxu0 0.0
  %1667 = vmatprep.subr.mxu0 0.0
  %1668 = vmatpush2.msra.mxu0 0.0
  %1669 = vmatprep.subr.mxu0 0.0
  %1670 = vmatpush2.msra.mxu0 0.0
  %1671 = vmatprep.subr.mxu0 0.0
  %1672 = vmatpush2.msra.mxu0 0.0
  %1673 = vmatprep.subr.mxu0 0.0
  %1674 = vmatpush2.msra.mxu0 0.0
  %1675 = vmatprep.subr.mxu0 0.0
  %1676 = vmatpush2.msra.mxu0 0.0
  %1677 = vmatprep.subr.mxu0 0.0
  %1678 = vmatpush2.msra.mxu0 0.0
  %1679 = vmatprep.subr.mxu0 0.0
  %1680 = vmatpush2.msra.mxu0 0.0
  %1681 = vmatprep.subr.mxu0 0.0
  %1682 = vmatpush2.msra.mxu0 0.0
  %1683 = vmatprep.subr.mxu0 0.0
  %1684 = vmatpush2.msra.mxu0 %v1600
  %1685 = vmatprep.subr.mxu0 0.0
  %1686 = vmatpush2.msra.mxu0 %v1599
  %1687 = vmatprep.mubr.f32.mxu0 %v1619
  %1688 = vmatmul.mubr.f32.gmra.mxu0 %v1609
  %v1689 = vpop.f32.mrf.mxu0
  %v1690 = vadd.f32 0.0, %v1689
  %v1691 = vpop.f32.mrf.mxu0
  %1692 = vmatprep.mubr.f32.mxu0 %v1621
  %1693 = vmatmul.mubr.f32.gmra.mxu0 %v1614
  %v1694 = vpop.f32.mrf.mxu0
  %v1695 = vadd.f32 0.0, %v1694
  %v1696 = vpop.f32.mrf.mxu0
  %1697 = vdwg.mxu0
  %v1699 = vsel %vm33, %v1556, 0
  %v1701 = vsel %vm33, %v1558, 0
  %1703 = vmatprep.subr.mxu0 0.0
  %1704 = vmatpush1.msra.mxu0 %v1575
  %1705 = vmatprep.subr.mxu0 0.0
  %1706 = vmatpush1.msra.mxu0 %v1574
  %1707 = vmatprep.subr.mxu0 0.0
  %1708 = vmatpush1.msra.mxu0 %v1573
  %1709 = vmatprep.subr.mxu0 0.0
  %1710 = vmatpush1.msra.mxu0 %v1572
  %1711 = vmatprep.subr.mxu0 0.0
  %1712 = vmatpush1.msra.mxu0 %v1571
  %1713 = vmatprep.subr.mxu0 0.0
  %1714 = vmatpush1.msra.mxu0 %v1570
  %1715 = vmatprep.subr.mxu0 0.0
  %1716 = vmatpush1.msra.mxu0 %v1569
  %1717 = vmatprep.subr.mxu0 0.0
  %1718 = vmatpush1.msra.mxu0 %v1568
  %1719 = vmatprep.subr.mxu0 0.0
  %1720 = vmatpush1.msra.mxu0 %v1567
  %1721 = vmatprep.subr.mxu0 0.0
  %1722 = vmatpush1.msra.mxu0 %v1566
  %1723 = vmatprep.subr.mxu0 0.0
  %1724 = vmatpush1.msra.mxu0 %v1565
  %1725 = vmatprep.subr.mxu0 0.0
  %1726 = vmatpush1.msra.mxu0 %v1564
  %1727 = vmatprep.subr.mxu0 0.0
  %1728 = vmatpush1.msra.mxu0 %v1563
  %1729 = vmatprep.subr.mxu0 0.0
  %1730 = vmatpush1.msra.mxu0 %v1562
  %1731 = vmatprep.subr.mxu0 0.0
  %1732 = vmatpush1.msra.mxu0 %v1561
  %1733 = vmatprep.subr.mxu0 0.0
  %1734 = vmatpush1.msra.mxu0 %v1560
  %1735 = vmatprep.subr.mxu0 0.0
  %1736 = vmatpush2.msra.mxu0 0.0
  %1737 = vmatprep.subr.mxu0 0.0
  %1738 = vmatpush2.msra.mxu0 0.0
  %1739 = vmatprep.subr.mxu0 0.0
  %1740 = vmatpush2.msra.mxu0 0.0
  %1741 = vmatprep.subr.mxu0 0.0
  %1742 = vmatpush2.msra.mxu0 0.0
  %1743 = vmatprep.subr.mxu0 0.0
  %1744 = vmatpush2.msra.mxu0 0.0
  %1745 = vmatprep.subr.mxu0 0.0
  %1746 = vmatpush2.msra.mxu0 0.0
  %1747 = vmatprep.subr.mxu0 0.0
  %1748 = vmatpush2.msra.mxu0 0.0
  %1749 = vmatprep.subr.mxu0 0.0
  %1750 = vmatpush2.msra.mxu0 0.0
  %1751 = vmatprep.subr.mxu0 0.0
  %1752 = vmatpush2.msra.mxu0 0.0
  %1753 = vmatprep.subr.mxu0 0.0
  %1754 = vmatpush2.msra.mxu0 0.0
  %1755 = vmatprep.subr.mxu0 0.0
  %1756 = vmatpush2.msra.mxu0 0.0
  %1757 = vmatprep.subr.mxu0 0.0
  %1758 = vmatpush2.msra.mxu0 0.0
  %1759 = vmatprep.subr.mxu0 0.0
  %1760 = vmatpush2.msra.mxu0 0.0
  %1761 = vmatprep.subr.mxu0 0.0
  %1762 = vmatpush2.msra.mxu0 0.0
  %1763 = vmatprep.subr.mxu0 0.0
  %1764 = vmatpush2.msra.mxu0 %v1577
  %1765 = vmatprep.subr.mxu0 0.0
  %1766 = vmatpush2.msra.mxu0 %v1576
  %1767 = vmatprep.mubr.f32.mxu0 %v1699
  %1768 = vmatmul.mubr.f32.gmra.mxu0 %v1555
  %v1769 = vpop.f32.mrf.mxu0
  %v1770 = vadd.f32 %v1690, %v1769
  %v1771 = vpop.f32.mrf.mxu0
  %1772 = vmatprep.mubr.f32.mxu0 %v1701
  %1773 = vmatmul.mubr.f32.gmra.mxu0 %v1557
  %v1774 = vpop.f32.mrf.mxu0
  %v1775 = vadd.f32 %v1695, %v1774
  %v1776 = vpop.f32.mrf.mxu0
  %1777 = vdwg.mxu0
  %v1778 = vld [vmem:[#allocation2] sm:$0xfc]
  %v1779 = vld [vmem:[#allocation2 + $0x8] sm:$0xfc]
  %v1780 = vld [vmem:[#allocation2 + $0x20] sm:$0x3]
  %v1781 = vld [vmem:[#allocation2 + $0x28] sm:$0x3]
  %s1782 = scalar_lea.vmem %s3, 720
  %v1783 = vld [vmem:[%s1782] sm:$0xff]
  %v1784 = vld [vmem:[%s1782 + $0x8] sm:$0xff]
  %v1785 = vld [vmem:[%s1782 + $0x10] sm:$0xff]
  %v1786 = vld [vmem:[%s1782 + $0x18] sm:$0xff]
  %v1787 = vld [vmem:[%s1782 + $0x20] sm:$0xff]
  %v1788 = vld [vmem:[%s1782 + $0x28] sm:$0xff]
  %v1789 = vld [vmem:[%s1782 + $0x30] sm:$0xff]
  %v1790 = vld [vmem:[%s1782 + $0x38] sm:$0xff]
  %v1791 = vld [vmem:[%s1782 + $0x40] sm:$0xff]
  %v1792 = vld [vmem:[%s1782 + $0x48] sm:$0xff]
  %v1793 = vld [vmem:[%s1782 + $0x50] sm:$0xff]
  %v1794 = vld [vmem:[%s1782 + $0x58] sm:$0xff]
  %v1795 = vld [vmem:[%s1782 + $0x60] sm:$0xff]
  %v1796 = vld [vmem:[%s1782 + $0x68] sm:$0xff]
  %v1797 = vld [vmem:[%s1782 + $0x70] sm:$0xff]
  %v1798 = vld [vmem:[%s1782 + $0x78] sm:$0xff]
  %v1799 = vld [vmem:[%s1782 + $0x80] sm:$0xff]
  %v1800 = vld [vmem:[%s1782 + $0x88] sm:$0xff]
  %v1805 = vrot.slane %v1778, 2
  %v1806 = vrot.slane %v1557, 2
  %v1807 = vsel %vm598, %v1805, %v1806
  %v1808 = vrot.slane %v1779, 2
  %v1809 = vrot.slane %v1558, 2
  %v1810 = vsel %vm598, %v1808, %v1809
  %v1811 = vrot.slane %v1780, 2
  %v1812 = vsel %vm598, %v1806, %v1811
  %v1813 = vrot.slane %v1781, 2
  %v1814 = vsel %vm598, %v1809, %v1813
  %v1817 = vsel %vm33, %v1810, 0
  %v1819 = vsel %vm33, %v1814, 0
  %1821 = vmatprep.subr.mxu0 0.0
  %1822 = vmatpush1.msra.mxu0 %v1798
  %1823 = vmatprep.subr.mxu0 0.0
  %1824 = vmatpush1.msra.mxu0 %v1797
  %1825 = vmatprep.subr.mxu0 0.0
  %1826 = vmatpush1.msra.mxu0 %v1796
  %1827 = vmatprep.subr.mxu0 0.0
  %1828 = vmatpush1.msra.mxu0 %v1795
  %1829 = vmatprep.subr.mxu0 0.0
  %1830 = vmatpush1.msra.mxu0 %v1794
  %1831 = vmatprep.subr.mxu0 0.0
  %1832 = vmatpush1.msra.mxu0 %v1793
  %1833 = vmatprep.subr.mxu0 0.0
  %1834 = vmatpush1.msra.mxu0 %v1792
  %1835 = vmatprep.subr.mxu0 0.0
  %1836 = vmatpush1.msra.mxu0 %v1791
  %1837 = vmatprep.subr.mxu0 0.0
  %1838 = vmatpush1.msra.mxu0 %v1790
  %1839 = vmatprep.subr.mxu0 0.0
  %1840 = vmatpush1.msra.mxu0 %v1789
  %1841 = vmatprep.subr.mxu0 0.0
  %1842 = vmatpush1.msra.mxu0 %v1788
  %1843 = vmatprep.subr.mxu0 0.0
  %1844 = vmatpush1.msra.mxu0 %v1787
  %1845 = vmatprep.subr.mxu0 0.0
  %1846 = vmatpush1.msra.mxu0 %v1786
  %1847 = vmatprep.subr.mxu0 0.0
  %1848 = vmatpush1.msra.mxu0 %v1785
  %1849 = vmatprep.subr.mxu0 0.0
  %1850 = vmatpush1.msra.mxu0 %v1784
  %1851 = vmatprep.subr.mxu0 0.0
  %1852 = vmatpush1.msra.mxu0 %v1783
  %1853 = vmatprep.subr.mxu0 0.0
  %1854 = vmatpush2.msra.mxu0 0.0
  %1855 = vmatprep.subr.mxu0 0.0
  %1856 = vmatpush2.msra.mxu0 0.0
  %1857 = vmatprep.subr.mxu0 0.0
  %1858 = vmatpush2.msra.mxu0 0.0
  %1859 = vmatprep.subr.mxu0 0.0
  %1860 = vmatpush2.msra.mxu0 0.0
  %1861 = vmatprep.subr.mxu0 0.0
  %1862 = vmatpush2.msra.mxu0 0.0
  %1863 = vmatprep.subr.mxu0 0.0
  %1864 = vmatpush2.msra.mxu0 0.0
  %1865 = vmatprep.subr.mxu0 0.0
  %1866 = vmatpush2.msra.mxu0 0.0
  %1867 = vmatprep.subr.mxu0 0.0
  %1868 = vmatpush2.msra.mxu0 0.0
  %1869 = vmatprep.subr.mxu0 0.0
  %1870 = vmatpush2.msra.mxu0 0.0
  %1871 = vmatprep.subr.mxu0 0.0
  %1872 = vmatpush2.msra.mxu0 0.0
  %1873 = vmatprep.subr.mxu0 0.0
  %1874 = vmatpush2.msra.mxu0 0.0
  %1875 = vmatprep.subr.mxu0 0.0
  %1876 = vmatpush2.msra.mxu0 0.0
  %1877 = vmatprep.subr.mxu0 0.0
  %1878 = vmatpush2.msra.mxu0 0.0
  %1879 = vmatprep.subr.mxu0 0.0
  %1880 = vmatpush2.msra.mxu0 0.0
  %1881 = vmatprep.subr.mxu0 0.0
  %1882 = vmatpush2.msra.mxu0 %v1800
  %1883 = vmatprep.subr.mxu0 0.0
  %1884 = vmatpush2.msra.mxu0 %v1799
  %1885 = vmatprep.mubr.f32.mxu0 %v1817
  %1886 = vmatmul.mubr.f32.gmra.mxu0 %v1807
  %v1887 = vpop.f32.mrf.mxu0
  %v1888 = vadd.f32 0.0, %v1887
  %v1889 = vpop.f32.mrf.mxu0
  %1890 = vmatprep.mubr.f32.mxu0 %v1819
  %1891 = vmatmul.mubr.f32.gmra.mxu0 %v1812
  %v1892 = vpop.f32.mrf.mxu0
  %v1893 = vadd.f32 0.0, %v1892
  %v1894 = vpop.f32.mrf.mxu0
  %1895 = vdwg.mxu0
  %v1896 = vadd.f32 %v1770, %v1888
  %v1897 = vadd.f32 %v1775, %v1893
  %1898 = vst [vmem:[#allocation3] sm:$0xff] %v1896
  %1899 = vst [vmem:[#allocation3 + $0x8] sm:$0xff] %v1897
  %v1900 = vld [vmem:[#allocation2 + $0x20] sm:$0xfc]
  %v1901 = vld [vmem:[#allocation2 + $0x28] sm:$0xfc]
  %v1902 = vld [vmem:[#allocation2 + $0x30] sm:$0xff]
  %v1903 = vld [vmem:[#allocation2 + $0x38] sm:$0xff]
  %v1904 = vld [vmem:[#allocation2 + $0x40] sm:$0x3]
  %v1905 = vld [vmem:[#allocation2 + $0x48] sm:$0x3]
  %v1906 = vld [vmem:[%s1559] sm:$0xff]
  %v1907 = vld [vmem:[%s1559 + $0x8] sm:$0xff]
  %v1908 = vld [vmem:[%s1559 + $0x10] sm:$0xff]
  %v1909 = vld [vmem:[%s1559 + $0x18] sm:$0xff]
  %v1910 = vld [vmem:[%s1559 + $0x20] sm:$0xff]
  %v1911 = vld [vmem:[%s1559 + $0x28] sm:$0xff]
  %v1912 = vld [vmem:[%s1559 + $0x30] sm:$0xff]
  %v1913 = vld [vmem:[%s1559 + $0x38] sm:$0xff]
  %v1914 = vld [vmem:[%s1559 + $0x40] sm:$0xff]
  %v1915 = vld [vmem:[%s1559 + $0x48] sm:$0xff]
  %v1916 = vld [vmem:[%s1559 + $0x50] sm:$0xff]
  %v1917 = vld [vmem:[%s1559 + $0x58] sm:$0xff]
  %v1918 = vld [vmem:[%s1559 + $0x60] sm:$0xff]
  %v1919 = vld [vmem:[%s1559 + $0x68] sm:$0xff]
  %v1920 = vld [vmem:[%s1559 + $0x70] sm:$0xff]
  %v1921 = vld [vmem:[%s1559 + $0x78] sm:$0xff]
  %v1922 = vld [vmem:[%s1559 + $0x80] sm:$0xff]
  %v1923 = vld [vmem:[%s1559 + $0x88] sm:$0xff]
  %v1924 = vld [vmem:[#allocation2 + $0x20] sm:$0xf8]
  %v1925 = vld [vmem:[#allocation2 + $0x28] sm:$0xf8]
  %v1926 = vld [vmem:[#allocation2 + $0x40] sm:$0x7]
  %v1927 = vld [vmem:[#allocation2 + $0x48] sm:$0x7]
  %v1928 = vld [vmem:[%s1582] sm:$0xff]
  %v1929 = vld [vmem:[%s1582 + $0x8] sm:$0xff]
  %v1930 = vld [vmem:[%s1582 + $0x10] sm:$0xff]
  %v1931 = vld [vmem:[%s1582 + $0x18] sm:$0xff]
  %v1932 = vld [vmem:[%s1582 + $0x20] sm:$0xff]
  %v1933 = vld [vmem:[%s1582 + $0x28] sm:$0xff]
  %v1934 = vld [vmem:[%s1582 + $0x30] sm:$0xff]
  %v1935 = vld [vmem:[%s1582 + $0x38] sm:$0xff]
  %v1936 = vld [vmem:[%s1582 + $0x40] sm:$0xff]
  %v1937 = vld [vmem:[%s1582 + $0x48] sm:$0xff]
  %v1938 = vld [vmem:[%s1582 + $0x50] sm:$0xff]
  %v1939 = vld [vmem:[%s1582 + $0x58] sm:$0xff]
  %v1940 = vld [vmem:[%s1582 + $0x60] sm:$0xff]
  %v1941 = vld [vmem:[%s1582 + $0x68] sm:$0xff]
  %v1942 = vld [vmem:[%s1582 + $0x70] sm:$0xff]
  %v1943 = vld [vmem:[%s1582 + $0x78] sm:$0xff]
  %v1944 = vld [vmem:[%s1582 + $0x80] sm:$0xff]
  %v1945 = vld [vmem:[%s1582 + $0x88] sm:$0xff]
  %v1952 = vrot.slane %v1924, 3
  %v1953 = vrot.slane %v1902, 3
  %v1954 = vsel %vm746, %v1952, %v1953
  %v1955 = vrot.slane %v1925, 3
  %v1956 = vrot.slane %v1903, 3
  %v1957 = vsel %vm746, %v1955, %v1956
  %v1958 = vrot.slane %v1926, 3
  %v1959 = vsel %vm746, %v1953, %v1958
  %v1960 = vrot.slane %v1927, 3
  %v1961 = vsel %vm746, %v1956, %v1960
  %v1964 = vsel %vm33, %v1957, 0
  %v1966 = vsel %vm33, %v1961, 0
  %1968 = vmatprep.subr.mxu0 0.0
  %1969 = vmatpush1.msra.mxu0 %v1943
  %1970 = vmatprep.subr.mxu0 0.0
  %1971 = vmatpush1.msra.mxu0 %v1942
  %1972 = vmatprep.subr.mxu0 0.0
  %1973 = vmatpush1.msra.mxu0 %v1941
  %1974 = vmatprep.subr.mxu0 0.0
  %1975 = vmatpush1.msra.mxu0 %v1940
  %1976 = vmatprep.subr.mxu0 0.0
  %1977 = vmatpush1.msra.mxu0 %v1939
  %1978 = vmatprep.subr.mxu0 0.0
  %1979 = vmatpush1.msra.mxu0 %v1938
  %1980 = vmatprep.subr.mxu0 0.0
  %1981 = vmatpush1.msra.mxu0 %v1937
  %1982 = vmatprep.subr.mxu0 0.0
  %1983 = vmatpush1.msra.mxu0 %v1936
  %1984 = vmatprep.subr.mxu0 0.0
  %1985 = vmatpush1.msra.mxu0 %v1935
  %1986 = vmatprep.subr.mxu0 0.0
  %1987 = vmatpush1.msra.mxu0 %v1934
  %1988 = vmatprep.subr.mxu0 0.0
  %1989 = vmatpush1.msra.mxu0 %v1933
  %1990 = vmatprep.subr.mxu0 0.0
  %1991 = vmatpush1.msra.mxu0 %v1932
  %1992 = vmatprep.subr.mxu0 0.0
  %1993 = vmatpush1.msra.mxu0 %v1931
  %1994 = vmatprep.subr.mxu0 0.0
  %1995 = vmatpush1.msra.mxu0 %v1930
  %1996 = vmatprep.subr.mxu0 0.0
  %1997 = vmatpush1.msra.mxu0 %v1929
  %1998 = vmatprep.subr.mxu0 0.0
  %1999 = vmatpush1.msra.mxu0 %v1928
  %2000 = vmatprep.subr.mxu0 0.0
  %2001 = vmatpush2.msra.mxu0 0.0
  %2002 = vmatprep.subr.mxu0 0.0
  %2003 = vmatpush2.msra.mxu0 0.0
  %2004 = vmatprep.subr.mxu0 0.0
  %2005 = vmatpush2.msra.mxu0 0.0
  %2006 = vmatprep.subr.mxu0 0.0
  %2007 = vmatpush2.msra.mxu0 0.0
  %2008 = vmatprep.subr.mxu0 0.0
  %2009 = vmatpush2.msra.mxu0 0.0
  %2010 = vmatprep.subr.mxu0 0.0
  %2011 = vmatpush2.msra.mxu0 0.0
  %2012 = vmatprep.subr.mxu0 0.0
  %2013 = vmatpush2.msra.mxu0 0.0
  %2014 = vmatprep.subr.mxu0 0.0
  %2015 = vmatpush2.msra.mxu0 0.0
  %2016 = vmatprep.subr.mxu0 0.0
  %2017 = vmatpush2.msra.mxu0 0.0
  %2018 = vmatprep.subr.mxu0 0.0
  %2019 = vmatpush2.msra.mxu0 0.0
  %2020 = vmatprep.subr.mxu0 0.0
  %2021 = vmatpush2.msra.mxu0 0.0
  %2022 = vmatprep.subr.mxu0 0.0
  %2023 = vmatpush2.msra.mxu0 0.0
  %2024 = vmatprep.subr.mxu0 0.0
  %2025 = vmatpush2.msra.mxu0 0.0
  %2026 = vmatprep.subr.mxu0 0.0
  %2027 = vmatpush2.msra.mxu0 0.0
  %2028 = vmatprep.subr.mxu0 0.0
  %2029 = vmatpush2.msra.mxu0 %v1945
  %2030 = vmatprep.subr.mxu0 0.0
  %2031 = vmatpush2.msra.mxu0 %v1944
  %2032 = vmatprep.mubr.f32.mxu0 %v1964
  %2033 = vmatmul.mubr.f32.gmra.mxu0 %v1954
  %v2034 = vpop.f32.mrf.mxu0
  %v2035 = vadd.f32 0.0, %v2034
  %v2036 = vpop.f32.mrf.mxu0
  %2037 = vmatprep.mubr.f32.mxu0 %v1966
  %2038 = vmatmul.mubr.f32.gmra.mxu0 %v1959
  %v2039 = vpop.f32.mrf.mxu0
  %v2040 = vadd.f32 0.0, %v2039
  %v2041 = vpop.f32.mrf.mxu0
  %2042 = vdwg.mxu0
  %v2047 = vrot.slane %v1900, 2
  %v2048 = vrot.slane %v1902, 2
  %v2049 = vsel %vm598, %v2047, %v2048
  %v2050 = vrot.slane %v1901, 2
  %v2051 = vrot.slane %v1903, 2
  %v2052 = vsel %vm598, %v2050, %v2051
  %v2053 = vrot.slane %v1904, 2
  %v2054 = vsel %vm598, %v2048, %v2053
  %v2055 = vrot.slane %v1905, 2
  %v2056 = vsel %vm598, %v2051, %v2055
  %v2059 = vsel %vm33, %v2052, 0
  %v2061 = vsel %vm33, %v2056, 0
  %2063 = vmatprep.subr.mxu0 0.0
  %2064 = vmatpush1.msra.mxu0 %v1921
  %2065 = vmatprep.subr.mxu0 0.0
  %2066 = vmatpush1.msra.mxu0 %v1920
  %2067 = vmatprep.subr.mxu0 0.0
  %2068 = vmatpush1.msra.mxu0 %v1919
  %2069 = vmatprep.subr.mxu0 0.0
  %2070 = vmatpush1.msra.mxu0 %v1918
  %2071 = vmatprep.subr.mxu0 0.0
  %2072 = vmatpush1.msra.mxu0 %v1917
  %2073 = vmatprep.subr.mxu0 0.0
  %2074 = vmatpush1.msra.mxu0 %v1916
  %2075 = vmatprep.subr.mxu0 0.0
  %2076 = vmatpush1.msra.mxu0 %v1915
  %2077 = vmatprep.subr.mxu0 0.0
  %2078 = vmatpush1.msra.mxu0 %v1914
  %2079 = vmatprep.subr.mxu0 0.0
  %2080 = vmatpush1.msra.mxu0 %v1913
  %2081 = vmatprep.subr.mxu0 0.0
  %2082 = vmatpush1.msra.mxu0 %v1912
  %2083 = vmatprep.subr.mxu0 0.0
  %2084 = vmatpush1.msra.mxu0 %v1911
  %2085 = vmatprep.subr.mxu0 0.0
  %2086 = vmatpush1.msra.mxu0 %v1910
  %2087 = vmatprep.subr.mxu0 0.0
  %2088 = vmatpush1.msra.mxu0 %v1909
  %2089 = vmatprep.subr.mxu0 0.0
  %2090 = vmatpush1.msra.mxu0 %v1908
  %2091 = vmatprep.subr.mxu0 0.0
  %2092 = vmatpush1.msra.mxu0 %v1907
  %2093 = vmatprep.subr.mxu0 0.0
  %2094 = vmatpush1.msra.mxu0 %v1906
  %2095 = vmatprep.subr.mxu0 0.0
  %2096 = vmatpush2.msra.mxu0 0.0
  %2097 = vmatprep.subr.mxu0 0.0
  %2098 = vmatpush2.msra.mxu0 0.0
  %2099 = vmatprep.subr.mxu0 0.0
  %2100 = vmatpush2.msra.mxu0 0.0
  %2101 = vmatprep.subr.mxu0 0.0
  %2102 = vmatpush2.msra.mxu0 0.0
  %2103 = vmatprep.subr.mxu0 0.0
  %2104 = vmatpush2.msra.mxu0 0.0
  %2105 = vmatprep.subr.mxu0 0.0
  %2106 = vmatpush2.msra.mxu0 0.0
  %2107 = vmatprep.subr.mxu0 0.0
  %2108 = vmatpush2.msra.mxu0 0.0
  %2109 = vmatprep.subr.mxu0 0.0
  %2110 = vmatpush2.msra.mxu0 0.0
  %2111 = vmatprep.subr.mxu0 0.0
  %2112 = vmatpush2.msra.mxu0 0.0
  %2113 = vmatprep.subr.mxu0 0.0
  %2114 = vmatpush2.msra.mxu0 0.0
  %2115 = vmatprep.subr.mxu0 0.0
  %2116 = vmatpush2.msra.mxu0 0.0
  %2117 = vmatprep.subr.mxu0 0.0
  %2118 = vmatpush2.msra.mxu0 0.0
  %2119 = vmatprep.subr.mxu0 0.0
  %2120 = vmatpush2.msra.mxu0 0.0
  %2121 = vmatprep.subr.mxu0 0.0
  %2122 = vmatpush2.msra.mxu0 0.0
  %2123 = vmatprep.subr.mxu0 0.0
  %2124 = vmatpush2.msra.mxu0 %v1923
  %2125 = vmatprep.subr.mxu0 0.0
  %2126 = vmatpush2.msra.mxu0 %v1922
  %2127 = vmatprep.mubr.f32.mxu0 %v2059
  %2128 = vmatmul.mubr.f32.gmra.mxu0 %v2049
  %v2129 = vpop.f32.mrf.mxu0
  %v2130 = vadd.f32 %v2035, %v2129
  %v2131 = vpop.f32.mrf.mxu0
  %2132 = vmatprep.mubr.f32.mxu0 %v2061
  %2133 = vmatmul.mubr.f32.gmra.mxu0 %v2054
  %v2134 = vpop.f32.mrf.mxu0
  %v2135 = vadd.f32 %v2040, %v2134
  %v2136 = vpop.f32.mrf.mxu0
  %2137 = vdwg.mxu0
  %v2138 = vld [vmem:[#allocation2 + $0x20] sm:$0xf0]
  %v2139 = vld [vmem:[#allocation2 + $0x28] sm:$0xf0]
  %v2140 = vld [vmem:[#allocation2 + $0x40] sm:$0xf]
  %v2141 = vld [vmem:[#allocation2 + $0x48] sm:$0xf]
  %v2142 = vld [vmem:[%s1782] sm:$0xff]
  %v2143 = vld [vmem:[%s1782 + $0x8] sm:$0xff]
  %v2144 = vld [vmem:[%s1782 + $0x10] sm:$0xff]
  %v2145 = vld [vmem:[%s1782 + $0x18] sm:$0xff]
  %v2146 = vld [vmem:[%s1782 + $0x20] sm:$0xff]
  %v2147 = vld [vmem:[%s1782 + $0x28] sm:$0xff]
  %v2148 = vld [vmem:[%s1782 + $0x30] sm:$0xff]
  %v2149 = vld [vmem:[%s1782 + $0x38] sm:$0xff]
  %v2150 = vld [vmem:[%s1782 + $0x40] sm:$0xff]
  %v2151 = vld [vmem:[%s1782 + $0x48] sm:$0xff]
  %v2152 = vld [vmem:[%s1782 + $0x50] sm:$0xff]
  %v2153 = vld [vmem:[%s1782 + $0x58] sm:$0xff]
  %v2154 = vld [vmem:[%s1782 + $0x60] sm:$0xff]
  %v2155 = vld [vmem:[%s1782 + $0x68] sm:$0xff]
  %v2156 = vld [vmem:[%s1782 + $0x70] sm:$0xff]
  %v2157 = vld [vmem:[%s1782 + $0x78] sm:$0xff]
  %v2158 = vld [vmem:[%s1782 + $0x80] sm:$0xff]
  %v2159 = vld [vmem:[%s1782 + $0x88] sm:$0xff]
  %v2164 = vrot.slane %v2138, 4
  %v2165 = vrot.slane %v1902, 4
  %v2166 = vsel %vm959, %v2164, %v2165
  %v2167 = vrot.slane %v2139, 4
  %v2168 = vrot.slane %v1903, 4
  %v2169 = vsel %vm959, %v2167, %v2168
  %v2170 = vrot.slane %v2140, 4
  %v2171 = vsel %vm959, %v2165, %v2170
  %v2172 = vrot.slane %v2141, 4
  %v2173 = vsel %vm959, %v2168, %v2172
  %v2176 = vsel %vm33, %v2169, 0
  %v2178 = vsel %vm33, %v2173, 0
  %2180 = vmatprep.subr.mxu0 0.0
  %2181 = vmatpush1.msra.mxu0 %v2157
  %2182 = vmatprep.subr.mxu0 0.0
  %2183 = vmatpush1.msra.mxu0 %v2156
  %2184 = vmatprep.subr.mxu0 0.0
  %2185 = vmatpush1.msra.mxu0 %v2155
  %2186 = vmatprep.subr.mxu0 0.0
  %2187 = vmatpush1.msra.mxu0 %v2154
  %2188 = vmatprep.subr.mxu0 0.0
  %2189 = vmatpush1.msra.mxu0 %v2153
  %2190 = vmatprep.subr.mxu0 0.0
  %2191 = vmatpush1.msra.mxu0 %v2152
  %2192 = vmatprep.subr.mxu0 0.0
  %2193 = vmatpush1.msra.mxu0 %v2151
  %2194 = vmatprep.subr.mxu0 0.0
  %2195 = vmatpush1.msra.mxu0 %v2150
  %2196 = vmatprep.subr.mxu0 0.0
  %2197 = vmatpush1.msra.mxu0 %v2149
  %2198 = vmatprep.subr.mxu0 0.0
  %2199 = vmatpush1.msra.mxu0 %v2148
  %2200 = vmatprep.subr.mxu0 0.0
  %2201 = vmatpush1.msra.mxu0 %v2147
  %2202 = vmatprep.subr.mxu0 0.0
  %2203 = vmatpush1.msra.mxu0 %v2146
  %2204 = vmatprep.subr.mxu0 0.0
  %2205 = vmatpush1.msra.mxu0 %v2145
  %2206 = vmatprep.subr.mxu0 0.0
  %2207 = vmatpush1.msra.mxu0 %v2144
  %2208 = vmatprep.subr.mxu0 0.0
  %2209 = vmatpush1.msra.mxu0 %v2143
  %2210 = vmatprep.subr.mxu0 0.0
  %2211 = vmatpush1.msra.mxu0 %v2142
  %2212 = vmatprep.subr.mxu0 0.0
  %2213 = vmatpush2.msra.mxu0 0.0
  %2214 = vmatprep.subr.mxu0 0.0
  %2215 = vmatpush2.msra.mxu0 0.0
  %2216 = vmatprep.subr.mxu0 0.0
  %2217 = vmatpush2.msra.mxu0 0.0
  %2218 = vmatprep.subr.mxu0 0.0
  %2219 = vmatpush2.msra.mxu0 0.0
  %2220 = vmatprep.subr.mxu0 0.0
  %2221 = vmatpush2.msra.mxu0 0.0
  %2222 = vmatprep.subr.mxu0 0.0
  %2223 = vmatpush2.msra.mxu0 0.0
  %2224 = vmatprep.subr.mxu0 0.0
  %2225 = vmatpush2.msra.mxu0 0.0
  %2226 = vmatprep.subr.mxu0 0.0
  %2227 = vmatpush2.msra.mxu0 0.0
  %2228 = vmatprep.subr.mxu0 0.0
  %2229 = vmatpush2.msra.mxu0 0.0
  %2230 = vmatprep.subr.mxu0 0.0
  %2231 = vmatpush2.msra.mxu0 0.0
  %2232 = vmatprep.subr.mxu0 0.0
  %2233 = vmatpush2.msra.mxu0 0.0
  %2234 = vmatprep.subr.mxu0 0.0
  %2235 = vmatpush2.msra.mxu0 0.0
  %2236 = vmatprep.subr.mxu0 0.0
  %2237 = vmatpush2.msra.mxu0 0.0
  %2238 = vmatprep.subr.mxu0 0.0
  %2239 = vmatpush2.msra.mxu0 0.0
  %2240 = vmatprep.subr.mxu0 0.0
  %2241 = vmatpush2.msra.mxu0 %v2159
  %2242 = vmatprep.subr.mxu0 0.0
  %2243 = vmatpush2.msra.mxu0 %v2158
  %2244 = vmatprep.mubr.f32.mxu0 %v2176
  %2245 = vmatmul.mubr.f32.gmra.mxu0 %v2166
  %v2246 = vpop.f32.mrf.mxu0
  %v2247 = vadd.f32 0.0, %v2246
  %v2248 = vpop.f32.mrf.mxu0
  %2249 = vmatprep.mubr.f32.mxu0 %v2178
  %2250 = vmatmul.mubr.f32.gmra.mxu0 %v2171
  %v2251 = vpop.f32.mrf.mxu0
  %v2252 = vadd.f32 0.0, %v2251
  %v2253 = vpop.f32.mrf.mxu0
  %2254 = vdwg.mxu0
  %v2255 = vadd.f32 %v2130, %v2247
  %v2256 = vadd.f32 %v2135, %v2252
  %2257 = vst [vmem:[#allocation3 + $0x10] sm:$0xff] %v2255
  %2258 = vst [vmem:[#allocation3 + $0x18] sm:$0xff] %v2256
  %v2259 = vld [vmem:[#allocation3] sm:$0xff]
  %v2260 = vld [vmem:[#allocation3 + $0x8] sm:$0xff]
  %v2261 = vld [vmem:[#allocation3 + $0x10] sm:$0xff]
  %v2262 = vld [vmem:[#allocation3 + $0x18] sm:$0xff]
  %s2263 = scalar_lea.vmem %s4, 1
  %v2264 = vld [vmem:[%s2263] sm:$0x1]
  %v2266 = vlaneseq
  %v2267 = vshrl.u32 %v2266, 7
  %v2268 = vsub.s32 0, %v2267
  %v2269 = vrot.slane %v2264, %v2268
  %v2271 = vadd.f32 %v2259, %v2269
  %v2272 = vadd.f32 %v2260, %v2269
  %v2273 = vadd.f32 %v2261, %v2269
  %v2274 = vadd.f32 %v2262, %v2269
  %v2275 = vadd.f32 %v2271, %v2272
  %v2276 = vadd.f32 %v2275, %v2273
  %v2277 = vadd.f32 %v2276, %v2274
  %v2278 = vrot.slane %v2277, 4
  %v2279 = vadd.f32 %v2277, %v2278
  %v2280 = vrot.slane %v2279, 2
  %v2281 = vadd.f32 %v2279, %v2280
  %v2282 = vrot.slane %v2281, 1
  %v2283 = vadd.f32 %v2281, %v2282
  %v2284 = vmul.f32 %v2271, %v2271
  %v2285 = vmul.f32 %v2272, %v2272
  %v2286 = vmul.f32 %v2273, %v2273
  %v2287 = vmul.f32 %v2274, %v2274
  %v2288 = vadd.f32 %v2284, %v2285
  %v2289 = vadd.f32 %v2288, %v2286
  %v2290 = vadd.f32 %v2289, %v2287
  %v2291 = vrot.slane %v2290, 4
  %v2292 = vadd.f32 %v2290, %v2291
  %v2293 = vrot.slane %v2292, 2
  %v2294 = vadd.f32 %v2292, %v2293
  %v2295 = vrot.slane %v2294, 1
  %v2296 = vadd.f32 %v2294, %v2295
  %2297 = vmatprep.subr.mxu0 0.0
  %2298 = vmatpush1.msra.mxu0 %v347
  %2299 = vmatprep.subr.mxu0 0.0
  %2300 = vmatpush1.msra.mxu0 %v346
  %2301 = vmatprep.subr.mxu0 0.0
  %2302 = vmatpush1.msra.mxu0 %v345
  %2303 = vmatprep.subr.mxu0 0.0
  %2304 = vmatpush1.msra.mxu0 %v344
  %2305 = vmatprep.subr.mxu0 0.0
  %2306 = vmatpush1.msra.mxu0 %v343
  %2307 = vmatprep.subr.mxu0 0.0
  %2308 = vmatpush1.msra.mxu0 %v342
  %2309 = vmatprep.subr.mxu0 0.0
  %2310 = vmatpush1.msra.mxu0 %v341
  %2311 = vmatprep.subr.mxu0 0.0
  %2312 = vmatpush1.msra.mxu0 %v340
  %2313 = vmatprep.subr.mxu0 0.0
  %2314 = vmatpush1.msra.mxu0 %v339
  %2315 = vmatprep.subr.mxu0 0.0
  %2316 = vmatpush1.msra.mxu0 %v338
  %2317 = vmatprep.subr.mxu0 0.0
  %2318 = vmatpush1.msra.mxu0 %v337
  %2319 = vmatprep.subr.mxu0 0.0
  %2320 = vmatpush1.msra.mxu0 %v336
  %2321 = vmatprep.subr.mxu0 0.0
  %2322 = vmatpush1.msra.mxu0 %v335
  %2323 = vmatprep.subr.mxu0 0.0
  %2324 = vmatpush1.msra.mxu0 %v334
  %2325 = vmatprep.subr.mxu0 0.0
  %2326 = vmatpush1.msra.mxu0 %v333
  %2327 = vmatprep.subr.mxu0 0.0
  %2328 = vmatpush1.msra.mxu0 %v332
  %2329 = vmatprep.subr.mxu0 0.0
  %2330 = vmatpush2.msra.mxu0 0.0
  %2331 = vmatprep.subr.mxu0 0.0
  %2332 = vmatpush2.msra.mxu0 0.0
  %2333 = vmatprep.subr.mxu0 0.0
  %2334 = vmatpush2.msra.mxu0 0.0
  %2335 = vmatprep.subr.mxu0 0.0
  %2336 = vmatpush2.msra.mxu0 0.0
  %2337 = vmatprep.subr.mxu0 0.0
  %2338 = vmatpush2.msra.mxu0 0.0
  %2339 = vmatprep.subr.mxu0 0.0
  %2340 = vmatpush2.msra.mxu0 0.0
  %2341 = vmatprep.subr.mxu0 0.0
  %2342 = vmatpush2.msra.mxu0 0.0
  %2343 = vmatprep.subr.mxu0 0.0
  %2344 = vmatpush2.msra.mxu0 0.0
  %2345 = vmatprep.subr.mxu0 0.0
  %2346 = vmatpush2.msra.mxu0 0.0
  %2347 = vmatprep.subr.mxu0 0.0
  %2348 = vmatpush2.msra.mxu0 0.0
  %2349 = vmatprep.subr.mxu0 0.0
  %2350 = vmatpush2.msra.mxu0 0.0
  %2351 = vmatprep.subr.mxu0 0.0
  %2352 = vmatpush2.msra.mxu0 0.0
  %2353 = vmatprep.subr.mxu0 0.0
  %2354 = vmatpush2.msra.mxu0 0.0
  %2355 = vmatprep.subr.mxu0 0.0
  %2356 = vmatpush2.msra.mxu0 0.0
  %2357 = vmatprep.subr.mxu0 0.0
  %2358 = vmatpush2.msra.mxu0 0.0
  %2359 = vmatprep.subr.mxu0 0.0
  %2360 = vmatpush2.msra.mxu0 0.0
  %2361 = vmatprep.mubr.f32.mxu0 0.0
  %2362 = vmatmul.mubr.f32.gmra.mxu0 %v2283
  %v2363 = vpop.f32.mrf.mxu0
  %v2364 = vadd.f32 0.0, %v2363
  %v2365 = vpop.f32.mrf.mxu0
  %2366 = vdwg.mxu0
  %2367 = vmatprep.subr.mxu0 0.0
  %2368 = vmatpush1.msra.mxu0 %v347
  %2369 = vmatprep.subr.mxu0 0.0
  %2370 = vmatpush1.msra.mxu0 %v346
  %2371 = vmatprep.subr.mxu0 0.0
  %2372 = vmatpush1.msra.mxu0 %v345
  %2373 = vmatprep.subr.mxu0 0.0
  %2374 = vmatpush1.msra.mxu0 %v344
  %2375 = vmatprep.subr.mxu0 0.0
  %2376 = vmatpush1.msra.mxu0 %v343
  %2377 = vmatprep.subr.mxu0 0.0
  %2378 = vmatpush1.msra.mxu0 %v342
  %2379 = vmatprep.subr.mxu0 0.0
  %2380 = vmatpush1.msra.mxu0 %v341
  %2381 = vmatprep.subr.mxu0 0.0
  %2382 = vmatpush1.msra.mxu0 %v340
  %2383 = vmatprep.subr.mxu0 0.0
  %2384 = vmatpush1.msra.mxu0 %v339
  %2385 = vmatprep.subr.mxu0 0.0
  %2386 = vmatpush1.msra.mxu0 %v338
  %2387 = vmatprep.subr.mxu0 0.0
  %2388 = vmatpush1.msra.mxu0 %v337
  %2389 = vmatprep.subr.mxu0 0.0
  %2390 = vmatpush1.msra.mxu0 %v336
  %2391 = vmatprep.subr.mxu0 0.0
  %2392 = vmatpush1.msra.mxu0 %v335
  %2393 = vmatprep.subr.mxu0 0.0
  %2394 = vmatpush1.msra.mxu0 %v334
  %2395 = vmatprep.subr.mxu0 0.0
  %2396 = vmatpush1.msra.mxu0 %v333
  %2397 = vmatprep.subr.mxu0 0.0
  %2398 = vmatpush1.msra.mxu0 %v332
  %2399 = vmatprep.subr.mxu0 0.0
  %2400 = vmatpush2.msra.mxu0 0.0
  %2401 = vmatprep.subr.mxu0 0.0
  %2402 = vmatpush2.msra.mxu0 0.0
  %2403 = vmatprep.subr.mxu0 0.0
  %2404 = vmatpush2.msra.mxu0 0.0
  %2405 = vmatprep.subr.mxu0 0.0
  %2406 = vmatpush2.msra.mxu0 0.0
  %2407 = vmatprep.subr.mxu0 0.0
  %2408 = vmatpush2.msra.mxu0 0.0
  %2409 = vmatprep.subr.mxu0 0.0
  %2410 = vmatpush2.msra.mxu0 0.0
  %2411 = vmatprep.subr.mxu0 0.0
  %2412 = vmatpush2.msra.mxu0 0.0
  %2413 = vmatprep.subr.mxu0 0.0
  %2414 = vmatpush2.msra.mxu0 0.0
  %2415 = vmatprep.subr.mxu0 0.0
  %2416 = vmatpush2.msra.mxu0 0.0
  %2417 = vmatprep.subr.mxu0 0.0
  %2418 = vmatpush2.msra.mxu0 0.0
  %2419 = vmatprep.subr.mxu0 0.0
  %2420 = vmatpush2.msra.mxu0 0.0
  %2421 = vmatprep.subr.mxu0 0.0
  %2422 = vmatpush2.msra.mxu0 0.0
  %2423 = vmatprep.subr.mxu0 0.0
  %2424 = vmatpush2.msra.mxu0 0.0
  %2425 = vmatprep.subr.mxu0 0.0
  %2426 = vmatpush2.msra.mxu0 0.0
  %2427 = vmatprep.subr.mxu0 0.0
  %2428 = vmatpush2.msra.mxu0 0.0
  %2429 = vmatprep.subr.mxu0 0.0
  %2430 = vmatpush2.msra.mxu0 0.0
  %2431 = vmatprep.mubr.f32.mxu0 0.0
  %2432 = vmatmul.mubr.f32.gmra.mxu0 %v2296
  %v2433 = vpop.f32.mrf.mxu0
  %v2434 = vadd.f32 0.0, %v2433
  %v2435 = vpop.f32.mrf.mxu0
  %2436 = vdwg.mxu0
  %v2437 = vmul.f32 %v2364, 0.001953125
  %v2438 = vmul.f32 %v2434, 0.001953125
  %v2439 = vmul.f32 %v2437, %v2437
  %v2440 = vsub.f32 %v2438, %v2439
  %v2441 = vadd.f32 %v2440, 1e-05
  %v2442 = vrsqrt.pop %v2441
  %v2444 = vsel %vm1238, %v2437, 0
  %2446 = vmatprep.subr.mxu0 0.0
  %2447 = vmatpush1.msra.mxu0 0.0
  %2448 = vmatprep.subr.mxu0 0.0
  %2449 = vmatpush1.msra.mxu0 0.0
  %2450 = vmatprep.subr.mxu0 0.0
  %2451 = vmatpush1.msra.mxu0 0.0
  %2452 = vmatprep.subr.mxu0 0.0
  %2453 = vmatpush1.msra.mxu0 0.0
  %2454 = vmatprep.subr.mxu0 0.0
  %2455 = vmatpush1.msra.mxu0 0.0
  %2456 = vmatprep.subr.mxu0 0.0
  %2457 = vmatpush1.msra.mxu0 0.0
  %2458 = vmatprep.subr.mxu0 0.0
  %2459 = vmatpush1.msra.mxu0 0.0
  %2460 = vmatprep.subr.mxu0 0.0
  %2461 = vmatpush1.msra.mxu0 0.0
  %2462 = vmatprep.subr.mxu0 0.0
  %2463 = vmatpush1.msra.mxu0 0.0
  %2464 = vmatprep.subr.mxu0 0.0
  %2465 = vmatpush1.msra.mxu0 0.0
  %2466 = vmatprep.subr.mxu0 0.0
  %2467 = vmatpush1.msra.mxu0 0.0
  %2468 = vmatprep.subr.mxu0 0.0
  %2469 = vmatpush1.msra.mxu0 0.0
  %2470 = vmatprep.subr.mxu0 0.0
  %2471 = vmatpush1.msra.mxu0 0.0
  %2472 = vmatprep.subr.mxu0 0.0
  %2473 = vmatpush1.msra.mxu0 0.0
  %2474 = vmatprep.subr.mxu0 0.0
  %2475 = vmatpush1.msra.mxu0 0.0
  %2476 = vmatprep.subr.mxu0 0.0
  %2477 = vmatpush1.msra.mxu0 %v331
  %2478 = vmatprep.subr.mxu0 0.0
  %2479 = vmatpush2.msra.mxu0 0.0
  %2480 = vmatprep.subr.mxu0 0.0
  %2481 = vmatpush2.msra.mxu0 0.0
  %2482 = vmatprep.subr.mxu0 0.0
  %2483 = vmatpush2.msra.mxu0 0.0
  %2484 = vmatprep.subr.mxu0 0.0
  %2485 = vmatpush2.msra.mxu0 0.0
  %2486 = vmatprep.subr.mxu0 0.0
  %2487 = vmatpush2.msra.mxu0 0.0
  %2488 = vmatprep.subr.mxu0 0.0
  %2489 = vmatpush2.msra.mxu0 0.0
  %2490 = vmatprep.subr.mxu0 0.0
  %2491 = vmatpush2.msra.mxu0 0.0
  %2492 = vmatprep.subr.mxu0 0.0
  %2493 = vmatpush2.msra.mxu0 0.0
  %2494 = vmatprep.subr.mxu0 0.0
  %2495 = vmatpush2.msra.mxu0 0.0
  %2496 = vmatprep.subr.mxu0 0.0
  %2497 = vmatpush2.msra.mxu0 0.0
  %2498 = vmatprep.subr.mxu0 0.0
  %2499 = vmatpush2.msra.mxu0 0.0
  %2500 = vmatprep.subr.mxu0 0.0
  %2501 = vmatpush2.msra.mxu0 0.0
  %2502 = vmatprep.subr.mxu0 0.0
  %2503 = vmatpush2.msra.mxu0 0.0
  %2504 = vmatprep.subr.mxu0 0.0
  %2505 = vmatpush2.msra.mxu0 0.0
  %2506 = vmatprep.subr.mxu0 0.0
  %2507 = vmatpush2.msra.mxu0 0.0
  %2508 = vmatprep.subr.mxu0 0.0
  %2509 = vmatpush2.msra.mxu0 0.0
  %2510 = vmatprep.mubr.f32.mxu0 0.0
  %2511 = vmatmul.mubr.f32.gmra.mxu0 %v2444
  %v2512 = vpop.f32.mrf.mxu0
  %v2513 = vadd.f32 0.0, %v2512
  %v2514 = vpop.f32.mrf.mxu0
  %2515 = vdwg.mxu0
  %v2517 = vsel %vm1238, %v2442, 0
  %2519 = vmatprep.subr.mxu0 0.0
  %2520 = vmatpush1.msra.mxu0 0.0
  %2521 = vmatprep.subr.mxu0 0.0
  %2522 = vmatpush1.msra.mxu0 0.0
  %2523 = vmatprep.subr.mxu0 0.0
  %2524 = vmatpush1.msra.mxu0 0.0
  %2525 = vmatprep.subr.mxu0 0.0
  %2526 = vmatpush1.msra.mxu0 0.0
  %2527 = vmatprep.subr.mxu0 0.0
  %2528 = vmatpush1.msra.mxu0 0.0
  %2529 = vmatprep.subr.mxu0 0.0
  %2530 = vmatpush1.msra.mxu0 0.0
  %2531 = vmatprep.subr.mxu0 0.0
  %2532 = vmatpush1.msra.mxu0 0.0
  %2533 = vmatprep.subr.mxu0 0.0
  %2534 = vmatpush1.msra.mxu0 0.0
  %2535 = vmatprep.subr.mxu0 0.0
  %2536 = vmatpush1.msra.mxu0 0.0
  %2537 = vmatprep.subr.mxu0 0.0
  %2538 = vmatpush1.msra.mxu0 0.0
  %2539 = vmatprep.subr.mxu0 0.0
  %2540 = vmatpush1.msra.mxu0 0.0
  %2541 = vmatprep.subr.mxu0 0.0
  %2542 = vmatpush1.msra.mxu0 0.0
  %2543 = vmatprep.subr.mxu0 0.0
  %2544 = vmatpush1.msra.mxu0 0.0
  %2545 = vmatprep.subr.mxu0 0.0
  %2546 = vmatpush1.msra.mxu0 0.0
  %2547 = vmatprep.subr.mxu0 0.0
  %2548 = vmatpush1.msra.mxu0 0.0
  %2549 = vmatprep.subr.mxu0 0.0
  %2550 = vmatpush1.msra.mxu0 %v331
  %2551 = vmatprep.subr.mxu0 0.0
  %2552 = vmatpush2.msra.mxu0 0.0
  %2553 = vmatprep.subr.mxu0 0.0
  %2554 = vmatpush2.msra.mxu0 0.0
  %2555 = vmatprep.subr.mxu0 0.0
  %2556 = vmatpush2.msra.mxu0 0.0
  %2557 = vmatprep.subr.mxu0 0.0
  %2558 = vmatpush2.msra.mxu0 0.0
  %2559 = vmatprep.subr.mxu0 0.0
  %2560 = vmatpush2.msra.mxu0 0.0
  %2561 = vmatprep.subr.mxu0 0.0
  %2562 = vmatpush2.msra.mxu0 0.0
  %2563 = vmatprep.subr.mxu0 0.0
  %2564 = vmatpush2.msra.mxu0 0.0
  %2565 = vmatprep.subr.mxu0 0.0
  %2566 = vmatpush2.msra.mxu0 0.0
  %2567 = vmatprep.subr.mxu0 0.0
  %2568 = vmatpush2.msra.mxu0 0.0
  %2569 = vmatprep.subr.mxu0 0.0
  %2570 = vmatpush2.msra.mxu0 0.0
  %2571 = vmatprep.subr.mxu0 0.0
  %2572 = vmatpush2.msra.mxu0 0.0
  %2573 = vmatprep.subr.mxu0 0.0
  %2574 = vmatpush2.msra.mxu0 0.0
  %2575 = vmatprep.subr.mxu0 0.0
  %2576 = vmatpush2.msra.mxu0 0.0
  %2577 = vmatprep.subr.mxu0 0.0
  %2578 = vmatpush2.msra.mxu0 0.0
  %2579 = vmatprep.subr.mxu0 0.0
  %2580 = vmatpush2.msra.mxu0 0.0
  %2581 = vmatprep.subr.mxu0 0.0
  %2582 = vmatpush2.msra.mxu0 0.0
  %2583 = vmatprep.mubr.f32.mxu0 0.0
  %2584 = vmatmul.mubr.f32.gmra.mxu0 %v2517
  %v2585 = vpop.f32.mrf.mxu0
  %v2586 = vadd.f32 0.0, %v2585
  %v2587 = vpop.f32.mrf.mxu0
  %2588 = vdwg.mxu0
  %s2589 = scalar_lea.vmem %s5, 1
  %v2590 = vld [vmem:[%s2589] sm:$0x1]
  %v2591 = vlaneseq
  %v2592 = vshrl.u32 %v2591, 7
  %v2593 = vsub.s32 0, %v2592
  %v2594 = vrot.slane %v2513, %v2593
  %v2595 = vsub.f32 %v2271, %v2594
  %v2596 = vsub.f32 %v2272, %v2594
  %v2597 = vsub.f32 %v2273, %v2594
  %v2598 = vsub.f32 %v2274, %v2594
  %v2600 = vlaneseq
  %v2601 = vshrl.u32 %v2600, 7
  %v2602 = vsub.s32 0, %v2601
  %v2603 = vrot.slane %v2590, %v2602
  %v2605 = vmul.f32 %v2603, %v2595
  %v2606 = vmul.f32 %v2603, %v2596
  %v2607 = vmul.f32 %v2603, %v2597
  %v2608 = vmul.f32 %v2603, %v2598
  %v2609 = vlaneseq
  %v2610 = vshrl.u32 %v2609, 7
  %v2611 = vsub.s32 0, %v2610
  %v2612 = vrot.slane %v2586, %v2611
  %v2613 = vmul.f32 %v2605, %v2612
  %v2614 = vmul.f32 %v2606, %v2612
  %v2615 = vmul.f32 %v2607, %v2612
  %v2616 = vmul.f32 %v2608, %v2612
  %s2617 = scalar_lea.vmem %s6, 1
  %v2618 = vld [vmem:[%s2617] sm:$0x1]
  %v2620 = vlaneseq
  %v2621 = vshrl.u32 %v2620, 7
  %v2622 = vsub.s32 0, %v2621
  %v2623 = vrot.slane %v2618, %v2622
  %v2625 = vadd.f32 %v2613, %v2623
  %v2626 = vadd.f32 %v2614, %v2623
  %v2627 = vadd.f32 %v2615, %v2623
  %v2628 = vadd.f32 %v2616, %v2623
  %v2629 = vmul.f32 %v2625, 0.5
  %v2630 = vmul.f32 %v2626, 0.5
  %v2631 = vmul.f32 %v2627, 0.5
  %v2632 = vmul.f32 %v2628, 0.5
  %v2633 = vmul.f32 %v2625, 0.70710677
  %v2634 = vmul.f32 %v2626, 0.70710677
  %v2635 = vmul.f32 %v2627, 0.70710677
  %v2636 = vmul.f32 %v2628, 0.70710677
  %vm2637 = vcmp.lt.f32.partialorder %v2633, 0.0
  %vm2638 = vcmp.lt.f32.partialorder %v2634, 0.0
  %vm2639 = vcmp.lt.f32.partialorder %v2635, 0.0
  %vm2640 = vcmp.lt.f32.partialorder %v2636, 0.0
  %v2641 = vsel %vm2637, -1.0, 1.0
  %v2642 = vsel %vm2638, -1.0, 1.0
  %v2643 = vsel %vm2639, -1.0, 1.0
  %v2644 = vsel %vm2640, -1.0, 1.0
  %v2645 = vand.u32 2147483647, %v2633
  %v2646 = vand.u32 2147483647, %v2634
  %v2647 = vand.u32 2147483647, %v2635
  %v2648 = vand.u32 2147483647, %v2636
  %v2649 = vmul.f32 %v2645, 0.3275911
  %v2650 = vmul.f32 %v2646, 0.3275911
  %v2651 = vmul.f32 %v2647, 0.3275911
  %v2652 = vmul.f32 %v2648, 0.3275911
  %v2653 = vadd.f32 %v2649, 1.0
  %v2654 = vadd.f32 %v2650, 1.0
  %v2655 = vadd.f32 %v2651, 1.0
  %v2656 = vadd.f32 %v2652, 1.0
  %v2657 = vrcp.pop %v2653
  %v2658 = vmul.f32 1.0, %v2657
  %v2659 = vrcp.pop %v2654
  %v2660 = vmul.f32 1.0, %v2659
  %v2661 = vrcp.pop %v2655
  %v2662 = vmul.f32 1.0, %v2661
  %v2663 = vrcp.pop %v2656
  %v2664 = vmul.f32 1.0, %v2663
  %v2665 = vmul.f32 %v2658, 1.0614054
  %v2666 = vmul.f32 %v2660, 1.0614054
  %v2667 = vmul.f32 %v2662, 1.0614054
  %v2668 = vmul.f32 %v2664, 1.0614054
  %v2669 = vadd.f32 %v2665, -1.4531521
  %v2670 = vadd.f32 %v2666, -1.4531521
  %v2671 = vadd.f32 %v2667, -1.4531521
  %v2672 = vadd.f32 %v2668, -1.4531521
  %v2673 = vmul.f32 %v2669, %v2658
  %v2674 = vmul.f32 %v2670, %v2660
  %v2675 = vmul.f32 %v2671, %v2662
  %v2676 = vmul.f32 %v2672, %v2664
  %v2677 = vadd.f32 %v2673, 1.4214138
  %v2678 = vadd.f32 %v2674, 1.4214138
  %v2679 = vadd.f32 %v2675, 1.4214138
  %v2680 = vadd.f32 %v2676, 1.4214138
  %v2681 = vmul.f32 %v2677, %v2658
  %v2682 = vmul.f32 %v2678, %v2660
  %v2683 = vmul.f32 %v2679, %v2662
  %v2684 = vmul.f32 %v2680, %v2664
  %v2685 = vadd.f32 %v2681, -0.28449672
  %v2686 = vadd.f32 %v2682, -0.28449672
  %v2687 = vadd.f32 %v2683, -0.28449672
  %v2688 = vadd.f32 %v2684, -0.28449672
  %v2689 = vmul.f32 %v2685, %v2658
  %v2690 = vmul.f32 %v2686, %v2660
  %v2691 = vmul.f32 %v2687, %v2662
  %v2692 = vmul.f32 %v2688, %v2664
  %v2693 = vadd.f32 %v2689, 0.2548296
  %v2694 = vadd.f32 %v2690, 0.2548296
  %v2695 = vadd.f32 %v2691, 0.2548296
  %v2696 = vadd.f32 %v2692, 0.2548296
  %v2697 = vmul.f32 %v2693, %v2658
  %v2698 = vmul.f32 %v2694, %v2660
  %v2699 = vmul.f32 %v2695, %v2662
  %v2700 = vmul.f32 %v2696, %v2664
  %v2701 = vsub.f32 0.0, %v2645
  %v2702 = vsub.f32 0.0, %v2646
  %v2703 = vsub.f32 0.0, %v2647
  %v2704 = vsub.f32 0.0, %v2648
  %v2705 = vmul.f32 %v2701, %v2645
  %v2706 = vmul.f32 %v2702, %v2646
  %v2707 = vmul.f32 %v2703, %v2647
  %v2708 = vmul.f32 %v2704, %v2648
  %v2709 = vmul.f32 %v2705, 1.442695
  %v2710 = vpow.pop %v2709
  %v2711 = vmul.f32 %v2706, 1.442695
  %v2712 = vpow.pop %v2711
  %v2713 = vmul.f32 %v2707, 1.442695
  %v2714 = vpow.pop %v2713
  %v2715 = vmul.f32 %v2708, 1.442695
  %v2716 = vpow.pop %v2715
  %v2717 = vmul.f32 %v2697, %v2710
  %v2718 = vmul.f32 %v2698, %v2712
  %v2719 = vmul.f32 %v2699, %v2714
  %v2720 = vmul.f32 %v2700, %v2716
  %v2721 = vsub.f32 1.0, %v2717
  %v2722 = vsub.f32 1.0, %v2718
  %v2723 = vsub.f32 1.0, %v2719
  %v2724 = vsub.f32 1.0, %v2720
  %v2725 = vmul.f32 %v2641, %v2721
  %v2726 = vmul.f32 %v2642, %v2722
  %v2727 = vmul.f32 %v2643, %v2723
  %v2728 = vmul.f32 %v2644, %v2724
  %v2729 = vadd.f32 %v2725, 1.0
  %v2730 = vadd.f32 %v2726, 1.0
  %v2731 = vadd.f32 %v2727, 1.0
  %v2732 = vadd.f32 %v2728, 1.0
  %v2733 = vmul.f32 %v2629, %v2729
  %v2734 = vmul.f32 %v2630, %v2730
  %v2735 = vmul.f32 %v2631, %v2731
  %v2736 = vmul.f32 %v2632, %v2732
  %v2737 = vld [vmem:[#allocation4] sm:$0xff]
  %v2738 = vld [vmem:[#allocation4 + $0x8] sm:$0xff]
  %v2739 = vld [vmem:[#allocation4 + $0x10] sm:$0xff]
  %v2740 = vld [vmem:[#allocation4 + $0x18] sm:$0xff]
  %v2741 = vadd.f32 %v2733, %v2737
  %v2742 = vadd.f32 %v2734, %v2738
  %v2743 = vadd.f32 %v2735, %v2739
  %v2744 = vadd.f32 %v2736, %v2740
  %v2745 = vmul.f32 %v2741, 0.7072136
  %v2746 = vmul.f32 %v2742, 0.7072136
  %v2747 = vmul.f32 %v2743, 0.7072136
  %v2748 = vmul.f32 %v2744, 0.7072136
  %v2751 = vrot.slane %v2745, 7
  %v2752 = vrot.slane %v2746, 7
  %v2753 = vsel %vm1533, %v2751, %v2752
  %2757 = vst [vmem:[#allocation2] sm:$0xfe] %v2751
  %2758 = vst [vmem:[#allocation2 + $0x10] sm:$0xff] %v2753
  %2759 = vst [vmem:[#allocation2 + $0x20] sm:$0x1] %v2752
  %v2762 = vrot.slane %v2747, 5
  %v2763 = vrot.slane %v2748, 5
  %v2764 = vsel %vm1545, %v2762, %v2763
  %2768 = vst [vmem:[#allocation2 + $0x20] sm:$0xf8] %v2762
  %2769 = vst [vmem:[#allocation2 + $0x30] sm:$0xff] %v2764
  %2770 = vst [vmem:[#allocation2 + $0x40] sm:$0x7] %v2763
  %v2771 = vld [vmem:[#allocation2] sm:$0xff]
  %v2772 = vld [vmem:[#allocation2 + $0x8] sm:$0xff]
  %v2773 = vld [vmem:[#allocation2 + $0x10] sm:$0xff]
  %v2774 = vld [vmem:[#allocation2 + $0x18] sm:$0xff]
  %s2775 = scalar_lea.vmem %s3, 864
  %v2776 = vld [vmem:[%s2775] sm:$0xff]
  %v2777 = vld [vmem:[%s2775 + $0x8] sm:$0xff]
  %v2778 = vld [vmem:[%s2775 + $0x10] sm:$0xff]
  %v2779 = vld [vmem:[%s2775 + $0x18] sm:$0xff]
  %v2780 = vld [vmem:[%s2775 + $0x20] sm:$0xff]
  %v2781 = vld [vmem:[%s2775 + $0x28] sm:$0xff]
  %v2782 = vld [vmem:[%s2775 + $0x30] sm:$0xff]
  %v2783 = vld [vmem:[%s2775 + $0x38] sm:$0xff]
  %v2784 = vld [vmem:[%s2775 + $0x40] sm:$0xff]
  %v2785 = vld [vmem:[%s2775 + $0x48] sm:$0xff]
  %v2786 = vld [vmem:[%s2775 + $0x50] sm:$0xff]
  %v2787 = vld [vmem:[%s2775 + $0x58] sm:$0xff]
  %v2788 = vld [vmem:[%s2775 + $0x60] sm:$0xff]
  %v2789 = vld [vmem:[%s2775 + $0x68] sm:$0xff]
  %v2790 = vld [vmem:[%s2775 + $0x70] sm:$0xff]
  %v2791 = vld [vmem:[%s2775 + $0x78] sm:$0xff]
  %v2792 = vld [vmem:[%s2775 + $0x80] sm:$0xff]
  %v2793 = vld [vmem:[%s2775 + $0x88] sm:$0xff]
  %v2794 = vld [vmem:[#allocation2] sm:$0xfe]
  %v2795 = vld [vmem:[#allocation2 + $0x8] sm:$0xfe]
  %v2796 = vld [vmem:[#allocation2 + $0x20] sm:$0x1]
  %v2797 = vld [vmem:[#allocation2 + $0x28] sm:$0x1]
  %s2798 = scalar_lea.vmem %s3, 1008
  %v2799 = vld [vmem:[%s2798] sm:$0xff]
  %v2800 = vld [vmem:[%s2798 + $0x8] sm:$0xff]
  %v2801 = vld [vmem:[%s2798 + $0x10] sm:$0xff]
  %v2802 = vld [vmem:[%s2798 + $0x18] sm:$0xff]
  %v2803 = vld [vmem:[%s2798 + $0x20] sm:$0xff]
  %v2804 = vld [vmem:[%s2798 + $0x28] sm:$0xff]
  %v2805 = vld [vmem:[%s2798 + $0x30] sm:$0xff]
  %v2806 = vld [vmem:[%s2798 + $0x38] sm:$0xff]
  %v2807 = vld [vmem:[%s2798 + $0x40] sm:$0xff]
  %v2808 = vld [vmem:[%s2798 + $0x48] sm:$0xff]
  %v2809 = vld [vmem:[%s2798 + $0x50] sm:$0xff]
  %v2810 = vld [vmem:[%s2798 + $0x58] sm:$0xff]
  %v2811 = vld [vmem:[%s2798 + $0x60] sm:$0xff]
  %v2812 = vld [vmem:[%s2798 + $0x68] sm:$0xff]
  %v2813 = vld [vmem:[%s2798 + $0x70] sm:$0xff]
  %v2814 = vld [vmem:[%s2798 + $0x78] sm:$0xff]
  %v2815 = vld [vmem:[%s2798 + $0x80] sm:$0xff]
  %v2816 = vld [vmem:[%s2798 + $0x88] sm:$0xff]
  %v2823 = vrot.slane %v2794, 1
  %v2824 = vrot.slane %v2773, 1
  %v2825 = vsel %vm399, %v2823, %v2824
  %v2826 = vrot.slane %v2795, 1
  %v2827 = vrot.slane %v2774, 1
  %v2828 = vsel %vm399, %v2826, %v2827
  %v2829 = vrot.slane %v2796, 1
  %v2830 = vsel %vm399, %v2824, %v2829
  %v2831 = vrot.slane %v2797, 1
  %v2832 = vsel %vm399, %v2827, %v2831
  %v2835 = vsel %vm33, %v2828, 0
  %v2837 = vsel %vm33, %v2832, 0
  %2839 = vmatprep.subr.mxu0 0.0
  %2840 = vmatpush1.msra.mxu0 %v2814
  %2841 = vmatprep.subr.mxu0 0.0
  %2842 = vmatpush1.msra.mxu0 %v2813
  %2843 = vmatprep.subr.mxu0 0.0
  %2844 = vmatpush1.msra.mxu0 %v2812
  %2845 = vmatprep.subr.mxu0 0.0
  %2846 = vmatpush1.msra.mxu0 %v2811
  %2847 = vmatprep.subr.mxu0 0.0
  %2848 = vmatpush1.msra.mxu0 %v2810
  %2849 = vmatprep.subr.mxu0 0.0
  %2850 = vmatpush1.msra.mxu0 %v2809
  %2851 = vmatprep.subr.mxu0 0.0
  %2852 = vmatpush1.msra.mxu0 %v2808
  %2853 = vmatprep.subr.mxu0 0.0
  %2854 = vmatpush1.msra.mxu0 %v2807
  %2855 = vmatprep.subr.mxu0 0.0
  %2856 = vmatpush1.msra.mxu0 %v2806
  %2857 = vmatprep.subr.mxu0 0.0
  %2858 = vmatpush1.msra.mxu0 %v2805
  %2859 = vmatprep.subr.mxu0 0.0
  %2860 = vmatpush1.msra.mxu0 %v2804
  %2861 = vmatprep.subr.mxu0 0.0
  %2862 = vmatpush1.msra.mxu0 %v2803
  %2863 = vmatprep.subr.mxu0 0.0
  %2864 = vmatpush1.msra.mxu0 %v2802
  %2865 = vmatprep.subr.mxu0 0.0
  %2866 = vmatpush1.msra.mxu0 %v2801
  %2867 = vmatprep.subr.mxu0 0.0
  %2868 = vmatpush1.msra.mxu0 %v2800
  %2869 = vmatprep.subr.mxu0 0.0
  %2870 = vmatpush1.msra.mxu0 %v2799
  %2871 = vmatprep.subr.mxu0 0.0
  %2872 = vmatpush2.msra.mxu0 0.0
  %2873 = vmatprep.subr.mxu0 0.0
  %2874 = vmatpush2.msra.mxu0 0.0
  %2875 = vmatprep.subr.mxu0 0.0
  %2876 = vmatpush2.msra.mxu0 0.0
  %2877 = vmatprep.subr.mxu0 0.0
  %2878 = vmatpush2.msra.mxu0 0.0
  %2879 = vmatprep.subr.mxu0 0.0
  %2880 = vmatpush2.msra.mxu0 0.0
  %2881 = vmatprep.subr.mxu0 0.0
  %2882 = vmatpush2.msra.mxu0 0.0
  %2883 = vmatprep.subr.mxu0 0.0
  %2884 = vmatpush2.msra.mxu0 0.0
  %2885 = vmatprep.subr.mxu0 0.0
  %2886 = vmatpush2.msra.mxu0 0.0
  %2887 = vmatprep.subr.mxu0 0.0
  %2888 = vmatpush2.msra.mxu0 0.0
  %2889 = vmatprep.subr.mxu0 0.0
  %2890 = vmatpush2.msra.mxu0 0.0
  %2891 = vmatprep.subr.mxu0 0.0
  %2892 = vmatpush2.msra.mxu0 0.0
  %2893 = vmatprep.subr.mxu0 0.0
  %2894 = vmatpush2.msra.mxu0 0.0
  %2895 = vmatprep.subr.mxu0 0.0
  %2896 = vmatpush2.msra.mxu0 0.0
  %2897 = vmatprep.subr.mxu0 0.0
  %2898 = vmatpush2.msra.mxu0 0.0
  %2899 = vmatprep.subr.mxu0 0.0
  %2900 = vmatpush2.msra.mxu0 %v2816
  %2901 = vmatprep.subr.mxu0 0.0
  %2902 = vmatpush2.msra.mxu0 %v2815
  %2903 = vmatprep.mubr.f32.mxu0 %v2835
  %2904 = vmatmul.mubr.f32.gmra.mxu0 %v2825
  %v2905 = vpop.f32.mrf.mxu0
  %v2906 = vadd.f32 0.0, %v2905
  %v2907 = vpop.f32.mrf.mxu0
  %2908 = vmatprep.mubr.f32.mxu0 %v2837
  %2909 = vmatmul.mubr.f32.gmra.mxu0 %v2830
  %v2910 = vpop.f32.mrf.mxu0
  %v2911 = vadd.f32 0.0, %v2910
  %v2912 = vpop.f32.mrf.mxu0
  %2913 = vdwg.mxu0
  %v2915 = vsel %vm33, %v2772, 0
  %v2917 = vsel %vm33, %v2774, 0
  %2919 = vmatprep.subr.mxu0 0.0
  %2920 = vmatpush1.msra.mxu0 %v2791
  %2921 = vmatprep.subr.mxu0 0.0
  %2922 = vmatpush1.msra.mxu0 %v2790
  %2923 = vmatprep.subr.mxu0 0.0
  %2924 = vmatpush1.msra.mxu0 %v2789
  %2925 = vmatprep.subr.mxu0 0.0
  %2926 = vmatpush1.msra.mxu0 %v2788
  %2927 = vmatprep.subr.mxu0 0.0
  %2928 = vmatpush1.msra.mxu0 %v2787
  %2929 = vmatprep.subr.mxu0 0.0
  %2930 = vmatpush1.msra.mxu0 %v2786
  %2931 = vmatprep.subr.mxu0 0.0
  %2932 = vmatpush1.msra.mxu0 %v2785
  %2933 = vmatprep.subr.mxu0 0.0
  %2934 = vmatpush1.msra.mxu0 %v2784
  %2935 = vmatprep.subr.mxu0 0.0
  %2936 = vmatpush1.msra.mxu0 %v2783
  %2937 = vmatprep.subr.mxu0 0.0
  %2938 = vmatpush1.msra.mxu0 %v2782
  %2939 = vmatprep.subr.mxu0 0.0
  %2940 = vmatpush1.msra.mxu0 %v2781
  %2941 = vmatprep.subr.mxu0 0.0
  %2942 = vmatpush1.msra.mxu0 %v2780
  %2943 = vmatprep.subr.mxu0 0.0
  %2944 = vmatpush1.msra.mxu0 %v2779
  %2945 = vmatprep.subr.mxu0 0.0
  %2946 = vmatpush1.msra.mxu0 %v2778
  %2947 = vmatprep.subr.mxu0 0.0
  %2948 = vmatpush1.msra.mxu0 %v2777
  %2949 = vmatprep.subr.mxu0 0.0
  %2950 = vmatpush1.msra.mxu0 %v2776
  %2951 = vmatprep.subr.mxu0 0.0
  %2952 = vmatpush2.msra.mxu0 0.0
  %2953 = vmatprep.subr.mxu0 0.0
  %2954 = vmatpush2.msra.mxu0 0.0
  %2955 = vmatprep.subr.mxu0 0.0
  %2956 = vmatpush2.msra.mxu0 0.0
  %2957 = vmatprep.subr.mxu0 0.0
  %2958 = vmatpush2.msra.mxu0 0.0
  %2959 = vmatprep.subr.mxu0 0.0
  %2960 = vmatpush2.msra.mxu0 0.0
  %2961 = vmatprep.subr.mxu0 0.0
  %2962 = vmatpush2.msra.mxu0 0.0
  %2963 = vmatprep.subr.mxu0 0.0
  %2964 = vmatpush2.msra.mxu0 0.0
  %2965 = vmatprep.subr.mxu0 0.0
  %2966 = vmatpush2.msra.mxu0 0.0
  %2967 = vmatprep.subr.mxu0 0.0
  %2968 = vmatpush2.msra.mxu0 0.0
  %2969 = vmatprep.subr.mxu0 0.0
  %2970 = vmatpush2.msra.mxu0 0.0
  %2971 = vmatprep.subr.mxu0 0.0
  %2972 = vmatpush2.msra.mxu0 0.0
  %2973 = vmatprep.subr.mxu0 0.0
  %2974 = vmatpush2.msra.mxu0 0.0
  %2975 = vmatprep.subr.mxu0 0.0
  %2976 = vmatpush2.msra.mxu0 0.0
  %2977 = vmatprep.subr.mxu0 0.0
  %2978 = vmatpush2.msra.mxu0 0.0
  %2979 = vmatprep.subr.mxu0 0.0
  %2980 = vmatpush2.msra.mxu0 %v2793
  %2981 = vmatprep.subr.mxu0 0.0
  %2982 = vmatpush2.msra.mxu0 %v2792
  %2983 = vmatprep.mubr.f32.mxu0 %v2915
  %2984 = vmatmul.mubr.f32.gmra.mxu0 %v2771
  %v2985 = vpop.f32.mrf.mxu0
  %v2986 = vadd.f32 %v2906, %v2985
  %v2987 = vpop.f32.mrf.mxu0
  %2988 = vmatprep.mubr.f32.mxu0 %v2917
  %2989 = vmatmul.mubr.f32.gmra.mxu0 %v2773
  %v2990 = vpop.f32.mrf.mxu0
  %v2991 = vadd.f32 %v2911, %v2990
  %v2992 = vpop.f32.mrf.mxu0
  %2993 = vdwg.mxu0
  %v2994 = vld [vmem:[#allocation2] sm:$0xfc]
  %v2995 = vld [vmem:[#allocation2 + $0x8] sm:$0xfc]
  %v2996 = vld [vmem:[#allocation2 + $0x20] sm:$0x3]
  %v2997 = vld [vmem:[#allocation2 + $0x28] sm:$0x3]
  %s2998 = scalar_lea.vmem %s3, 1152
  %v2999 = vld [vmem:[%s2998] sm:$0xff]
  %v3000 = vld [vmem:[%s2998 + $0x8] sm:$0xff]
  %v3001 = vld [vmem:[%s2998 + $0x10] sm:$0xff]
  %v3002 = vld [vmem:[%s2998 + $0x18] sm:$0xff]
  %v3003 = vld [vmem:[%s2998 + $0x20] sm:$0xff]
  %v3004 = vld [vmem:[%s2998 + $0x28] sm:$0xff]
  %v3005 = vld [vmem:[%s2998 + $0x30] sm:$0xff]
  %v3006 = vld [vmem:[%s2998 + $0x38] sm:$0xff]
  %v3007 = vld [vmem:[%s2998 + $0x40] sm:$0xff]
  %v3008 = vld [vmem:[%s2998 + $0x48] sm:$0xff]
  %v3009 = vld [vmem:[%s2998 + $0x50] sm:$0xff]
  %v3010 = vld [vmem:[%s2998 + $0x58] sm:$0xff]
  %v3011 = vld [vmem:[%s2998 + $0x60] sm:$0xff]
  %v3012 = vld [vmem:[%s2998 + $0x68] sm:$0xff]
  %v3013 = vld [vmem:[%s2998 + $0x70] sm:$0xff]
  %v3014 = vld [vmem:[%s2998 + $0x78] sm:$0xff]
  %v3015 = vld [vmem:[%s2998 + $0x80] sm:$0xff]
  %v3016 = vld [vmem:[%s2998 + $0x88] sm:$0xff]
  %v3021 = vrot.slane %v2994, 2
  %v3022 = vrot.slane %v2773, 2
  %v3023 = vsel %vm598, %v3021, %v3022
  %v3024 = vrot.slane %v2995, 2
  %v3025 = vrot.slane %v2774, 2
  %v3026 = vsel %vm598, %v3024, %v3025
  %v3027 = vrot.slane %v2996, 2
  %v3028 = vsel %vm598, %v3022, %v3027
  %v3029 = vrot.slane %v2997, 2
  %v3030 = vsel %vm598, %v3025, %v3029
  %v3033 = vsel %vm33, %v3026, 0
  %v3035 = vsel %vm33, %v3030, 0
  %3037 = vmatprep.subr.mxu0 0.0
  %3038 = vmatpush1.msra.mxu0 %v3014
  %3039 = vmatprep.subr.mxu0 0.0
  %3040 = vmatpush1.msra.mxu0 %v3013
  %3041 = vmatprep.subr.mxu0 0.0
  %3042 = vmatpush1.msra.mxu0 %v3012
  %3043 = vmatprep.subr.mxu0 0.0
  %3044 = vmatpush1.msra.mxu0 %v3011
  %3045 = vmatprep.subr.mxu0 0.0
  %3046 = vmatpush1.msra.mxu0 %v3010
  %3047 = vmatprep.subr.mxu0 0.0
  %3048 = vmatpush1.msra.mxu0 %v3009
  %3049 = vmatprep.subr.mxu0 0.0
  %3050 = vmatpush1.msra.mxu0 %v3008
  %3051 = vmatprep.subr.mxu0 0.0
  %3052 = vmatpush1.msra.mxu0 %v3007
  %3053 = vmatprep.subr.mxu0 0.0
  %3054 = vmatpush1.msra.mxu0 %v3006
  %3055 = vmatprep.subr.mxu0 0.0
  %3056 = vmatpush1.msra.mxu0 %v3005
  %3057 = vmatprep.subr.mxu0 0.0
  %3058 = vmatpush1.msra.mxu0 %v3004
  %3059 = vmatprep.subr.mxu0 0.0
  %3060 = vmatpush1.msra.mxu0 %v3003
  %3061 = vmatprep.subr.mxu0 0.0
  %3062 = vmatpush1.msra.mxu0 %v3002
  %3063 = vmatprep.subr.mxu0 0.0
  %3064 = vmatpush1.msra.mxu0 %v3001
  %3065 = vmatprep.subr.mxu0 0.0
  %3066 = vmatpush1.msra.mxu0 %v3000
  %3067 = vmatprep.subr.mxu0 0.0
  %3068 = vmatpush1.msra.mxu0 %v2999
  %3069 = vmatprep.subr.mxu0 0.0
  %3070 = vmatpush2.msra.mxu0 0.0
  %3071 = vmatprep.subr.mxu0 0.0
  %3072 = vmatpush2.msra.mxu0 0.0
  %3073 = vmatprep.subr.mxu0 0.0
  %3074 = vmatpush2.msra.mxu0 0.0
  %3075 = vmatprep.subr.mxu0 0.0
  %3076 = vmatpush2.msra.mxu0 0.0
  %3077 = vmatprep.subr.mxu0 0.0
  %3078 = vmatpush2.msra.mxu0 0.0
  %3079 = vmatprep.subr.mxu0 0.0
  %3080 = vmatpush2.msra.mxu0 0.0
  %3081 = vmatprep.subr.mxu0 0.0
  %3082 = vmatpush2.msra.mxu0 0.0
  %3083 = vmatprep.subr.mxu0 0.0
  %3084 = vmatpush2.msra.mxu0 0.0
  %3085 = vmatprep.subr.mxu0 0.0
  %3086 = vmatpush2.msra.mxu0 0.0
  %3087 = vmatprep.subr.mxu0 0.0
  %3088 = vmatpush2.msra.mxu0 0.0
  %3089 = vmatprep.subr.mxu0 0.0
  %3090 = vmatpush2.msra.mxu0 0.0
  %3091 = vmatprep.subr.mxu0 0.0
  %3092 = vmatpush2.msra.mxu0 0.0
  %3093 = vmatprep.subr.mxu0 0.0
  %3094 = vmatpush2.msra.mxu0 0.0
  %3095 = vmatprep.subr.mxu0 0.0
  %3096 = vmatpush2.msra.mxu0 0.0
  %3097 = vmatprep.subr.mxu0 0.0
  %3098 = vmatpush2.msra.mxu0 %v3016
  %3099 = vmatprep.subr.mxu0 0.0
  %3100 = vmatpush2.msra.mxu0 %v3015
  %3101 = vmatprep.mubr.f32.mxu0 %v3033
  %3102 = vmatmul.mubr.f32.gmra.mxu0 %v3023
  %v3103 = vpop.f32.mrf.mxu0
  %v3104 = vadd.f32 0.0, %v3103
  %v3105 = vpop.f32.mrf.mxu0
  %3106 = vmatprep.mubr.f32.mxu0 %v3035
  %3107 = vmatmul.mubr.f32.gmra.mxu0 %v3028
  %v3108 = vpop.f32.mrf.mxu0
  %v3109 = vadd.f32 0.0, %v3108
  %v3110 = vpop.f32.mrf.mxu0
  %3111 = vdwg.mxu0
  %v3112 = vadd.f32 %v2986, %v3104
  %v3113 = vadd.f32 %v2991, %v3109
  %3114 = vst [vmem:[#allocation3] sm:$0xff] %v3112
  %3115 = vst [vmem:[#allocation3 + $0x8] sm:$0xff] %v3113
  %v3116 = vld [vmem:[#allocation2 + $0x20] sm:$0xfc]
  %v3117 = vld [vmem:[#allocation2 + $0x28] sm:$0xfc]
  %v3118 = vld [vmem:[#allocation2 + $0x30] sm:$0xff]
  %v3119 = vld [vmem:[#allocation2 + $0x38] sm:$0xff]
  %v3120 = vld [vmem:[#allocation2 + $0x40] sm:$0x3]
  %v3121 = vld [vmem:[#allocation2 + $0x48] sm:$0x3]
  %v3122 = vld [vmem:[%s2775] sm:$0xff]
  %v3123 = vld [vmem:[%s2775 + $0x8] sm:$0xff]
  %v3124 = vld [vmem:[%s2775 + $0x10] sm:$0xff]
  %v3125 = vld [vmem:[%s2775 + $0x18] sm:$0xff]
  %v3126 = vld [vmem:[%s2775 + $0x20] sm:$0xff]
  %v3127 = vld [vmem:[%s2775 + $0x28] sm:$0xff]
  %v3128 = vld [vmem:[%s2775 + $0x30] sm:$0xff]
  %v3129 = vld [vmem:[%s2775 + $0x38] sm:$0xff]
  %v3130 = vld [vmem:[%s2775 + $0x40] sm:$0xff]
  %v3131 = vld [vmem:[%s2775 + $0x48] sm:$0xff]
  %v3132 = vld [vmem:[%s2775 + $0x50] sm:$0xff]
  %v3133 = vld [vmem:[%s2775 + $0x58] sm:$0xff]
  %v3134 = vld [vmem:[%s2775 + $0x60] sm:$0xff]
  %v3135 = vld [vmem:[%s2775 + $0x68] sm:$0xff]
  %v3136 = vld [vmem:[%s2775 + $0x70] sm:$0xff]
  %v3137 = vld [vmem:[%s2775 + $0x78] sm:$0xff]
  %v3138 = vld [vmem:[%s2775 + $0x80] sm:$0xff]
  %v3139 = vld [vmem:[%s2775 + $0x88] sm:$0xff]
  %v3140 = vld [vmem:[#allocation2 + $0x20] sm:$0xf8]
  %v3141 = vld [vmem:[#allocation2 + $0x28] sm:$0xf8]
  %v3142 = vld [vmem:[#allocation2 + $0x40] sm:$0x7]
  %v3143 = vld [vmem:[#allocation2 + $0x48] sm:$0x7]
  %v3144 = vld [vmem:[%s2798] sm:$0xff]
  %v3145 = vld [vmem:[%s2798 + $0x8] sm:$0xff]
  %v3146 = vld [vmem:[%s2798 + $0x10] sm:$0xff]
  %v3147 = vld [vmem:[%s2798 + $0x18] sm:$0xff]
  %v3148 = vld [vmem:[%s2798 + $0x20] sm:$0xff]
  %v3149 = vld [vmem:[%s2798 + $0x28] sm:$0xff]
  %v3150 = vld [vmem:[%s2798 + $0x30] sm:$0xff]
  %v3151 = vld [vmem:[%s2798 + $0x38] sm:$0xff]
  %v3152 = vld [vmem:[%s2798 + $0x40] sm:$0xff]
  %v3153 = vld [vmem:[%s2798 + $0x48] sm:$0xff]
  %v3154 = vld [vmem:[%s2798 + $0x50] sm:$0xff]
  %v3155 = vld [vmem:[%s2798 + $0x58] sm:$0xff]
  %v3156 = vld [vmem:[%s2798 + $0x60] sm:$0xff]
  %v3157 = vld [vmem:[%s2798 + $0x68] sm:$0xff]
  %v3158 = vld [vmem:[%s2798 + $0x70] sm:$0xff]
  %v3159 = vld [vmem:[%s2798 + $0x78] sm:$0xff]
  %v3160 = vld [vmem:[%s2798 + $0x80] sm:$0xff]
  %v3161 = vld [vmem:[%s2798 + $0x88] sm:$0xff]
  %v3168 = vrot.slane %v3140, 3
  %v3169 = vrot.slane %v3118, 3
  %v3170 = vsel %vm746, %v3168, %v3169
  %v3171 = vrot.slane %v3141, 3
  %v3172 = vrot.slane %v3119, 3
  %v3173 = vsel %vm746, %v3171, %v3172
  %v3174 = vrot.slane %v3142, 3
  %v3175 = vsel %vm746, %v3169, %v3174
  %v3176 = vrot.slane %v3143, 3
  %v3177 = vsel %vm746, %v3172, %v3176
  %v3180 = vsel %vm33, %v3173, 0
  %v3182 = vsel %vm33, %v3177, 0
  %3184 = vmatprep.subr.mxu0 0.0
  %3185 = vmatpush1.msra.mxu0 %v3159
  %3186 = vmatprep.subr.mxu0 0.0
  %3187 = vmatpush1.msra.mxu0 %v3158
  %3188 = vmatprep.subr.mxu0 0.0
  %3189 = vmatpush1.msra.mxu0 %v3157
  %3190 = vmatprep.subr.mxu0 0.0
  %3191 = vmatpush1.msra.mxu0 %v3156
  %3192 = vmatprep.subr.mxu0 0.0
  %3193 = vmatpush1.msra.mxu0 %v3155
  %3194 = vmatprep.subr.mxu0 0.0
  %3195 = vmatpush1.msra.mxu0 %v3154
  %3196 = vmatprep.subr.mxu0 0.0
  %3197 = vmatpush1.msra.mxu0 %v3153
  %3198 = vmatprep.subr.mxu0 0.0
  %3199 = vmatpush1.msra.mxu0 %v3152
  %3200 = vmatprep.subr.mxu0 0.0
  %3201 = vmatpush1.msra.mxu0 %v3151
  %3202 = vmatprep.subr.mxu0 0.0
  %3203 = vmatpush1.msra.mxu0 %v3150
  %3204 = vmatprep.subr.mxu0 0.0
  %3205 = vmatpush1.msra.mxu0 %v3149
  %3206 = vmatprep.subr.mxu0 0.0
  %3207 = vmatpush1.msra.mxu0 %v3148
  %3208 = vmatprep.subr.mxu0 0.0
  %3209 = vmatpush1.msra.mxu0 %v3147
  %3210 = vmatprep.subr.mxu0 0.0
  %3211 = vmatpush1.msra.mxu0 %v3146
  %3212 = vmatprep.subr.mxu0 0.0
  %3213 = vmatpush1.msra.mxu0 %v3145
  %3214 = vmatprep.subr.mxu0 0.0
  %3215 = vmatpush1.msra.mxu0 %v3144
  %3216 = vmatprep.subr.mxu0 0.0
  %3217 = vmatpush2.msra.mxu0 0.0
  %3218 = vmatprep.subr.mxu0 0.0
  %3219 = vmatpush2.msra.mxu0 0.0
  %3220 = vmatprep.subr.mxu0 0.0
  %3221 = vmatpush2.msra.mxu0 0.0
  %3222 = vmatprep.subr.mxu0 0.0
  %3223 = vmatpush2.msra.mxu0 0.0
  %3224 = vmatprep.subr.mxu0 0.0
  %3225 = vmatpush2.msra.mxu0 0.0
  %3226 = vmatprep.subr.mxu0 0.0
  %3227 = vmatpush2.msra.mxu0 0.0
  %3228 = vmatprep.subr.mxu0 0.0
  %3229 = vmatpush2.msra.mxu0 0.0
  %3230 = vmatprep.subr.mxu0 0.0
  %3231 = vmatpush2.msra.mxu0 0.0
  %3232 = vmatprep.subr.mxu0 0.0
  %3233 = vmatpush2.msra.mxu0 0.0
  %3234 = vmatprep.subr.mxu0 0.0
  %3235 = vmatpush2.msra.mxu0 0.0
  %3236 = vmatprep.subr.mxu0 0.0
  %3237 = vmatpush2.msra.mxu0 0.0
  %3238 = vmatprep.subr.mxu0 0.0
  %3239 = vmatpush2.msra.mxu0 0.0
  %3240 = vmatprep.subr.mxu0 0.0
  %3241 = vmatpush2.msra.mxu0 0.0
  %3242 = vmatprep.subr.mxu0 0.0
  %3243 = vmatpush2.msra.mxu0 0.0
  %3244 = vmatprep.subr.mxu0 0.0
  %3245 = vmatpush2.msra.mxu0 %v3161
  %3246 = vmatprep.subr.mxu0 0.0
  %3247 = vmatpush2.msra.mxu0 %v3160
  %3248 = vmatprep.mubr.f32.mxu0 %v3180
  %3249 = vmatmul.mubr.f32.gmra.mxu0 %v3170
  %v3250 = vpop.f32.mrf.mxu0
  %v3251 = vadd.f32 0.0, %v3250
  %v3252 = vpop.f32.mrf.mxu0
  %3253 = vmatprep.mubr.f32.mxu0 %v3182
  %3254 = vmatmul.mubr.f32.gmra.mxu0 %v3175
  %v3255 = vpop.f32.mrf.mxu0
  %v3256 = vadd.f32 0.0, %v3255
  %v3257 = vpop.f32.mrf.mxu0
  %3258 = vdwg.mxu0
  %v3263 = vrot.slane %v3116, 2
  %v3264 = vrot.slane %v3118, 2
  %v3265 = vsel %vm598, %v3263, %v3264
  %v3266 = vrot.slane %v3117, 2
  %v3267 = vrot.slane %v3119, 2
  %v3268 = vsel %vm598, %v3266, %v3267
  %v3269 = vrot.slane %v3120, 2
  %v3270 = vsel %vm598, %v3264, %v3269
  %v3271 = vrot.slane %v3121, 2
  %v3272 = vsel %vm598, %v3267, %v3271
  %v3275 = vsel %vm33, %v3268, 0
  %v3277 = vsel %vm33, %v3272, 0
  %3279 = vmatprep.subr.mxu0 0.0
  %3280 = vmatpush1.msra.mxu0 %v3137
  %3281 = vmatprep.subr.mxu0 0.0
  %3282 = vmatpush1.msra.mxu0 %v3136
  %3283 = vmatprep.subr.mxu0 0.0
  %3284 = vmatpush1.msra.mxu0 %v3135
  %3285 = vmatprep.subr.mxu0 0.0
  %3286 = vmatpush1.msra.mxu0 %v3134
  %3287 = vmatprep.subr.mxu0 0.0
  %3288 = vmatpush1.msra.mxu0 %v3133
  %3289 = vmatprep.subr.mxu0 0.0
  %3290 = vmatpush1.msra.mxu0 %v3132
  %3291 = vmatprep.subr.mxu0 0.0
  %3292 = vmatpush1.msra.mxu0 %v3131
  %3293 = vmatprep.subr.mxu0 0.0
  %3294 = vmatpush1.msra.mxu0 %v3130
  %3295 = vmatprep.subr.mxu0 0.0
  %3296 = vmatpush1.msra.mxu0 %v3129
  %3297 = vmatprep.subr.mxu0 0.0
  %3298 = vmatpush1.msra.mxu0 %v3128
  %3299 = vmatprep.subr.mxu0 0.0
  %3300 = vmatpush1.msra.mxu0 %v3127
  %3301 = vmatprep.subr.mxu0 0.0
  %3302 = vmatpush1.msra.mxu0 %v3126
  %3303 = vmatprep.subr.mxu0 0.0
  %3304 = vmatpush1.msra.mxu0 %v3125
  %3305 = vmatprep.subr.mxu0 0.0
  %3306 = vmatpush1.msra.mxu0 %v3124
  %3307 = vmatprep.subr.mxu0 0.0
  %3308 = vmatpush1.msra.mxu0 %v3123
  %3309 = vmatprep.subr.mxu0 0.0
  %3310 = vmatpush1.msra.mxu0 %v3122
  %3311 = vmatprep.subr.mxu0 0.0
  %3312 = vmatpush2.msra.mxu0 0.0
  %3313 = vmatprep.subr.mxu0 0.0
  %3314 = vmatpush2.msra.mxu0 0.0
  %3315 = vmatprep.subr.mxu0 0.0
  %3316 = vmatpush2.msra.mxu0 0.0
  %3317 = vmatprep.subr.mxu0 0.0
  %3318 = vmatpush2.msra.mxu0 0.0
  %3319 = vmatprep.subr.mxu0 0.0
  %3320 = vmatpush2.msra.mxu0 0.0
  %3321 = vmatprep.subr.mxu0 0.0
  %3322 = vmatpush2.msra.mxu0 0.0
  %3323 = vmatprep.subr.mxu0 0.0
  %3324 = vmatpush2.msra.mxu0 0.0
  %3325 = vmatprep.subr.mxu0 0.0
  %3326 = vmatpush2.msra.mxu0 0.0
  %3327 = vmatprep.subr.mxu0 0.0
  %3328 = vmatpush2.msra.mxu0 0.0
  %3329 = vmatprep.subr.mxu0 0.0
  %3330 = vmatpush2.msra.mxu0 0.0
  %3331 = vmatprep.subr.mxu0 0.0
  %3332 = vmatpush2.msra.mxu0 0.0
  %3333 = vmatprep.subr.mxu0 0.0
  %3334 = vmatpush2.msra.mxu0 0.0
  %3335 = vmatprep.subr.mxu0 0.0
  %3336 = vmatpush2.msra.mxu0 0.0
  %3337 = vmatprep.subr.mxu0 0.0
  %3338 = vmatpush2.msra.mxu0 0.0
  %3339 = vmatprep.subr.mxu0 0.0
  %3340 = vmatpush2.msra.mxu0 %v3139
  %3341 = vmatprep.subr.mxu0 0.0
  %3342 = vmatpush2.msra.mxu0 %v3138
  %3343 = vmatprep.mubr.f32.mxu0 %v3275
  %3344 = vmatmul.mubr.f32.gmra.mxu0 %v3265
  %v3345 = vpop.f32.mrf.mxu0
  %v3346 = vadd.f32 %v3251, %v3345
  %v3347 = vpop.f32.mrf.mxu0
  %3348 = vmatprep.mubr.f32.mxu0 %v3277
  %3349 = vmatmul.mubr.f32.gmra.mxu0 %v3270
  %v3350 = vpop.f32.mrf.mxu0
  %v3351 = vadd.f32 %v3256, %v3350
  %v3352 = vpop.f32.mrf.mxu0
  %3353 = vdwg.mxu0
  %v3354 = vld [vmem:[#allocation2 + $0x20] sm:$0xf0]
  %v3355 = vld [vmem:[#allocation2 + $0x28] sm:$0xf0]
  %v3356 = vld [vmem:[#allocation2 + $0x40] sm:$0xf]
  %v3357 = vld [vmem:[#allocation2 + $0x48] sm:$0xf]
  %v3358 = vld [vmem:[%s2998] sm:$0xff]
  %v3359 = vld [vmem:[%s2998 + $0x8] sm:$0xff]
  %v3360 = vld [vmem:[%s2998 + $0x10] sm:$0xff]
  %v3361 = vld [vmem:[%s2998 + $0x18] sm:$0xff]
  %v3362 = vld [vmem:[%s2998 + $0x20] sm:$0xff]
  %v3363 = vld [vmem:[%s2998 + $0x28] sm:$0xff]
  %v3364 = vld [vmem:[%s2998 + $0x30] sm:$0xff]
  %v3365 = vld [vmem:[%s2998 + $0x38] sm:$0xff]
  %v3366 = vld [vmem:[%s2998 + $0x40] sm:$0xff]
  %v3367 = vld [vmem:[%s2998 + $0x48] sm:$0xff]
  %v3368 = vld [vmem:[%s2998 + $0x50] sm:$0xff]
  %v3369 = vld [vmem:[%s2998 + $0x58] sm:$0xff]
  %v3370 = vld [vmem:[%s2998 + $0x60] sm:$0xff]
  %v3371 = vld [vmem:[%s2998 + $0x68] sm:$0xff]
  %v3372 = vld [vmem:[%s2998 + $0x70] sm:$0xff]
  %v3373 = vld [vmem:[%s2998 + $0x78] sm:$0xff]
  %v3374 = vld [vmem:[%s2998 + $0x80] sm:$0xff]
  %v3375 = vld [vmem:[%s2998 + $0x88] sm:$0xff]
  %v3380 = vrot.slane %v3354, 4
  %v3381 = vrot.slane %v3118, 4
  %v3382 = vsel %vm959, %v3380, %v3381
  %v3383 = vrot.slane %v3355, 4
  %v3384 = vrot.slane %v3119, 4
  %v3385 = vsel %vm959, %v3383, %v3384
  %v3386 = vrot.slane %v3356, 4
  %v3387 = vsel %vm959, %v3381, %v3386
  %v3388 = vrot.slane %v3357, 4
  %v3389 = vsel %vm959, %v3384, %v3388
  %v3392 = vsel %vm33, %v3385, 0
  %v3394 = vsel %vm33, %v3389, 0
  %3396 = vmatprep.subr.mxu0 0.0
  %3397 = vmatpush1.msra.mxu0 %v3373
  %3398 = vmatprep.subr.mxu0 0.0
  %3399 = vmatpush1.msra.mxu0 %v3372
  %3400 = vmatprep.subr.mxu0 0.0
  %3401 = vmatpush1.msra.mxu0 %v3371
  %3402 = vmatprep.subr.mxu0 0.0
  %3403 = vmatpush1.msra.mxu0 %v3370
  %3404 = vmatprep.subr.mxu0 0.0
  %3405 = vmatpush1.msra.mxu0 %v3369
  %3406 = vmatprep.subr.mxu0 0.0
  %3407 = vmatpush1.msra.mxu0 %v3368
  %3408 = vmatprep.subr.mxu0 0.0
  %3409 = vmatpush1.msra.mxu0 %v3367
  %3410 = vmatprep.subr.mxu0 0.0
  %3411 = vmatpush1.msra.mxu0 %v3366
  %3412 = vmatprep.subr.mxu0 0.0
  %3413 = vmatpush1.msra.mxu0 %v3365
  %3414 = vmatprep.subr.mxu0 0.0
  %3415 = vmatpush1.msra.mxu0 %v3364
  %3416 = vmatprep.subr.mxu0 0.0
  %3417 = vmatpush1.msra.mxu0 %v3363
  %3418 = vmatprep.subr.mxu0 0.0
  %3419 = vmatpush1.msra.mxu0 %v3362
  %3420 = vmatprep.subr.mxu0 0.0
  %3421 = vmatpush1.msra.mxu0 %v3361
  %3422 = vmatprep.subr.mxu0 0.0
  %3423 = vmatpush1.msra.mxu0 %v3360
  %3424 = vmatprep.subr.mxu0 0.0
  %3425 = vmatpush1.msra.mxu0 %v3359
  %3426 = vmatprep.subr.mxu0 0.0
  %3427 = vmatpush1.msra.mxu0 %v3358
  %3428 = vmatprep.subr.mxu0 0.0
  %3429 = vmatpush2.msra.mxu0 0.0
  %3430 = vmatprep.subr.mxu0 0.0
  %3431 = vmatpush2.msra.mxu0 0.0
  %3432 = vmatprep.subr.mxu0 0.0
  %3433 = vmatpush2.msra.mxu0 0.0
  %3434 = vmatprep.subr.mxu0 0.0
  %3435 = vmatpush2.msra.mxu0 0.0
  %3436 = vmatprep.subr.mxu0 0.0
  %3437 = vmatpush2.msra.mxu0 0.0
  %3438 = vmatprep.subr.mxu0 0.0
  %3439 = vmatpush2.msra.mxu0 0.0
  %3440 = vmatprep.subr.mxu0 0.0
  %3441 = vmatpush2.msra.mxu0 0.0
  %3442 = vmatprep.subr.mxu0 0.0
  %3443 = vmatpush2.msra.mxu0 0.0
  %3444 = vmatprep.subr.mxu0 0.0
  %3445 = vmatpush2.msra.mxu0 0.0
  %3446 = vmatprep.subr.mxu0 0.0
  %3447 = vmatpush2.msra.mxu0 0.0
  %3448 = vmatprep.subr.mxu0 0.0
  %3449 = vmatpush2.msra.mxu0 0.0
  %3450 = vmatprep.subr.mxu0 0.0
  %3451 = vmatpush2.msra.mxu0 0.0
  %3452 = vmatprep.subr.mxu0 0.0
  %3453 = vmatpush2.msra.mxu0 0.0
  %3454 = vmatprep.subr.mxu0 0.0
  %3455 = vmatpush2.msra.mxu0 0.0
  %3456 = vmatprep.subr.mxu0 0.0
  %3457 = vmatpush2.msra.mxu0 %v3375
  %3458 = vmatprep.subr.mxu0 0.0
  %3459 = vmatpush2.msra.mxu0 %v3374
  %3460 = vmatprep.mubr.f32.mxu0 %v3392
  %3461 = vmatmul.mubr.f32.gmra.mxu0 %v3382
  %v3462 = vpop.f32.mrf.mxu0
  %v3463 = vadd.f32 0.0, %v3462
  %v3464 = vpop.f32.mrf.mxu0
  %3465 = vmatprep.mubr.f32.mxu0 %v3394
  %3466 = vmatmul.mubr.f32.gmra.mxu0 %v3387
  %v3467 = vpop.f32.mrf.mxu0
  %v3468 = vadd.f32 0.0, %v3467
  %v3469 = vpop.f32.mrf.mxu0
  %3470 = vdwg.mxu0
  %v3471 = vadd.f32 %v3346, %v3463
  %v3472 = vadd.f32 %v3351, %v3468
  %3473 = vst [vmem:[#allocation3 + $0x10] sm:$0xff] %v3471
  %3474 = vst [vmem:[#allocation3 + $0x18] sm:$0xff] %v3472
  %v3475 = vld [vmem:[#allocation3] sm:$0xff]
  %v3476 = vld [vmem:[#allocation3 + $0x8] sm:$0xff]
  %v3477 = vld [vmem:[#allocation3 + $0x10] sm:$0xff]
  %v3478 = vld [vmem:[#allocation3 + $0x18] sm:$0xff]
  %s3479 = scalar_lea.vmem %s4, 2
  %v3480 = vld [vmem:[%s3479] sm:$0x1]
  %v3482 = vlaneseq
  %v3483 = vshrl.u32 %v3482, 7
  %v3484 = vsub.s32 0, %v3483
  %v3485 = vrot.slane %v3480, %v3484
  %v3487 = vadd.f32 %v3475, %v3485
  %v3488 = vadd.f32 %v3476, %v3485
  %v3489 = vadd.f32 %v3477, %v3485
  %v3490 = vadd.f32 %v3478, %v3485
  %v3491 = vadd.f32 %v3487, %v3488
  %v3492 = vadd.f32 %v3491, %v3489
  %v3493 = vadd.f32 %v3492, %v3490
  %v3494 = vrot.slane %v3493, 4
  %v3495 = vadd.f32 %v3493, %v3494
  %v3496 = vrot.slane %v3495, 2
  %v3497 = vadd.f32 %v3495, %v3496
  %v3498 = vrot.slane %v3497, 1
  %v3499 = vadd.f32 %v3497, %v3498
  %v3500 = vmul.f32 %v3487, %v3487
  %v3501 = vmul.f32 %v3488, %v3488
  %v3502 = vmul.f32 %v3489, %v3489
  %v3503 = vmul.f32 %v3490, %v3490
  %v3504 = vadd.f32 %v3500, %v3501
  %v3505 = vadd.f32 %v3504, %v3502
  %v3506 = vadd.f32 %v3505, %v3503
  %v3507 = vrot.slane %v3506, 4
  %v3508 = vadd.f32 %v3506, %v3507
  %v3509 = vrot.slane %v3508, 2
  %v3510 = vadd.f32 %v3508, %v3509
  %v3511 = vrot.slane %v3510, 1
  %v3512 = vadd.f32 %v3510, %v3511
  %3513 = vmatprep.subr.mxu0 0.0
  %3514 = vmatpush1.msra.mxu0 %v347
  %3515 = vmatprep.subr.mxu0 0.0
  %3516 = vmatpush1.msra.mxu0 %v346
  %3517 = vmatprep.subr.mxu0 0.0
  %3518 = vmatpush1.msra.mxu0 %v345
  %3519 = vmatprep.subr.mxu0 0.0
  %3520 = vmatpush1.msra.mxu0 %v344
  %3521 = vmatprep.subr.mxu0 0.0
  %3522 = vmatpush1.msra.mxu0 %v343
  %3523 = vmatprep.subr.mxu0 0.0
  %3524 = vmatpush1.msra.mxu0 %v342
  %3525 = vmatprep.subr.mxu0 0.0
  %3526 = vmatpush1.msra.mxu0 %v341
  %3527 = vmatprep.subr.mxu0 0.0
  %3528 = vmatpush1.msra.mxu0 %v340
  %3529 = vmatprep.subr.mxu0 0.0
  %3530 = vmatpush1.msra.mxu0 %v339
  %3531 = vmatprep.subr.mxu0 0.0
  %3532 = vmatpush1.msra.mxu0 %v338
  %3533 = vmatprep.subr.mxu0 0.0
  %3534 = vmatpush1.msra.mxu0 %v337
  %3535 = vmatprep.subr.mxu0 0.0
  %3536 = vmatpush1.msra.mxu0 %v336
  %3537 = vmatprep.subr.mxu0 0.0
  %3538 = vmatpush1.msra.mxu0 %v335
  %3539 = vmatprep.subr.mxu0 0.0
  %3540 = vmatpush1.msra.mxu0 %v334
  %3541 = vmatprep.subr.mxu0 0.0
  %3542 = vmatpush1.msra.mxu0 %v333
  %3543 = vmatprep.subr.mxu0 0.0
  %3544 = vmatpush1.msra.mxu0 %v332
  %3545 = vmatprep.subr.mxu0 0.0
  %3546 = vmatpush2.msra.mxu0 0.0
  %3547 = vmatprep.subr.mxu0 0.0
  %3548 = vmatpush2.msra.mxu0 0.0
  %3549 = vmatprep.subr.mxu0 0.0
  %3550 = vmatpush2.msra.mxu0 0.0
  %3551 = vmatprep.subr.mxu0 0.0
  %3552 = vmatpush2.msra.mxu0 0.0
  %3553 = vmatprep.subr.mxu0 0.0
  %3554 = vmatpush2.msra.mxu0 0.0
  %3555 = vmatprep.subr.mxu0 0.0
  %3556 = vmatpush2.msra.mxu0 0.0
  %3557 = vmatprep.subr.mxu0 0.0
  %3558 = vmatpush2.msra.mxu0 0.0
  %3559 = vmatprep.subr.mxu0 0.0
  %3560 = vmatpush2.msra.mxu0 0.0
  %3561 = vmatprep.subr.mxu0 0.0
  %3562 = vmatpush2.msra.mxu0 0.0
  %3563 = vmatprep.subr.mxu0 0.0
  %3564 = vmatpush2.msra.mxu0 0.0
  %3565 = vmatprep.subr.mxu0 0.0
  %3566 = vmatpush2.msra.mxu0 0.0
  %3567 = vmatprep.subr.mxu0 0.0
  %3568 = vmatpush2.msra.mxu0 0.0
  %3569 = vmatprep.subr.mxu0 0.0
  %3570 = vmatpush2.msra.mxu0 0.0
  %3571 = vmatprep.subr.mxu0 0.0
  %3572 = vmatpush2.msra.mxu0 0.0
  %3573 = vmatprep.subr.mxu0 0.0
  %3574 = vmatpush2.msra.mxu0 0.0
  %3575 = vmatprep.subr.mxu0 0.0
  %3576 = vmatpush2.msra.mxu0 0.0
  %3577 = vmatprep.mubr.f32.mxu0 0.0
  %3578 = vmatmul.mubr.f32.gmra.mxu0 %v3499
  %v3579 = vpop.f32.mrf.mxu0
  %v3580 = vadd.f32 0.0, %v3579
  %v3581 = vpop.f32.mrf.mxu0
  %3582 = vdwg.mxu0
  %3583 = vmatprep.subr.mxu0 0.0
  %3584 = vmatpush1.msra.mxu0 %v347
  %3585 = vmatprep.subr.mxu0 0.0
  %3586 = vmatpush1.msra.mxu0 %v346
  %3587 = vmatprep.subr.mxu0 0.0
  %3588 = vmatpush1.msra.mxu0 %v345
  %3589 = vmatprep.subr.mxu0 0.0
  %3590 = vmatpush1.msra.mxu0 %v344
  %3591 = vmatprep.subr.mxu0 0.0
  %3592 = vmatpush1.msra.mxu0 %v343
  %3593 = vmatprep.subr.mxu0 0.0
  %3594 = vmatpush1.msra.mxu0 %v342
  %3595 = vmatprep.subr.mxu0 0.0
  %3596 = vmatpush1.msra.mxu0 %v341
  %3597 = vmatprep.subr.mxu0 0.0
  %3598 = vmatpush1.msra.mxu0 %v340
  %3599 = vmatprep.subr.mxu0 0.0
  %3600 = vmatpush1.msra.mxu0 %v339
  %3601 = vmatprep.subr.mxu0 0.0
  %3602 = vmatpush1.msra.mxu0 %v338
  %3603 = vmatprep.subr.mxu0 0.0
  %3604 = vmatpush1.msra.mxu0 %v337
  %3605 = vmatprep.subr.mxu0 0.0
  %3606 = vmatpush1.msra.mxu0 %v336
  %3607 = vmatprep.subr.mxu0 0.0
  %3608 = vmatpush1.msra.mxu0 %v335
  %3609 = vmatprep.subr.mxu0 0.0
  %3610 = vmatpush1.msra.mxu0 %v334
  %3611 = vmatprep.subr.mxu0 0.0
  %3612 = vmatpush1.msra.mxu0 %v333
  %3613 = vmatprep.subr.mxu0 0.0
  %3614 = vmatpush1.msra.mxu0 %v332
  %3615 = vmatprep.subr.mxu0 0.0
  %3616 = vmatpush2.msra.mxu0 0.0
  %3617 = vmatprep.subr.mxu0 0.0
  %3618 = vmatpush2.msra.mxu0 0.0
  %3619 = vmatprep.subr.mxu0 0.0
  %3620 = vmatpush2.msra.mxu0 0.0
  %3621 = vmatprep.subr.mxu0 0.0
  %3622 = vmatpush2.msra.mxu0 0.0
  %3623 = vmatprep.subr.mxu0 0.0
  %3624 = vmatpush2.msra.mxu0 0.0
  %3625 = vmatprep.subr.mxu0 0.0
  %3626 = vmatpush2.msra.mxu0 0.0
  %3627 = vmatprep.subr.mxu0 0.0
  %3628 = vmatpush2.msra.mxu0 0.0
  %3629 = vmatprep.subr.mxu0 0.0
  %3630 = vmatpush2.msra.mxu0 0.0
  %3631 = vmatprep.subr.mxu0 0.0
  %3632 = vmatpush2.msra.mxu0 0.0
  %3633 = vmatprep.subr.mxu0 0.0
  %3634 = vmatpush2.msra.mxu0 0.0
  %3635 = vmatprep.subr.mxu0 0.0
  %3636 = vmatpush2.msra.mxu0 0.0
  %3637 = vmatprep.subr.mxu0 0.0
  %3638 = vmatpush2.msra.mxu0 0.0
  %3639 = vmatprep.subr.mxu0 0.0
  %3640 = vmatpush2.msra.mxu0 0.0
  %3641 = vmatprep.subr.mxu0 0.0
  %3642 = vmatpush2.msra.mxu0 0.0
  %3643 = vmatprep.subr.mxu0 0.0
  %3644 = vmatpush2.msra.mxu0 0.0
  %3645 = vmatprep.subr.mxu0 0.0
  %3646 = vmatpush2.msra.mxu0 0.0
  %3647 = vmatprep.mubr.f32.mxu0 0.0
  %3648 = vmatmul.mubr.f32.gmra.mxu0 %v3512
  %v3649 = vpop.f32.mrf.mxu0
  %v3650 = vadd.f32 0.0, %v3649
  %v3651 = vpop.f32.mrf.mxu0
  %3652 = vdwg.mxu0
  %v3653 = vmul.f32 %v3580, 0.001953125
  %v3654 = vmul.f32 %v3650, 0.001953125
  %v3655 = vmul.f32 %v3653, %v3653
  %v3656 = vsub.f32 %v3654, %v3655
  %v3657 = vadd.f32 %v3656, 1e-05
  %v3658 = vrsqrt.pop %v3657
  %v3660 = vsel %vm1238, %v3653, 0
  %3662 = vmatprep.subr.mxu0 0.0
  %3663 = vmatpush1.msra.mxu0 0.0
  %3664 = vmatprep.subr.mxu0 0.0
  %3665 = vmatpush1.msra.mxu0 0.0
  %3666 = vmatprep.subr.mxu0 0.0
  %3667 = vmatpush1.msra.mxu0 0.0
  %3668 = vmatprep.subr.mxu0 0.0
  %3669 = vmatpush1.msra.mxu0 0.0
  %3670 = vmatprep.subr.mxu0 0.0
  %3671 = vmatpush1.msra.mxu0 0.0
  %3672 = vmatprep.subr.mxu0 0.0
  %3673 = vmatpush1.msra.mxu0 0.0
  %3674 = vmatprep.subr.mxu0 0.0
  %3675 = vmatpush1.msra.mxu0 0.0
  %3676 = vmatprep.subr.mxu0 0.0
  %3677 = vmatpush1.msra.mxu0 0.0
  %3678 = vmatprep.subr.mxu0 0.0
  %3679 = vmatpush1.msra.mxu0 0.0
  %3680 = vmatprep.subr.mxu0 0.0
  %3681 = vmatpush1.msra.mxu0 0.0
  %3682 = vmatprep.subr.mxu0 0.0
  %3683 = vmatpush1.msra.mxu0 0.0
  %3684 = vmatprep.subr.mxu0 0.0
  %3685 = vmatpush1.msra.mxu0 0.0
  %3686 = vmatprep.subr.mxu0 0.0
  %3687 = vmatpush1.msra.mxu0 0.0
  %3688 = vmatprep.subr.mxu0 0.0
  %3689 = vmatpush1.msra.mxu0 0.0
  %3690 = vmatprep.subr.mxu0 0.0
  %3691 = vmatpush1.msra.mxu0 0.0
  %3692 = vmatprep.subr.mxu0 0.0
  %3693 = vmatpush1.msra.mxu0 %v331
  %3694 = vmatprep.subr.mxu0 0.0
  %3695 = vmatpush2.msra.mxu0 0.0
  %3696 = vmatprep.subr.mxu0 0.0
  %3697 = vmatpush2.msra.mxu0 0.0
  %3698 = vmatprep.subr.mxu0 0.0
  %3699 = vmatpush2.msra.mxu0 0.0
  %3700 = vmatprep.subr.mxu0 0.0
  %3701 = vmatpush2.msra.mxu0 0.0
  %3702 = vmatprep.subr.mxu0 0.0
  %3703 = vmatpush2.msra.mxu0 0.0
  %3704 = vmatprep.subr.mxu0 0.0
  %3705 = vmatpush2.msra.mxu0 0.0
  %3706 = vmatprep.subr.mxu0 0.0
  %3707 = vmatpush2.msra.mxu0 0.0
  %3708 = vmatprep.subr.mxu0 0.0
  %3709 = vmatpush2.msra.mxu0 0.0
  %3710 = vmatprep.subr.mxu0 0.0
  %3711 = vmatpush2.msra.mxu0 0.0
  %3712 = vmatprep.subr.mxu0 0.0
  %3713 = vmatpush2.msra.mxu0 0.0
  %3714 = vmatprep.subr.mxu0 0.0
  %3715 = vmatpush2.msra.mxu0 0.0
  %3716 = vmatprep.subr.mxu0 0.0
  %3717 = vmatpush2.msra.mxu0 0.0
  %3718 = vmatprep.subr.mxu0 0.0
  %3719 = vmatpush2.msra.mxu0 0.0
  %3720 = vmatprep.subr.mxu0 0.0
  %3721 = vmatpush2.msra.mxu0 0.0
  %3722 = vmatprep.subr.mxu0 0.0
  %3723 = vmatpush2.msra.mxu0 0.0
  %3724 = vmatprep.subr.mxu0 0.0
  %3725 = vmatpush2.msra.mxu0 0.0
  %3726 = vmatprep.mubr.f32.mxu0 0.0
  %3727 = vmatmul.mubr.f32.gmra.mxu0 %v3660
  %v3728 = vpop.f32.mrf.mxu0
  %v3729 = vadd.f32 0.0, %v3728
  %v3730 = vpop.f32.mrf.mxu0
  %3731 = vdwg.mxu0
  %v3733 = vsel %vm1238, %v3658, 0
  %3735 = vmatprep.subr.mxu0 0.0
  %3736 = vmatpush1.msra.mxu0 0.0
  %3737 = vmatprep.subr.mxu0 0.0
  %3738 = vmatpush1.msra.mxu0 0.0
  %3739 = vmatprep.subr.mxu0 0.0
  %3740 = vmatpush1.msra.mxu0 0.0
  %3741 = vmatprep.subr.mxu0 0.0
  %3742 = vmatpush1.msra.mxu0 0.0
  %3743 = vmatprep.subr.mxu0 0.0
  %3744 = vmatpush1.msra.mxu0 0.0
  %3745 = vmatprep.subr.mxu0 0.0
  %3746 = vmatpush1.msra.mxu0 0.0
  %3747 = vmatprep.subr.mxu0 0.0
  %3748 = vmatpush1.msra.mxu0 0.0
  %3749 = vmatprep.subr.mxu0 0.0
  %3750 = vmatpush1.msra.mxu0 0.0
  %3751 = vmatprep.subr.mxu0 0.0
  %3752 = vmatpush1.msra.mxu0 0.0
  %3753 = vmatprep.subr.mxu0 0.0
  %3754 = vmatpush1.msra.mxu0 0.0
  %3755 = vmatprep.subr.mxu0 0.0
  %3756 = vmatpush1.msra.mxu0 0.0
  %3757 = vmatprep.subr.mxu0 0.0
  %3758 = vmatpush1.msra.mxu0 0.0
  %3759 = vmatprep.subr.mxu0 0.0
  %3760 = vmatpush1.msra.mxu0 0.0
  %3761 = vmatprep.subr.mxu0 0.0
  %3762 = vmatpush1.msra.mxu0 0.0
  %3763 = vmatprep.subr.mxu0 0.0
  %3764 = vmatpush1.msra.mxu0 0.0
  %3765 = vmatprep.subr.mxu0 0.0
  %3766 = vmatpush1.msra.mxu0 %v331
  %3767 = vmatprep.subr.mxu0 0.0
  %3768 = vmatpush2.msra.mxu0 0.0
  %3769 = vmatprep.subr.mxu0 0.0
  %3770 = vmatpush2.msra.mxu0 0.0
  %3771 = vmatprep.subr.mxu0 0.0
  %3772 = vmatpush2.msra.mxu0 0.0
  %3773 = vmatprep.subr.mxu0 0.0
  %3774 = vmatpush2.msra.mxu0 0.0
  %3775 = vmatprep.subr.mxu0 0.0
  %3776 = vmatpush2.msra.mxu0 0.0
  %3777 = vmatprep.subr.mxu0 0.0
  %3778 = vmatpush2.msra.mxu0 0.0
  %3779 = vmatprep.subr.mxu0 0.0
  %3780 = vmatpush2.msra.mxu0 0.0
  %3781 = vmatprep.subr.mxu0 0.0
  %3782 = vmatpush2.msra.mxu0 0.0
  %3783 = vmatprep.subr.mxu0 0.0
  %3784 = vmatpush2.msra.mxu0 0.0
  %3785 = vmatprep.subr.mxu0 0.0
  %3786 = vmatpush2.msra.mxu0 0.0
  %3787 = vmatprep.subr.mxu0 0.0
  %3788 = vmatpush2.msra.mxu0 0.0
  %3789 = vmatprep.subr.mxu0 0.0
  %3790 = vmatpush2.msra.mxu0 0.0
  %3791 = vmatprep.subr.mxu0 0.0
  %3792 = vmatpush2.msra.mxu0 0.0
  %3793 = vmatprep.subr.mxu0 0.0
  %3794 = vmatpush2.msra.mxu0 0.0
  %3795 = vmatprep.subr.mxu0 0.0
  %3796 = vmatpush2.msra.mxu0 0.0
  %3797 = vmatprep.subr.mxu0 0.0
  %3798 = vmatpush2.msra.mxu0 0.0
  %3799 = vmatprep.mubr.f32.mxu0 0.0
  %3800 = vmatmul.mubr.f32.gmra.mxu0 %v3733
  %v3801 = vpop.f32.mrf.mxu0
  %v3802 = vadd.f32 0.0, %v3801
  %v3803 = vpop.f32.mrf.mxu0
  %3804 = vdwg.mxu0
  %s3805 = scalar_lea.vmem %s5, 2
  %v3806 = vld [vmem:[%s3805] sm:$0x1]
  %v3807 = vlaneseq
  %v3808 = vshrl.u32 %v3807, 7
  %v3809 = vsub.s32 0, %v3808
  %v3810 = vrot.slane %v3729, %v3809
  %v3811 = vsub.f32 %v3487, %v3810
  %v3812 = vsub.f32 %v3488, %v3810
  %v3813 = vsub.f32 %v3489, %v3810
  %v3814 = vsub.f32 %v3490, %v3810
  %v3816 = vlaneseq
  %v3817 = vshrl.u32 %v3816, 7
  %v3818 = vsub.s32 0, %v3817
  %v3819 = vrot.slane %v3806, %v3818
  %v3821 = vmul.f32 %v3819, %v3811
  %v3822 = vmul.f32 %v3819, %v3812
  %v3823 = vmul.f32 %v3819, %v3813
  %v3824 = vmul.f32 %v3819, %v3814
  %v3825 = vlaneseq
  %v3826 = vshrl.u32 %v3825, 7
  %v3827 = vsub.s32 0, %v3826
  %v3828 = vrot.slane %v3802, %v3827
  %v3829 = vmul.f32 %v3821, %v3828
  %v3830 = vmul.f32 %v3822, %v3828
  %v3831 = vmul.f32 %v3823, %v3828
  %v3832 = vmul.f32 %v3824, %v3828
  %s3833 = scalar_lea.vmem %s6, 2
  %v3834 = vld [vmem:[%s3833] sm:$0x1]
  %v3836 = vlaneseq
  %v3837 = vshrl.u32 %v3836, 7
  %v3838 = vsub.s32 0, %v3837
  %v3839 = vrot.slane %v3834, %v3838
  %v3841 = vadd.f32 %v3829, %v3839
  %v3842 = vadd.f32 %v3830, %v3839
  %v3843 = vadd.f32 %v3831, %v3839
  %v3844 = vadd.f32 %v3832, %v3839
  %v3845 = vmul.f32 %v3841, 0.5
  %v3846 = vmul.f32 %v3842, 0.5
  %v3847 = vmul.f32 %v3843, 0.5
  %v3848 = vmul.f32 %v3844, 0.5
  %v3849 = vmul.f32 %v3841, 0.70710677
  %v3850 = vmul.f32 %v3842, 0.70710677
  %v3851 = vmul.f32 %v3843, 0.70710677
  %v3852 = vmul.f32 %v3844, 0.70710677
  %vm3853 = vcmp.lt.f32.partialorder %v3849, 0.0
  %vm3854 = vcmp.lt.f32.partialorder %v3850, 0.0
  %vm3855 = vcmp.lt.f32.partialorder %v3851, 0.0
  %vm3856 = vcmp.lt.f32.partialorder %v3852, 0.0
  %v3857 = vsel %vm3853, -1.0, 1.0
  %v3858 = vsel %vm3854, -1.0, 1.0
  %v3859 = vsel %vm3855, -1.0, 1.0
  %v3860 = vsel %vm3856, -1.0, 1.0
  %v3861 = vand.u32 2147483647, %v3849
  %v3862 = vand.u32 2147483647, %v3850
  %v3863 = vand.u32 2147483647, %v3851
  %v3864 = vand.u32 2147483647, %v3852
  %v3865 = vmul.f32 %v3861, 0.3275911
  %v3866 = vmul.f32 %v3862, 0.3275911
  %v3867 = vmul.f32 %v3863, 0.3275911
  %v3868 = vmul.f32 %v3864, 0.3275911
  %v3869 = vadd.f32 %v3865, 1.0
  %v3870 = vadd.f32 %v3866, 1.0
  %v3871 = vadd.f32 %v3867, 1.0
  %v3872 = vadd.f32 %v3868, 1.0
  %v3873 = vrcp.pop %v3869
  %v3874 = vmul.f32 1.0, %v3873
  %v3875 = vrcp.pop %v3870
  %v3876 = vmul.f32 1.0, %v3875
  %v3877 = vrcp.pop %v3871
  %v3878 = vmul.f32 1.0, %v3877
  %v3879 = vrcp.pop %v3872
  %v3880 = vmul.f32 1.0, %v3879
  %v3881 = vmul.f32 %v3874, 1.0614054
  %v3882 = vmul.f32 %v3876, 1.0614054
  %v3883 = vmul.f32 %v3878, 1.0614054
  %v3884 = vmul.f32 %v3880, 1.0614054
  %v3885 = vadd.f32 %v3881, -1.4531521
  %v3886 = vadd.f32 %v3882, -1.4531521
  %v3887 = vadd.f32 %v3883, -1.4531521
  %v3888 = vadd.f32 %v3884, -1.4531521
  %v3889 = vmul.f32 %v3885, %v3874
  %v3890 = vmul.f32 %v3886, %v3876
  %v3891 = vmul.f32 %v3887, %v3878
  %v3892 = vmul.f32 %v3888, %v3880
  %v3893 = vadd.f32 %v3889, 1.4214138
  %v3894 = vadd.f32 %v3890, 1.4214138
  %v3895 = vadd.f32 %v3891, 1.4214138
  %v3896 = vadd.f32 %v3892, 1.4214138
  %v3897 = vmul.f32 %v3893, %v3874
  %v3898 = vmul.f32 %v3894, %v3876
  %v3899 = vmul.f32 %v3895, %v3878
  %v3900 = vmul.f32 %v3896, %v3880
  %v3901 = vadd.f32 %v3897, -0.28449672
  %v3902 = vadd.f32 %v3898, -0.28449672
  %v3903 = vadd.f32 %v3899, -0.28449672
  %v3904 = vadd.f32 %v3900, -0.28449672
  %v3905 = vmul.f32 %v3901, %v3874
  %v3906 = vmul.f32 %v3902, %v3876
  %v3907 = vmul.f32 %v3903, %v3878
  %v3908 = vmul.f32 %v3904, %v3880
  %v3909 = vadd.f32 %v3905, 0.2548296
  %v3910 = vadd.f32 %v3906, 0.2548296
  %v3911 = vadd.f32 %v3907, 0.2548296
  %v3912 = vadd.f32 %v3908, 0.2548296
  %v3913 = vmul.f32 %v3909, %v3874
  %v3914 = vmul.f32 %v3910, %v3876
  %v3915 = vmul.f32 %v3911, %v3878
  %v3916 = vmul.f32 %v3912, %v3880
  %v3917 = vsub.f32 0.0, %v3861
  %v3918 = vsub.f32 0.0, %v3862
  %v3919 = vsub.f32 0.0, %v3863
  %v3920 = vsub.f32 0.0, %v3864
  %v3921 = vmul.f32 %v3917, %v3861
  %v3922 = vmul.f32 %v3918, %v3862
  %v3923 = vmul.f32 %v3919, %v3863
  %v3924 = vmul.f32 %v3920, %v3864
  %v3925 = vmul.f32 %v3921, 1.442695
  %v3926 = vpow.pop %v3925
  %v3927 = vmul.f32 %v3922, 1.442695
  %v3928 = vpow.pop %v3927
  %v3929 = vmul.f32 %v3923, 1.442695
  %v3930 = vpow.pop %v3929
  %v3931 = vmul.f32 %v3924, 1.442695
  %v3932 = vpow.pop %v3931
  %v3933 = vmul.f32 %v3913, %v3926
  %v3934 = vmul.f32 %v3914, %v3928
  %v3935 = vmul.f32 %v3915, %v3930
  %v3936 = vmul.f32 %v3916, %v3932
  %v3937 = vsub.f32 1.0, %v3933
  %v3938 = vsub.f32 1.0, %v3934
  %v3939 = vsub.f32 1.0, %v3935
  %v3940 = vsub.f32 1.0, %v3936
  %v3941 = vmul.f32 %v3857, %v3937
  %v3942 = vmul.f32 %v3858, %v3938
  %v3943 = vmul.f32 %v3859, %v3939
  %v3944 = vmul.f32 %v3860, %v3940
  %v3945 = vadd.f32 %v3941, 1.0
  %v3946 = vadd.f32 %v3942, 1.0
  %v3947 = vadd.f32 %v3943, 1.0
  %v3948 = vadd.f32 %v3944, 1.0
  %v3949 = vmul.f32 %v3845, %v3945
  %v3950 = vmul.f32 %v3846, %v3946
  %v3951 = vmul.f32 %v3847, %v3947
  %v3952 = vmul.f32 %v3848, %v3948
  %v3955 = vrot.slane %v3949, 7
  %v3956 = vrot.slane %v3950, 7
  %v3957 = vsel %vm1533, %v3955, %v3956
  %3961 = vst [vmem:[#allocation2] sm:$0xfe] %v3955
  %3962 = vst [vmem:[#allocation2 + $0x10] sm:$0xff] %v3957
  %3963 = vst [vmem:[#allocation2 + $0x20] sm:$0x1] %v3956
  %v3966 = vrot.slane %v3951, 5
  %v3967 = vrot.slane %v3952, 5
  %v3968 = vsel %vm1545, %v3966, %v3967
  %3972 = vst [vmem:[#allocation2 + $0x20] sm:$0xf8] %v3966
  %3973 = vst [vmem:[#allocation2 + $0x30] sm:$0xff] %v3968
  %3974 = vst [vmem:[#allocation2 + $0x40] sm:$0x7] %v3967
  %v3975 = vld [vmem:[#allocation2] sm:$0xff]
  %v3976 = vld [vmem:[#allocation2 + $0x8] sm:$0xff]
  %v3977 = vld [vmem:[#allocation2 + $0x10] sm:$0xff]
  %v3978 = vld [vmem:[#allocation2 + $0x18] sm:$0xff]
  %s3979 = scalar_lea.vmem %s3, 1296
  %v3980 = vld [vmem:[%s3979] sm:$0xff]
  %v3981 = vld [vmem:[%s3979 + $0x8] sm:$0xff]
  %v3982 = vld [vmem:[%s3979 + $0x10] sm:$0xff]
  %v3983 = vld [vmem:[%s3979 + $0x18] sm:$0xff]
  %v3984 = vld [vmem:[%s3979 + $0x20] sm:$0xff]
  %v3985 = vld [vmem:[%s3979 + $0x28] sm:$0xff]
  %v3986 = vld [vmem:[%s3979 + $0x30] sm:$0xff]
  %v3987 = vld [vmem:[%s3979 + $0x38] sm:$0xff]
  %v3988 = vld [vmem:[%s3979 + $0x40] sm:$0xff]
  %v3989 = vld [vmem:[%s3979 + $0x48] sm:$0xff]
  %v3990 = vld [vmem:[%s3979 + $0x50] sm:$0xff]
  %v3991 = vld [vmem:[%s3979 + $0x58] sm:$0xff]
  %v3992 = vld [vmem:[%s3979 + $0x60] sm:$0xff]
  %v3993 = vld [vmem:[%s3979 + $0x68] sm:$0xff]
  %v3994 = vld [vmem:[%s3979 + $0x70] sm:$0xff]
  %v3995 = vld [vmem:[%s3979 + $0x78] sm:$0xff]
  %v3996 = vld [vmem:[%s3979 + $0x80] sm:$0xff]
  %v3997 = vld [vmem:[%s3979 + $0x88] sm:$0xff]
  %v3998 = vld [vmem:[#allocation2] sm:$0xfe]
  %v3999 = vld [vmem:[#allocation2 + $0x8] sm:$0xfe]
  %v4000 = vld [vmem:[#allocation2 + $0x20] sm:$0x1]
  %v4001 = vld [vmem:[#allocation2 + $0x28] sm:$0x1]
  %s4002 = scalar_lea.vmem %s3, 1440
  %v4003 = vld [vmem:[%s4002] sm:$0xff]
  %v4004 = vld [vmem:[%s4002 + $0x8] sm:$0xff]
  %v4005 = vld [vmem:[%s4002 + $0x10] sm:$0xff]
  %v4006 = vld [vmem:[%s4002 + $0x18] sm:$0xff]
  %v4007 = vld [vmem:[%s4002 + $0x20] sm:$0xff]
  %v4008 = vld [vmem:[%s4002 + $0x28] sm:$0xff]
  %v4009 = vld [vmem:[%s4002 + $0x30] sm:$0xff]
  %v4010 = vld [vmem:[%s4002 + $0x38] sm:$0xff]
  %v4011 = vld [vmem:[%s4002 + $0x40] sm:$0xff]
  %v4012 = vld [vmem:[%s4002 + $0x48] sm:$0xff]
  %v4013 = vld [vmem:[%s4002 + $0x50] sm:$0xff]
  %v4014 = vld [vmem:[%s4002 + $0x58] sm:$0xff]
  %v4015 = vld [vmem:[%s4002 + $0x60] sm:$0xff]
  %v4016 = vld [vmem:[%s4002 + $0x68] sm:$0xff]
  %v4017 = vld [vmem:[%s4002 + $0x70] sm:$0xff]
  %v4018 = vld [vmem:[%s4002 + $0x78] sm:$0xff]
  %v4019 = vld [vmem:[%s4002 + $0x80] sm:$0xff]
  %v4020 = vld [vmem:[%s4002 + $0x88] sm:$0xff]
  %v4027 = vrot.slane %v3998, 1
  %v4028 = vrot.slane %v3977, 1
  %v4029 = vsel %vm399, %v4027, %v4028
  %v4030 = vrot.slane %v3999, 1
  %v4031 = vrot.slane %v3978, 1
  %v4032 = vsel %vm399, %v4030, %v4031
  %v4033 = vrot.slane %v4000, 1
  %v4034 = vsel %vm399, %v4028, %v4033
  %v4035 = vrot.slane %v4001, 1
  %v4036 = vsel %vm399, %v4031, %v4035
  %v4039 = vsel %vm33, %v4032, 0
  %v4041 = vsel %vm33, %v4036, 0
  %4043 = vmatprep.subr.mxu0 0.0
  %4044 = vmatpush1.msra.mxu0 %v4018
  %4045 = vmatprep.subr.mxu0 0.0
  %4046 = vmatpush1.msra.mxu0 %v4017
  %4047 = vmatprep.subr.mxu0 0.0
  %4048 = vmatpush1.msra.mxu0 %v4016
  %4049 = vmatprep.subr.mxu0 0.0
  %4050 = vmatpush1.msra.mxu0 %v4015
  %4051 = vmatprep.subr.mxu0 0.0
  %4052 = vmatpush1.msra.mxu0 %v4014
  %4053 = vmatprep.subr.mxu0 0.0
  %4054 = vmatpush1.msra.mxu0 %v4013
  %4055 = vmatprep.subr.mxu0 0.0
  %4056 = vmatpush1.msra.mxu0 %v4012
  %4057 = vmatprep.subr.mxu0 0.0
  %4058 = vmatpush1.msra.mxu0 %v4011
  %4059 = vmatprep.subr.mxu0 0.0
  %4060 = vmatpush1.msra.mxu0 %v4010
  %4061 = vmatprep.subr.mxu0 0.0
  %4062 = vmatpush1.msra.mxu0 %v4009
  %4063 = vmatprep.subr.mxu0 0.0
  %4064 = vmatpush1.msra.mxu0 %v4008
  %4065 = vmatprep.subr.mxu0 0.0
  %4066 = vmatpush1.msra.mxu0 %v4007
  %4067 = vmatprep.subr.mxu0 0.0
  %4068 = vmatpush1.msra.mxu0 %v4006
  %4069 = vmatprep.subr.mxu0 0.0
  %4070 = vmatpush1.msra.mxu0 %v4005
  %4071 = vmatprep.subr.mxu0 0.0
  %4072 = vmatpush1.msra.mxu0 %v4004
  %4073 = vmatprep.subr.mxu0 0.0
  %4074 = vmatpush1.msra.mxu0 %v4003
  %4075 = vmatprep.subr.mxu0 0.0
  %4076 = vmatpush2.msra.mxu0 0.0
  %4077 = vmatprep.subr.mxu0 0.0
  %4078 = vmatpush2.msra.mxu0 0.0
  %4079 = vmatprep.subr.mxu0 0.0
  %4080 = vmatpush2.msra.mxu0 0.0
  %4081 = vmatprep.subr.mxu0 0.0
  %4082 = vmatpush2.msra.mxu0 0.0
  %4083 = vmatprep.subr.mxu0 0.0
  %4084 = vmatpush2.msra.mxu0 0.0
  %4085 = vmatprep.subr.mxu0 0.0
  %4086 = vmatpush2.msra.mxu0 0.0
  %4087 = vmatprep.subr.mxu0 0.0
  %4088 = vmatpush2.msra.mxu0 0.0
  %4089 = vmatprep.subr.mxu0 0.0
  %4090 = vmatpush2.msra.mxu0 0.0
  %4091 = vmatprep.subr.mxu0 0.0
  %4092 = vmatpush2.msra.mxu0 0.0
  %4093 = vmatprep.subr.mxu0 0.0
  %4094 = vmatpush2.msra.mxu0 0.0
  %4095 = vmatprep.subr.mxu0 0.0
  %4096 = vmatpush2.msra.mxu0 0.0
  %4097 = vmatprep.subr.mxu0 0.0
  %4098 = vmatpush2.msra.mxu0 0.0
  %4099 = vmatprep.subr.mxu0 0.0
  %4100 = vmatpush2.msra.mxu0 0.0
  %4101 = vmatprep.subr.mxu0 0.0
  %4102 = vmatpush2.msra.mxu0 0.0
  %4103 = vmatprep.subr.mxu0 0.0
  %4104 = vmatpush2.msra.mxu0 %v4020
  %4105 = vmatprep.subr.mxu0 0.0
  %4106 = vmatpush2.msra.mxu0 %v4019
  %4107 = vmatprep.mubr.f32.mxu0 %v4039
  %4108 = vmatmul.mubr.f32.gmra.mxu0 %v4029
  %v4109 = vpop.f32.mrf.mxu0
  %v4110 = vadd.f32 0.0, %v4109
  %v4111 = vpop.f32.mrf.mxu0
  %4112 = vmatprep.mubr.f32.mxu0 %v4041
  %4113 = vmatmul.mubr.f32.gmra.mxu0 %v4034
  %v4114 = vpop.f32.mrf.mxu0
  %v4115 = vadd.f32 0.0, %v4114
  %v4116 = vpop.f32.mrf.mxu0
  %4117 = vdwg.mxu0
  %v4119 = vsel %vm33, %v3976, 0
  %v4121 = vsel %vm33, %v3978, 0
  %4123 = vmatprep.subr.mxu0 0.0
  %4124 = vmatpush1.msra.mxu0 %v3995
  %4125 = vmatprep.subr.mxu0 0.0
  %4126 = vmatpush1.msra.mxu0 %v3994
  %4127 = vmatprep.subr.mxu0 0.0
  %4128 = vmatpush1.msra.mxu0 %v3993
  %4129 = vmatprep.subr.mxu0 0.0
  %4130 = vmatpush1.msra.mxu0 %v3992
  %4131 = vmatprep.subr.mxu0 0.0
  %4132 = vmatpush1.msra.mxu0 %v3991
  %4133 = vmatprep.subr.mxu0 0.0
  %4134 = vmatpush1.msra.mxu0 %v3990
  %4135 = vmatprep.subr.mxu0 0.0
  %4136 = vmatpush1.msra.mxu0 %v3989
  %4137 = vmatprep.subr.mxu0 0.0
  %4138 = vmatpush1.msra.mxu0 %v3988
  %4139 = vmatprep.subr.mxu0 0.0
  %4140 = vmatpush1.msra.mxu0 %v3987
  %4141 = vmatprep.subr.mxu0 0.0
  %4142 = vmatpush1.msra.mxu0 %v3986
  %4143 = vmatprep.subr.mxu0 0.0
  %4144 = vmatpush1.msra.mxu0 %v3985
  %4145 = vmatprep.subr.mxu0 0.0
  %4146 = vmatpush1.msra.mxu0 %v3984
  %4147 = vmatprep.subr.mxu0 0.0
  %4148 = vmatpush1.msra.mxu0 %v3983
  %4149 = vmatprep.subr.mxu0 0.0
  %4150 = vmatpush1.msra.mxu0 %v3982
  %4151 = vmatprep.subr.mxu0 0.0
  %4152 = vmatpush1.msra.mxu0 %v3981
  %4153 = vmatprep.subr.mxu0 0.0
  %4154 = vmatpush1.msra.mxu0 %v3980
  %4155 = vmatprep.subr.mxu0 0.0
  %4156 = vmatpush2.msra.mxu0 0.0
  %4157 = vmatprep.subr.mxu0 0.0
  %4158 = vmatpush2.msra.mxu0 0.0
  %4159 = vmatprep.subr.mxu0 0.0
  %4160 = vmatpush2.msra.mxu0 0.0
  %4161 = vmatprep.subr.mxu0 0.0
  %4162 = vmatpush2.msra.mxu0 0.0
  %4163 = vmatprep.subr.mxu0 0.0
  %4164 = vmatpush2.msra.mxu0 0.0
  %4165 = vmatprep.subr.mxu0 0.0
  %4166 = vmatpush2.msra.mxu0 0.0
  %4167 = vmatprep.subr.mxu0 0.0
  %4168 = vmatpush2.msra.mxu0 0.0
  %4169 = vmatprep.subr.mxu0 0.0
  %4170 = vmatpush2.msra.mxu0 0.0
  %4171 = vmatprep.subr.mxu0 0.0
  %4172 = vmatpush2.msra.mxu0 0.0
  %4173 = vmatprep.subr.mxu0 0.0
  %4174 = vmatpush2.msra.mxu0 0.0
  %4175 = vmatprep.subr.mxu0 0.0
  %4176 = vmatpush2.msra.mxu0 0.0
  %4177 = vmatprep.subr.mxu0 0.0
  %4178 = vmatpush2.msra.mxu0 0.0
  %4179 = vmatprep.subr.mxu0 0.0
  %4180 = vmatpush2.msra.mxu0 0.0
  %4181 = vmatprep.subr.mxu0 0.0
  %4182 = vmatpush2.msra.mxu0 0.0
  %4183 = vmatprep.subr.mxu0 0.0
  %4184 = vmatpush2.msra.mxu0 %v3997
  %4185 = vmatprep.subr.mxu0 0.0
  %4186 = vmatpush2.msra.mxu0 %v3996
  %4187 = vmatprep.mubr.f32.mxu0 %v4119
  %4188 = vmatmul.mubr.f32.gmra.mxu0 %v3975
  %v4189 = vpop.f32.mrf.mxu0
  %v4190 = vadd.f32 %v4110, %v4189
  %v4191 = vpop.f32.mrf.mxu0
  %4192 = vmatprep.mubr.f32.mxu0 %v4121
  %4193 = vmatmul.mubr.f32.gmra.mxu0 %v3977
  %v4194 = vpop.f32.mrf.mxu0
  %v4195 = vadd.f32 %v4115, %v4194
  %v4196 = vpop.f32.mrf.mxu0
  %4197 = vdwg.mxu0
  %v4198 = vld [vmem:[#allocation2] sm:$0xfc]
  %v4199 = vld [vmem:[#allocation2 + $0x8] sm:$0xfc]
  %v4200 = vld [vmem:[#allocation2 + $0x20] sm:$0x3]
  %v4201 = vld [vmem:[#allocation2 + $0x28] sm:$0x3]
  %s4202 = scalar_lea.vmem %s3, 1584
  %v4203 = vld [vmem:[%s4202] sm:$0xff]
  %v4204 = vld [vmem:[%s4202 + $0x8] sm:$0xff]
  %v4205 = vld [vmem:[%s4202 + $0x10] sm:$0xff]
  %v4206 = vld [vmem:[%s4202 + $0x18] sm:$0xff]
  %v4207 = vld [vmem:[%s4202 + $0x20] sm:$0xff]
  %v4208 = vld [vmem:[%s4202 + $0x28] sm:$0xff]
  %v4209 = vld [vmem:[%s4202 + $0x30] sm:$0xff]
  %v4210 = vld [vmem:[%s4202 + $0x38] sm:$0xff]
  %v4211 = vld [vmem:[%s4202 + $0x40] sm:$0xff]
  %v4212 = vld [vmem:[%s4202 + $0x48] sm:$0xff]
  %v4213 = vld [vmem:[%s4202 + $0x50] sm:$0xff]
  %v4214 = vld [vmem:[%s4202 + $0x58] sm:$0xff]
  %v4215 = vld [vmem:[%s4202 + $0x60] sm:$0xff]
  %v4216 = vld [vmem:[%s4202 + $0x68] sm:$0xff]
  %v4217 = vld [vmem:[%s4202 + $0x70] sm:$0xff]
  %v4218 = vld [vmem:[%s4202 + $0x78] sm:$0xff]
  %v4219 = vld [vmem:[%s4202 + $0x80] sm:$0xff]
  %v4220 = vld [vmem:[%s4202 + $0x88] sm:$0xff]
  %v4225 = vrot.slane %v4198, 2
  %v4226 = vrot.slane %v3977, 2
  %v4227 = vsel %vm598, %v4225, %v4226
  %v4228 = vrot.slane %v4199, 2
  %v4229 = vrot.slane %v3978, 2
  %v4230 = vsel %vm598, %v4228, %v4229
  %v4231 = vrot.slane %v4200, 2
  %v4232 = vsel %vm598, %v4226, %v4231
  %v4233 = vrot.slane %v4201, 2
  %v4234 = vsel %vm598, %v4229, %v4233
  %v4237 = vsel %vm33, %v4230, 0
  %v4239 = vsel %vm33, %v4234, 0
  %4241 = vmatprep.subr.mxu0 0.0
  %4242 = vmatpush1.msra.mxu0 %v4218
  %4243 = vmatprep.subr.mxu0 0.0
  %4244 = vmatpush1.msra.mxu0 %v4217
  %4245 = vmatprep.subr.mxu0 0.0
  %4246 = vmatpush1.msra.mxu0 %v4216
  %4247 = vmatprep.subr.mxu0 0.0
  %4248 = vmatpush1.msra.mxu0 %v4215
  %4249 = vmatprep.subr.mxu0 0.0
  %4250 = vmatpush1.msra.mxu0 %v4214
  %4251 = vmatprep.subr.mxu0 0.0
  %4252 = vmatpush1.msra.mxu0 %v4213
  %4253 = vmatprep.subr.mxu0 0.0
  %4254 = vmatpush1.msra.mxu0 %v4212
  %4255 = vmatprep.subr.mxu0 0.0
  %4256 = vmatpush1.msra.mxu0 %v4211
  %4257 = vmatprep.subr.mxu0 0.0
  %4258 = vmatpush1.msra.mxu0 %v4210
  %4259 = vmatprep.subr.mxu0 0.0
  %4260 = vmatpush1.msra.mxu0 %v4209
  %4261 = vmatprep.subr.mxu0 0.0
  %4262 = vmatpush1.msra.mxu0 %v4208
  %4263 = vmatprep.subr.mxu0 0.0
  %4264 = vmatpush1.msra.mxu0 %v4207
  %4265 = vmatprep.subr.mxu0 0.0
  %4266 = vmatpush1.msra.mxu0 %v4206
  %4267 = vmatprep.subr.mxu0 0.0
  %4268 = vmatpush1.msra.mxu0 %v4205
  %4269 = vmatprep.subr.mxu0 0.0
  %4270 = vmatpush1.msra.mxu0 %v4204
  %4271 = vmatprep.subr.mxu0 0.0
  %4272 = vmatpush1.msra.mxu0 %v4203
  %4273 = vmatprep.subr.mxu0 0.0
  %4274 = vmatpush2.msra.mxu0 0.0
  %4275 = vmatprep.subr.mxu0 0.0
  %4276 = vmatpush2.msra.mxu0 0.0
  %4277 = vmatprep.subr.mxu0 0.0
  %4278 = vmatpush2.msra.mxu0 0.0
  %4279 = vmatprep.subr.mxu0 0.0
  %4280 = vmatpush2.msra.mxu0 0.0
  %4281 = vmatprep.subr.mxu0 0.0
  %4282 = vmatpush2.msra.mxu0 0.0
  %4283 = vmatprep.subr.mxu0 0.0
  %4284 = vmatpush2.msra.mxu0 0.0
  %4285 = vmatprep.subr.mxu0 0.0
  %4286 = vmatpush2.msra.mxu0 0.0
  %4287 = vmatprep.subr.mxu0 0.0
  %4288 = vmatpush2.msra.mxu0 0.0
  %4289 = vmatprep.subr.mxu0 0.0
  %4290 = vmatpush2.msra.mxu0 0.0
  %4291 = vmatprep.subr.mxu0 0.0
  %4292 = vmatpush2.msra.mxu0 0.0
  %4293 = vmatprep.subr.mxu0 0.0
  %4294 = vmatpush2.msra.mxu0 0.0
  %4295 = vmatprep.subr.mxu0 0.0
  %4296 = vmatpush2.msra.mxu0 0.0
  %4297 = vmatprep.subr.mxu0 0.0
  %4298 = vmatpush2.msra.mxu0 0.0
  %4299 = vmatprep.subr.mxu0 0.0
  %4300 = vmatpush2.msra.mxu0 0.0
  %4301 = vmatprep.subr.mxu0 0.0
  %4302 = vmatpush2.msra.mxu0 %v4220
  %4303 = vmatprep.subr.mxu0 0.0
  %4304 = vmatpush2.msra.mxu0 %v4219
  %4305 = vmatprep.mubr.f32.mxu0 %v4237
  %4306 = vmatmul.mubr.f32.gmra.mxu0 %v4227
  %v4307 = vpop.f32.mrf.mxu0
  %v4308 = vadd.f32 0.0, %v4307
  %v4309 = vpop.f32.mrf.mxu0
  %4310 = vmatprep.mubr.f32.mxu0 %v4239
  %4311 = vmatmul.mubr.f32.gmra.mxu0 %v4232
  %v4312 = vpop.f32.mrf.mxu0
  %v4313 = vadd.f32 0.0, %v4312
  %v4314 = vpop.f32.mrf.mxu0
  %4315 = vdwg.mxu0
  %v4316 = vadd.f32 %v4190, %v4308
  %v4317 = vadd.f32 %v4195, %v4313
  %4318 = vst [vmem:[#allocation3] sm:$0xff] %v4316
  %4319 = vst [vmem:[#allocation3 + $0x8] sm:$0xff] %v4317
  %v4320 = vld [vmem:[#allocation2 + $0x20] sm:$0xfc]
  %v4321 = vld [vmem:[#allocation2 + $0x28] sm:$0xfc]
  %v4322 = vld [vmem:[#allocation2 + $0x30] sm:$0xff]
  %v4323 = vld [vmem:[#allocation2 + $0x38] sm:$0xff]
  %v4324 = vld [vmem:[#allocation2 + $0x40] sm:$0x3]
  %v4325 = vld [vmem:[#allocation2 + $0x48] sm:$0x3]
  %v4326 = vld [vmem:[%s3979] sm:$0xff]
  %v4327 = vld [vmem:[%s3979 + $0x8] sm:$0xff]
  %v4328 = vld [vmem:[%s3979 + $0x10] sm:$0xff]
  %v4329 = vld [vmem:[%s3979 + $0x18] sm:$0xff]
  %v4330 = vld [vmem:[%s3979 + $0x20] sm:$0xff]
  %v4331 = vld [vmem:[%s3979 + $0x28] sm:$0xff]
  %v4332 = vld [vmem:[%s3979 + $0x30] sm:$0xff]
  %v4333 = vld [vmem:[%s3979 + $0x38] sm:$0xff]
  %v4334 = vld [vmem:[%s3979 + $0x40] sm:$0xff]
  %v4335 = vld [vmem:[%s3979 + $0x48] sm:$0xff]
  %v4336 = vld [vmem:[%s3979 + $0x50] sm:$0xff]
  %v4337 = vld [vmem:[%s3979 + $0x58] sm:$0xff]
  %v4338 = vld [vmem:[%s3979 + $0x60] sm:$0xff]
  %v4339 = vld [vmem:[%s3979 + $0x68] sm:$0xff]
  %v4340 = vld [vmem:[%s3979 + $0x70] sm:$0xff]
  %v4341 = vld [vmem:[%s3979 + $0x78] sm:$0xff]
  %v4342 = vld [vmem:[%s3979 + $0x80] sm:$0xff]
  %v4343 = vld [vmem:[%s3979 + $0x88] sm:$0xff]
  %v4344 = vld [vmem:[#allocation2 + $0x20] sm:$0xf8]
  %v4345 = vld [vmem:[#allocation2 + $0x28] sm:$0xf8]
  %v4346 = vld [vmem:[#allocation2 + $0x40] sm:$0x7]
  %v4347 = vld [vmem:[#allocation2 + $0x48] sm:$0x7]
  %v4348 = vld [vmem:[%s4002] sm:$0xff]
  %v4349 = vld [vmem:[%s4002 + $0x8] sm:$0xff]
  %v4350 = vld [vmem:[%s4002 + $0x10] sm:$0xff]
  %v4351 = vld [vmem:[%s4002 + $0x18] sm:$0xff]
  %v4352 = vld [vmem:[%s4002 + $0x20] sm:$0xff]
  %v4353 = vld [vmem:[%s4002 + $0x28] sm:$0xff]
  %v4354 = vld [vmem:[%s4002 + $0x30] sm:$0xff]
  %v4355 = vld [vmem:[%s4002 + $0x38] sm:$0xff]
  %v4356 = vld [vmem:[%s4002 + $0x40] sm:$0xff]
  %v4357 = vld [vmem:[%s4002 + $0x48] sm:$0xff]
  %v4358 = vld [vmem:[%s4002 + $0x50] sm:$0xff]
  %v4359 = vld [vmem:[%s4002 + $0x58] sm:$0xff]
  %v4360 = vld [vmem:[%s4002 + $0x60] sm:$0xff]
  %v4361 = vld [vmem:[%s4002 + $0x68] sm:$0xff]
  %v4362 = vld [vmem:[%s4002 + $0x70] sm:$0xff]
  %v4363 = vld [vmem:[%s4002 + $0x78] sm:$0xff]
  %v4364 = vld [vmem:[%s4002 + $0x80] sm:$0xff]
  %v4365 = vld [vmem:[%s4002 + $0x88] sm:$0xff]
  %v4372 = vrot.slane %v4344, 3
  %v4373 = vrot.slane %v4322, 3
  %v4374 = vsel %vm746, %v4372, %v4373
  %v4375 = vrot.slane %v4345, 3
  %v4376 = vrot.slane %v4323, 3
  %v4377 = vsel %vm746, %v4375, %v4376
  %v4378 = vrot.slane %v4346, 3
  %v4379 = vsel %vm746, %v4373, %v4378
  %v4380 = vrot.slane %v4347, 3
  %v4381 = vsel %vm746, %v4376, %v4380
  %v4384 = vsel %vm33, %v4377, 0
  %v4386 = vsel %vm33, %v4381, 0
  %4388 = vmatprep.subr.mxu0 0.0
  %4389 = vmatpush1.msra.mxu0 %v4363
  %4390 = vmatprep.subr.mxu0 0.0
  %4391 = vmatpush1.msra.mxu0 %v4362
  %4392 = vmatprep.subr.mxu0 0.0
  %4393 = vmatpush1.msra.mxu0 %v4361
  %4394 = vmatprep.subr.mxu0 0.0
  %4395 = vmatpush1.msra.mxu0 %v4360
  %4396 = vmatprep.subr.mxu0 0.0
  %4397 = vmatpush1.msra.mxu0 %v4359
  %4398 = vmatprep.subr.mxu0 0.0
  %4399 = vmatpush1.msra.mxu0 %v4358
  %4400 = vmatprep.subr.mxu0 0.0
  %4401 = vmatpush1.msra.mxu0 %v4357
  %4402 = vmatprep.subr.mxu0 0.0
  %4403 = vmatpush1.msra.mxu0 %v4356
  %4404 = vmatprep.subr.mxu0 0.0
  %4405 = vmatpush1.msra.mxu0 %v4355
  %4406 = vmatprep.subr.mxu0 0.0
  %4407 = vmatpush1.msra.mxu0 %v4354
  %4408 = vmatprep.subr.mxu0 0.0
  %4409 = vmatpush1.msra.mxu0 %v4353
  %4410 = vmatprep.subr.mxu0 0.0
  %4411 = vmatpush1.msra.mxu0 %v4352
  %4412 = vmatprep.subr.mxu0 0.0
  %4413 = vmatpush1.msra.mxu0 %v4351
  %4414 = vmatprep.subr.mxu0 0.0
  %4415 = vmatpush1.msra.mxu0 %v4350
  %4416 = vmatprep.subr.mxu0 0.0
  %4417 = vmatpush1.msra.mxu0 %v4349
  %4418 = vmatprep.subr.mxu0 0.0
  %4419 = vmatpush1.msra.mxu0 %v4348
  %4420 = vmatprep.subr.mxu0 0.0
  %4421 = vmatpush2.msra.mxu0 0.0
  %4422 = vmatprep.subr.mxu0 0.0
  %4423 = vmatpush2.msra.mxu0 0.0
  %4424 = vmatprep.subr.mxu0 0.0
  %4425 = vmatpush2.msra.mxu0 0.0
  %4426 = vmatprep.subr.mxu0 0.0
  %4427 = vmatpush2.msra.mxu0 0.0
  %4428 = vmatprep.subr.mxu0 0.0
  %4429 = vmatpush2.msra.mxu0 0.0
  %4430 = vmatprep.subr.mxu0 0.0
  %4431 = vmatpush2.msra.mxu0 0.0
  %4432 = vmatprep.subr.mxu0 0.0
  %4433 = vmatpush2.msra.mxu0 0.0
  %4434 = vmatprep.subr.mxu0 0.0
  %4435 = vmatpush2.msra.mxu0 0.0
  %4436 = vmatprep.subr.mxu0 0.0
  %4437 = vmatpush2.msra.mxu0 0.0
  %4438 = vmatprep.subr.mxu0 0.0
  %4439 = vmatpush2.msra.mxu0 0.0
  %4440 = vmatprep.subr.mxu0 0.0
  %4441 = vmatpush2.msra.mxu0 0.0
  %4442 = vmatprep.subr.mxu0 0.0
  %4443 = vmatpush2.msra.mxu0 0.0
  %4444 = vmatprep.subr.mxu0 0.0
  %4445 = vmatpush2.msra.mxu0 0.0
  %4446 = vmatprep.subr.mxu0 0.0
  %4447 = vmatpush2.msra.mxu0 0.0
  %4448 = vmatprep.subr.mxu0 0.0
  %4449 = vmatpush2.msra.mxu0 %v4365
  %4450 = vmatprep.subr.mxu0 0.0
  %4451 = vmatpush2.msra.mxu0 %v4364
  %4452 = vmatprep.mubr.f32.mxu0 %v4384
  %4453 = vmatmul.mubr.f32.gmra.mxu0 %v4374
  %v4454 = vpop.f32.mrf.mxu0
  %v4455 = vadd.f32 0.0, %v4454
  %v4456 = vpop.f32.mrf.mxu0
  %4457 = vmatprep.mubr.f32.mxu0 %v4386
  %4458 = vmatmul.mubr.f32.gmra.mxu0 %v4379
  %v4459 = vpop.f32.mrf.mxu0
  %v4460 = vadd.f32 0.0, %v4459
  %v4461 = vpop.f32.mrf.mxu0
  %4462 = vdwg.mxu0
  %v4467 = vrot.slane %v4320, 2
  %v4468 = vrot.slane %v4322, 2
  %v4469 = vsel %vm598, %v4467, %v4468
  %v4470 = vrot.slane %v4321, 2
  %v4471 = vrot.slane %v4323, 2
  %v4472 = vsel %vm598, %v4470, %v4471
  %v4473 = vrot.slane %v4324, 2
  %v4474 = vsel %vm598, %v4468, %v4473
  %v4475 = vrot.slane %v4325, 2
  %v4476 = vsel %vm598, %v4471, %v4475
  %v4479 = vsel %vm33, %v4472, 0
  %v4481 = vsel %vm33, %v4476, 0
  %4483 = vmatprep.subr.mxu0 0.0
  %4484 = vmatpush1.msra.mxu0 %v4341
  %4485 = vmatprep.subr.mxu0 0.0
  %4486 = vmatpush1.msra.mxu0 %v4340
  %4487 = vmatprep.subr.mxu0 0.0
  %4488 = vmatpush1.msra.mxu0 %v4339
  %4489 = vmatprep.subr.mxu0 0.0
  %4490 = vmatpush1.msra.mxu0 %v4338
  %4491 = vmatprep.subr.mxu0 0.0
  %4492 = vmatpush1.msra.mxu0 %v4337
  %4493 = vmatprep.subr.mxu0 0.0
  %4494 = vmatpush1.msra.mxu0 %v4336
  %4495 = vmatprep.subr.mxu0 0.0
  %4496 = vmatpush1.msra.mxu0 %v4335
  %4497 = vmatprep.subr.mxu0 0.0
  %4498 = vmatpush1.msra.mxu0 %v4334
  %4499 = vmatprep.subr.mxu0 0.0
  %4500 = vmatpush1.msra.mxu0 %v4333
  %4501 = vmatprep.subr.mxu0 0.0
  %4502 = vmatpush1.msra.mxu0 %v4332
  %4503 = vmatprep.subr.mxu0 0.0
  %4504 = vmatpush1.msra.mxu0 %v4331
  %4505 = vmatprep.subr.mxu0 0.0
  %4506 = vmatpush1.msra.mxu0 %v4330
  %4507 = vmatprep.subr.mxu0 0.0
  %4508 = vmatpush1.msra.mxu0 %v4329
  %4509 = vmatprep.subr.mxu0 0.0
  %4510 = vmatpush1.msra.mxu0 %v4328
  %4511 = vmatprep.subr.mxu0 0.0
  %4512 = vmatpush1.msra.mxu0 %v4327
  %4513 = vmatprep.subr.mxu0 0.0
  %4514 = vmatpush1.msra.mxu0 %v4326
  %4515 = vmatprep.subr.mxu0 0.0
  %4516 = vmatpush2.msra.mxu0 0.0
  %4517 = vmatprep.subr.mxu0 0.0
  %4518 = vmatpush2.msra.mxu0 0.0
  %4519 = vmatprep.subr.mxu0 0.0
  %4520 = vmatpush2.msra.mxu0 0.0
  %4521 = vmatprep.subr.mxu0 0.0
  %4522 = vmatpush2.msra.mxu0 0.0
  %4523 = vmatprep.subr.mxu0 0.0
  %4524 = vmatpush2.msra.mxu0 0.0
  %4525 = vmatprep.subr.mxu0 0.0
  %4526 = vmatpush2.msra.mxu0 0.0
  %4527 = vmatprep.subr.mxu0 0.0
  %4528 = vmatpush2.msra.mxu0 0.0
  %4529 = vmatprep.subr.mxu0 0.0
  %4530 = vmatpush2.msra.mxu0 0.0
  %4531 = vmatprep.subr.mxu0 0.0
  %4532 = vmatpush2.msra.mxu0 0.0
  %4533 = vmatprep.subr.mxu0 0.0
  %4534 = vmatpush2.msra.mxu0 0.0
  %4535 = vmatprep.subr.mxu0 0.0
  %4536 = vmatpush2.msra.mxu0 0.0
  %4537 = vmatprep.subr.mxu0 0.0
  %4538 = vmatpush2.msra.mxu0 0.0
  %4539 = vmatprep.subr.mxu0 0.0
  %4540 = vmatpush2.msra.mxu0 0.0
  %4541 = vmatprep.subr.mxu0 0.0
  %4542 = vmatpush2.msra.mxu0 0.0
  %4543 = vmatprep.subr.mxu0 0.0
  %4544 = vmatpush2.msra.mxu0 %v4343
  %4545 = vmatprep.subr.mxu0 0.0
  %4546 = vmatpush2.msra.mxu0 %v4342
  %4547 = vmatprep.mubr.f32.mxu0 %v4479
  %4548 = vmatmul.mubr.f32.gmra.mxu0 %v4469
  %v4549 = vpop.f32.mrf.mxu0
  %v4550 = vadd.f32 %v4455, %v4549
  %v4551 = vpop.f32.mrf.mxu0
  %4552 = vmatprep.mubr.f32.mxu0 %v4481
  %4553 = vmatmul.mubr.f32.gmra.mxu0 %v4474
  %v4554 = vpop.f32.mrf.mxu0
  %v4555 = vadd.f32 %v4460, %v4554
  %v4556 = vpop.f32.mrf.mxu0
  %4557 = vdwg.mxu0
  %v4558 = vld [vmem:[#allocation2 + $0x20] sm:$0xf0]
  %v4559 = vld [vmem:[#allocation2 + $0x28] sm:$0xf0]
  %v4560 = vld [vmem:[#allocation2 + $0x40] sm:$0xf]
  %v4561 = vld [vmem:[#allocation2 + $0x48] sm:$0xf]
  %v4562 = vld [vmem:[%s4202] sm:$0xff]
  %v4563 = vld [vmem:[%s4202 + $0x8] sm:$0xff]
  %v4564 = vld [vmem:[%s4202 + $0x10] sm:$0xff]
  %v4565 = vld [vmem:[%s4202 + $0x18] sm:$0xff]
  %v4566 = vld [vmem:[%s4202 + $0x20] sm:$0xff]
  %v4567 = vld [vmem:[%s4202 + $0x28] sm:$0xff]
  %v4568 = vld [vmem:[%s4202 + $0x30] sm:$0xff]
  %v4569 = vld [vmem:[%s4202 + $0x38] sm:$0xff]
  %v4570 = vld [vmem:[%s4202 + $0x40] sm:$0xff]
  %v4571 = vld [vmem:[%s4202 + $0x48] sm:$0xff]
  %v4572 = vld [vmem:[%s4202 + $0x50] sm:$0xff]
  %v4573 = vld [vmem:[%s4202 + $0x58] sm:$0xff]
  %v4574 = vld [vmem:[%s4202 + $0x60] sm:$0xff]
  %v4575 = vld [vmem:[%s4202 + $0x68] sm:$0xff]
  %v4576 = vld [vmem:[%s4202 + $0x70] sm:$0xff]
  %v4577 = vld [vmem:[%s4202 + $0x78] sm:$0xff]
  %v4578 = vld [vmem:[%s4202 + $0x80] sm:$0xff]
  %v4579 = vld [vmem:[%s4202 + $0x88] sm:$0xff]
  %v4584 = vrot.slane %v4558, 4
  %v4585 = vrot.slane %v4322, 4
  %v4586 = vsel %vm959, %v4584, %v4585
  %v4587 = vrot.slane %v4559, 4
  %v4588 = vrot.slane %v4323, 4
  %v4589 = vsel %vm959, %v4587, %v4588
  %v4590 = vrot.slane %v4560, 4
  %v4591 = vsel %vm959, %v4585, %v4590
  %v4592 = vrot.slane %v4561, 4
  %v4593 = vsel %vm959, %v4588, %v4592
  %v4596 = vsel %vm33, %v4589, 0
  %v4598 = vsel %vm33, %v4593, 0
  %4600 = vmatprep.subr.mxu0 0.0
  %4601 = vmatpush1.msra.mxu0 %v4577
  %4602 = vmatprep.subr.mxu0 0.0
  %4603 = vmatpush1.msra.mxu0 %v4576
  %4604 = vmatprep.subr.mxu0 0.0
  %4605 = vmatpush1.msra.mxu0 %v4575
  %4606 = vmatprep.subr.mxu0 0.0
  %4607 = vmatpush1.msra.mxu0 %v4574
  %4608 = vmatprep.subr.mxu0 0.0
  %4609 = vmatpush1.msra.mxu0 %v4573
  %4610 = vmatprep.subr.mxu0 0.0
  %4611 = vmatpush1.msra.mxu0 %v4572
  %4612 = vmatprep.subr.mxu0 0.0
  %4613 = vmatpush1.msra.mxu0 %v4571
  %4614 = vmatprep.subr.mxu0 0.0
  %4615 = vmatpush1.msra.mxu0 %v4570
  %4616 = vmatprep.subr.mxu0 0.0
  %4617 = vmatpush1.msra.mxu0 %v4569
  %4618 = vmatprep.subr.mxu0 0.0
  %4619 = vmatpush1.msra.mxu0 %v4568
  %4620 = vmatprep.subr.mxu0 0.0
  %4621 = vmatpush1.msra.mxu0 %v4567
  %4622 = vmatprep.subr.mxu0 0.0
  %4623 = vmatpush1.msra.mxu0 %v4566
  %4624 = vmatprep.subr.mxu0 0.0
  %4625 = vmatpush1.msra.mxu0 %v4565
  %4626 = vmatprep.subr.mxu0 0.0
  %4627 = vmatpush1.msra.mxu0 %v4564
  %4628 = vmatprep.subr.mxu0 0.0
  %4629 = vmatpush1.msra.mxu0 %v4563
  %4630 = vmatprep.subr.mxu0 0.0
  %4631 = vmatpush1.msra.mxu0 %v4562
  %4632 = vmatprep.subr.mxu0 0.0
  %4633 = vmatpush2.msra.mxu0 0.0
  %4634 = vmatprep.subr.mxu0 0.0
  %4635 = vmatpush2.msra.mxu0 0.0
  %4636 = vmatprep.subr.mxu0 0.0
  %4637 = vmatpush2.msra.mxu0 0.0
  %4638 = vmatprep.subr.mxu0 0.0
  %4639 = vmatpush2.msra.mxu0 0.0
  %4640 = vmatprep.subr.mxu0 0.0
  %4641 = vmatpush2.msra.mxu0 0.0
  %4642 = vmatprep.subr.mxu0 0.0
  %4643 = vmatpush2.msra.mxu0 0.0
  %4644 = vmatprep.subr.mxu0 0.0
  %4645 = vmatpush2.msra.mxu0 0.0
  %4646 = vmatprep.subr.mxu0 0.0
  %4647 = vmatpush2.msra.mxu0 0.0
  %4648 = vmatprep.subr.mxu0 0.0
  %4649 = vmatpush2.msra.mxu0 0.0
  %4650 = vmatprep.subr.mxu0 0.0
  %4651 = vmatpush2.msra.mxu0 0.0
  %4652 = vmatprep.subr.mxu0 0.0
  %4653 = vmatpush2.msra.mxu0 0.0
  %4654 = vmatprep.subr.mxu0 0.0
  %4655 = vmatpush2.msra.mxu0 0.0
  %4656 = vmatprep.subr.mxu0 0.0
  %4657 = vmatpush2.msra.mxu0 0.0
  %4658 = vmatprep.subr.mxu0 0.0
  %4659 = vmatpush2.msra.mxu0 0.0
  %4660 = vmatprep.subr.mxu0 0.0
  %4661 = vmatpush2.msra.mxu0 %v4579
  %4662 = vmatprep.subr.mxu0 0.0
  %4663 = vmatpush2.msra.mxu0 %v4578
  %4664 = vmatprep.mubr.f32.mxu0 %v4596
  %4665 = vmatmul.mubr.f32.gmra.mxu0 %v4586
  %v4666 = vpop.f32.mrf.mxu0
  %v4667 = vadd.f32 0.0, %v4666
  %v4668 = vpop.f32.mrf.mxu0
  %4669 = vmatprep.mubr.f32.mxu0 %v4598
  %4670 = vmatmul.mubr.f32.gmra.mxu0 %v4591
  %v4671 = vpop.f32.mrf.mxu0
  %v4672 = vadd.f32 0.0, %v4671
  %v4673 = vpop.f32.mrf.mxu0
  %4674 = vdwg.mxu0
  %v4675 = vadd.f32 %v4550, %v4667
  %v4676 = vadd.f32 %v4555, %v4672
  %4677 = vst [vmem:[#allocation3 + $0x10] sm:$0xff] %v4675
  %4678 = vst [vmem:[#allocation3 + $0x18] sm:$0xff] %v4676
  %v4679 = vld [vmem:[#allocation3] sm:$0xff]
  %v4680 = vld [vmem:[#allocation3 + $0x8] sm:$0xff]
  %v4681 = vld [vmem:[#allocation3 + $0x10] sm:$0xff]
  %v4682 = vld [vmem:[#allocation3 + $0x18] sm:$0xff]
  %s4683 = scalar_lea.vmem %s4, 3
  %v4684 = vld [vmem:[%s4683] sm:$0x1]
  %v4686 = vlaneseq
  %v4687 = vshrl.u32 %v4686, 7
  %v4688 = vsub.s32 0, %v4687
  %v4689 = vrot.slane %v4684, %v4688
  %v4691 = vadd.f32 %v4679, %v4689
  %v4692 = vadd.f32 %v4680, %v4689
  %v4693 = vadd.f32 %v4681, %v4689
  %v4694 = vadd.f32 %v4682, %v4689
  %v4695 = vadd.f32 %v4691, %v4692
  %v4696 = vadd.f32 %v4695, %v4693
  %v4697 = vadd.f32 %v4696, %v4694
  %v4698 = vrot.slane %v4697, 4
  %v4699 = vadd.f32 %v4697, %v4698
  %v4700 = vrot.slane %v4699, 2
  %v4701 = vadd.f32 %v4699, %v4700
  %v4702 = vrot.slane %v4701, 1
  %v4703 = vadd.f32 %v4701, %v4702
  %v4704 = vmul.f32 %v4691, %v4691
  %v4705 = vmul.f32 %v4692, %v4692
  %v4706 = vmul.f32 %v4693, %v4693
  %v4707 = vmul.f32 %v4694, %v4694
  %v4708 = vadd.f32 %v4704, %v4705
  %v4709 = vadd.f32 %v4708, %v4706
  %v4710 = vadd.f32 %v4709, %v4707
  %v4711 = vrot.slane %v4710, 4
  %v4712 = vadd.f32 %v4710, %v4711
  %v4713 = vrot.slane %v4712, 2
  %v4714 = vadd.f32 %v4712, %v4713
  %v4715 = vrot.slane %v4714, 1
  %v4716 = vadd.f32 %v4714, %v4715
  %4717 = vmatprep.subr.mxu0 0.0
  %4718 = vmatpush1.msra.mxu0 %v347
  %4719 = vmatprep.subr.mxu0 0.0
  %4720 = vmatpush1.msra.mxu0 %v346
  %4721 = vmatprep.subr.mxu0 0.0
  %4722 = vmatpush1.msra.mxu0 %v345
  %4723 = vmatprep.subr.mxu0 0.0
  %4724 = vmatpush1.msra.mxu0 %v344
  %4725 = vmatprep.subr.mxu0 0.0
  %4726 = vmatpush1.msra.mxu0 %v343
  %4727 = vmatprep.subr.mxu0 0.0
  %4728 = vmatpush1.msra.mxu0 %v342
  %4729 = vmatprep.subr.mxu0 0.0
  %4730 = vmatpush1.msra.mxu0 %v341
  %4731 = vmatprep.subr.mxu0 0.0
  %4732 = vmatpush1.msra.mxu0 %v340
  %4733 = vmatprep.subr.mxu0 0.0
  %4734 = vmatpush1.msra.mxu0 %v339
  %4735 = vmatprep.subr.mxu0 0.0
  %4736 = vmatpush1.msra.mxu0 %v338
  %4737 = vmatprep.subr.mxu0 0.0
  %4738 = vmatpush1.msra.mxu0 %v337
  %4739 = vmatprep.subr.mxu0 0.0
  %4740 = vmatpush1.msra.mxu0 %v336
  %4741 = vmatprep.subr.mxu0 0.0
  %4742 = vmatpush1.msra.mxu0 %v335
  %4743 = vmatprep.subr.mxu0 0.0
  %4744 = vmatpush1.msra.mxu0 %v334
  %4745 = vmatprep.subr.mxu0 0.0
  %4746 = vmatpush1.msra.mxu0 %v333
  %4747 = vmatprep.subr.mxu0 0.0
  %4748 = vmatpush1.msra.mxu0 %v332
  %4749 = vmatprep.subr.mxu0 0.0
  %4750 = vmatpush2.msra.mxu0 0.0
  %4751 = vmatprep.subr.mxu0 0.0
  %4752 = vmatpush2.msra.mxu0 0.0
  %4753 = vmatprep.subr.mxu0 0.0
  %4754 = vmatpush2.msra.mxu0 0.0
  %4755 = vmatprep.subr.mxu0 0.0
  %4756 = vmatpush2.msra.mxu0 0.0
  %4757 = vmatprep.subr.mxu0 0.0
  %4758 = vmatpush2.msra.mxu0 0.0
  %4759 = vmatprep.subr.mxu0 0.0
  %4760 = vmatpush2.msra.mxu0 0.0
  %4761 = vmatprep.subr.mxu0 0.0
  %4762 = vmatpush2.msra.mxu0 0.0
  %4763 = vmatprep.subr.mxu0 0.0
  %4764 = vmatpush2.msra.mxu0 0.0
  %4765 = vmatprep.subr.mxu0 0.0
  %4766 = vmatpush2.msra.mxu0 0.0
  %4767 = vmatprep.subr.mxu0 0.0
  %4768 = vmatpush2.msra.mxu0 0.0
  %4769 = vmatprep.subr.mxu0 0.0
  %4770 = vmatpush2.msra.mxu0 0.0
  %4771 = vmatprep.subr.mxu0 0.0
  %4772 = vmatpush2.msra.mxu0 0.0
  %4773 = vmatprep.subr.mxu0 0.0
  %4774 = vmatpush2.msra.mxu0 0.0
  %4775 = vmatprep.subr.mxu0 0.0
  %4776 = vmatpush2.msra.mxu0 0.0
  %4777 = vmatprep.subr.mxu0 0.0
  %4778 = vmatpush2.msra.mxu0 0.0
  %4779 = vmatprep.subr.mxu0 0.0
  %4780 = vmatpush2.msra.mxu0 0.0
  %4781 = vmatprep.mubr.f32.mxu0 0.0
  %4782 = vmatmul.mubr.f32.gmra.mxu0 %v4703
  %v4783 = vpop.f32.mrf.mxu0
  %v4784 = vadd.f32 0.0, %v4783
  %v4785 = vpop.f32.mrf.mxu0
  %4786 = vdwg.mxu0
  %4787 = vmatprep.subr.mxu0 0.0
  %4788 = vmatpush1.msra.mxu0 %v347
  %4789 = vmatprep.subr.mxu0 0.0
  %4790 = vmatpush1.msra.mxu0 %v346
  %4791 = vmatprep.subr.mxu0 0.0
  %4792 = vmatpush1.msra.mxu0 %v345
  %4793 = vmatprep.subr.mxu0 0.0
  %4794 = vmatpush1.msra.mxu0 %v344
  %4795 = vmatprep.subr.mxu0 0.0
  %4796 = vmatpush1.msra.mxu0 %v343
  %4797 = vmatprep.subr.mxu0 0.0
  %4798 = vmatpush1.msra.mxu0 %v342
  %4799 = vmatprep.subr.mxu0 0.0
  %4800 = vmatpush1.msra.mxu0 %v341
  %4801 = vmatprep.subr.mxu0 0.0
  %4802 = vmatpush1.msra.mxu0 %v340
  %4803 = vmatprep.subr.mxu0 0.0
  %4804 = vmatpush1.msra.mxu0 %v339
  %4805 = vmatprep.subr.mxu0 0.0
  %4806 = vmatpush1.msra.mxu0 %v338
  %4807 = vmatprep.subr.mxu0 0.0
  %4808 = vmatpush1.msra.mxu0 %v337
  %4809 = vmatprep.subr.mxu0 0.0
  %4810 = vmatpush1.msra.mxu0 %v336
  %4811 = vmatprep.subr.mxu0 0.0
  %4812 = vmatpush1.msra.mxu0 %v335
  %4813 = vmatprep.subr.mxu0 0.0
  %4814 = vmatpush1.msra.mxu0 %v334
  %4815 = vmatprep.subr.mxu0 0.0
  %4816 = vmatpush1.msra.mxu0 %v333
  %4817 = vmatprep.subr.mxu0 0.0
  %4818 = vmatpush1.msra.mxu0 %v332
  %4819 = vmatprep.subr.mxu0 0.0
  %4820 = vmatpush2.msra.mxu0 0.0
  %4821 = vmatprep.subr.mxu0 0.0
  %4822 = vmatpush2.msra.mxu0 0.0
  %4823 = vmatprep.subr.mxu0 0.0
  %4824 = vmatpush2.msra.mxu0 0.0
  %4825 = vmatprep.subr.mxu0 0.0
  %4826 = vmatpush2.msra.mxu0 0.0
  %4827 = vmatprep.subr.mxu0 0.0
  %4828 = vmatpush2.msra.mxu0 0.0
  %4829 = vmatprep.subr.mxu0 0.0
  %4830 = vmatpush2.msra.mxu0 0.0
  %4831 = vmatprep.subr.mxu0 0.0
  %4832 = vmatpush2.msra.mxu0 0.0
  %4833 = vmatprep.subr.mxu0 0.0
  %4834 = vmatpush2.msra.mxu0 0.0
  %4835 = vmatprep.subr.mxu0 0.0
  %4836 = vmatpush2.msra.mxu0 0.0
  %4837 = vmatprep.subr.mxu0 0.0
  %4838 = vmatpush2.msra.mxu0 0.0
  %4839 = vmatprep.subr.mxu0 0.0
  %4840 = vmatpush2.msra.mxu0 0.0
  %4841 = vmatprep.subr.mxu0 0.0
  %4842 = vmatpush2.msra.mxu0 0.0
  %4843 = vmatprep.subr.mxu0 0.0
  %4844 = vmatpush2.msra.mxu0 0.0
  %4845 = vmatprep.subr.mxu0 0.0
  %4846 = vmatpush2.msra.mxu0 0.0
  %4847 = vmatprep.subr.mxu0 0.0
  %4848 = vmatpush2.msra.mxu0 0.0
  %4849 = vmatprep.subr.mxu0 0.0
  %4850 = vmatpush2.msra.mxu0 0.0
  %4851 = vmatprep.mubr.f32.mxu0 0.0
  %4852 = vmatmul.mubr.f32.gmra.mxu0 %v4716
  %v4853 = vpop.f32.mrf.mxu0
  %v4854 = vadd.f32 0.0, %v4853
  %v4855 = vpop.f32.mrf.mxu0
  %4856 = vdwg.mxu0
  %v4857 = vmul.f32 %v4784, 0.001953125
  %v4858 = vmul.f32 %v4854, 0.001953125
  %v4859 = vmul.f32 %v4857, %v4857
  %v4860 = vsub.f32 %v4858, %v4859
  %v4861 = vadd.f32 %v4860, 1e-05
  %v4862 = vrsqrt.pop %v4861
  %v4864 = vsel %vm1238, %v4857, 0
  %4866 = vmatprep.subr.mxu0 0.0
  %4867 = vmatpush1.msra.mxu0 0.0
  %4868 = vmatprep.subr.mxu0 0.0
  %4869 = vmatpush1.msra.mxu0 0.0
  %4870 = vmatprep.subr.mxu0 0.0
  %4871 = vmatpush1.msra.mxu0 0.0
  %4872 = vmatprep.subr.mxu0 0.0
  %4873 = vmatpush1.msra.mxu0 0.0
  %4874 = vmatprep.subr.mxu0 0.0
  %4875 = vmatpush1.msra.mxu0 0.0
  %4876 = vmatprep.subr.mxu0 0.0
  %4877 = vmatpush1.msra.mxu0 0.0
  %4878 = vmatprep.subr.mxu0 0.0
  %4879 = vmatpush1.msra.mxu0 0.0
  %4880 = vmatprep.subr.mxu0 0.0
  %4881 = vmatpush1.msra.mxu0 0.0
  %4882 = vmatprep.subr.mxu0 0.0
  %4883 = vmatpush1.msra.mxu0 0.0
  %4884 = vmatprep.subr.mxu0 0.0
  %4885 = vmatpush1.msra.mxu0 0.0
  %4886 = vmatprep.subr.mxu0 0.0
  %4887 = vmatpush1.msra.mxu0 0.0
  %4888 = vmatprep.subr.mxu0 0.0
  %4889 = vmatpush1.msra.mxu0 0.0
  %4890 = vmatprep.subr.mxu0 0.0
  %4891 = vmatpush1.msra.mxu0 0.0
  %4892 = vmatprep.subr.mxu0 0.0
  %4893 = vmatpush1.msra.mxu0 0.0
  %4894 = vmatprep.subr.mxu0 0.0
  %4895 = vmatpush1.msra.mxu0 0.0
  %4896 = vmatprep.subr.mxu0 0.0
  %4897 = vmatpush1.msra.mxu0 %v331
  %4898 = vmatprep.subr.mxu0 0.0
  %4899 = vmatpush2.msra.mxu0 0.0
  %4900 = vmatprep.subr.mxu0 0.0
  %4901 = vmatpush2.msra.mxu0 0.0
  %4902 = vmatprep.subr.mxu0 0.0
  %4903 = vmatpush2.msra.mxu0 0.0
  %4904 = vmatprep.subr.mxu0 0.0
  %4905 = vmatpush2.msra.mxu0 0.0
  %4906 = vmatprep.subr.mxu0 0.0
  %4907 = vmatpush2.msra.mxu0 0.0
  %4908 = vmatprep.subr.mxu0 0.0
  %4909 = vmatpush2.msra.mxu0 0.0
  %4910 = vmatprep.subr.mxu0 0.0
  %4911 = vmatpush2.msra.mxu0 0.0
  %4912 = vmatprep.subr.mxu0 0.0
  %4913 = vmatpush2.msra.mxu0 0.0
  %4914 = vmatprep.subr.mxu0 0.0
  %4915 = vmatpush2.msra.mxu0 0.0
  %4916 = vmatprep.subr.mxu0 0.0
  %4917 = vmatpush2.msra.mxu0 0.0
  %4918 = vmatprep.subr.mxu0 0.0
  %4919 = vmatpush2.msra.mxu0 0.0
  %4920 = vmatprep.subr.mxu0 0.0
  %4921 = vmatpush2.msra.mxu0 0.0
  %4922 = vmatprep.subr.mxu0 0.0
  %4923 = vmatpush2.msra.mxu0 0.0
  %4924 = vmatprep.subr.mxu0 0.0
  %4925 = vmatpush2.msra.mxu0 0.0
  %4926 = vmatprep.subr.mxu0 0.0
  %4927 = vmatpush2.msra.mxu0 0.0
  %4928 = vmatprep.subr.mxu0 0.0
  %4929 = vmatpush2.msra.mxu0 0.0
  %4930 = vmatprep.mubr.f32.mxu0 0.0
  %4931 = vmatmul.mubr.f32.gmra.mxu0 %v4864
  %v4932 = vpop.f32.mrf.mxu0
  %v4933 = vadd.f32 0.0, %v4932
  %v4934 = vpop.f32.mrf.mxu0
  %4935 = vdwg.mxu0
  %v4937 = vsel %vm1238, %v4862, 0
  %4939 = vmatprep.subr.mxu0 0.0
  %4940 = vmatpush1.msra.mxu0 0.0
  %4941 = vmatprep.subr.mxu0 0.0
  %4942 = vmatpush1.msra.mxu0 0.0
  %4943 = vmatprep.subr.mxu0 0.0
  %4944 = vmatpush1.msra.mxu0 0.0
  %4945 = vmatprep.subr.mxu0 0.0
  %4946 = vmatpush1.msra.mxu0 0.0
  %4947 = vmatprep.subr.mxu0 0.0
  %4948 = vmatpush1.msra.mxu0 0.0
  %4949 = vmatprep.subr.mxu0 0.0
  %4950 = vmatpush1.msra.mxu0 0.0
  %4951 = vmatprep.subr.mxu0 0.0
  %4952 = vmatpush1.msra.mxu0 0.0
  %4953 = vmatprep.subr.mxu0 0.0
  %4954 = vmatpush1.msra.mxu0 0.0
  %4955 = vmatprep.subr.mxu0 0.0
  %4956 = vmatpush1.msra.mxu0 0.0
  %4957 = vmatprep.subr.mxu0 0.0
  %4958 = vmatpush1.msra.mxu0 0.0
  %4959 = vmatprep.subr.mxu0 0.0
  %4960 = vmatpush1.msra.mxu0 0.0
  %4961 = vmatprep.subr.mxu0 0.0
  %4962 = vmatpush1.msra.mxu0 0.0
  %4963 = vmatprep.subr.mxu0 0.0
  %4964 = vmatpush1.msra.mxu0 0.0
  %4965 = vmatprep.subr.mxu0 0.0
  %4966 = vmatpush1.msra.mxu0 0.0
  %4967 = vmatprep.subr.mxu0 0.0
  %4968 = vmatpush1.msra.mxu0 0.0
  %4969 = vmatprep.subr.mxu0 0.0
  %4970 = vmatpush1.msra.mxu0 %v331
  %4971 = vmatprep.subr.mxu0 0.0
  %4972 = vmatpush2.msra.mxu0 0.0
  %4973 = vmatprep.subr.mxu0 0.0
  %4974 = vmatpush2.msra.mxu0 0.0
  %4975 = vmatprep.subr.mxu0 0.0
  %4976 = vmatpush2.msra.mxu0 0.0
  %4977 = vmatprep.subr.mxu0 0.0
  %4978 = vmatpush2.msra.mxu0 0.0
  %4979 = vmatprep.subr.mxu0 0.0
  %4980 = vmatpush2.msra.mxu0 0.0
  %4981 = vmatprep.subr.mxu0 0.0
  %4982 = vmatpush2.msra.mxu0 0.0
  %4983 = vmatprep.subr.mxu0 0.0
  %4984 = vmatpush2.msra.mxu0 0.0
  %4985 = vmatprep.subr.mxu0 0.0
  %4986 = vmatpush2.msra.mxu0 0.0
  %4987 = vmatprep.subr.mxu0 0.0
  %4988 = vmatpush2.msra.mxu0 0.0
  %4989 = vmatprep.subr.mxu0 0.0
  %4990 = vmatpush2.msra.mxu0 0.0
  %4991 = vmatprep.subr.mxu0 0.0
  %4992 = vmatpush2.msra.mxu0 0.0
  %4993 = vmatprep.subr.mxu0 0.0
  %4994 = vmatpush2.msra.mxu0 0.0
  %4995 = vmatprep.subr.mxu0 0.0
  %4996 = vmatpush2.msra.mxu0 0.0
  %4997 = vmatprep.subr.mxu0 0.0
  %4998 = vmatpush2.msra.mxu0 0.0
  %4999 = vmatprep.subr.mxu0 0.0
  %5000 = vmatpush2.msra.mxu0 0.0
  %5001 = vmatprep.subr.mxu0 0.0
  %5002 = vmatpush2.msra.mxu0 0.0
  %5003 = vmatprep.mubr.f32.mxu0 0.0
  %5004 = vmatmul.mubr.f32.gmra.mxu0 %v4937
  %v5005 = vpop.f32.mrf.mxu0
  %v5006 = vadd.f32 0.0, %v5005
  %v5007 = vpop.f32.mrf.mxu0
  %5008 = vdwg.mxu0
  %s5009 = scalar_lea.vmem %s5, 3
  %v5010 = vld [vmem:[%s5009] sm:$0x1]
  %v5011 = vlaneseq
  %v5012 = vshrl.u32 %v5011, 7
  %v5013 = vsub.s32 0, %v5012
  %v5014 = vrot.slane %v4933, %v5013
  %v5015 = vsub.f32 %v4691, %v5014
  %v5016 = vsub.f32 %v4692, %v5014
  %v5017 = vsub.f32 %v4693, %v5014
  %v5018 = vsub.f32 %v4694, %v5014
  %v5020 = vlaneseq
  %v5021 = vshrl.u32 %v5020, 7
  %v5022 = vsub.s32 0, %v5021
  %v5023 = vrot.slane %v5010, %v5022
  %v5025 = vmul.f32 %v5023, %v5015
  %v5026 = vmul.f32 %v5023, %v5016
  %v5027 = vmul.f32 %v5023, %v5017
  %v5028 = vmul.f32 %v5023, %v5018
  %v5029 = vlaneseq
  %v5030 = vshrl.u32 %v5029, 7
  %v5031 = vsub.s32 0, %v5030
  %v5032 = vrot.slane %v5006, %v5031
  %v5033 = vmul.f32 %v5025, %v5032
  %v5034 = vmul.f32 %v5026, %v5032
  %v5035 = vmul.f32 %v5027, %v5032
  %v5036 = vmul.f32 %v5028, %v5032
  %s5037 = scalar_lea.vmem %s6, 3
  %v5038 = vld [vmem:[%s5037] sm:$0x1]
  %v5040 = vlaneseq
  %v5041 = vshrl.u32 %v5040, 7
  %v5042 = vsub.s32 0, %v5041
  %v5043 = vrot.slane %v5038, %v5042
  %v5045 = vadd.f32 %v5033, %v5043
  %v5046 = vadd.f32 %v5034, %v5043
  %v5047 = vadd.f32 %v5035, %v5043
  %v5048 = vadd.f32 %v5036, %v5043
  %v5049 = vmul.f32 %v5045, 0.5
  %v5050 = vmul.f32 %v5046, 0.5
  %v5051 = vmul.f32 %v5047, 0.5
  %v5052 = vmul.f32 %v5048, 0.5
  %v5053 = vmul.f32 %v5045, 0.70710677
  %v5054 = vmul.f32 %v5046, 0.70710677
  %v5055 = vmul.f32 %v5047, 0.70710677
  %v5056 = vmul.f32 %v5048, 0.70710677
  %vm5057 = vcmp.lt.f32.partialorder %v5053, 0.0
  %vm5058 = vcmp.lt.f32.partialorder %v5054, 0.0
  %vm5059 = vcmp.lt.f32.partialorder %v5055, 0.0
  %vm5060 = vcmp.lt.f32.partialorder %v5056, 0.0
  %v5061 = vsel %vm5057, -1.0, 1.0
  %v5062 = vsel %vm5058, -1.0, 1.0
  %v5063 = vsel %vm5059, -1.0, 1.0
  %v5064 = vsel %vm5060, -1.0, 1.0
  %v5065 = vand.u32 2147483647, %v5053
  %v5066 = vand.u32 2147483647, %v5054
  %v5067 = vand.u32 2147483647, %v5055
  %v5068 = vand.u32 2147483647, %v5056
  %v5069 = vmul.f32 %v5065, 0.3275911
  %v5070 = vmul.f32 %v5066, 0.3275911
  %v5071 = vmul.f32 %v5067, 0.3275911
  %v5072 = vmul.f32 %v5068, 0.3275911
  %v5073 = vadd.f32 %v5069, 1.0
  %v5074 = vadd.f32 %v5070, 1.0
  %v5075 = vadd.f32 %v5071, 1.0
  %v5076 = vadd.f32 %v5072, 1.0
  %v5077 = vrcp.pop %v5073
  %v5078 = vmul.f32 1.0, %v5077
  %v5079 = vrcp.pop %v5074
  %v5080 = vmul.f32 1.0, %v5079
  %v5081 = vrcp.pop %v5075
  %v5082 = vmul.f32 1.0, %v5081
  %v5083 = vrcp.pop %v5076
  %v5084 = vmul.f32 1.0, %v5083
  %v5085 = vmul.f32 %v5078, 1.0614054
  %v5086 = vmul.f32 %v5080, 1.0614054
  %v5087 = vmul.f32 %v5082, 1.0614054
  %v5088 = vmul.f32 %v5084, 1.0614054
  %v5089 = vadd.f32 %v5085, -1.4531521
  %v5090 = vadd.f32 %v5086, -1.4531521
  %v5091 = vadd.f32 %v5087, -1.4531521
  %v5092 = vadd.f32 %v5088, -1.4531521
  %v5093 = vmul.f32 %v5089, %v5078
  %v5094 = vmul.f32 %v5090, %v5080
  %v5095 = vmul.f32 %v5091, %v5082
  %v5096 = vmul.f32 %v5092, %v5084
  %v5097 = vadd.f32 %v5093, 1.4214138
  %v5098 = vadd.f32 %v5094, 1.4214138
  %v5099 = vadd.f32 %v5095, 1.4214138
  %v5100 = vadd.f32 %v5096, 1.4214138
  %v5101 = vmul.f32 %v5097, %v5078
  %v5102 = vmul.f32 %v5098, %v5080
  %v5103 = vmul.f32 %v5099, %v5082
  %v5104 = vmul.f32 %v5100, %v5084
  %v5105 = vadd.f32 %v5101, -0.28449672
  %v5106 = vadd.f32 %v5102, -0.28449672
  %v5107 = vadd.f32 %v5103, -0.28449672
  %v5108 = vadd.f32 %v5104, -0.28449672
  %v5109 = vmul.f32 %v5105, %v5078
  %v5110 = vmul.f32 %v5106, %v5080
  %v5111 = vmul.f32 %v5107, %v5082
  %v5112 = vmul.f32 %v5108, %v5084
  %v5113 = vadd.f32 %v5109, 0.2548296
  %v5114 = vadd.f32 %v5110, 0.2548296
  %v5115 = vadd.f32 %v5111, 0.2548296
  %v5116 = vadd.f32 %v5112, 0.2548296
  %v5117 = vmul.f32 %v5113, %v5078
  %v5118 = vmul.f32 %v5114, %v5080
  %v5119 = vmul.f32 %v5115, %v5082
  %v5120 = vmul.f32 %v5116, %v5084
  %v5121 = vsub.f32 0.0, %v5065
  %v5122 = vsub.f32 0.0, %v5066
  %v5123 = vsub.f32 0.0, %v5067
  %v5124 = vsub.f32 0.0, %v5068
  %v5125 = vmul.f32 %v5121, %v5065
  %v5126 = vmul.f32 %v5122, %v5066
  %v5127 = vmul.f32 %v5123, %v5067
  %v5128 = vmul.f32 %v5124, %v5068
  %v5129 = vmul.f32 %v5125, 1.442695
  %v5130 = vpow.pop %v5129
  %v5131 = vmul.f32 %v5126, 1.442695
  %v5132 = vpow.pop %v5131
  %v5133 = vmul.f32 %v5127, 1.442695
  %v5134 = vpow.pop %v5133
  %v5135 = vmul.f32 %v5128, 1.442695
  %v5136 = vpow.pop %v5135
  %v5137 = vmul.f32 %v5117, %v5130
  %v5138 = vmul.f32 %v5118, %v5132
  %v5139 = vmul.f32 %v5119, %v5134
  %v5140 = vmul.f32 %v5120, %v5136
  %v5141 = vsub.f32 1.0, %v5137
  %v5142 = vsub.f32 1.0, %v5138
  %v5143 = vsub.f32 1.0, %v5139
  %v5144 = vsub.f32 1.0, %v5140
  %v5145 = vmul.f32 %v5061, %v5141
  %v5146 = vmul.f32 %v5062, %v5142
  %v5147 = vmul.f32 %v5063, %v5143
  %v5148 = vmul.f32 %v5064, %v5144
  %v5149 = vadd.f32 %v5145, 1.0
  %v5150 = vadd.f32 %v5146, 1.0
  %v5151 = vadd.f32 %v5147, 1.0
  %v5152 = vadd.f32 %v5148, 1.0
  %v5153 = vmul.f32 %v5049, %v5149
  %v5154 = vmul.f32 %v5050, %v5150
  %v5155 = vmul.f32 %v5051, %v5151
  %v5156 = vmul.f32 %v5052, %v5152
  %5157 = vst [vmem:[%s9] sm:$0xff] %v5153
  %5158 = vst [vmem:[%s9 + $0x8] sm:$0xff] %v5154
  %5159 = vst [vmem:[%s9 + $0x10] sm:$0xff] %v5155
  %5160 = vst [vmem:[%s9 + $0x18] sm:$0xff] %v5156
  // Predicated region
  $region38: #{unet_up_forward.1} parent=0 // pred_check
    _
  $region39: #{unet_up_forward.1} parent=0 // pred_check_branch
    %5162 = sbr.rel (0) target = $region41
  $region40: #{unet_up_forward.1} parent=0 // pred_region
    _
  $region41: #{unet_up_forward.1} parent=0 // pred_fallthru
    _
  // Predicated region
  $region42: #{unet_up_forward.1} parent=0 // pred_check
    _
  $region43: #{unet_up_forward.1} parent=0 // pred_check_branch
    %5164 = sbr.rel (0) target = $region45
  $region44: #{unet_up_forward.1} parent=0 // pred_region
    _
  $region45: #{unet_up_forward.1} parent=0 // pred_fallthru
    _

</llo_original>
